<compile_context>
chip_gen: v6e
topology: v6e:2x2x1
jax: 0.10.0
libtpu: 0.0.40
codegen_flags: <defaults>
</compile_context>

<pallas_src>
import functools
import math

import jax
import jax.numpy as jnp
from jax.experimental import pallas as pl
from jax.experimental.pallas import tpu as pltpu

D_MODEL = 32
N_HEADS = 4
D_K = D_MODEL // N_HEADS
D_FF = 64
N_LAYERS = 2
EPS = 1e-6


# ------------------------------ fused kernel --------------------------------

def _layer_norm(x, g, b):
    # annotated-transformer LayerNorm: unbiased std (D-1), eps added to std.
    mean = jnp.mean(x, axis=-1, keepdims=True)
    xc = x - mean
    std = jnp.sqrt(jnp.sum(xc * xc, axis=-1, keepdims=True) / (x.shape[-1] - 1))
    return g * xc / (std + EPS) + b


def _attention(q, k, v, mask):
    """q: (Tq, D), k/v: (Tk, D), mask: (Tq, Tk) float {0,1}. Heads = lane slices."""
    scale = 1.0 / math.sqrt(D_K)
    neg = jnp.float32(-1e9)
    outs = []
    for h in range(N_HEADS):
        s0 = h * D_K
        qh = q[:, s0:s0 + D_K]
        kh = k[:, s0:s0 + D_K]
        vh = v[:, s0:s0 + D_K]
        s = jax.lax.dot_general(qh, kh, (((1,), (1,)), ((), ())),
                                preferred_element_type=jnp.float32) * scale
        s = jnp.where(mask == 0.0, neg, s)
        s = s - jnp.max(s, axis=-1, keepdims=True)
        p = jnp.exp(s)
        p = p / jnp.sum(p, axis=-1, keepdims=True)
        outs.append(jnp.dot(p, vh, preferred_element_type=jnp.float32))
    return jnp.concatenate(outs, axis=-1)   # (Tq, D)


def _decoder_kernel(x_ref, mem_ref, tgtm_ref, srcm_ref,
                    w_sqkv_ref, b_sqkv_ref, w_so_ref, b_so_ref,
                    w_xq_ref, b_xq_ref, w_xkv_ref, b_xkv_ref, w_xo_ref, b_xo_ref,
                    w_f1_ref, b_f1_ref, w_f2_ref, b_f2_ref,
                    ln_g_ref, ln_b_ref, fn_g_ref, fn_b_ref,
                    o_ref):
    x = x_ref[0].astype(jnp.float32)          # (Tq, D)
    mem = mem_ref[0].astype(jnp.float32)      # (Tk, D)
    tgt_mask = tgtm_ref[0]                    # (Tq, Tq)
    src_mask = srcm_ref[0]                    # (Tq, Tk)

    for l in range(N_LAYERS):                 # unrolled: N_LAYERS is tiny/static
        ln_g = ln_g_ref[l]                    # (3, D)
        ln_b = ln_b_ref[l]

        # --- sublayer 0: masked self-attention (pre-norm + residual) ---
        xn = _layer_norm(x, ln_g[0:1, :], ln_b[0:1, :])
        qkv = (jnp.dot(xn, w_sqkv_ref[l], preferred_element_type=jnp.float32)
               + b_sqkv_ref[l])                                   # (Tq, 3D)
        a = _attention(qkv[:, :D_MODEL],
                       qkv[:, D_MODEL:2 * D_MODEL],
                       qkv[:, 2 * D_MODEL:],
                       tgt_mask)
        x = x + jnp.dot(a, w_so_ref[l], preferred_element_type=jnp.float32) + b_so_ref[l]

        # --- sublayer 1: cross-attention over encoder memory ---
        xn = _layer_norm(x, ln_g[1:2, :], ln_b[1:2, :])
        q = jnp.dot(xn, w_xq_ref[l], preferred_element_type=jnp.float32) + b_xq_ref[l]
        kv = jnp.dot(mem, w_xkv_ref[l], preferred_element_type=jnp.float32) + b_xkv_ref[l]
        a = _attention(q, kv[:, :D_MODEL], kv[:, D_MODEL:], src_mask)
        x = x + jnp.dot(a, w_xo_ref[l], preferred_element_type=jnp.float32) + b_xo_ref[l]

        # --- sublayer 2: position-wise FFN ---
        xn = _layer_norm(x, ln_g[2:3, :], ln_b[2:3, :])
        h = jnp.maximum(
            jnp.dot(xn, w_f1_ref[l], preferred_element_type=jnp.float32) + b_f1_ref[l],
            0.0)
        x = x + jnp.dot(h, w_f2_ref[l], preferred_element_type=jnp.float32) + b_f2_ref[l]

    y = _layer_norm(x, fn_g_ref[...], fn_b_ref[...])
    o_ref[0] = y.astype(o_ref.dtype)


# ------------------------------ wrapper --------------------------------------

_WEIGHT_NAMES = ["w_sqkv", "b_sqkv", "w_so", "b_so",
                 "w_xq", "b_xq", "w_xkv", "b_xkv", "w_xo", "b_xo",
                 "w_f1", "b_f1", "w_f2", "b_f2",
                 "ln_g", "ln_b", "fn_g", "fn_b"]


def pack_decoder_params(params):
    """Stack per-layer params into a handful of (L, ...) arrays; fuse QKV / KV."""
    def stack(fn):
        return jnp.stack([fn(lp) for lp in params["layers"]], axis=0)

    return {
        "w_sqkv": stack(lambda p: jnp.concatenate(
            [p["self_attn"]["wq"], p["self_attn"]["wk"], p["self_attn"]["wv"]], axis=1)),
        "b_sqkv": stack(lambda p: jnp.concatenate(
            [p["self_attn"]["bq"], p["self_attn"]["bk"], p["self_attn"]["bv"]])[None, :]),
        "w_so": stack(lambda p: p["self_attn"]["wo"]),
        "b_so": stack(lambda p: p["self_attn"]["bo"][None, :]),
        "w_xq": stack(lambda p: p["src_attn"]["wq"]),
        "b_xq": stack(lambda p: p["src_attn"]["bq"][None, :]),
        "w_xkv": stack(lambda p: jnp.concatenate(
            [p["src_attn"]["wk"], p["src_attn"]["wv"]], axis=1)),
        "b_xkv": stack(lambda p: jnp.concatenate(
            [p["src_attn"]["bk"], p["src_attn"]["bv"]])[None, :]),
        "w_xo": stack(lambda p: p["src_attn"]["wo"]),
        "b_xo": stack(lambda p: p["src_attn"]["bo"][None, :]),
        "w_f1": stack(lambda p: p["ffn"]["w1"]),
        "b_f1": stack(lambda p: p["ffn"]["b1"][None, :]),
        "w_f2": stack(lambda p: p["ffn"]["w2"]),
        "b_f2": stack(lambda p: p["ffn"]["b2"][None, :]),
        "ln_g": stack(lambda p: jnp.stack([p["ln0_g"], p["ln1_g"], p["ln2_g"]])),
        "ln_b": stack(lambda p: jnp.stack([p["ln0_b"], p["ln1_b"], p["ln2_b"]])),
        "fn_g": params["norm_g"][None, :],
        "fn_b": params["norm_b"][None, :],
    }


def decoder_forward(packed, x, hidden_states, src_mask, tgt_mask):
    B, Tq, D = x.shape
    Tk = hidden_states.shape[1]

    tgt_m = jnp.broadcast_to(tgt_mask, (B, Tq, Tq)).astype(jnp.float32)
    src_m = jnp.broadcast_to(src_mask, (B, Tq, Tk)).astype(jnp.float32)

    weights = [packed[n] for n in _WEIGHT_NAMES]

    def full_spec(arr):
        shape = arr.shape
        nd = len(shape)
        return pl.BlockSpec(shape, lambda b, _nd=nd: (0,) * _nd)

    in_specs = [
        pl.BlockSpec((1, Tq, D), lambda b: (b, 0, 0)),     # x
        pl.BlockSpec((1, Tk, D), lambda b: (b, 0, 0)),     # memory
        pl.BlockSpec((1, Tq, Tq), lambda b: (b, 0, 0)),    # tgt mask
        pl.BlockSpec((1, Tq, Tk), lambda b: (b, 0, 0)),    # src mask
    ] + [full_spec(w) for w in weights]                    # all weights: VMEM-resident

    return pl.pallas_call(
        _decoder_kernel,
        out_shape=jax.ShapeDtypeStruct((B, Tq, D), x.dtype),
        grid=(B,),
        in_specs=in_specs,
        out_specs=pl.BlockSpec((1, Tq, D), lambda b: (b, 0, 0)),
        compiler_params=pltpu.CompilerParams(
            dimension_semantics=("parallel",)),            # v7x: one batch per TC
    )(x, hidden_states, tgt_m, src_m, *weights)


# ----------------------------- parameter init --------------------------------

def _init_linear(key, d_in, d_out):
    k1, k2 = jax.random.split(key)
    bound = 1.0 / math.sqrt(d_in)
    w = jax.random.uniform(k1, (d_in, d_out), jnp.float32, -bound, bound)
    b = jax.random.uniform(k2, (d_out,), jnp.float32, -bound, bound)
    return w, b


def _init_attn(key):
    ks = jax.random.split(key, 4)
    p = {}
    for name, k in zip(("q", "k", "v", "o"), ks):
        w, b = _init_linear(k, D_MODEL, D_MODEL)
        p["w" + name], p["b" + name] = w, b
    return p


def _init_layer(key):
    k1, k2, k3, k4 = jax.random.split(key, 4)
    w1, b1 = _init_linear(k3, D_MODEL, D_FF)
    w2, b2 = _init_linear(k4, D_FF, D_MODEL)
    return {
        "self_attn": _init_attn(k1),
        "src_attn": _init_attn(k2),
        "ffn": {"w1": w1, "b1": b1, "w2": w2, "b2": b2},
        "ln0_g": jnp.ones(D_MODEL), "ln0_b": jnp.zeros(D_MODEL),
        "ln1_g": jnp.ones(D_MODEL), "ln1_b": jnp.zeros(D_MODEL),
        "ln2_g": jnp.ones(D_MODEL), "ln2_b": jnp.zeros(D_MODEL),
    }


def init_params(key):
    keys = jax.random.split(key, N_LAYERS)
    return {
        "layers": [_init_layer(k) for k in keys],
        "norm_g": jnp.ones(D_MODEL),
        "norm_b": jnp.zeros(D_MODEL),
    }


# --------------------------- pure-JAX reference -------------------------------

def _reference_forward(params, x, memory, src_mask, tgt_mask):
    HI = jax.lax.Precision.HIGHEST

    def ln(v, g, b):
        mean = jnp.mean(v, -1, keepdims=True)
        vc = v - mean
        std = jnp.sqrt(jnp.sum(vc * vc, -1, keepdims=True) / (v.shape[-1] - 1))
        return g * vc / (std + EPS) + b

    def mha(p, q_in, k_in, v_in, mask):
        B, Tq, D = q_in.shape
        Tk = k_in.shape[1]

        def proj(t, w, b):
            return jnp.einsum("btd,de->bte", t, w, precision=HI) + b

        q = proj(q_in, p["wq"], p["bq"]).reshape(B, Tq, N_HEADS, D_K).transpose(0, 2, 1, 3)
        k = proj(k_in, p["wk"], p["bk"]).reshape(B, Tk, N_HEADS, D_K).transpose(0, 2, 1, 3)
        v = proj(v_in, p["wv"], p["bv"]).reshape(B, Tk, N_HEADS, D_K).transpose(0, 2, 1, 3)
        s = jnp.einsum("bhqd,bhkd->bhqk", q, k, precision=HI) / math.sqrt(D_K)
        m = jnp.broadcast_to(mask, (B, Tq, Tk))[:, None, :, :]
        s = jnp.where(m == 0, -1e9, s)
        pa = jax.nn.softmax(s, axis=-1)
        o = jnp.einsum("bhqk,bhkd->bhqd", pa, v, precision=HI)
        o = o.transpose(0, 2, 1, 3).reshape(B, Tq, D)
        return jnp.einsum("btd,de->bte", o, p["wo"], precision=HI) + p["bo"]

    for lp in params["layers"]:
        xn = ln(x, lp["ln0_g"], lp["ln0_b"])
        x = x + mha(lp["self_attn"], xn, xn, xn, tgt_mask)
        xn = ln(x, lp["ln1_g"], lp["ln1_b"])
        x = x + mha(lp["src_attn"], xn, memory, memory, src_mask)
        xn = ln(x, lp["ln2_g"], lp["ln2_b"])
        h = jnp.maximum(jnp.einsum("btd,df->btf", xn, lp["ffn"]["w1"], precision=HI)
                        + lp["ffn"]["b1"], 0.0)
        x = x + jnp.einsum("btf,fd->btd", h, lp["ffn"]["w2"], precision=HI) + lp["ffn"]["b2"]
    return ln(x, params["norm_g"], params["norm_b"])


# ---------------------------------- main --------------------------------------

if __name__ == "__main__":
    B, T_TGT, T_SRC = 2, 8, 16
    root = jax.random.PRNGKey(0)
    kx, kh, kp = jax.random.split(root, 3)

    x = jax.random.normal(kx, (B, T_TGT, D_MODEL), jnp.float32)
    hidden_states = jax.random.normal(kh, (B, T_SRC, D_MODEL), jnp.float32)
    src_mask = jnp.ones((B, 1, T_SRC), jnp.float32)                       # all-ones source mask
    tgt_mask = jnp.broadcast_to(jnp.tril(jnp.ones((T_TGT, T_TGT), jnp.float32)),
                                (B, T_TGT, T_TGT))                        # causal target mask

    params = init_params(kp)
    packed = pack_decoder_params(params)

    out = decoder_forward(packed, x, hidden_states, src_mask, tgt_mask)
    out = jax.block_until_ready(out)
    assert out.shape == (B, T_TGT, D_MODEL) and bool(jnp.all(jnp.isfinite(out)))

    ref = _reference_forward(params, x, hidden_states, src_mask, tgt_mask)
    max_err = float(jnp.max(jnp.abs(out - ref)))
    assert max_err < 2e-3, f"mismatch vs reference: {max_err}"

    print("KERNEL_OK")
</pallas_src>

<mosaic_0001>
module attributes {stable_mosaic.version = 11 : i64} {
  func.func @_decoder_kernel(%arg0: i32, %arg1: memref<1x8x32xf32, #tpu.memory_space<vmem>>, %arg2: memref<1x16x32xf32, #tpu.memory_space<vmem>>, %arg3: memref<1x8x8xf32, #tpu.memory_space<vmem>>, %arg4: memref<1x8x16xf32, #tpu.memory_space<vmem>>, %arg5: memref<2x32x96xf32, #tpu.memory_space<vmem>>, %arg6: memref<2x1x96xf32, #tpu.memory_space<vmem>>, %arg7: memref<2x32x32xf32, #tpu.memory_space<vmem>>, %arg8: memref<2x1x32xf32, #tpu.memory_space<vmem>>, %arg9: memref<2x32x32xf32, #tpu.memory_space<vmem>>, %arg10: memref<2x1x32xf32, #tpu.memory_space<vmem>>, %arg11: memref<2x32x64xf32, #tpu.memory_space<vmem>>, %arg12: memref<2x1x64xf32, #tpu.memory_space<vmem>>, %arg13: memref<2x32x32xf32, #tpu.memory_space<vmem>>, %arg14: memref<2x1x32xf32, #tpu.memory_space<vmem>>, %arg15: memref<2x32x64xf32, #tpu.memory_space<vmem>>, %arg16: memref<2x1x64xf32, #tpu.memory_space<vmem>>, %arg17: memref<2x64x32xf32, #tpu.memory_space<vmem>>, %arg18: memref<2x1x32xf32, #tpu.memory_space<vmem>>, %arg19: memref<2x3x32xf32, #tpu.memory_space<vmem>>, %arg20: memref<2x3x32xf32, #tpu.memory_space<vmem>>, %arg21: memref<1x32xf32, #tpu.memory_space<vmem>>, %arg22: memref<1x32xf32, #tpu.memory_space<vmem>>, %arg23: memref<1x8x32xf32, #tpu.memory_space<vmem>>) attributes {dimension_semantics = [#tpu.dimension_semantics<parallel>], iteration_bounds = array<i64: 2>, scalar_prefetch = 0 : i64, scratch_operands = 0 : i64, tpu.core_type = #tpu.core_type<tc>, window_params = [{transform_indices = @transform_0, window_bounds = array<i64: 1, 8, 32>}, {transform_indices = @transform_1, window_bounds = array<i64: 1, 16, 32>}, {transform_indices = @transform_2, window_bounds = array<i64: 1, 8, 8>}, {transform_indices = @transform_3, window_bounds = array<i64: 1, 8, 16>}, {pipeline_mode = #tpu.pipeline_mode<synchronous>, transform_indices = @transform_4, window_bounds = array<i64: 2, 32, 96>}, {pipeline_mode = #tpu.pipeline_mode<synchronous>, transform_indices = @transform_5, window_bounds = array<i64: 2, 1, 96>}, {pipeline_mode = #tpu.pipeline_mode<synchronous>, transform_indices = @transform_6, window_bounds = array<i64: 2, 32, 32>}, {pipeline_mode = #tpu.pipeline_mode<synchronous>, transform_indices = @transform_7, window_bounds = array<i64: 2, 1, 32>}, {pipeline_mode = #tpu.pipeline_mode<synchronous>, transform_indices = @transform_8, window_bounds = array<i64: 2, 32, 32>}, {pipeline_mode = #tpu.pipeline_mode<synchronous>, transform_indices = @transform_9, window_bounds = array<i64: 2, 1, 32>}, {pipeline_mode = #tpu.pipeline_mode<synchronous>, transform_indices = @transform_10, window_bounds = array<i64: 2, 32, 64>}, {pipeline_mode = #tpu.pipeline_mode<synchronous>, transform_indices = @transform_11, window_bounds = array<i64: 2, 1, 64>}, {pipeline_mode = #tpu.pipeline_mode<synchronous>, transform_indices = @transform_12, window_bounds = array<i64: 2, 32, 32>}, {pipeline_mode = #tpu.pipeline_mode<synchronous>, transform_indices = @transform_13, window_bounds = array<i64: 2, 1, 32>}, {pipeline_mode = #tpu.pipeline_mode<synchronous>, transform_indices = @transform_14, window_bounds = array<i64: 2, 32, 64>}, {pipeline_mode = #tpu.pipeline_mode<synchronous>, transform_indices = @transform_15, window_bounds = array<i64: 2, 1, 64>}, {pipeline_mode = #tpu.pipeline_mode<synchronous>, transform_indices = @transform_16, window_bounds = array<i64: 2, 64, 32>}, {pipeline_mode = #tpu.pipeline_mode<synchronous>, transform_indices = @transform_17, window_bounds = array<i64: 2, 1, 32>}, {pipeline_mode = #tpu.pipeline_mode<synchronous>, transform_indices = @transform_18, window_bounds = array<i64: 2, 3, 32>}, {pipeline_mode = #tpu.pipeline_mode<synchronous>, transform_indices = @transform_19, window_bounds = array<i64: 2, 3, 32>}, {pipeline_mode = #tpu.pipeline_mode<synchronous>, transform_indices = @transform_20, window_bounds = array<i64: 1, 32>}, {pipeline_mode = #tpu.pipeline_mode<synchronous>, transform_indices = @transform_21, window_bounds = array<i64: 1, 32>}, {transform_indices = @transform_22, window_bounds = array<i64: 1, 8, 32>}]} {
    %c0 = arith.constant 0 : index
    %c0_0 = arith.constant 0 : index
    %c0_1 = arith.constant 0 : index
    %0 = vector.load %arg1[%c0, %c0_0, %c0_1] : memref<1x8x32xf32, #tpu.memory_space<vmem>>, vector<1x8x32xf32>
    %1 = vector.shape_cast %0 : vector<1x8x32xf32> to vector<8x32xf32>
    %c0_2 = arith.constant 0 : index
    %c0_3 = arith.constant 0 : index
    %c0_4 = arith.constant 0 : index
    %2 = vector.load %arg2[%c0_2, %c0_3, %c0_4] : memref<1x16x32xf32, #tpu.memory_space<vmem>>, vector<1x16x32xf32>
    %3 = vector.shape_cast %2 : vector<1x16x32xf32> to vector<16x32xf32>
    %c0_5 = arith.constant 0 : index
    %c0_6 = arith.constant 0 : index
    %c0_7 = arith.constant 0 : index
    %4 = vector.load %arg3[%c0_5, %c0_6, %c0_7] : memref<1x8x8xf32, #tpu.memory_space<vmem>>, vector<1x8x8xf32>
    %5 = vector.shape_cast %4 : vector<1x8x8xf32> to vector<8x8xf32>
    %c0_8 = arith.constant 0 : index
    %c0_9 = arith.constant 0 : index
    %c0_10 = arith.constant 0 : index
    %6 = vector.load %arg4[%c0_8, %c0_9, %c0_10] : memref<1x8x16xf32, #tpu.memory_space<vmem>>, vector<1x8x16xf32>
    %7 = vector.shape_cast %6 : vector<1x8x16xf32> to vector<8x16xf32>
    %c0_11 = arith.constant 0 : index
    %c0_12 = arith.constant 0 : index
    %c0_13 = arith.constant 0 : index
    %8 = vector.load %arg19[%c0_11, %c0_12, %c0_13] : memref<2x3x32xf32, #tpu.memory_space<vmem>>, vector<1x3x32xf32>
    %9 = vector.shape_cast %8 : vector<1x3x32xf32> to vector<3x32xf32>
    %c0_14 = arith.constant 0 : index
    %c0_15 = arith.constant 0 : index
    %c0_16 = arith.constant 0 : index
    %10 = vector.load %arg20[%c0_14, %c0_15, %c0_16] : memref<2x3x32xf32, #tpu.memory_space<vmem>>, vector<1x3x32xf32>
    %11 = vector.shape_cast %10 : vector<1x3x32xf32> to vector<3x32xf32>
    %12 = vector.extract_strided_slice %9 {offsets = [0, 0], sizes = [1, 32], strides = [1, 1]} : vector<3x32xf32> to vector<1x32xf32>
    %13 = vector.extract_strided_slice %11 {offsets = [0, 0], sizes = [1, 32], strides = [1, 1]} : vector<3x32xf32> to vector<1x32xf32>
    %cst = arith.constant dense<0.000000e+00> : vector<8xf32>
    %14 = vector.multi_reduction <add>, %1, %cst [1] : vector<8x32xf32> to vector<8xf32>
    %15 = vector.shape_cast %14 : vector<8xf32> to vector<8x1xf32>
    %cst_17 = arith.constant 3.200000e+01 : f32
    %16 = vector.broadcast %cst_17 : f32 to vector<8x1xf32>
    %17 = arith.divf %15, %16 : vector<8x1xf32>
    %18 = vector.broadcast %17 : vector<8x1xf32> to vector<8x32xf32>
    %19 = arith.subf %1, %18 : vector<8x32xf32>
    %20 = arith.mulf %19, %19 : vector<8x32xf32>
    %cst_18 = arith.constant dense<0.000000e+00> : vector<8xf32>
    %21 = vector.multi_reduction <add>, %20, %cst_18 [1] : vector<8x32xf32> to vector<8xf32>
    %22 = vector.shape_cast %21 : vector<8xf32> to vector<8x1xf32>
    %cst_19 = arith.constant 3.100000e+01 : f32
    %23 = vector.broadcast %cst_19 : f32 to vector<8x1xf32>
    %24 = arith.divf %22, %23 : vector<8x1xf32>
    %25 = math.sqrt %24 : vector<8x1xf32>
    %26 = vector.broadcast %12 : vector<1x32xf32> to vector<8x32xf32>
    %27 = arith.mulf %26, %19 : vector<8x32xf32>
    %cst_20 = arith.constant 9.99999997E-7 : f32
    %28 = vector.broadcast %cst_20 : f32 to vector<8x1xf32>
    %29 = arith.addf %25, %28 : vector<8x1xf32>
    %30 = vector.broadcast %29 : vector<8x1xf32> to vector<8x32xf32>
    %31 = arith.divf %27, %30 : vector<8x32xf32>
    %32 = vector.broadcast %13 : vector<1x32xf32> to vector<8x32xf32>
    %33 = arith.addf %31, %32 : vector<8x32xf32>
    %c0_21 = arith.constant 0 : index
    %c0_22 = arith.constant 0 : index
    %c0_23 = arith.constant 0 : index
    %34 = vector.load %arg5[%c0_21, %c0_22, %c0_23] : memref<2x32x96xf32, #tpu.memory_space<vmem>>, vector<1x32x96xf32>
    %35 = vector.shape_cast %34 : vector<1x32x96xf32> to vector<32x96xf32>
    %cst_24 = arith.constant dense<0.000000e+00> : vector<8x96xf32>
    %36 = tpu.matmul %33, %35, %cst_24 {dimension_numbers = #tpu.dot_dimension_numbers<[1], [0], [0], [1], [0, 0, 1, 1], [], []>} : vector<8x32xf32>, vector<32x96xf32>, vector<8x96xf32> -> vector<8x96xf32>
    %c0_25 = arith.constant 0 : index
    %c0_26 = arith.constant 0 : index
    %c0_27 = arith.constant 0 : index
    %37 = vector.load %arg6[%c0_25, %c0_26, %c0_27] : memref<2x1x96xf32, #tpu.memory_space<vmem>>, vector<1x1x96xf32>
    %38 = vector.shape_cast %37 : vector<1x1x96xf32> to vector<1x96xf32>
    %39 = vector.broadcast %38 : vector<1x96xf32> to vector<8x96xf32>
    %40 = arith.addf %36, %39 : vector<8x96xf32>
    %41 = vector.extract_strided_slice %40 {offsets = [0, 0], sizes = [8, 32], strides = [1, 1]} : vector<8x96xf32> to vector<8x32xf32>
    %42 = vector.extract_strided_slice %40 {offsets = [0, 32], sizes = [8, 32], strides = [1, 1]} : vector<8x96xf32> to vector<8x32xf32>
    %43 = vector.extract_strided_slice %40 {offsets = [0, 64], sizes = [8, 32], strides = [1, 1]} : vector<8x96xf32> to vector<8x32xf32>
    %44 = vector.extract_strided_slice %41 {offsets = [0, 0], sizes = [8, 8], strides = [1, 1]} : vector<8x32xf32> to vector<8x8xf32>
    %45 = vector.extract_strided_slice %42 {offsets = [0, 0], sizes = [8, 8], strides = [1, 1]} : vector<8x32xf32> to vector<8x8xf32>
    %46 = vector.extract_strided_slice %43 {offsets = [0, 0], sizes = [8, 8], strides = [1, 1]} : vector<8x32xf32> to vector<8x8xf32>
    %cst_28 = arith.constant dense<0.000000e+00> : vector<8x8xf32>
    %47 = tpu.matmul %44, %45, %cst_28 {dimension_numbers = #tpu.dot_dimension_numbers<[1], [1], [0], [0], [0, 0, 1, 0], [], []>} : vector<8x8xf32>, vector<8x8xf32>, vector<8x8xf32> -> vector<8x8xf32>
    %cst_29 = arith.constant 0.353553385 : f32
    %48 = vector.broadcast %cst_29 : f32 to vector<8x8xf32>
    %49 = arith.mulf %47, %48 : vector<8x8xf32>
    %cst_30 = arith.constant 0.000000e+00 : f32
    %50 = vector.broadcast %cst_30 : f32 to vector<8x8xf32>
    %51 = arith.cmpf oeq, %5, %50 : vector<8x8xf32>
    %cst_31 = arith.constant -1.000000e+09 : f32
    %52 = vector.broadcast %cst_31 : f32 to vector<8x8xf32>
    %53 = arith.select %51, %52, %49 : vector<8x8xi1>, vector<8x8xf32>
    %cst_32 = arith.constant dense<0xFF800000> : vector<8xf32>
    %54 = vector.multi_reduction <maximumf>, %53, %cst_32 [1] : vector<8x8xf32> to vector<8xf32>
    %55 = vector.shape_cast %54 : vector<8xf32> to vector<8x1xf32>
    %56 = vector.broadcast %55 : vector<8x1xf32> to vector<8x8xf32>
    %57 = arith.subf %53, %56 : vector<8x8xf32>
    %58 = math.exp %57 : vector<8x8xf32>
    %cst_33 = arith.constant dense<0.000000e+00> : vector<8xf32>
    %59 = vector.multi_reduction <add>, %58, %cst_33 [1] : vector<8x8xf32> to vector<8xf32>
    %60 = vector.shape_cast %59 : vector<8xf32> to vector<8x1xf32>
    %61 = vector.broadcast %60 : vector<8x1xf32> to vector<8x8xf32>
    %62 = arith.divf %58, %61 : vector<8x8xf32>
    %cst_34 = arith.constant dense<0.000000e+00> : vector<8x8xf32>
    %63 = tpu.matmul %62, %46, %cst_34 {dimension_numbers = #tpu.dot_dimension_numbers<[1], [0], [0], [1], [0, 0, 1, 1], [], []>} : vector<8x8xf32>, vector<8x8xf32>, vector<8x8xf32> -> vector<8x8xf32>
    %64 = vector.extract_strided_slice %41 {offsets = [0, 8], sizes = [8, 8], strides = [1, 1]} : vector<8x32xf32> to vector<8x8xf32>
    %65 = vector.extract_strided_slice %42 {offsets = [0, 8], sizes = [8, 8], strides = [1, 1]} : vector<8x32xf32> to vector<8x8xf32>
    %66 = vector.extract_strided_slice %43 {offsets = [0, 8], sizes = [8, 8], strides = [1, 1]} : vector<8x32xf32> to vector<8x8xf32>
    %cst_35 = arith.constant dense<0.000000e+00> : vector<8x8xf32>
    %67 = tpu.matmul %64, %65, %cst_35 {dimension_numbers = #tpu.dot_dimension_numbers<[1], [1], [0], [0], [0, 0, 1, 0], [], []>} : vector<8x8xf32>, vector<8x8xf32>, vector<8x8xf32> -> vector<8x8xf32>
    %cst_36 = arith.constant 0.353553385 : f32
    %68 = vector.broadcast %cst_36 : f32 to vector<8x8xf32>
    %69 = arith.mulf %67, %68 : vector<8x8xf32>
    %cst_37 = arith.constant 0.000000e+00 : f32
    %70 = vector.broadcast %cst_37 : f32 to vector<8x8xf32>
    %71 = arith.cmpf oeq, %5, %70 : vector<8x8xf32>
    %cst_38 = arith.constant -1.000000e+09 : f32
    %72 = vector.broadcast %cst_38 : f32 to vector<8x8xf32>
    %73 = arith.select %71, %72, %69 : vector<8x8xi1>, vector<8x8xf32>
    %cst_39 = arith.constant dense<0xFF800000> : vector<8xf32>
    %74 = vector.multi_reduction <maximumf>, %73, %cst_39 [1] : vector<8x8xf32> to vector<8xf32>
    %75 = vector.shape_cast %74 : vector<8xf32> to vector<8x1xf32>
    %76 = vector.broadcast %75 : vector<8x1xf32> to vector<8x8xf32>
    %77 = arith.subf %73, %76 : vector<8x8xf32>
    %78 = math.exp %77 : vector<8x8xf32>
    %cst_40 = arith.constant dense<0.000000e+00> : vector<8xf32>
    %79 = vector.multi_reduction <add>, %78, %cst_40 [1] : vector<8x8xf32> to vector<8xf32>
    %80 = vector.shape_cast %79 : vector<8xf32> to vector<8x1xf32>
    %81 = vector.broadcast %80 : vector<8x1xf32> to vector<8x8xf32>
    %82 = arith.divf %78, %81 : vector<8x8xf32>
    %cst_41 = arith.constant dense<0.000000e+00> : vector<8x8xf32>
    %83 = tpu.matmul %82, %66, %cst_41 {dimension_numbers = #tpu.dot_dimension_numbers<[1], [0], [0], [1], [0, 0, 1, 1], [], []>} : vector<8x8xf32>, vector<8x8xf32>, vector<8x8xf32> -> vector<8x8xf32>
    %84 = vector.extract_strided_slice %41 {offsets = [0, 16], sizes = [8, 8], strides = [1, 1]} : vector<8x32xf32> to vector<8x8xf32>
    %85 = vector.extract_strided_slice %42 {offsets = [0, 16], sizes = [8, 8], strides = [1, 1]} : vector<8x32xf32> to vector<8x8xf32>
    %86 = vector.extract_strided_slice %43 {offsets = [0, 16], sizes = [8, 8], strides = [1, 1]} : vector<8x32xf32> to vector<8x8xf32>
    %cst_42 = arith.constant dense<0.000000e+00> : vector<8x8xf32>
    %87 = tpu.matmul %84, %85, %cst_42 {dimension_numbers = #tpu.dot_dimension_numbers<[1], [1], [0], [0], [0, 0, 1, 0], [], []>} : vector<8x8xf32>, vector<8x8xf32>, vector<8x8xf32> -> vector<8x8xf32>
    %cst_43 = arith.constant 0.353553385 : f32
    %88 = vector.broadcast %cst_43 : f32 to vector<8x8xf32>
    %89 = arith.mulf %87, %88 : vector<8x8xf32>
    %cst_44 = arith.constant 0.000000e+00 : f32
    %90 = vector.broadcast %cst_44 : f32 to vector<8x8xf32>
    %91 = arith.cmpf oeq, %5, %90 : vector<8x8xf32>
    %cst_45 = arith.constant -1.000000e+09 : f32
    %92 = vector.broadcast %cst_45 : f32 to vector<8x8xf32>
    %93 = arith.select %91, %92, %89 : vector<8x8xi1>, vector<8x8xf32>
    %cst_46 = arith.constant dense<0xFF800000> : vector<8xf32>
    %94 = vector.multi_reduction <maximumf>, %93, %cst_46 [1] : vector<8x8xf32> to vector<8xf32>
    %95 = vector.shape_cast %94 : vector<8xf32> to vector<8x1xf32>
    %96 = vector.broadcast %95 : vector<8x1xf32> to vector<8x8xf32>
    %97 = arith.subf %93, %96 : vector<8x8xf32>
    %98 = math.exp %97 : vector<8x8xf32>
    %cst_47 = arith.constant dense<0.000000e+00> : vector<8xf32>
    %99 = vector.multi_reduction <add>, %98, %cst_47 [1] : vector<8x8xf32> to vector<8xf32>
    %100 = vector.shape_cast %99 : vector<8xf32> to vector<8x1xf32>
    %101 = vector.broadcast %100 : vector<8x1xf32> to vector<8x8xf32>
    %102 = arith.divf %98, %101 : vector<8x8xf32>
    %cst_48 = arith.constant dense<0.000000e+00> : vector<8x8xf32>
    %103 = tpu.matmul %102, %86, %cst_48 {dimension_numbers = #tpu.dot_dimension_numbers<[1], [0], [0], [1], [0, 0, 1, 1], [], []>} : vector<8x8xf32>, vector<8x8xf32>, vector<8x8xf32> -> vector<8x8xf32>
    %104 = vector.extract_strided_slice %41 {offsets = [0, 24], sizes = [8, 8], strides = [1, 1]} : vector<8x32xf32> to vector<8x8xf32>
    %105 = vector.extract_strided_slice %42 {offsets = [0, 24], sizes = [8, 8], strides = [1, 1]} : vector<8x32xf32> to vector<8x8xf32>
    %106 = vector.extract_strided_slice %43 {offsets = [0, 24], sizes = [8, 8], strides = [1, 1]} : vector<8x32xf32> to vector<8x8xf32>
    %cst_49 = arith.constant dense<0.000000e+00> : vector<8x8xf32>
    %107 = tpu.matmul %104, %105, %cst_49 {dimension_numbers = #tpu.dot_dimension_numbers<[1], [1], [0], [0], [0, 0, 1, 0], [], []>} : vector<8x8xf32>, vector<8x8xf32>, vector<8x8xf32> -> vector<8x8xf32>
    %cst_50 = arith.constant 0.353553385 : f32
    %108 = vector.broadcast %cst_50 : f32 to vector<8x8xf32>
    %109 = arith.mulf %107, %108 : vector<8x8xf32>
    %cst_51 = arith.constant 0.000000e+00 : f32
    %110 = vector.broadcast %cst_51 : f32 to vector<8x8xf32>
    %111 = arith.cmpf oeq, %5, %110 : vector<8x8xf32>
    %cst_52 = arith.constant -1.000000e+09 : f32
    %112 = vector.broadcast %cst_52 : f32 to vector<8x8xf32>
    %113 = arith.select %111, %112, %109 : vector<8x8xi1>, vector<8x8xf32>
    %cst_53 = arith.constant dense<0xFF800000> : vector<8xf32>
    %114 = vector.multi_reduction <maximumf>, %113, %cst_53 [1] : vector<8x8xf32> to vector<8xf32>
    %115 = vector.shape_cast %114 : vector<8xf32> to vector<8x1xf32>
    %116 = vector.broadcast %115 : vector<8x1xf32> to vector<8x8xf32>
    %117 = arith.subf %113, %116 : vector<8x8xf32>
    %118 = math.exp %117 : vector<8x8xf32>
    %cst_54 = arith.constant dense<0.000000e+00> : vector<8xf32>
    %119 = vector.multi_reduction <add>, %118, %cst_54 [1] : vector<8x8xf32> to vector<8xf32>
    %120 = vector.shape_cast %119 : vector<8xf32> to vector<8x1xf32>
    %121 = vector.broadcast %120 : vector<8x1xf32> to vector<8x8xf32>
    %122 = arith.divf %118, %121 : vector<8x8xf32>
    %cst_55 = arith.constant dense<0.000000e+00> : vector<8x8xf32>
    %123 = tpu.matmul %122, %106, %cst_55 {dimension_numbers = #tpu.dot_dimension_numbers<[1], [0], [0], [1], [0, 0, 1, 1], [], []>} : vector<8x8xf32>, vector<8x8xf32>, vector<8x8xf32> -> vector<8x8xf32>
    %124 = tpu.concatenate %63, %83, %103, %123 in 1 : vector<8x8xf32>, vector<8x8xf32>, vector<8x8xf32>, vector<8x8xf32> -> vector<8x32xf32>
    %c0_56 = arith.constant 0 : index
    %c0_57 = arith.constant 0 : index
    %c0_58 = arith.constant 0 : index
    %125 = vector.load %arg7[%c0_56, %c0_57, %c0_58] : memref<2x32x32xf32, #tpu.memory_space<vmem>>, vector<1x32x32xf32>
    %126 = vector.shape_cast %125 : vector<1x32x32xf32> to vector<32x32xf32>
    %cst_59 = arith.constant dense<0.000000e+00> : vector<8x32xf32>
    %127 = tpu.matmul %124, %126, %cst_59 {dimension_numbers = #tpu.dot_dimension_numbers<[1], [0], [0], [1], [0, 0, 1, 1], [], []>} : vector<8x32xf32>, vector<32x32xf32>, vector<8x32xf32> -> vector<8x32xf32>
    %128 = arith.addf %1, %127 : vector<8x32xf32>
    %c0_60 = arith.constant 0 : index
    %c0_61 = arith.constant 0 : index
    %c0_62 = arith.constant 0 : index
    %129 = vector.load %arg8[%c0_60, %c0_61, %c0_62] : memref<2x1x32xf32, #tpu.memory_space<vmem>>, vector<1x1x32xf32>
    %130 = vector.shape_cast %129 : vector<1x1x32xf32> to vector<1x32xf32>
    %131 = vector.broadcast %130 : vector<1x32xf32> to vector<8x32xf32>
    %132 = arith.addf %128, %131 : vector<8x32xf32>
    %133 = vector.extract_strided_slice %9 {offsets = [1, 0], sizes = [1, 32], strides = [1, 1]} : vector<3x32xf32> to vector<1x32xf32>
    %134 = vector.extract_strided_slice %11 {offsets = [1, 0], sizes = [1, 32], strides = [1, 1]} : vector<3x32xf32> to vector<1x32xf32>
    %cst_63 = arith.constant dense<0.000000e+00> : vector<8xf32>
    %135 = vector.multi_reduction <add>, %132, %cst_63 [1] : vector<8x32xf32> to vector<8xf32>
    %136 = vector.shape_cast %135 : vector<8xf32> to vector<8x1xf32>
    %cst_64 = arith.constant 3.200000e+01 : f32
    %137 = vector.broadcast %cst_64 : f32 to vector<8x1xf32>
    %138 = arith.divf %136, %137 : vector<8x1xf32>
    %139 = vector.broadcast %138 : vector<8x1xf32> to vector<8x32xf32>
    %140 = arith.subf %132, %139 : vector<8x32xf32>
    %141 = arith.mulf %140, %140 : vector<8x32xf32>
    %cst_65 = arith.constant dense<0.000000e+00> : vector<8xf32>
    %142 = vector.multi_reduction <add>, %141, %cst_65 [1] : vector<8x32xf32> to vector<8xf32>
    %143 = vector.shape_cast %142 : vector<8xf32> to vector<8x1xf32>
    %cst_66 = arith.constant 3.100000e+01 : f32
    %144 = vector.broadcast %cst_66 : f32 to vector<8x1xf32>
    %145 = arith.divf %143, %144 : vector<8x1xf32>
    %146 = math.sqrt %145 : vector<8x1xf32>
    %147 = vector.broadcast %133 : vector<1x32xf32> to vector<8x32xf32>
    %148 = arith.mulf %147, %140 : vector<8x32xf32>
    %cst_67 = arith.constant 9.99999997E-7 : f32
    %149 = vector.broadcast %cst_67 : f32 to vector<8x1xf32>
    %150 = arith.addf %146, %149 : vector<8x1xf32>
    %151 = vector.broadcast %150 : vector<8x1xf32> to vector<8x32xf32>
    %152 = arith.divf %148, %151 : vector<8x32xf32>
    %153 = vector.broadcast %134 : vector<1x32xf32> to vector<8x32xf32>
    %154 = arith.addf %152, %153 : vector<8x32xf32>
    %c0_68 = arith.constant 0 : index
    %c0_69 = arith.constant 0 : index
    %c0_70 = arith.constant 0 : index
    %155 = vector.load %arg9[%c0_68, %c0_69, %c0_70] : memref<2x32x32xf32, #tpu.memory_space<vmem>>, vector<1x32x32xf32>
    %156 = vector.shape_cast %155 : vector<1x32x32xf32> to vector<32x32xf32>
    %cst_71 = arith.constant dense<0.000000e+00> : vector<8x32xf32>
    %157 = tpu.matmul %154, %156, %cst_71 {dimension_numbers = #tpu.dot_dimension_numbers<[1], [0], [0], [1], [0, 0, 1, 1], [], []>} : vector<8x32xf32>, vector<32x32xf32>, vector<8x32xf32> -> vector<8x32xf32>
    %c0_72 = arith.constant 0 : index
    %c0_73 = arith.constant 0 : index
    %c0_74 = arith.constant 0 : index
    %158 = vector.load %arg10[%c0_72, %c0_73, %c0_74] : memref<2x1x32xf32, #tpu.memory_space<vmem>>, vector<1x1x32xf32>
    %159 = vector.shape_cast %158 : vector<1x1x32xf32> to vector<1x32xf32>
    %160 = vector.broadcast %159 : vector<1x32xf32> to vector<8x32xf32>
    %161 = arith.addf %157, %160 : vector<8x32xf32>
    %c0_75 = arith.constant 0 : index
    %c0_76 = arith.constant 0 : index
    %c0_77 = arith.constant 0 : index
    %162 = vector.load %arg11[%c0_75, %c0_76, %c0_77] : memref<2x32x64xf32, #tpu.memory_space<vmem>>, vector<1x32x64xf32>
    %163 = vector.shape_cast %162 : vector<1x32x64xf32> to vector<32x64xf32>
    %cst_78 = arith.constant dense<0.000000e+00> : vector<16x64xf32>
    %164 = tpu.matmul %3, %163, %cst_78 {dimension_numbers = #tpu.dot_dimension_numbers<[1], [0], [0], [1], [0, 0, 1, 1], [], []>} : vector<16x32xf32>, vector<32x64xf32>, vector<16x64xf32> -> vector<16x64xf32>
    %c0_79 = arith.constant 0 : index
    %c0_80 = arith.constant 0 : index
    %c0_81 = arith.constant 0 : index
    %165 = vector.load %arg12[%c0_79, %c0_80, %c0_81] : memref<2x1x64xf32, #tpu.memory_space<vmem>>, vector<1x1x64xf32>
    %166 = vector.shape_cast %165 : vector<1x1x64xf32> to vector<1x64xf32>
    %167 = vector.broadcast %166 : vector<1x64xf32> to vector<16x64xf32>
    %168 = arith.addf %164, %167 : vector<16x64xf32>
    %169 = vector.extract_strided_slice %168 {offsets = [0, 0], sizes = [16, 32], strides = [1, 1]} : vector<16x64xf32> to vector<16x32xf32>
    %170 = vector.extract_strided_slice %168 {offsets = [0, 32], sizes = [16, 32], strides = [1, 1]} : vector<16x64xf32> to vector<16x32xf32>
    %171 = vector.extract_strided_slice %161 {offsets = [0, 0], sizes = [8, 8], strides = [1, 1]} : vector<8x32xf32> to vector<8x8xf32>
    %172 = vector.extract_strided_slice %169 {offsets = [0, 0], sizes = [16, 8], strides = [1, 1]} : vector<16x32xf32> to vector<16x8xf32>
    %173 = vector.extract_strided_slice %170 {offsets = [0, 0], sizes = [16, 8], strides = [1, 1]} : vector<16x32xf32> to vector<16x8xf32>
    %cst_82 = arith.constant dense<0.000000e+00> : vector<8x16xf32>
    %174 = tpu.matmul %171, %172, %cst_82 {dimension_numbers = #tpu.dot_dimension_numbers<[1], [1], [0], [0], [0, 0, 1, 0], [], []>} : vector<8x8xf32>, vector<16x8xf32>, vector<8x16xf32> -> vector<8x16xf32>
    %cst_83 = arith.constant 0.353553385 : f32
    %175 = vector.broadcast %cst_83 : f32 to vector<8x16xf32>
    %176 = arith.mulf %174, %175 : vector<8x16xf32>
    %cst_84 = arith.constant 0.000000e+00 : f32
    %177 = vector.broadcast %cst_84 : f32 to vector<8x16xf32>
    %178 = arith.cmpf oeq, %7, %177 : vector<8x16xf32>
    %cst_85 = arith.constant -1.000000e+09 : f32
    %179 = vector.broadcast %cst_85 : f32 to vector<8x16xf32>
    %180 = arith.select %178, %179, %176 : vector<8x16xi1>, vector<8x16xf32>
    %cst_86 = arith.constant dense<0xFF800000> : vector<8xf32>
    %181 = vector.multi_reduction <maximumf>, %180, %cst_86 [1] : vector<8x16xf32> to vector<8xf32>
    %182 = vector.shape_cast %181 : vector<8xf32> to vector<8x1xf32>
    %183 = vector.broadcast %182 : vector<8x1xf32> to vector<8x16xf32>
    %184 = arith.subf %180, %183 : vector<8x16xf32>
    %185 = math.exp %184 : vector<8x16xf32>
    %cst_87 = arith.constant dense<0.000000e+00> : vector<8xf32>
    %186 = vector.multi_reduction <add>, %185, %cst_87 [1] : vector<8x16xf32> to vector<8xf32>
    %187 = vector.shape_cast %186 : vector<8xf32> to vector<8x1xf32>
    %188 = vector.broadcast %187 : vector<8x1xf32> to vector<8x16xf32>
    %189 = arith.divf %185, %188 : vector<8x16xf32>
    %cst_88 = arith.constant dense<0.000000e+00> : vector<8x8xf32>
    %190 = tpu.matmul %189, %173, %cst_88 {dimension_numbers = #tpu.dot_dimension_numbers<[1], [0], [0], [1], [0, 0, 1, 1], [], []>} : vector<8x16xf32>, vector<16x8xf32>, vector<8x8xf32> -> vector<8x8xf32>
    %191 = vector.extract_strided_slice %161 {offsets = [0, 8], sizes = [8, 8], strides = [1, 1]} : vector<8x32xf32> to vector<8x8xf32>
    %192 = vector.extract_strided_slice %169 {offsets = [0, 8], sizes = [16, 8], strides = [1, 1]} : vector<16x32xf32> to vector<16x8xf32>
    %193 = vector.extract_strided_slice %170 {offsets = [0, 8], sizes = [16, 8], strides = [1, 1]} : vector<16x32xf32> to vector<16x8xf32>
    %cst_89 = arith.constant dense<0.000000e+00> : vector<8x16xf32>
    %194 = tpu.matmul %191, %192, %cst_89 {dimension_numbers = #tpu.dot_dimension_numbers<[1], [1], [0], [0], [0, 0, 1, 0], [], []>} : vector<8x8xf32>, vector<16x8xf32>, vector<8x16xf32> -> vector<8x16xf32>
    %cst_90 = arith.constant 0.353553385 : f32
    %195 = vector.broadcast %cst_90 : f32 to vector<8x16xf32>
    %196 = arith.mulf %194, %195 : vector<8x16xf32>
    %cst_91 = arith.constant 0.000000e+00 : f32
    %197 = vector.broadcast %cst_91 : f32 to vector<8x16xf32>
    %198 = arith.cmpf oeq, %7, %197 : vector<8x16xf32>
    %cst_92 = arith.constant -1.000000e+09 : f32
    %199 = vector.broadcast %cst_92 : f32 to vector<8x16xf32>
    %200 = arith.select %198, %199, %196 : vector<8x16xi1>, vector<8x16xf32>
    %cst_93 = arith.constant dense<0xFF800000> : vector<8xf32>
    %201 = vector.multi_reduction <maximumf>, %200, %cst_93 [1] : vector<8x16xf32> to vector<8xf32>
    %202 = vector.shape_cast %201 : vector<8xf32> to vector<8x1xf32>
    %203 = vector.broadcast %202 : vector<8x1xf32> to vector<8x16xf32>
    %204 = arith.subf %200, %203 : vector<8x16xf32>
    %205 = math.exp %204 : vector<8x16xf32>
    %cst_94 = arith.constant dense<0.000000e+00> : vector<8xf32>
    %206 = vector.multi_reduction <add>, %205, %cst_94 [1] : vector<8x16xf32> to vector<8xf32>
    %207 = vector.shape_cast %206 : vector<8xf32> to vector<8x1xf32>
    %208 = vector.broadcast %207 : vector<8x1xf32> to vector<8x16xf32>
    %209 = arith.divf %205, %208 : vector<8x16xf32>
    %cst_95 = arith.constant dense<0.000000e+00> : vector<8x8xf32>
    %210 = tpu.matmul %209, %193, %cst_95 {dimension_numbers = #tpu.dot_dimension_numbers<[1], [0], [0], [1], [0, 0, 1, 1], [], []>} : vector<8x16xf32>, vector<16x8xf32>, vector<8x8xf32> -> vector<8x8xf32>
    %211 = vector.extract_strided_slice %161 {offsets = [0, 16], sizes = [8, 8], strides = [1, 1]} : vector<8x32xf32> to vector<8x8xf32>
    %212 = vector.extract_strided_slice %169 {offsets = [0, 16], sizes = [16, 8], strides = [1, 1]} : vector<16x32xf32> to vector<16x8xf32>
    %213 = vector.extract_strided_slice %170 {offsets = [0, 16], sizes = [16, 8], strides = [1, 1]} : vector<16x32xf32> to vector<16x8xf32>
    %cst_96 = arith.constant dense<0.000000e+00> : vector<8x16xf32>
    %214 = tpu.matmul %211, %212, %cst_96 {dimension_numbers = #tpu.dot_dimension_numbers<[1], [1], [0], [0], [0, 0, 1, 0], [], []>} : vector<8x8xf32>, vector<16x8xf32>, vector<8x16xf32> -> vector<8x16xf32>
    %cst_97 = arith.constant 0.353553385 : f32
    %215 = vector.broadcast %cst_97 : f32 to vector<8x16xf32>
    %216 = arith.mulf %214, %215 : vector<8x16xf32>
    %cst_98 = arith.constant 0.000000e+00 : f32
    %217 = vector.broadcast %cst_98 : f32 to vector<8x16xf32>
    %218 = arith.cmpf oeq, %7, %217 : vector<8x16xf32>
    %cst_99 = arith.constant -1.000000e+09 : f32
    %219 = vector.broadcast %cst_99 : f32 to vector<8x16xf32>
    %220 = arith.select %218, %219, %216 : vector<8x16xi1>, vector<8x16xf32>
    %cst_100 = arith.constant dense<0xFF800000> : vector<8xf32>
    %221 = vector.multi_reduction <maximumf>, %220, %cst_100 [1] : vector<8x16xf32> to vector<8xf32>
    %222 = vector.shape_cast %221 : vector<8xf32> to vector<8x1xf32>
    %223 = vector.broadcast %222 : vector<8x1xf32> to vector<8x16xf32>
    %224 = arith.subf %220, %223 : vector<8x16xf32>
    %225 = math.exp %224 : vector<8x16xf32>
    %cst_101 = arith.constant dense<0.000000e+00> : vector<8xf32>
    %226 = vector.multi_reduction <add>, %225, %cst_101 [1] : vector<8x16xf32> to vector<8xf32>
    %227 = vector.shape_cast %226 : vector<8xf32> to vector<8x1xf32>
    %228 = vector.broadcast %227 : vector<8x1xf32> to vector<8x16xf32>
    %229 = arith.divf %225, %228 : vector<8x16xf32>
    %cst_102 = arith.constant dense<0.000000e+00> : vector<8x8xf32>
    %230 = tpu.matmul %229, %213, %cst_102 {dimension_numbers = #tpu.dot_dimension_numbers<[1], [0], [0], [1], [0, 0, 1, 1], [], []>} : vector<8x16xf32>, vector<16x8xf32>, vector<8x8xf32> -> vector<8x8xf32>
    %231 = vector.extract_strided_slice %161 {offsets = [0, 24], sizes = [8, 8], strides = [1, 1]} : vector<8x32xf32> to vector<8x8xf32>
    %232 = vector.extract_strided_slice %169 {offsets = [0, 24], sizes = [16, 8], strides = [1, 1]} : vector<16x32xf32> to vector<16x8xf32>
    %233 = vector.extract_strided_slice %170 {offsets = [0, 24], sizes = [16, 8], strides = [1, 1]} : vector<16x32xf32> to vector<16x8xf32>
    %cst_103 = arith.constant dense<0.000000e+00> : vector<8x16xf32>
    %234 = tpu.matmul %231, %232, %cst_103 {dimension_numbers = #tpu.dot_dimension_numbers<[1], [1], [0], [0], [0, 0, 1, 0], [], []>} : vector<8x8xf32>, vector<16x8xf32>, vector<8x16xf32> -> vector<8x16xf32>
    %cst_104 = arith.constant 0.353553385 : f32
    %235 = vector.broadcast %cst_104 : f32 to vector<8x16xf32>
    %236 = arith.mulf %234, %235 : vector<8x16xf32>
    %cst_105 = arith.constant 0.000000e+00 : f32
    %237 = vector.broadcast %cst_105 : f32 to vector<8x16xf32>
    %238 = arith.cmpf oeq, %7, %237 : vector<8x16xf32>
    %cst_106 = arith.constant -1.000000e+09 : f32
    %239 = vector.broadcast %cst_106 : f32 to vector<8x16xf32>
    %240 = arith.select %238, %239, %236 : vector<8x16xi1>, vector<8x16xf32>
    %cst_107 = arith.constant dense<0xFF800000> : vector<8xf32>
    %241 = vector.multi_reduction <maximumf>, %240, %cst_107 [1] : vector<8x16xf32> to vector<8xf32>
    %242 = vector.shape_cast %241 : vector<8xf32> to vector<8x1xf32>
    %243 = vector.broadcast %242 : vector<8x1xf32> to vector<8x16xf32>
    %244 = arith.subf %240, %243 : vector<8x16xf32>
    %245 = math.exp %244 : vector<8x16xf32>
    %cst_108 = arith.constant dense<0.000000e+00> : vector<8xf32>
    %246 = vector.multi_reduction <add>, %245, %cst_108 [1] : vector<8x16xf32> to vector<8xf32>
    %247 = vector.shape_cast %246 : vector<8xf32> to vector<8x1xf32>
    %248 = vector.broadcast %247 : vector<8x1xf32> to vector<8x16xf32>
    %249 = arith.divf %245, %248 : vector<8x16xf32>
    %cst_109 = arith.constant dense<0.000000e+00> : vector<8x8xf32>
    %250 = tpu.matmul %249, %233, %cst_109 {dimension_numbers = #tpu.dot_dimension_numbers<[1], [0], [0], [1], [0, 0, 1, 1], [], []>} : vector<8x16xf32>, vector<16x8xf32>, vector<8x8xf32> -> vector<8x8xf32>
    %251 = tpu.concatenate %190, %210, %230, %250 in 1 : vector<8x8xf32>, vector<8x8xf32>, vector<8x8xf32>, vector<8x8xf32> -> vector<8x32xf32>
    %c0_110 = arith.constant 0 : index
    %c0_111 = arith.constant 0 : index
    %c0_112 = arith.constant 0 : index
    %252 = vector.load %arg13[%c0_110, %c0_111, %c0_112] : memref<2x32x32xf32, #tpu.memory_space<vmem>>, vector<1x32x32xf32>
    %253 = vector.shape_cast %252 : vector<1x32x32xf32> to vector<32x32xf32>
    %cst_113 = arith.constant dense<0.000000e+00> : vector<8x32xf32>
    %254 = tpu.matmul %251, %253, %cst_113 {dimension_numbers = #tpu.dot_dimension_numbers<[1], [0], [0], [1], [0, 0, 1, 1], [], []>} : vector<8x32xf32>, vector<32x32xf32>, vector<8x32xf32> -> vector<8x32xf32>
    %255 = arith.addf %132, %254 : vector<8x32xf32>
    %c0_114 = arith.constant 0 : index
    %c0_115 = arith.constant 0 : index
    %c0_116 = arith.constant 0 : index
    %256 = vector.load %arg14[%c0_114, %c0_115, %c0_116] : memref<2x1x32xf32, #tpu.memory_space<vmem>>, vector<1x1x32xf32>
    %257 = vector.shape_cast %256 : vector<1x1x32xf32> to vector<1x32xf32>
    %258 = vector.broadcast %257 : vector<1x32xf32> to vector<8x32xf32>
    %259 = arith.addf %255, %258 : vector<8x32xf32>
    %260 = vector.extract_strided_slice %9 {offsets = [2, 0], sizes = [1, 32], strides = [1, 1]} : vector<3x32xf32> to vector<1x32xf32>
    %261 = vector.extract_strided_slice %11 {offsets = [2, 0], sizes = [1, 32], strides = [1, 1]} : vector<3x32xf32> to vector<1x32xf32>
    %cst_117 = arith.constant dense<0.000000e+00> : vector<8xf32>
    %262 = vector.multi_reduction <add>, %259, %cst_117 [1] : vector<8x32xf32> to vector<8xf32>
    %263 = vector.shape_cast %262 : vector<8xf32> to vector<8x1xf32>
    %cst_118 = arith.constant 3.200000e+01 : f32
    %264 = vector.broadcast %cst_118 : f32 to vector<8x1xf32>
    %265 = arith.divf %263, %264 : vector<8x1xf32>
    %266 = vector.broadcast %265 : vector<8x1xf32> to vector<8x32xf32>
    %267 = arith.subf %259, %266 : vector<8x32xf32>
    %268 = arith.mulf %267, %267 : vector<8x32xf32>
    %cst_119 = arith.constant dense<0.000000e+00> : vector<8xf32>
    %269 = vector.multi_reduction <add>, %268, %cst_119 [1] : vector<8x32xf32> to vector<8xf32>
    %270 = vector.shape_cast %269 : vector<8xf32> to vector<8x1xf32>
    %cst_120 = arith.constant 3.100000e+01 : f32
    %271 = vector.broadcast %cst_120 : f32 to vector<8x1xf32>
    %272 = arith.divf %270, %271 : vector<8x1xf32>
    %273 = math.sqrt %272 : vector<8x1xf32>
    %274 = vector.broadcast %260 : vector<1x32xf32> to vector<8x32xf32>
    %275 = arith.mulf %274, %267 : vector<8x32xf32>
    %cst_121 = arith.constant 9.99999997E-7 : f32
    %276 = vector.broadcast %cst_121 : f32 to vector<8x1xf32>
    %277 = arith.addf %273, %276 : vector<8x1xf32>
    %278 = vector.broadcast %277 : vector<8x1xf32> to vector<8x32xf32>
    %279 = arith.divf %275, %278 : vector<8x32xf32>
    %280 = vector.broadcast %261 : vector<1x32xf32> to vector<8x32xf32>
    %281 = arith.addf %279, %280 : vector<8x32xf32>
    %c0_122 = arith.constant 0 : index
    %c0_123 = arith.constant 0 : index
    %c0_124 = arith.constant 0 : index
    %282 = vector.load %arg15[%c0_122, %c0_123, %c0_124] : memref<2x32x64xf32, #tpu.memory_space<vmem>>, vector<1x32x64xf32>
    %283 = vector.shape_cast %282 : vector<1x32x64xf32> to vector<32x64xf32>
    %cst_125 = arith.constant dense<0.000000e+00> : vector<8x64xf32>
    %284 = tpu.matmul %281, %283, %cst_125 {dimension_numbers = #tpu.dot_dimension_numbers<[1], [0], [0], [1], [0, 0, 1, 1], [], []>} : vector<8x32xf32>, vector<32x64xf32>, vector<8x64xf32> -> vector<8x64xf32>
    %c0_126 = arith.constant 0 : index
    %c0_127 = arith.constant 0 : index
    %c0_128 = arith.constant 0 : index
    %285 = vector.load %arg16[%c0_126, %c0_127, %c0_128] : memref<2x1x64xf32, #tpu.memory_space<vmem>>, vector<1x1x64xf32>
    %286 = vector.shape_cast %285 : vector<1x1x64xf32> to vector<1x64xf32>
    %287 = vector.broadcast %286 : vector<1x64xf32> to vector<8x64xf32>
    %288 = arith.addf %284, %287 : vector<8x64xf32>
    %cst_129 = arith.constant 0.000000e+00 : f32
    %289 = vector.broadcast %cst_129 : f32 to vector<8x64xf32>
    %290 = arith.maximumf %288, %289 : vector<8x64xf32>
    %c0_130 = arith.constant 0 : index
    %c0_131 = arith.constant 0 : index
    %c0_132 = arith.constant 0 : index
    %291 = vector.load %arg17[%c0_130, %c0_131, %c0_132] : memref<2x64x32xf32, #tpu.memory_space<vmem>>, vector<1x64x32xf32>
    %292 = vector.shape_cast %291 : vector<1x64x32xf32> to vector<64x32xf32>
    %cst_133 = arith.constant dense<0.000000e+00> : vector<8x32xf32>
    %293 = tpu.matmul %290, %292, %cst_133 {dimension_numbers = #tpu.dot_dimension_numbers<[1], [0], [0], [1], [0, 0, 1, 1], [], []>} : vector<8x64xf32>, vector<64x32xf32>, vector<8x32xf32> -> vector<8x32xf32>
    %294 = arith.addf %259, %293 : vector<8x32xf32>
    %c0_134 = arith.constant 0 : index
    %c0_135 = arith.constant 0 : index
    %c0_136 = arith.constant 0 : index
    %295 = vector.load %arg18[%c0_134, %c0_135, %c0_136] : memref<2x1x32xf32, #tpu.memory_space<vmem>>, vector<1x1x32xf32>
    %296 = vector.shape_cast %295 : vector<1x1x32xf32> to vector<1x32xf32>
    %297 = vector.broadcast %296 : vector<1x32xf32> to vector<8x32xf32>
    %298 = arith.addf %294, %297 : vector<8x32xf32>
    %c1 = arith.constant 1 : index
    %c0_137 = arith.constant 0 : index
    %c0_138 = arith.constant 0 : index
    %299 = vector.load %arg19[%c1, %c0_137, %c0_138] : memref<2x3x32xf32, #tpu.memory_space<vmem>>, vector<1x3x32xf32>
    %300 = vector.shape_cast %299 : vector<1x3x32xf32> to vector<3x32xf32>
    %c1_139 = arith.constant 1 : index
    %c0_140 = arith.constant 0 : index
    %c0_141 = arith.constant 0 : index
    %301 = vector.load %arg20[%c1_139, %c0_140, %c0_141] : memref<2x3x32xf32, #tpu.memory_space<vmem>>, vector<1x3x32xf32>
    %302 = vector.shape_cast %301 : vector<1x3x32xf32> to vector<3x32xf32>
    %303 = vector.extract_strided_slice %300 {offsets = [0, 0], sizes = [1, 32], strides = [1, 1]} : vector<3x32xf32> to vector<1x32xf32>
    %304 = vector.extract_strided_slice %302 {offsets = [0, 0], sizes = [1, 32], strides = [1, 1]} : vector<3x32xf32> to vector<1x32xf32>
    %cst_142 = arith.constant dense<0.000000e+00> : vector<8xf32>
    %305 = vector.multi_reduction <add>, %298, %cst_142 [1] : vector<8x32xf32> to vector<8xf32>
    %306 = vector.shape_cast %305 : vector<8xf32> to vector<8x1xf32>
    %cst_143 = arith.constant 3.200000e+01 : f32
    %307 = vector.broadcast %cst_143 : f32 to vector<8x1xf32>
    %308 = arith.divf %306, %307 : vector<8x1xf32>
    %309 = vector.broadcast %308 : vector<8x1xf32> to vector<8x32xf32>
    %310 = arith.subf %298, %309 : vector<8x32xf32>
    %311 = arith.mulf %310, %310 : vector<8x32xf32>
    %cst_144 = arith.constant dense<0.000000e+00> : vector<8xf32>
    %312 = vector.multi_reduction <add>, %311, %cst_144 [1] : vector<8x32xf32> to vector<8xf32>
    %313 = vector.shape_cast %312 : vector<8xf32> to vector<8x1xf32>
    %cst_145 = arith.constant 3.100000e+01 : f32
    %314 = vector.broadcast %cst_145 : f32 to vector<8x1xf32>
    %315 = arith.divf %313, %314 : vector<8x1xf32>
    %316 = math.sqrt %315 : vector<8x1xf32>
    %317 = vector.broadcast %303 : vector<1x32xf32> to vector<8x32xf32>
    %318 = arith.mulf %317, %310 : vector<8x32xf32>
    %cst_146 = arith.constant 9.99999997E-7 : f32
    %319 = vector.broadcast %cst_146 : f32 to vector<8x1xf32>
    %320 = arith.addf %316, %319 : vector<8x1xf32>
    %321 = vector.broadcast %320 : vector<8x1xf32> to vector<8x32xf32>
    %322 = arith.divf %318, %321 : vector<8x32xf32>
    %323 = vector.broadcast %304 : vector<1x32xf32> to vector<8x32xf32>
    %324 = arith.addf %322, %323 : vector<8x32xf32>
    %c1_147 = arith.constant 1 : index
    %c0_148 = arith.constant 0 : index
    %c0_149 = arith.constant 0 : index
    %325 = vector.load %arg5[%c1_147, %c0_148, %c0_149] : memref<2x32x96xf32, #tpu.memory_space<vmem>>, vector<1x32x96xf32>
    %326 = vector.shape_cast %325 : vector<1x32x96xf32> to vector<32x96xf32>
    %cst_150 = arith.constant dense<0.000000e+00> : vector<8x96xf32>
    %327 = tpu.matmul %324, %326, %cst_150 {dimension_numbers = #tpu.dot_dimension_numbers<[1], [0], [0], [1], [0, 0, 1, 1], [], []>} : vector<8x32xf32>, vector<32x96xf32>, vector<8x96xf32> -> vector<8x96xf32>
    %c1_151 = arith.constant 1 : index
    %c0_152 = arith.constant 0 : index
    %c0_153 = arith.constant 0 : index
    %328 = vector.load %arg6[%c1_151, %c0_152, %c0_153] : memref<2x1x96xf32, #tpu.memory_space<vmem>>, vector<1x1x96xf32>
    %329 = vector.shape_cast %328 : vector<1x1x96xf32> to vector<1x96xf32>
    %330 = vector.broadcast %329 : vector<1x96xf32> to vector<8x96xf32>
    %331 = arith.addf %327, %330 : vector<8x96xf32>
    %332 = vector.extract_strided_slice %331 {offsets = [0, 0], sizes = [8, 32], strides = [1, 1]} : vector<8x96xf32> to vector<8x32xf32>
    %333 = vector.extract_strided_slice %331 {offsets = [0, 32], sizes = [8, 32], strides = [1, 1]} : vector<8x96xf32> to vector<8x32xf32>
    %334 = vector.extract_strided_slice %331 {offsets = [0, 64], sizes = [8, 32], strides = [1, 1]} : vector<8x96xf32> to vector<8x32xf32>
    %335 = vector.extract_strided_slice %332 {offsets = [0, 0], sizes = [8, 8], strides = [1, 1]} : vector<8x32xf32> to vector<8x8xf32>
    %336 = vector.extract_strided_slice %333 {offsets = [0, 0], sizes = [8, 8], strides = [1, 1]} : vector<8x32xf32> to vector<8x8xf32>
    %337 = vector.extract_strided_slice %334 {offsets = [0, 0], sizes = [8, 8], strides = [1, 1]} : vector<8x32xf32> to vector<8x8xf32>
    %cst_154 = arith.constant dense<0.000000e+00> : vector<8x8xf32>
    %338 = tpu.matmul %335, %336, %cst_154 {dimension_numbers = #tpu.dot_dimension_numbers<[1], [1], [0], [0], [0, 0, 1, 0], [], []>} : vector<8x8xf32>, vector<8x8xf32>, vector<8x8xf32> -> vector<8x8xf32>
    %cst_155 = arith.constant 0.353553385 : f32
    %339 = vector.broadcast %cst_155 : f32 to vector<8x8xf32>
    %340 = arith.mulf %338, %339 : vector<8x8xf32>
    %cst_156 = arith.constant 0.000000e+00 : f32
    %341 = vector.broadcast %cst_156 : f32 to vector<8x8xf32>
    %342 = arith.cmpf oeq, %5, %341 : vector<8x8xf32>
    %cst_157 = arith.constant -1.000000e+09 : f32
    %343 = vector.broadcast %cst_157 : f32 to vector<8x8xf32>
    %344 = arith.select %342, %343, %340 : vector<8x8xi1>, vector<8x8xf32>
    %cst_158 = arith.constant dense<0xFF800000> : vector<8xf32>
    %345 = vector.multi_reduction <maximumf>, %344, %cst_158 [1] : vector<8x8xf32> to vector<8xf32>
    %346 = vector.shape_cast %345 : vector<8xf32> to vector<8x1xf32>
    %347 = vector.broadcast %346 : vector<8x1xf32> to vector<8x8xf32>
    %348 = arith.subf %344, %347 : vector<8x8xf32>
    %349 = math.exp %348 : vector<8x8xf32>
    %cst_159 = arith.constant dense<0.000000e+00> : vector<8xf32>
    %350 = vector.multi_reduction <add>, %349, %cst_159 [1] : vector<8x8xf32> to vector<8xf32>
    %351 = vector.shape_cast %350 : vector<8xf32> to vector<8x1xf32>
    %352 = vector.broadcast %351 : vector<8x1xf32> to vector<8x8xf32>
    %353 = arith.divf %349, %352 : vector<8x8xf32>
    %cst_160 = arith.constant dense<0.000000e+00> : vector<8x8xf32>
    %354 = tpu.matmul %353, %337, %cst_160 {dimension_numbers = #tpu.dot_dimension_numbers<[1], [0], [0], [1], [0, 0, 1, 1], [], []>} : vector<8x8xf32>, vector<8x8xf32>, vector<8x8xf32> -> vector<8x8xf32>
    %355 = vector.extract_strided_slice %332 {offsets = [0, 8], sizes = [8, 8], strides = [1, 1]} : vector<8x32xf32> to vector<8x8xf32>
    %356 = vector.extract_strided_slice %333 {offsets = [0, 8], sizes = [8, 8], strides = [1, 1]} : vector<8x32xf32> to vector<8x8xf32>
    %357 = vector.extract_strided_slice %334 {offsets = [0, 8], sizes = [8, 8], strides = [1, 1]} : vector<8x32xf32> to vector<8x8xf32>
    %cst_161 = arith.constant dense<0.000000e+00> : vector<8x8xf32>
    %358 = tpu.matmul %355, %356, %cst_161 {dimension_numbers = #tpu.dot_dimension_numbers<[1], [1], [0], [0], [0, 0, 1, 0], [], []>} : vector<8x8xf32>, vector<8x8xf32>, vector<8x8xf32> -> vector<8x8xf32>
    %cst_162 = arith.constant 0.353553385 : f32
    %359 = vector.broadcast %cst_162 : f32 to vector<8x8xf32>
    %360 = arith.mulf %358, %359 : vector<8x8xf32>
    %cst_163 = arith.constant 0.000000e+00 : f32
    %361 = vector.broadcast %cst_163 : f32 to vector<8x8xf32>
    %362 = arith.cmpf oeq, %5, %361 : vector<8x8xf32>
    %cst_164 = arith.constant -1.000000e+09 : f32
    %363 = vector.broadcast %cst_164 : f32 to vector<8x8xf32>
    %364 = arith.select %362, %363, %360 : vector<8x8xi1>, vector<8x8xf32>
    %cst_165 = arith.constant dense<0xFF800000> : vector<8xf32>
    %365 = vector.multi_reduction <maximumf>, %364, %cst_165 [1] : vector<8x8xf32> to vector<8xf32>
    %366 = vector.shape_cast %365 : vector<8xf32> to vector<8x1xf32>
    %367 = vector.broadcast %366 : vector<8x1xf32> to vector<8x8xf32>
    %368 = arith.subf %364, %367 : vector<8x8xf32>
    %369 = math.exp %368 : vector<8x8xf32>
    %cst_166 = arith.constant dense<0.000000e+00> : vector<8xf32>
    %370 = vector.multi_reduction <add>, %369, %cst_166 [1] : vector<8x8xf32> to vector<8xf32>
    %371 = vector.shape_cast %370 : vector<8xf32> to vector<8x1xf32>
    %372 = vector.broadcast %371 : vector<8x1xf32> to vector<8x8xf32>
    %373 = arith.divf %369, %372 : vector<8x8xf32>
    %cst_167 = arith.constant dense<0.000000e+00> : vector<8x8xf32>
    %374 = tpu.matmul %373, %357, %cst_167 {dimension_numbers = #tpu.dot_dimension_numbers<[1], [0], [0], [1], [0, 0, 1, 1], [], []>} : vector<8x8xf32>, vector<8x8xf32>, vector<8x8xf32> -> vector<8x8xf32>
    %375 = vector.extract_strided_slice %332 {offsets = [0, 16], sizes = [8, 8], strides = [1, 1]} : vector<8x32xf32> to vector<8x8xf32>
    %376 = vector.extract_strided_slice %333 {offsets = [0, 16], sizes = [8, 8], strides = [1, 1]} : vector<8x32xf32> to vector<8x8xf32>
    %377 = vector.extract_strided_slice %334 {offsets = [0, 16], sizes = [8, 8], strides = [1, 1]} : vector<8x32xf32> to vector<8x8xf32>
    %cst_168 = arith.constant dense<0.000000e+00> : vector<8x8xf32>
    %378 = tpu.matmul %375, %376, %cst_168 {dimension_numbers = #tpu.dot_dimension_numbers<[1], [1], [0], [0], [0, 0, 1, 0], [], []>} : vector<8x8xf32>, vector<8x8xf32>, vector<8x8xf32> -> vector<8x8xf32>
    %cst_169 = arith.constant 0.353553385 : f32
    %379 = vector.broadcast %cst_169 : f32 to vector<8x8xf32>
    %380 = arith.mulf %378, %379 : vector<8x8xf32>
    %cst_170 = arith.constant 0.000000e+00 : f32
    %381 = vector.broadcast %cst_170 : f32 to vector<8x8xf32>
    %382 = arith.cmpf oeq, %5, %381 : vector<8x8xf32>
    %cst_171 = arith.constant -1.000000e+09 : f32
    %383 = vector.broadcast %cst_171 : f32 to vector<8x8xf32>
    %384 = arith.select %382, %383, %380 : vector<8x8xi1>, vector<8x8xf32>
    %cst_172 = arith.constant dense<0xFF800000> : vector<8xf32>
    %385 = vector.multi_reduction <maximumf>, %384, %cst_172 [1] : vector<8x8xf32> to vector<8xf32>
    %386 = vector.shape_cast %385 : vector<8xf32> to vector<8x1xf32>
    %387 = vector.broadcast %386 : vector<8x1xf32> to vector<8x8xf32>
    %388 = arith.subf %384, %387 : vector<8x8xf32>
    %389 = math.exp %388 : vector<8x8xf32>
    %cst_173 = arith.constant dense<0.000000e+00> : vector<8xf32>
    %390 = vector.multi_reduction <add>, %389, %cst_173 [1] : vector<8x8xf32> to vector<8xf32>
    %391 = vector.shape_cast %390 : vector<8xf32> to vector<8x1xf32>
    %392 = vector.broadcast %391 : vector<8x1xf32> to vector<8x8xf32>
    %393 = arith.divf %389, %392 : vector<8x8xf32>
    %cst_174 = arith.constant dense<0.000000e+00> : vector<8x8xf32>
    %394 = tpu.matmul %393, %377, %cst_174 {dimension_numbers = #tpu.dot_dimension_numbers<[1], [0], [0], [1], [0, 0, 1, 1], [], []>} : vector<8x8xf32>, vector<8x8xf32>, vector<8x8xf32> -> vector<8x8xf32>
    %395 = vector.extract_strided_slice %332 {offsets = [0, 24], sizes = [8, 8], strides = [1, 1]} : vector<8x32xf32> to vector<8x8xf32>
    %396 = vector.extract_strided_slice %333 {offsets = [0, 24], sizes = [8, 8], strides = [1, 1]} : vector<8x32xf32> to vector<8x8xf32>
    %397 = vector.extract_strided_slice %334 {offsets = [0, 24], sizes = [8, 8], strides = [1, 1]} : vector<8x32xf32> to vector<8x8xf32>
    %cst_175 = arith.constant dense<0.000000e+00> : vector<8x8xf32>
    %398 = tpu.matmul %395, %396, %cst_175 {dimension_numbers = #tpu.dot_dimension_numbers<[1], [1], [0], [0], [0, 0, 1, 0], [], []>} : vector<8x8xf32>, vector<8x8xf32>, vector<8x8xf32> -> vector<8x8xf32>
    %cst_176 = arith.constant 0.353553385 : f32
    %399 = vector.broadcast %cst_176 : f32 to vector<8x8xf32>
    %400 = arith.mulf %398, %399 : vector<8x8xf32>
    %cst_177 = arith.constant 0.000000e+00 : f32
    %401 = vector.broadcast %cst_177 : f32 to vector<8x8xf32>
    %402 = arith.cmpf oeq, %5, %401 : vector<8x8xf32>
    %cst_178 = arith.constant -1.000000e+09 : f32
    %403 = vector.broadcast %cst_178 : f32 to vector<8x8xf32>
    %404 = arith.select %402, %403, %400 : vector<8x8xi1>, vector<8x8xf32>
    %cst_179 = arith.constant dense<0xFF800000> : vector<8xf32>
    %405 = vector.multi_reduction <maximumf>, %404, %cst_179 [1] : vector<8x8xf32> to vector<8xf32>
    %406 = vector.shape_cast %405 : vector<8xf32> to vector<8x1xf32>
    %407 = vector.broadcast %406 : vector<8x1xf32> to vector<8x8xf32>
    %408 = arith.subf %404, %407 : vector<8x8xf32>
    %409 = math.exp %408 : vector<8x8xf32>
    %cst_180 = arith.constant dense<0.000000e+00> : vector<8xf32>
    %410 = vector.multi_reduction <add>, %409, %cst_180 [1] : vector<8x8xf32> to vector<8xf32>
    %411 = vector.shape_cast %410 : vector<8xf32> to vector<8x1xf32>
    %412 = vector.broadcast %411 : vector<8x1xf32> to vector<8x8xf32>
    %413 = arith.divf %409, %412 : vector<8x8xf32>
    %cst_181 = arith.constant dense<0.000000e+00> : vector<8x8xf32>
    %414 = tpu.matmul %413, %397, %cst_181 {dimension_numbers = #tpu.dot_dimension_numbers<[1], [0], [0], [1], [0, 0, 1, 1], [], []>} : vector<8x8xf32>, vector<8x8xf32>, vector<8x8xf32> -> vector<8x8xf32>
    %415 = tpu.concatenate %354, %374, %394, %414 in 1 : vector<8x8xf32>, vector<8x8xf32>, vector<8x8xf32>, vector<8x8xf32> -> vector<8x32xf32>
    %c1_182 = arith.constant 1 : index
    %c0_183 = arith.constant 0 : index
    %c0_184 = arith.constant 0 : index
    %416 = vector.load %arg7[%c1_182, %c0_183, %c0_184] : memref<2x32x32xf32, #tpu.memory_space<vmem>>, vector<1x32x32xf32>
    %417 = vector.shape_cast %416 : vector<1x32x32xf32> to vector<32x32xf32>
    %cst_185 = arith.constant dense<0.000000e+00> : vector<8x32xf32>
    %418 = tpu.matmul %415, %417, %cst_185 {dimension_numbers = #tpu.dot_dimension_numbers<[1], [0], [0], [1], [0, 0, 1, 1], [], []>} : vector<8x32xf32>, vector<32x32xf32>, vector<8x32xf32> -> vector<8x32xf32>
    %419 = arith.addf %298, %418 : vector<8x32xf32>
    %c1_186 = arith.constant 1 : index
    %c0_187 = arith.constant 0 : index
    %c0_188 = arith.constant 0 : index
    %420 = vector.load %arg8[%c1_186, %c0_187, %c0_188] : memref<2x1x32xf32, #tpu.memory_space<vmem>>, vector<1x1x32xf32>
    %421 = vector.shape_cast %420 : vector<1x1x32xf32> to vector<1x32xf32>
    %422 = vector.broadcast %421 : vector<1x32xf32> to vector<8x32xf32>
    %423 = arith.addf %419, %422 : vector<8x32xf32>
    %424 = vector.extract_strided_slice %300 {offsets = [1, 0], sizes = [1, 32], strides = [1, 1]} : vector<3x32xf32> to vector<1x32xf32>
    %425 = vector.extract_strided_slice %302 {offsets = [1, 0], sizes = [1, 32], strides = [1, 1]} : vector<3x32xf32> to vector<1x32xf32>
    %cst_189 = arith.constant dense<0.000000e+00> : vector<8xf32>
    %426 = vector.multi_reduction <add>, %423, %cst_189 [1] : vector<8x32xf32> to vector<8xf32>
    %427 = vector.shape_cast %426 : vector<8xf32> to vector<8x1xf32>
    %cst_190 = arith.constant 3.200000e+01 : f32
    %428 = vector.broadcast %cst_190 : f32 to vector<8x1xf32>
    %429 = arith.divf %427, %428 : vector<8x1xf32>
    %430 = vector.broadcast %429 : vector<8x1xf32> to vector<8x32xf32>
    %431 = arith.subf %423, %430 : vector<8x32xf32>
    %432 = arith.mulf %431, %431 : vector<8x32xf32>
    %cst_191 = arith.constant dense<0.000000e+00> : vector<8xf32>
    %433 = vector.multi_reduction <add>, %432, %cst_191 [1] : vector<8x32xf32> to vector<8xf32>
    %434 = vector.shape_cast %433 : vector<8xf32> to vector<8x1xf32>
    %cst_192 = arith.constant 3.100000e+01 : f32
    %435 = vector.broadcast %cst_192 : f32 to vector<8x1xf32>
    %436 = arith.divf %434, %435 : vector<8x1xf32>
    %437 = math.sqrt %436 : vector<8x1xf32>
    %438 = vector.broadcast %424 : vector<1x32xf32> to vector<8x32xf32>
    %439 = arith.mulf %438, %431 : vector<8x32xf32>
    %cst_193 = arith.constant 9.99999997E-7 : f32
    %440 = vector.broadcast %cst_193 : f32 to vector<8x1xf32>
    %441 = arith.addf %437, %440 : vector<8x1xf32>
    %442 = vector.broadcast %441 : vector<8x1xf32> to vector<8x32xf32>
    %443 = arith.divf %439, %442 : vector<8x32xf32>
    %444 = vector.broadcast %425 : vector<1x32xf32> to vector<8x32xf32>
    %445 = arith.addf %443, %444 : vector<8x32xf32>
    %c1_194 = arith.constant 1 : index
    %c0_195 = arith.constant 0 : index
    %c0_196 = arith.constant 0 : index
    %446 = vector.load %arg9[%c1_194, %c0_195, %c0_196] : memref<2x32x32xf32, #tpu.memory_space<vmem>>, vector<1x32x32xf32>
    %447 = vector.shape_cast %446 : vector<1x32x32xf32> to vector<32x32xf32>
    %cst_197 = arith.constant dense<0.000000e+00> : vector<8x32xf32>
    %448 = tpu.matmul %445, %447, %cst_197 {dimension_numbers = #tpu.dot_dimension_numbers<[1], [0], [0], [1], [0, 0, 1, 1], [], []>} : vector<8x32xf32>, vector<32x32xf32>, vector<8x32xf32> -> vector<8x32xf32>
    %c1_198 = arith.constant 1 : index
    %c0_199 = arith.constant 0 : index
    %c0_200 = arith.constant 0 : index
    %449 = vector.load %arg10[%c1_198, %c0_199, %c0_200] : memref<2x1x32xf32, #tpu.memory_space<vmem>>, vector<1x1x32xf32>
    %450 = vector.shape_cast %449 : vector<1x1x32xf32> to vector<1x32xf32>
    %451 = vector.broadcast %450 : vector<1x32xf32> to vector<8x32xf32>
    %452 = arith.addf %448, %451 : vector<8x32xf32>
    %c1_201 = arith.constant 1 : index
    %c0_202 = arith.constant 0 : index
    %c0_203 = arith.constant 0 : index
    %453 = vector.load %arg11[%c1_201, %c0_202, %c0_203] : memref<2x32x64xf32, #tpu.memory_space<vmem>>, vector<1x32x64xf32>
    %454 = vector.shape_cast %453 : vector<1x32x64xf32> to vector<32x64xf32>
    %cst_204 = arith.constant dense<0.000000e+00> : vector<16x64xf32>
    %455 = tpu.matmul %3, %454, %cst_204 {dimension_numbers = #tpu.dot_dimension_numbers<[1], [0], [0], [1], [0, 0, 1, 1], [], []>} : vector<16x32xf32>, vector<32x64xf32>, vector<16x64xf32> -> vector<16x64xf32>
    %c1_205 = arith.constant 1 : index
    %c0_206 = arith.constant 0 : index
    %c0_207 = arith.constant 0 : index
    %456 = vector.load %arg12[%c1_205, %c0_206, %c0_207] : memref<2x1x64xf32, #tpu.memory_space<vmem>>, vector<1x1x64xf32>
    %457 = vector.shape_cast %456 : vector<1x1x64xf32> to vector<1x64xf32>
    %458 = vector.broadcast %457 : vector<1x64xf32> to vector<16x64xf32>
    %459 = arith.addf %455, %458 : vector<16x64xf32>
    %460 = vector.extract_strided_slice %459 {offsets = [0, 0], sizes = [16, 32], strides = [1, 1]} : vector<16x64xf32> to vector<16x32xf32>
    %461 = vector.extract_strided_slice %459 {offsets = [0, 32], sizes = [16, 32], strides = [1, 1]} : vector<16x64xf32> to vector<16x32xf32>
    %462 = vector.extract_strided_slice %452 {offsets = [0, 0], sizes = [8, 8], strides = [1, 1]} : vector<8x32xf32> to vector<8x8xf32>
    %463 = vector.extract_strided_slice %460 {offsets = [0, 0], sizes = [16, 8], strides = [1, 1]} : vector<16x32xf32> to vector<16x8xf32>
    %464 = vector.extract_strided_slice %461 {offsets = [0, 0], sizes = [16, 8], strides = [1, 1]} : vector<16x32xf32> to vector<16x8xf32>
    %cst_208 = arith.constant dense<0.000000e+00> : vector<8x16xf32>
    %465 = tpu.matmul %462, %463, %cst_208 {dimension_numbers = #tpu.dot_dimension_numbers<[1], [1], [0], [0], [0, 0, 1, 0], [], []>} : vector<8x8xf32>, vector<16x8xf32>, vector<8x16xf32> -> vector<8x16xf32>
    %cst_209 = arith.constant 0.353553385 : f32
    %466 = vector.broadcast %cst_209 : f32 to vector<8x16xf32>
    %467 = arith.mulf %465, %466 : vector<8x16xf32>
    %cst_210 = arith.constant 0.000000e+00 : f32
    %468 = vector.broadcast %cst_210 : f32 to vector<8x16xf32>
    %469 = arith.cmpf oeq, %7, %468 : vector<8x16xf32>
    %cst_211 = arith.constant -1.000000e+09 : f32
    %470 = vector.broadcast %cst_211 : f32 to vector<8x16xf32>
    %471 = arith.select %469, %470, %467 : vector<8x16xi1>, vector<8x16xf32>
    %cst_212 = arith.constant dense<0xFF800000> : vector<8xf32>
    %472 = vector.multi_reduction <maximumf>, %471, %cst_212 [1] : vector<8x16xf32> to vector<8xf32>
    %473 = vector.shape_cast %472 : vector<8xf32> to vector<8x1xf32>
    %474 = vector.broadcast %473 : vector<8x1xf32> to vector<8x16xf32>
    %475 = arith.subf %471, %474 : vector<8x16xf32>
    %476 = math.exp %475 : vector<8x16xf32>
    %cst_213 = arith.constant dense<0.000000e+00> : vector<8xf32>
    %477 = vector.multi_reduction <add>, %476, %cst_213 [1] : vector<8x16xf32> to vector<8xf32>
    %478 = vector.shape_cast %477 : vector<8xf32> to vector<8x1xf32>
    %479 = vector.broadcast %478 : vector<8x1xf32> to vector<8x16xf32>
    %480 = arith.divf %476, %479 : vector<8x16xf32>
    %cst_214 = arith.constant dense<0.000000e+00> : vector<8x8xf32>
    %481 = tpu.matmul %480, %464, %cst_214 {dimension_numbers = #tpu.dot_dimension_numbers<[1], [0], [0], [1], [0, 0, 1, 1], [], []>} : vector<8x16xf32>, vector<16x8xf32>, vector<8x8xf32> -> vector<8x8xf32>
    %482 = vector.extract_strided_slice %452 {offsets = [0, 8], sizes = [8, 8], strides = [1, 1]} : vector<8x32xf32> to vector<8x8xf32>
    %483 = vector.extract_strided_slice %460 {offsets = [0, 8], sizes = [16, 8], strides = [1, 1]} : vector<16x32xf32> to vector<16x8xf32>
    %484 = vector.extract_strided_slice %461 {offsets = [0, 8], sizes = [16, 8], strides = [1, 1]} : vector<16x32xf32> to vector<16x8xf32>
    %cst_215 = arith.constant dense<0.000000e+00> : vector<8x16xf32>
    %485 = tpu.matmul %482, %483, %cst_215 {dimension_numbers = #tpu.dot_dimension_numbers<[1], [1], [0], [0], [0, 0, 1, 0], [], []>} : vector<8x8xf32>, vector<16x8xf32>, vector<8x16xf32> -> vector<8x16xf32>
    %cst_216 = arith.constant 0.353553385 : f32
    %486 = vector.broadcast %cst_216 : f32 to vector<8x16xf32>
    %487 = arith.mulf %485, %486 : vector<8x16xf32>
    %cst_217 = arith.constant 0.000000e+00 : f32
    %488 = vector.broadcast %cst_217 : f32 to vector<8x16xf32>
    %489 = arith.cmpf oeq, %7, %488 : vector<8x16xf32>
    %cst_218 = arith.constant -1.000000e+09 : f32
    %490 = vector.broadcast %cst_218 : f32 to vector<8x16xf32>
    %491 = arith.select %489, %490, %487 : vector<8x16xi1>, vector<8x16xf32>
    %cst_219 = arith.constant dense<0xFF800000> : vector<8xf32>
    %492 = vector.multi_reduction <maximumf>, %491, %cst_219 [1] : vector<8x16xf32> to vector<8xf32>
    %493 = vector.shape_cast %492 : vector<8xf32> to vector<8x1xf32>
    %494 = vector.broadcast %493 : vector<8x1xf32> to vector<8x16xf32>
    %495 = arith.subf %491, %494 : vector<8x16xf32>
    %496 = math.exp %495 : vector<8x16xf32>
    %cst_220 = arith.constant dense<0.000000e+00> : vector<8xf32>
    %497 = vector.multi_reduction <add>, %496, %cst_220 [1] : vector<8x16xf32> to vector<8xf32>
    %498 = vector.shape_cast %497 : vector<8xf32> to vector<8x1xf32>
    %499 = vector.broadcast %498 : vector<8x1xf32> to vector<8x16xf32>
    %500 = arith.divf %496, %499 : vector<8x16xf32>
    %cst_221 = arith.constant dense<0.000000e+00> : vector<8x8xf32>
    %501 = tpu.matmul %500, %484, %cst_221 {dimension_numbers = #tpu.dot_dimension_numbers<[1], [0], [0], [1], [0, 0, 1, 1], [], []>} : vector<8x16xf32>, vector<16x8xf32>, vector<8x8xf32> -> vector<8x8xf32>
    %502 = vector.extract_strided_slice %452 {offsets = [0, 16], sizes = [8, 8], strides = [1, 1]} : vector<8x32xf32> to vector<8x8xf32>
    %503 = vector.extract_strided_slice %460 {offsets = [0, 16], sizes = [16, 8], strides = [1, 1]} : vector<16x32xf32> to vector<16x8xf32>
    %504 = vector.extract_strided_slice %461 {offsets = [0, 16], sizes = [16, 8], strides = [1, 1]} : vector<16x32xf32> to vector<16x8xf32>
    %cst_222 = arith.constant dense<0.000000e+00> : vector<8x16xf32>
    %505 = tpu.matmul %502, %503, %cst_222 {dimension_numbers = #tpu.dot_dimension_numbers<[1], [1], [0], [0], [0, 0, 1, 0], [], []>} : vector<8x8xf32>, vector<16x8xf32>, vector<8x16xf32> -> vector<8x16xf32>
    %cst_223 = arith.constant 0.353553385 : f32
    %506 = vector.broadcast %cst_223 : f32 to vector<8x16xf32>
    %507 = arith.mulf %505, %506 : vector<8x16xf32>
    %cst_224 = arith.constant 0.000000e+00 : f32
    %508 = vector.broadcast %cst_224 : f32 to vector<8x16xf32>
    %509 = arith.cmpf oeq, %7, %508 : vector<8x16xf32>
    %cst_225 = arith.constant -1.000000e+09 : f32
    %510 = vector.broadcast %cst_225 : f32 to vector<8x16xf32>
    %511 = arith.select %509, %510, %507 : vector<8x16xi1>, vector<8x16xf32>
    %cst_226 = arith.constant dense<0xFF800000> : vector<8xf32>
    %512 = vector.multi_reduction <maximumf>, %511, %cst_226 [1] : vector<8x16xf32> to vector<8xf32>
    %513 = vector.shape_cast %512 : vector<8xf32> to vector<8x1xf32>
    %514 = vector.broadcast %513 : vector<8x1xf32> to vector<8x16xf32>
    %515 = arith.subf %511, %514 : vector<8x16xf32>
    %516 = math.exp %515 : vector<8x16xf32>
    %cst_227 = arith.constant dense<0.000000e+00> : vector<8xf32>
    %517 = vector.multi_reduction <add>, %516, %cst_227 [1] : vector<8x16xf32> to vector<8xf32>
    %518 = vector.shape_cast %517 : vector<8xf32> to vector<8x1xf32>
    %519 = vector.broadcast %518 : vector<8x1xf32> to vector<8x16xf32>
    %520 = arith.divf %516, %519 : vector<8x16xf32>
    %cst_228 = arith.constant dense<0.000000e+00> : vector<8x8xf32>
    %521 = tpu.matmul %520, %504, %cst_228 {dimension_numbers = #tpu.dot_dimension_numbers<[1], [0], [0], [1], [0, 0, 1, 1], [], []>} : vector<8x16xf32>, vector<16x8xf32>, vector<8x8xf32> -> vector<8x8xf32>
    %522 = vector.extract_strided_slice %452 {offsets = [0, 24], sizes = [8, 8], strides = [1, 1]} : vector<8x32xf32> to vector<8x8xf32>
    %523 = vector.extract_strided_slice %460 {offsets = [0, 24], sizes = [16, 8], strides = [1, 1]} : vector<16x32xf32> to vector<16x8xf32>
    %524 = vector.extract_strided_slice %461 {offsets = [0, 24], sizes = [16, 8], strides = [1, 1]} : vector<16x32xf32> to vector<16x8xf32>
    %cst_229 = arith.constant dense<0.000000e+00> : vector<8x16xf32>
    %525 = tpu.matmul %522, %523, %cst_229 {dimension_numbers = #tpu.dot_dimension_numbers<[1], [1], [0], [0], [0, 0, 1, 0], [], []>} : vector<8x8xf32>, vector<16x8xf32>, vector<8x16xf32> -> vector<8x16xf32>
    %cst_230 = arith.constant 0.353553385 : f32
    %526 = vector.broadcast %cst_230 : f32 to vector<8x16xf32>
    %527 = arith.mulf %525, %526 : vector<8x16xf32>
    %cst_231 = arith.constant 0.000000e+00 : f32
    %528 = vector.broadcast %cst_231 : f32 to vector<8x16xf32>
    %529 = arith.cmpf oeq, %7, %528 : vector<8x16xf32>
    %cst_232 = arith.constant -1.000000e+09 : f32
    %530 = vector.broadcast %cst_232 : f32 to vector<8x16xf32>
    %531 = arith.select %529, %530, %527 : vector<8x16xi1>, vector<8x16xf32>
    %cst_233 = arith.constant dense<0xFF800000> : vector<8xf32>
    %532 = vector.multi_reduction <maximumf>, %531, %cst_233 [1] : vector<8x16xf32> to vector<8xf32>
    %533 = vector.shape_cast %532 : vector<8xf32> to vector<8x1xf32>
    %534 = vector.broadcast %533 : vector<8x1xf32> to vector<8x16xf32>
    %535 = arith.subf %531, %534 : vector<8x16xf32>
    %536 = math.exp %535 : vector<8x16xf32>
    %cst_234 = arith.constant dense<0.000000e+00> : vector<8xf32>
    %537 = vector.multi_reduction <add>, %536, %cst_234 [1] : vector<8x16xf32> to vector<8xf32>
    %538 = vector.shape_cast %537 : vector<8xf32> to vector<8x1xf32>
    %539 = vector.broadcast %538 : vector<8x1xf32> to vector<8x16xf32>
    %540 = arith.divf %536, %539 : vector<8x16xf32>
    %cst_235 = arith.constant dense<0.000000e+00> : vector<8x8xf32>
    %541 = tpu.matmul %540, %524, %cst_235 {dimension_numbers = #tpu.dot_dimension_numbers<[1], [0], [0], [1], [0, 0, 1, 1], [], []>} : vector<8x16xf32>, vector<16x8xf32>, vector<8x8xf32> -> vector<8x8xf32>
    %542 = tpu.concatenate %481, %501, %521, %541 in 1 : vector<8x8xf32>, vector<8x8xf32>, vector<8x8xf32>, vector<8x8xf32> -> vector<8x32xf32>
    %c1_236 = arith.constant 1 : index
    %c0_237 = arith.constant 0 : index
    %c0_238 = arith.constant 0 : index
    %543 = vector.load %arg13[%c1_236, %c0_237, %c0_238] : memref<2x32x32xf32, #tpu.memory_space<vmem>>, vector<1x32x32xf32>
    %544 = vector.shape_cast %543 : vector<1x32x32xf32> to vector<32x32xf32>
    %cst_239 = arith.constant dense<0.000000e+00> : vector<8x32xf32>
    %545 = tpu.matmul %542, %544, %cst_239 {dimension_numbers = #tpu.dot_dimension_numbers<[1], [0], [0], [1], [0, 0, 1, 1], [], []>} : vector<8x32xf32>, vector<32x32xf32>, vector<8x32xf32> -> vector<8x32xf32>
    %546 = arith.addf %423, %545 : vector<8x32xf32>
    %c1_240 = arith.constant 1 : index
    %c0_241 = arith.constant 0 : index
    %c0_242 = arith.constant 0 : index
    %547 = vector.load %arg14[%c1_240, %c0_241, %c0_242] : memref<2x1x32xf32, #tpu.memory_space<vmem>>, vector<1x1x32xf32>
    %548 = vector.shape_cast %547 : vector<1x1x32xf32> to vector<1x32xf32>
    %549 = vector.broadcast %548 : vector<1x32xf32> to vector<8x32xf32>
    %550 = arith.addf %546, %549 : vector<8x32xf32>
    %551 = vector.extract_strided_slice %300 {offsets = [2, 0], sizes = [1, 32], strides = [1, 1]} : vector<3x32xf32> to vector<1x32xf32>
    %552 = vector.extract_strided_slice %302 {offsets = [2, 0], sizes = [1, 32], strides = [1, 1]} : vector<3x32xf32> to vector<1x32xf32>
    %cst_243 = arith.constant dense<0.000000e+00> : vector<8xf32>
    %553 = vector.multi_reduction <add>, %550, %cst_243 [1] : vector<8x32xf32> to vector<8xf32>
    %554 = vector.shape_cast %553 : vector<8xf32> to vector<8x1xf32>
    %cst_244 = arith.constant 3.200000e+01 : f32
    %555 = vector.broadcast %cst_244 : f32 to vector<8x1xf32>
    %556 = arith.divf %554, %555 : vector<8x1xf32>
    %557 = vector.broadcast %556 : vector<8x1xf32> to vector<8x32xf32>
    %558 = arith.subf %550, %557 : vector<8x32xf32>
    %559 = arith.mulf %558, %558 : vector<8x32xf32>
    %cst_245 = arith.constant dense<0.000000e+00> : vector<8xf32>
    %560 = vector.multi_reduction <add>, %559, %cst_245 [1] : vector<8x32xf32> to vector<8xf32>
    %561 = vector.shape_cast %560 : vector<8xf32> to vector<8x1xf32>
    %cst_246 = arith.constant 3.100000e+01 : f32
    %562 = vector.broadcast %cst_246 : f32 to vector<8x1xf32>
    %563 = arith.divf %561, %562 : vector<8x1xf32>
    %564 = math.sqrt %563 : vector<8x1xf32>
    %565 = vector.broadcast %551 : vector<1x32xf32> to vector<8x32xf32>
    %566 = arith.mulf %565, %558 : vector<8x32xf32>
    %cst_247 = arith.constant 9.99999997E-7 : f32
    %567 = vector.broadcast %cst_247 : f32 to vector<8x1xf32>
    %568 = arith.addf %564, %567 : vector<8x1xf32>
    %569 = vector.broadcast %568 : vector<8x1xf32> to vector<8x32xf32>
    %570 = arith.divf %566, %569 : vector<8x32xf32>
    %571 = vector.broadcast %552 : vector<1x32xf32> to vector<8x32xf32>
    %572 = arith.addf %570, %571 : vector<8x32xf32>
    %c1_248 = arith.constant 1 : index
    %c0_249 = arith.constant 0 : index
    %c0_250 = arith.constant 0 : index
    %573 = vector.load %arg15[%c1_248, %c0_249, %c0_250] : memref<2x32x64xf32, #tpu.memory_space<vmem>>, vector<1x32x64xf32>
    %574 = vector.shape_cast %573 : vector<1x32x64xf32> to vector<32x64xf32>
    %cst_251 = arith.constant dense<0.000000e+00> : vector<8x64xf32>
    %575 = tpu.matmul %572, %574, %cst_251 {dimension_numbers = #tpu.dot_dimension_numbers<[1], [0], [0], [1], [0, 0, 1, 1], [], []>} : vector<8x32xf32>, vector<32x64xf32>, vector<8x64xf32> -> vector<8x64xf32>
    %c1_252 = arith.constant 1 : index
    %c0_253 = arith.constant 0 : index
    %c0_254 = arith.constant 0 : index
    %576 = vector.load %arg16[%c1_252, %c0_253, %c0_254] : memref<2x1x64xf32, #tpu.memory_space<vmem>>, vector<1x1x64xf32>
    %577 = vector.shape_cast %576 : vector<1x1x64xf32> to vector<1x64xf32>
    %578 = vector.broadcast %577 : vector<1x64xf32> to vector<8x64xf32>
    %579 = arith.addf %575, %578 : vector<8x64xf32>
    %cst_255 = arith.constant 0.000000e+00 : f32
    %580 = vector.broadcast %cst_255 : f32 to vector<8x64xf32>
    %581 = arith.maximumf %579, %580 : vector<8x64xf32>
    %c1_256 = arith.constant 1 : index
    %c0_257 = arith.constant 0 : index
    %c0_258 = arith.constant 0 : index
    %582 = vector.load %arg17[%c1_256, %c0_257, %c0_258] : memref<2x64x32xf32, #tpu.memory_space<vmem>>, vector<1x64x32xf32>
    %583 = vector.shape_cast %582 : vector<1x64x32xf32> to vector<64x32xf32>
    %cst_259 = arith.constant dense<0.000000e+00> : vector<8x32xf32>
    %584 = tpu.matmul %581, %583, %cst_259 {dimension_numbers = #tpu.dot_dimension_numbers<[1], [0], [0], [1], [0, 0, 1, 1], [], []>} : vector<8x64xf32>, vector<64x32xf32>, vector<8x32xf32> -> vector<8x32xf32>
    %585 = arith.addf %550, %584 : vector<8x32xf32>
    %c1_260 = arith.constant 1 : index
    %c0_261 = arith.constant 0 : index
    %c0_262 = arith.constant 0 : index
    %586 = vector.load %arg18[%c1_260, %c0_261, %c0_262] : memref<2x1x32xf32, #tpu.memory_space<vmem>>, vector<1x1x32xf32>
    %587 = vector.shape_cast %586 : vector<1x1x32xf32> to vector<1x32xf32>
    %588 = vector.broadcast %587 : vector<1x32xf32> to vector<8x32xf32>
    %589 = arith.addf %585, %588 : vector<8x32xf32>
    %c0_263 = arith.constant 0 : index
    %c0_264 = arith.constant 0 : index
    %590 = vector.load %arg21[%c0_263, %c0_264] : memref<1x32xf32, #tpu.memory_space<vmem>>, vector<1x32xf32>
    %c0_265 = arith.constant 0 : index
    %c0_266 = arith.constant 0 : index
    %591 = vector.load %arg22[%c0_265, %c0_266] : memref<1x32xf32, #tpu.memory_space<vmem>>, vector<1x32xf32>
    %cst_267 = arith.constant dense<0.000000e+00> : vector<8xf32>
    %592 = vector.multi_reduction <add>, %589, %cst_267 [1] : vector<8x32xf32> to vector<8xf32>
    %593 = vector.shape_cast %592 : vector<8xf32> to vector<8x1xf32>
    %cst_268 = arith.constant 3.200000e+01 : f32
    %594 = vector.broadcast %cst_268 : f32 to vector<8x1xf32>
    %595 = arith.divf %593, %594 : vector<8x1xf32>
    %596 = vector.broadcast %595 : vector<8x1xf32> to vector<8x32xf32>
    %597 = arith.subf %589, %596 : vector<8x32xf32>
    %598 = arith.mulf %597, %597 : vector<8x32xf32>
    %cst_269 = arith.constant dense<0.000000e+00> : vector<8xf32>
    %599 = vector.multi_reduction <add>, %598, %cst_269 [1] : vector<8x32xf32> to vector<8xf32>
    %600 = vector.shape_cast %599 : vector<8xf32> to vector<8x1xf32>
    %cst_270 = arith.constant 3.100000e+01 : f32
    %601 = vector.broadcast %cst_270 : f32 to vector<8x1xf32>
    %602 = arith.divf %600, %601 : vector<8x1xf32>
    %603 = math.sqrt %602 : vector<8x1xf32>
    %604 = vector.broadcast %590 : vector<1x32xf32> to vector<8x32xf32>
    %605 = arith.mulf %604, %597 : vector<8x32xf32>
    %cst_271 = arith.constant 9.99999997E-7 : f32
    %606 = vector.broadcast %cst_271 : f32 to vector<8x1xf32>
    %607 = arith.addf %603, %606 : vector<8x1xf32>
    %608 = vector.broadcast %607 : vector<8x1xf32> to vector<8x32xf32>
    %609 = arith.divf %605, %608 : vector<8x32xf32>
    %610 = vector.broadcast %591 : vector<1x32xf32> to vector<8x32xf32>
    %611 = arith.addf %609, %610 : vector<8x32xf32>
    %c0_272 = arith.constant 0 : index
    %c0_273 = arith.constant 0 : index
    %c0_274 = arith.constant 0 : index
    %612 = vector.load %arg23[%c0_272, %c0_273, %c0_274] : memref<1x8x32xf32, #tpu.memory_space<vmem>>, vector<1x8x32xf32>
    %613 = vector.shape_cast %612 : vector<1x8x32xf32> to vector<8x32xf32>
    %614 = vector.shape_cast %611 : vector<8x32xf32> to vector<1x8x32xf32>
    tpu.vector_store %arg23[%c0_272, %c0_273, %c0_274], %614 {strides = array<i32>} : memref<1x8x32xf32, #tpu.memory_space<vmem>>, vector<1x8x32xf32>,
    return
  }
  func.func @transform_0(%arg0: i32) -> (i32, i32, i32) {
    %c0_i32 = arith.constant 0 : i32
    %c0_i32_0 = arith.constant 0 : i32
    %c0_i32_1 = arith.constant 0 : i32
    return %arg0, %c0_i32, %c0_i32_0 : i32, i32, i32
  }
  func.func @transform_1(%arg0: i32) -> (i32, i32, i32) {
    %c0_i32 = arith.constant 0 : i32
    %c0_i32_0 = arith.constant 0 : i32
    %c0_i32_1 = arith.constant 0 : i32
    return %arg0, %c0_i32, %c0_i32_0 : i32, i32, i32
  }
  func.func @transform_2(%arg0: i32) -> (i32, i32, i32) {
    %c0_i32 = arith.constant 0 : i32
    %c0_i32_0 = arith.constant 0 : i32
    %c0_i32_1 = arith.constant 0 : i32
    return %arg0, %c0_i32, %c0_i32_0 : i32, i32, i32
  }
  func.func @transform_3(%arg0: i32) -> (i32, i32, i32) {
    %c0_i32 = arith.constant 0 : i32
    %c0_i32_0 = arith.constant 0 : i32
    %c0_i32_1 = arith.constant 0 : i32
    return %arg0, %c0_i32, %c0_i32_0 : i32, i32, i32
  }
  func.func @transform_4(%arg0: i32) -> (i32, i32, i32) {
    %c0_i32 = arith.constant 0 : i32
    %c0_i32_0 = arith.constant 0 : i32
    %c0_i32_1 = arith.constant 0 : i32
    %c0_i32_2 = arith.constant 0 : i32
    return %c0_i32, %c0_i32_0, %c0_i32_1 : i32, i32, i32
  }
  func.func @transform_5(%arg0: i32) -> (i32, i32, i32) {
    %c0_i32 = arith.constant 0 : i32
    %c0_i32_0 = arith.constant 0 : i32
    %c0_i32_1 = arith.constant 0 : i32
    %c0_i32_2 = arith.constant 0 : i32
    return %c0_i32, %c0_i32_0, %c0_i32_1 : i32, i32, i32
  }
  func.func @transform_6(%arg0: i32) -> (i32, i32, i32) {
    %c0_i32 = arith.constant 0 : i32
    %c0_i32_0 = arith.constant 0 : i32
    %c0_i32_1 = arith.constant 0 : i32
    %c0_i32_2 = arith.constant 0 : i32
    return %c0_i32, %c0_i32_0, %c0_i32_1 : i32, i32, i32
  }
  func.func @transform_7(%arg0: i32) -> (i32, i32, i32) {
    %c0_i32 = arith.constant 0 : i32
    %c0_i32_0 = arith.constant 0 : i32
    %c0_i32_1 = arith.constant 0 : i32
    %c0_i32_2 = arith.constant 0 : i32
    return %c0_i32, %c0_i32_0, %c0_i32_1 : i32, i32, i32
  }
  func.func @transform_8(%arg0: i32) -> (i32, i32, i32) {
    %c0_i32 = arith.constant 0 : i32
    %c0_i32_0 = arith.constant 0 : i32
    %c0_i32_1 = arith.constant 0 : i32
    %c0_i32_2 = arith.constant 0 : i32
    return %c0_i32, %c0_i32_0, %c0_i32_1 : i32, i32, i32
  }
  func.func @transform_9(%arg0: i32) -> (i32, i32, i32) {
    %c0_i32 = arith.constant 0 : i32
    %c0_i32_0 = arith.constant 0 : i32
    %c0_i32_1 = arith.constant 0 : i32
    %c0_i32_2 = arith.constant 0 : i32
    return %c0_i32, %c0_i32_0, %c0_i32_1 : i32, i32, i32
  }
  func.func @transform_10(%arg0: i32) -> (i32, i32, i32) {
    %c0_i32 = arith.constant 0 : i32
    %c0_i32_0 = arith.constant 0 : i32
    %c0_i32_1 = arith.constant 0 : i32
    %c0_i32_2 = arith.constant 0 : i32
    return %c0_i32, %c0_i32_0, %c0_i32_1 : i32, i32, i32
  }
  func.func @transform_11(%arg0: i32) -> (i32, i32, i32) {
    %c0_i32 = arith.constant 0 : i32
    %c0_i32_0 = arith.constant 0 : i32
    %c0_i32_1 = arith.constant 0 : i32
    %c0_i32_2 = arith.constant 0 : i32
    return %c0_i32, %c0_i32_0, %c0_i32_1 : i32, i32, i32
  }
  func.func @transform_12(%arg0: i32) -> (i32, i32, i32) {
    %c0_i32 = arith.constant 0 : i32
    %c0_i32_0 = arith.constant 0 : i32
    %c0_i32_1 = arith.constant 0 : i32
    %c0_i32_2 = arith.constant 0 : i32
    return %c0_i32, %c0_i32_0, %c0_i32_1 : i32, i32, i32
  }
  func.func @transform_13(%arg0: i32) -> (i32, i32, i32) {
    %c0_i32 = arith.constant 0 : i32
    %c0_i32_0 = arith.constant 0 : i32
    %c0_i32_1 = arith.constant 0 : i32
    %c0_i32_2 = arith.constant 0 : i32
    return %c0_i32, %c0_i32_0, %c0_i32_1 : i32, i32, i32
  }
  func.func @transform_14(%arg0: i32) -> (i32, i32, i32) {
    %c0_i32 = arith.constant 0 : i32
    %c0_i32_0 = arith.constant 0 : i32
    %c0_i32_1 = arith.constant 0 : i32
    %c0_i32_2 = arith.constant 0 : i32
    return %c0_i32, %c0_i32_0, %c0_i32_1 : i32, i32, i32
  }
  func.func @transform_15(%arg0: i32) -> (i32, i32, i32) {
    %c0_i32 = arith.constant 0 : i32
    %c0_i32_0 = arith.constant 0 : i32
    %c0_i32_1 = arith.constant 0 : i32
    %c0_i32_2 = arith.constant 0 : i32
    return %c0_i32, %c0_i32_0, %c0_i32_1 : i32, i32, i32
  }
  func.func @transform_16(%arg0: i32) -> (i32, i32, i32) {
    %c0_i32 = arith.constant 0 : i32
    %c0_i32_0 = arith.constant 0 : i32
    %c0_i32_1 = arith.constant 0 : i32
    %c0_i32_2 = arith.constant 0 : i32
    return %c0_i32, %c0_i32_0, %c0_i32_1 : i32, i32, i32
  }
  func.func @transform_17(%arg0: i32) -> (i32, i32, i32) {
    %c0_i32 = arith.constant 0 : i32
    %c0_i32_0 = arith.constant 0 : i32
    %c0_i32_1 = arith.constant 0 : i32
    %c0_i32_2 = arith.constant 0 : i32
    return %c0_i32, %c0_i32_0, %c0_i32_1 : i32, i32, i32
  }
  func.func @transform_18(%arg0: i32) -> (i32, i32, i32) {
    %c0_i32 = arith.constant 0 : i32
    %c0_i32_0 = arith.constant 0 : i32
    %c0_i32_1 = arith.constant 0 : i32
    %c0_i32_2 = arith.constant 0 : i32
    return %c0_i32, %c0_i32_0, %c0_i32_1 : i32, i32, i32
  }
  func.func @transform_19(%arg0: i32) -> (i32, i32, i32) {
    %c0_i32 = arith.constant 0 : i32
    %c0_i32_0 = arith.constant 0 : i32
    %c0_i32_1 = arith.constant 0 : i32
    %c0_i32_2 = arith.constant 0 : i32
    return %c0_i32, %c0_i32_0, %c0_i32_1 : i32, i32, i32
  }
  func.func @transform_20(%arg0: i32) -> (i32, i32) {
    %c0_i32 = arith.constant 0 : i32
    %c0_i32_0 = arith.constant 0 : i32
    %c0_i32_1 = arith.constant 0 : i32
    return %c0_i32, %c0_i32_0 : i32, i32
  }
  func.func @transform_21(%arg0: i32) -> (i32, i32) {
    %c0_i32 = arith.constant 0 : i32
    %c0_i32_0 = arith.constant 0 : i32
    %c0_i32_1 = arith.constant 0 : i32
    return %c0_i32, %c0_i32_0 : i32, i32
  }
  func.func @transform_22(%arg0: i32) -> (i32, i32, i32) {
    %c0_i32 = arith.constant 0 : i32
    %c0_i32_0 = arith.constant 0 : i32
    %c0_i32_1 = arith.constant 0 : i32
    return %arg0, %c0_i32, %c0_i32_0 : i32, i32, i32
  }
}

</mosaic_0001>

<llo_original>
// kernel: tpu_custom_call.1
$region0: #{tpu_custom_call.1}
  #allocation0 [shape = 'u32[]', space=smem, size = 0x4, offset = 0x4, fixed_abs, tag = 'smem constant byte address 0x4 - core index']
  #allocation1 [shape = 'u32[144,128]{1,0:T(1,128)}', space=vmem, size = 0x12000, scoped, tag = 'internal scratch']
  %s0 = inlined_call_operand.vmem [shape: f32[2,8,32], index: 0, kind: input, shape index: {}]
  %s1 = inlined_call_operand.hbm [shape: f32[2,16,32], index: 1, kind: input, shape index: {}]
  %s2 = inlined_call_operand.hbm [shape: f32[2,8,8], index: 2, kind: input, shape index: {}]
  %s3 = inlined_call_operand.hbm [shape: f32[2,8,16], index: 3, kind: input, shape index: {}]
  %s4 = inlined_call_operand.vmem [shape: f32[2,32,96], index: 4, kind: input, shape index: {}]
  %s5 = inlined_call_operand.vmem [shape: f32[2,1,96], index: 5, kind: input, shape index: {}]
  %s6 = inlined_call_operand.vmem [shape: f32[2,32,32], index: 6, kind: input, shape index: {}]
  %s7 = inlined_call_operand.vmem [shape: f32[2,1,32], index: 7, kind: input, shape index: {}]
  %s8 = inlined_call_operand.vmem [shape: f32[2,32,32], index: 8, kind: input, shape index: {}]
  %s9 = inlined_call_operand.vmem [shape: f32[2,1,32], index: 9, kind: input, shape index: {}]
  %s10 = inlined_call_operand.hbm [shape: f32[2,32,64], index: 10, kind: input, shape index: {}]
  %s11 = inlined_call_operand.vmem [shape: f32[2,1,64], index: 11, kind: input, shape index: {}]
  %s12 = inlined_call_operand.hbm [shape: f32[2,32,32], index: 12, kind: input, shape index: {}]
  %s13 = inlined_call_operand.vmem [shape: f32[2,1,32], index: 13, kind: input, shape index: {}]
  %s14 = inlined_call_operand.hbm [shape: f32[2,32,64], index: 14, kind: input, shape index: {}]
  %s15 = inlined_call_operand.vmem [shape: f32[2,1,64], index: 15, kind: input, shape index: {}]
  %s16 = inlined_call_operand.vmem [shape: f32[2,64,32], index: 16, kind: input, shape index: {}]
  %s17 = inlined_call_operand.vmem [shape: f32[2,1,32], index: 17, kind: input, shape index: {}]
  %s18 = inlined_call_operand.vmem [shape: f32[2,3,32], index: 18, kind: input, shape index: {}]
  %s19 = inlined_call_operand.vmem [shape: f32[2,3,32], index: 19, kind: input, shape index: {}]
  %s20 = inlined_call_operand.vmem [shape: f32[1,32], index: 20, kind: input, shape index: {}]
  %s21 = inlined_call_operand.vmem [shape: f32[1,32], index: 21, kind: input, shape index: {}]
  %s22 = inlined_call_operand.hbm [shape: f32[2,8,32], index: 22, kind: output, shape index: {}]
  %s23 = sld [smem:[#allocation0]]
  $region145: #{tpu_custom_call.1} parent=0
    _
  %s25 = ssub.s32 1, %s23
  %s26 = scalar_select 0, %s25, %s23
  $region1: #{tpu_custom_call.1} parent=0
    #allocation2 [shape = 'u8[16384]{0}', space=vmem, size = 0x4000, scoped, tag = 'input window, operand 1']
    #allocation3 [shape = 's32[2]{0}', space=sflag, size = 0x8, scoped, tag = 'scoped memory for tpu_custom_call.1']
    #allocation4 [shape = 's32[2]{0}', space=sflag, size = 0x8, scoped, tag = 'scoped memory for tpu_custom_call.1']
    #allocation5 [shape = 'u8[8192]{0}', space=vmem, size = 0x2000, scoped, tag = 'input window, operand 2']
    #allocation6 [shape = 's32[2]{0}', space=sflag, size = 0x8, scoped, tag = 'scoped memory for tpu_custom_call.1']
    #allocation7 [shape = 'u8[8192]{0}', space=vmem, size = 0x2000, scoped, tag = 'input window, operand 3']
    #allocation8 [shape = 'u8[32768]{0}', space=vmem, size = 0x8000, scoped, tag = 'input window, operand 10, single buffered']
    #allocation9 [shape = 's32[1]{0}', space=sflag, size = 0x4, scoped, tag = 'scoped memory for tpu_custom_call.1']
    #allocation10 [shape = 'u8[32768]{0}', space=vmem, size = 0x8000, scoped, tag = 'input window, operand 12, single buffered']
    #allocation11 [shape = 'u8[32768]{0}', space=vmem, size = 0x8000, scoped, tag = 'input window, operand 14, single buffered']
    #allocation12 [shape = 's32[1]{0}', space=sflag, size = 0x4, scoped, tag = 'scoped memory for tpu_custom_call.1']
    #allocation13 [shape = 'u8[8192]{0}', space=vmem, size = 0x2000, scoped, tag = 'output window, operand 0']
    %27 = vsyncpa [#allocation3], 0
    %s28 = scalar_lea.sflag [#allocation3], 1
    %29 = vsyncpa %s28, 0
    %30 = vsyncpa [#allocation6], 0
    %s31 = scalar_lea.sflag [#allocation6], 1
    %32 = vsyncpa %s31, 0
    %33 = vsyncpa [#allocation9], 0
    %34 = vsyncpa [#allocation12], 0
    %35 = vsyncpa [#allocation4], 0
    %s36 = scalar_lea.sflag [#allocation4], 1
    %37 = vsyncpa %s36, 0
    loop: start=0, step=1, limit=4
    $region2: #{tpu_custom_call.1} parent=1 // loop_pre_header
      _
    $region3: #{tpu_custom_call.1} parent=1 // loop_header
      %s39 = sphi 0, %s43
      %p40 = scmp.ge.s32.totalorder %s39, 4
      %s49 = sphi 0, %s51
      %s52 = sphi 0, %s49
      %s53 = sphi 0, %s52
      %s69 = sphi 0, %s53
      %s75 = sphi 0, %s77
      %s78 = sphi 0, %s75
      %s79 = sphi 0, %s78
      %s95 = sphi 0, %s79
      %s101 = sphi 0, %s103
      %s104 = sphi 0, %s101
      %s105 = sphi 0, %s104
      %s121 = sphi 0, %s105
      %s127 = sphi 0, %s129
      %s130 = sphi 0, %s127
      %s131 = sphi 0, %s130
      %s147 = sphi 0, %s131
      %s151 = sphi 0, %s151
      %s153 = sphi 0, %s151
      %s154 = sphi 0, %s153
      %s168 = sphi 0, %s154
      %s172 = sphi 0, %s172
      %s174 = sphi 0, %s172
      %s175 = sphi 0, %s174
      %s189 = sphi 0, %s175
      %s193 = sphi 0, %s193
      %s195 = sphi 0, %s193
      %s196 = sphi 0, %s195
      %s210 = sphi 0, %s196
      %s214 = sphi 0, %s214
      %s216 = sphi 0, %s214
      %s217 = sphi 0, %s216
      %s231 = sphi 0, %s217
      %s235 = sphi 0, %s235
      %s237 = sphi 0, %s235
      %s238 = sphi 0, %s237
      %s252 = sphi 0, %s238
      %s256 = sphi 0, %s256
      %s258 = sphi 0, %s256
      %s259 = sphi 0, %s258
      %s273 = sphi 0, %s259
      %s277 = sphi 0, %s277
      %s279 = sphi 0, %s277
      %s280 = sphi 0, %s279
      %s294 = sphi 0, %s280
      %s298 = sphi 0, %s298
      %s300 = sphi 0, %s298
      %s301 = sphi 0, %s300
      %s315 = sphi 0, %s301
      %s319 = sphi 0, %s319
      %s321 = sphi 0, %s319
      %s322 = sphi 0, %s321
      %s336 = sphi 0, %s322
      %s340 = sphi 0, %s340
      %s342 = sphi 0, %s340
      %s343 = sphi 0, %s342
      %s357 = sphi 0, %s343
      %s361 = sphi 0, %s361
      %s363 = sphi 0, %s361
      %s364 = sphi 0, %s363
      %s378 = sphi 0, %s364
      %s382 = sphi 0, %s382
      %s384 = sphi 0, %s382
      %s385 = sphi 0, %s384
      %s399 = sphi 0, %s385
      %s403 = sphi 0, %s403
      %s405 = sphi 0, %s403
      %s406 = sphi 0, %s405
      %s420 = sphi 0, %s406
      %s424 = sphi 0, %s424
      %s426 = sphi 0, %s424
      %s427 = sphi 0, %s426
      %s441 = sphi 0, %s427
      %s445 = sphi 0, %s445
      %s447 = sphi 0, %s445
      %s448 = sphi 0, %s447
      %s462 = sphi 0, %s448
      %s466 = sphi 0, %s466
      %s468 = sphi 0, %s466
      %s469 = sphi 0, %s468
      %s483 = sphi 0, %s469
      %s487 = sphi 0, %s487
      %s489 = sphi 0, %s487
      %s490 = sphi 0, %s489
      %s504 = sphi 0, %s490
      %s508 = sphi 0, %s508
      %s510 = sphi 0, %s508
      %s511 = sphi 0, %s510
      %s525 = sphi 0, %s511
      %s531 = sphi 0, %s533
      %s534 = sphi 0, %s531
      %s535 = sphi 0, %s534
      %s551 = sphi 0, %s535
    $region4: #{tpu_custom_call.1} parent=1 // loop_header_branch
      %42 = sbr.rel (%p40) target = $region8
    $region5: #{tpu_custom_call.1} parent=1 // loop_body
      %s44 = ssub.s32 %s39, 1
      %s45 = ssub.s32 %s39, 2
      %s46 = sadd.s32 %s39, 1
      %s47 = ssub.s32 %s39, %s46
      %p48 = scmp.eq.s32.totalorder %s47, 0
      %s50 = sadd.s32 %s49, 1
      %s51 = scalar_select %p48, %s49, %s50
      %p54 = pneg %p48
      %p55 = scmp.eq.s32.totalorder %s39, 1
      %p56 = por %p54, %p55
      %p57 = scmp.ne.s32.totalorder %s49, %s52
      %p58 = scmp.eq.s32.totalorder %s39, 0
      %p59 = por %p57, %p58
      %p60 = scmp.ne.s32.totalorder %s49, %s52
      %p61 = scmp.eq.s32.totalorder %s44, 1
      %p62 = por %p60, %p61
      %p63 = scmp.ne.s32.totalorder %s52, %s53
      %p64 = scmp.eq.s32.totalorder %s44, 0
      %p65 = por %p63, %p64
      %p66 = scmp.ne.s32.totalorder %s52, %s53
      %p67 = scmp.eq.s32.totalorder %s45, 1
      %p68 = por %p66, %p67
      %p70 = scmp.ne.s32.totalorder %s53, %s69
      %p71 = scmp.eq.s32.totalorder %s45, 0
      %p72 = por %p70, %p71
      %s73 = ssub.s32 %s39, %s46
      %p74 = scmp.eq.s32.totalorder %s73, 0
      %s76 = sadd.s32 %s75, 1
      %s77 = scalar_select %p74, %s75, %s76
      %p80 = pneg %p74
      %p81 = scmp.eq.s32.totalorder %s39, 1
      %p82 = por %p80, %p81
      %p83 = scmp.ne.s32.totalorder %s75, %s78
      %p84 = scmp.eq.s32.totalorder %s39, 0
      %p85 = por %p83, %p84
      %p86 = scmp.ne.s32.totalorder %s75, %s78
      %p87 = scmp.eq.s32.totalorder %s44, 1
      %p88 = por %p86, %p87
      %p89 = scmp.ne.s32.totalorder %s78, %s79
      %p90 = scmp.eq.s32.totalorder %s44, 0
      %p91 = por %p89, %p90
      %p92 = scmp.ne.s32.totalorder %s78, %s79
      %p93 = scmp.eq.s32.totalorder %s45, 1
      %p94 = por %p92, %p93
      %p96 = scmp.ne.s32.totalorder %s79, %s95
      %p97 = scmp.eq.s32.totalorder %s45, 0
      %p98 = por %p96, %p97
      %s99 = ssub.s32 %s39, %s46
      %p100 = scmp.eq.s32.totalorder %s99, 0
      %s102 = sadd.s32 %s101, 1
      %s103 = scalar_select %p100, %s101, %s102
      %p106 = pneg %p100
      %p107 = scmp.eq.s32.totalorder %s39, 1
      %p108 = por %p106, %p107
      %p109 = scmp.ne.s32.totalorder %s101, %s104
      %p110 = scmp.eq.s32.totalorder %s39, 0
      %p111 = por %p109, %p110
      %p112 = scmp.ne.s32.totalorder %s101, %s104
      %p113 = scmp.eq.s32.totalorder %s44, 1
      %p114 = por %p112, %p113
      %p115 = scmp.ne.s32.totalorder %s104, %s105
      %p116 = scmp.eq.s32.totalorder %s44, 0
      %p117 = por %p115, %p116
      %p118 = scmp.ne.s32.totalorder %s104, %s105
      %p119 = scmp.eq.s32.totalorder %s45, 1
      %p120 = por %p118, %p119
      %p122 = scmp.ne.s32.totalorder %s105, %s121
      %p123 = scmp.eq.s32.totalorder %s45, 0
      %p124 = por %p122, %p123
      %s125 = ssub.s32 %s39, %s46
      %p126 = scmp.eq.s32.totalorder %s125, 0
      %s128 = sadd.s32 %s127, 1
      %s129 = scalar_select %p126, %s127, %s128
      %p132 = pneg %p126
      %p133 = scmp.eq.s32.totalorder %s39, 1
      %p134 = por %p132, %p133
      %p135 = scmp.ne.s32.totalorder %s127, %s130
      %p136 = scmp.eq.s32.totalorder %s39, 0
      %p137 = por %p135, %p136
      %p138 = scmp.ne.s32.totalorder %s127, %s130
      %p139 = scmp.eq.s32.totalorder %s44, 1
      %p140 = por %p138, %p139
      %p141 = scmp.ne.s32.totalorder %s130, %s131
      %p142 = scmp.eq.s32.totalorder %s44, 0
      %p143 = por %p141, %p142
      %p144 = scmp.ne.s32.totalorder %s130, %s131
      %p145 = scmp.eq.s32.totalorder %s45, 1
      %p146 = por %p144, %p145
      %p148 = scmp.ne.s32.totalorder %s131, %s147
      %p149 = scmp.eq.s32.totalorder %s45, 0
      %p150 = por %p148, %p149
      %s152 = sadd.s32 %s151, 1
      %p155 = scmp.eq.s32.totalorder %s39, 1
      %p156 = scmp.ne.s32.totalorder %s151, %s153
      %p157 = scmp.eq.s32.totalorder %s39, 0
      %p158 = por %p156, %p157
      %p159 = scmp.ne.s32.totalorder %s151, %s153
      %p160 = scmp.eq.s32.totalorder %s44, 1
      %p161 = por %p159, %p160
      %p162 = scmp.ne.s32.totalorder %s153, %s154
      %p163 = scmp.eq.s32.totalorder %s44, 0
      %p164 = por %p162, %p163
      %p165 = scmp.ne.s32.totalorder %s153, %s154
      %p166 = scmp.eq.s32.totalorder %s45, 1
      %p167 = por %p165, %p166
      %p169 = scmp.ne.s32.totalorder %s154, %s168
      %p170 = scmp.eq.s32.totalorder %s45, 0
      %p171 = por %p169, %p170
      %s173 = sadd.s32 %s172, 1
      %p176 = scmp.eq.s32.totalorder %s39, 1
      %p177 = scmp.ne.s32.totalorder %s172, %s174
      %p178 = scmp.eq.s32.totalorder %s39, 0
      %p179 = por %p177, %p178
      %p180 = scmp.ne.s32.totalorder %s172, %s174
      %p181 = scmp.eq.s32.totalorder %s44, 1
      %p182 = por %p180, %p181
      %p183 = scmp.ne.s32.totalorder %s174, %s175
      %p184 = scmp.eq.s32.totalorder %s44, 0
      %p185 = por %p183, %p184
      %p186 = scmp.ne.s32.totalorder %s174, %s175
      %p187 = scmp.eq.s32.totalorder %s45, 1
      %p188 = por %p186, %p187
      %p190 = scmp.ne.s32.totalorder %s175, %s189
      %p191 = scmp.eq.s32.totalorder %s45, 0
      %p192 = por %p190, %p191
      %s194 = sadd.s32 %s193, 1
      %p197 = scmp.eq.s32.totalorder %s39, 1
      %p198 = scmp.ne.s32.totalorder %s193, %s195
      %p199 = scmp.eq.s32.totalorder %s39, 0
      %p200 = por %p198, %p199
      %p201 = scmp.ne.s32.totalorder %s193, %s195
      %p202 = scmp.eq.s32.totalorder %s44, 1
      %p203 = por %p201, %p202
      %p204 = scmp.ne.s32.totalorder %s195, %s196
      %p205 = scmp.eq.s32.totalorder %s44, 0
      %p206 = por %p204, %p205
      %p207 = scmp.ne.s32.totalorder %s195, %s196
      %p208 = scmp.eq.s32.totalorder %s45, 1
      %p209 = por %p207, %p208
      %p211 = scmp.ne.s32.totalorder %s196, %s210
      %p212 = scmp.eq.s32.totalorder %s45, 0
      %p213 = por %p211, %p212
      %s215 = sadd.s32 %s214, 1
      %p218 = scmp.eq.s32.totalorder %s39, 1
      %p219 = scmp.ne.s32.totalorder %s214, %s216
      %p220 = scmp.eq.s32.totalorder %s39, 0
      %p221 = por %p219, %p220
      %p222 = scmp.ne.s32.totalorder %s214, %s216
      %p223 = scmp.eq.s32.totalorder %s44, 1
      %p224 = por %p222, %p223
      %p225 = scmp.ne.s32.totalorder %s216, %s217
      %p226 = scmp.eq.s32.totalorder %s44, 0
      %p227 = por %p225, %p226
      %p228 = scmp.ne.s32.totalorder %s216, %s217
      %p229 = scmp.eq.s32.totalorder %s45, 1
      %p230 = por %p228, %p229
      %p232 = scmp.ne.s32.totalorder %s217, %s231
      %p233 = scmp.eq.s32.totalorder %s45, 0
      %p234 = por %p232, %p233
      %s236 = sadd.s32 %s235, 1
      %p239 = scmp.eq.s32.totalorder %s39, 1
      %p240 = scmp.ne.s32.totalorder %s235, %s237
      %p241 = scmp.eq.s32.totalorder %s39, 0
      %p242 = por %p240, %p241
      %p243 = scmp.ne.s32.totalorder %s235, %s237
      %p244 = scmp.eq.s32.totalorder %s44, 1
      %p245 = por %p243, %p244
      %p246 = scmp.ne.s32.totalorder %s237, %s238
      %p247 = scmp.eq.s32.totalorder %s44, 0
      %p248 = por %p246, %p247
      %p249 = scmp.ne.s32.totalorder %s237, %s238
      %p250 = scmp.eq.s32.totalorder %s45, 1
      %p251 = por %p249, %p250
      %p253 = scmp.ne.s32.totalorder %s238, %s252
      %p254 = scmp.eq.s32.totalorder %s45, 0
      %p255 = por %p253, %p254
      %s257 = sadd.s32 %s256, 1
      %p260 = scmp.eq.s32.totalorder %s39, 1
      %p261 = scmp.ne.s32.totalorder %s256, %s258
      %p262 = scmp.eq.s32.totalorder %s39, 0
      %p263 = por %p261, %p262
      %p264 = scmp.ne.s32.totalorder %s256, %s258
      %p265 = scmp.eq.s32.totalorder %s44, 1
      %p266 = por %p264, %p265
      %p267 = scmp.ne.s32.totalorder %s258, %s259
      %p268 = scmp.eq.s32.totalorder %s44, 0
      %p269 = por %p267, %p268
      %p270 = scmp.ne.s32.totalorder %s258, %s259
      %p271 = scmp.eq.s32.totalorder %s45, 1
      %p272 = por %p270, %p271
      %p274 = scmp.ne.s32.totalorder %s259, %s273
      %p275 = scmp.eq.s32.totalorder %s45, 0
      %p276 = por %p274, %p275
      %s278 = sadd.s32 %s277, 1
      %p281 = scmp.eq.s32.totalorder %s39, 1
      %p282 = scmp.ne.s32.totalorder %s277, %s279
      %p283 = scmp.eq.s32.totalorder %s39, 0
      %p284 = por %p282, %p283
      %p285 = scmp.ne.s32.totalorder %s277, %s279
      %p286 = scmp.eq.s32.totalorder %s44, 1
      %p287 = por %p285, %p286
      %p288 = scmp.ne.s32.totalorder %s279, %s280
      %p289 = scmp.eq.s32.totalorder %s44, 0
      %p290 = por %p288, %p289
      %p291 = scmp.ne.s32.totalorder %s279, %s280
      %p292 = scmp.eq.s32.totalorder %s45, 1
      %p293 = por %p291, %p292
      %p295 = scmp.ne.s32.totalorder %s280, %s294
      %p296 = scmp.eq.s32.totalorder %s45, 0
      %p297 = por %p295, %p296
      %s299 = sadd.s32 %s298, 1
      %p302 = scmp.eq.s32.totalorder %s39, 1
      %p303 = scmp.ne.s32.totalorder %s298, %s300
      %p304 = scmp.eq.s32.totalorder %s39, 0
      %p305 = por %p303, %p304
      %p306 = scmp.ne.s32.totalorder %s298, %s300
      %p307 = scmp.eq.s32.totalorder %s44, 1
      %p308 = por %p306, %p307
      %p309 = scmp.ne.s32.totalorder %s300, %s301
      %p310 = scmp.eq.s32.totalorder %s44, 0
      %p311 = por %p309, %p310
      %p312 = scmp.ne.s32.totalorder %s300, %s301
      %p313 = scmp.eq.s32.totalorder %s45, 1
      %p314 = por %p312, %p313
      %p316 = scmp.ne.s32.totalorder %s301, %s315
      %p317 = scmp.eq.s32.totalorder %s45, 0
      %p318 = por %p316, %p317
      %s320 = sadd.s32 %s319, 1
      %p323 = scmp.eq.s32.totalorder %s39, 1
      %p324 = scmp.ne.s32.totalorder %s319, %s321
      %p325 = scmp.eq.s32.totalorder %s39, 0
      %p326 = por %p324, %p325
      %p327 = scmp.ne.s32.totalorder %s319, %s321
      %p328 = scmp.eq.s32.totalorder %s44, 1
      %p329 = por %p327, %p328
      %p330 = scmp.ne.s32.totalorder %s321, %s322
      %p331 = scmp.eq.s32.totalorder %s44, 0
      %p332 = por %p330, %p331
      %p333 = scmp.ne.s32.totalorder %s321, %s322
      %p334 = scmp.eq.s32.totalorder %s45, 1
      %p335 = por %p333, %p334
      %p337 = scmp.ne.s32.totalorder %s322, %s336
      %p338 = scmp.eq.s32.totalorder %s45, 0
      %p339 = por %p337, %p338
      %s341 = sadd.s32 %s340, 1
      %p344 = scmp.eq.s32.totalorder %s39, 1
      %p345 = scmp.ne.s32.totalorder %s340, %s342
      %p346 = scmp.eq.s32.totalorder %s39, 0
      %p347 = por %p345, %p346
      %p348 = scmp.ne.s32.totalorder %s340, %s342
      %p349 = scmp.eq.s32.totalorder %s44, 1
      %p350 = por %p348, %p349
      %p351 = scmp.ne.s32.totalorder %s342, %s343
      %p352 = scmp.eq.s32.totalorder %s44, 0
      %p353 = por %p351, %p352
      %p354 = scmp.ne.s32.totalorder %s342, %s343
      %p355 = scmp.eq.s32.totalorder %s45, 1
      %p356 = por %p354, %p355
      %p358 = scmp.ne.s32.totalorder %s343, %s357
      %p359 = scmp.eq.s32.totalorder %s45, 0
      %p360 = por %p358, %p359
      %s362 = sadd.s32 %s361, 1
      %p365 = scmp.eq.s32.totalorder %s39, 1
      %p366 = scmp.ne.s32.totalorder %s361, %s363
      %p367 = scmp.eq.s32.totalorder %s39, 0
      %p368 = por %p366, %p367
      %p369 = scmp.ne.s32.totalorder %s361, %s363
      %p370 = scmp.eq.s32.totalorder %s44, 1
      %p371 = por %p369, %p370
      %p372 = scmp.ne.s32.totalorder %s363, %s364
      %p373 = scmp.eq.s32.totalorder %s44, 0
      %p374 = por %p372, %p373
      %p375 = scmp.ne.s32.totalorder %s363, %s364
      %p376 = scmp.eq.s32.totalorder %s45, 1
      %p377 = por %p375, %p376
      %p379 = scmp.ne.s32.totalorder %s364, %s378
      %p380 = scmp.eq.s32.totalorder %s45, 0
      %p381 = por %p379, %p380
      %s383 = sadd.s32 %s382, 1
      %p386 = scmp.eq.s32.totalorder %s39, 1
      %p387 = scmp.ne.s32.totalorder %s382, %s384
      %p388 = scmp.eq.s32.totalorder %s39, 0
      %p389 = por %p387, %p388
      %p390 = scmp.ne.s32.totalorder %s382, %s384
      %p391 = scmp.eq.s32.totalorder %s44, 1
      %p392 = por %p390, %p391
      %p393 = scmp.ne.s32.totalorder %s384, %s385
      %p394 = scmp.eq.s32.totalorder %s44, 0
      %p395 = por %p393, %p394
      %p396 = scmp.ne.s32.totalorder %s384, %s385
      %p397 = scmp.eq.s32.totalorder %s45, 1
      %p398 = por %p396, %p397
      %p400 = scmp.ne.s32.totalorder %s385, %s399
      %p401 = scmp.eq.s32.totalorder %s45, 0
      %p402 = por %p400, %p401
      %s404 = sadd.s32 %s403, 1
      %p407 = scmp.eq.s32.totalorder %s39, 1
      %p408 = scmp.ne.s32.totalorder %s403, %s405
      %p409 = scmp.eq.s32.totalorder %s39, 0
      %p410 = por %p408, %p409
      %p411 = scmp.ne.s32.totalorder %s403, %s405
      %p412 = scmp.eq.s32.totalorder %s44, 1
      %p413 = por %p411, %p412
      %p414 = scmp.ne.s32.totalorder %s405, %s406
      %p415 = scmp.eq.s32.totalorder %s44, 0
      %p416 = por %p414, %p415
      %p417 = scmp.ne.s32.totalorder %s405, %s406
      %p418 = scmp.eq.s32.totalorder %s45, 1
      %p419 = por %p417, %p418
      %p421 = scmp.ne.s32.totalorder %s406, %s420
      %p422 = scmp.eq.s32.totalorder %s45, 0
      %p423 = por %p421, %p422
      %s425 = sadd.s32 %s424, 1
      %p428 = scmp.eq.s32.totalorder %s39, 1
      %p429 = scmp.ne.s32.totalorder %s424, %s426
      %p430 = scmp.eq.s32.totalorder %s39, 0
      %p431 = por %p429, %p430
      %p432 = scmp.ne.s32.totalorder %s424, %s426
      %p433 = scmp.eq.s32.totalorder %s44, 1
      %p434 = por %p432, %p433
      %p435 = scmp.ne.s32.totalorder %s426, %s427
      %p436 = scmp.eq.s32.totalorder %s44, 0
      %p437 = por %p435, %p436
      %p438 = scmp.ne.s32.totalorder %s426, %s427
      %p439 = scmp.eq.s32.totalorder %s45, 1
      %p440 = por %p438, %p439
      %p442 = scmp.ne.s32.totalorder %s427, %s441
      %p443 = scmp.eq.s32.totalorder %s45, 0
      %p444 = por %p442, %p443
      %s446 = sadd.s32 %s445, 1
      %p449 = scmp.eq.s32.totalorder %s39, 1
      %p450 = scmp.ne.s32.totalorder %s445, %s447
      %p451 = scmp.eq.s32.totalorder %s39, 0
      %p452 = por %p450, %p451
      %p453 = scmp.ne.s32.totalorder %s445, %s447
      %p454 = scmp.eq.s32.totalorder %s44, 1
      %p455 = por %p453, %p454
      %p456 = scmp.ne.s32.totalorder %s447, %s448
      %p457 = scmp.eq.s32.totalorder %s44, 0
      %p458 = por %p456, %p457
      %p459 = scmp.ne.s32.totalorder %s447, %s448
      %p460 = scmp.eq.s32.totalorder %s45, 1
      %p461 = por %p459, %p460
      %p463 = scmp.ne.s32.totalorder %s448, %s462
      %p464 = scmp.eq.s32.totalorder %s45, 0
      %p465 = por %p463, %p464
      %s467 = sadd.s32 %s466, 1
      %p470 = scmp.eq.s32.totalorder %s39, 1
      %p471 = scmp.ne.s32.totalorder %s466, %s468
      %p472 = scmp.eq.s32.totalorder %s39, 0
      %p473 = por %p471, %p472
      %p474 = scmp.ne.s32.totalorder %s466, %s468
      %p475 = scmp.eq.s32.totalorder %s44, 1
      %p476 = por %p474, %p475
      %p477 = scmp.ne.s32.totalorder %s468, %s469
      %p478 = scmp.eq.s32.totalorder %s44, 0
      %p479 = por %p477, %p478
      %p480 = scmp.ne.s32.totalorder %s468, %s469
      %p481 = scmp.eq.s32.totalorder %s45, 1
      %p482 = por %p480, %p481
      %p484 = scmp.ne.s32.totalorder %s469, %s483
      %p485 = scmp.eq.s32.totalorder %s45, 0
      %p486 = por %p484, %p485
      %s488 = sadd.s32 %s487, 1
      %p491 = scmp.eq.s32.totalorder %s39, 1
      %p492 = scmp.ne.s32.totalorder %s487, %s489
      %p493 = scmp.eq.s32.totalorder %s39, 0
      %p494 = por %p492, %p493
      %p495 = scmp.ne.s32.totalorder %s487, %s489
      %p496 = scmp.eq.s32.totalorder %s44, 1
      %p497 = por %p495, %p496
      %p498 = scmp.ne.s32.totalorder %s489, %s490
      %p499 = scmp.eq.s32.totalorder %s44, 0
      %p500 = por %p498, %p499
      %p501 = scmp.ne.s32.totalorder %s489, %s490
      %p502 = scmp.eq.s32.totalorder %s45, 1
      %p503 = por %p501, %p502
      %p505 = scmp.ne.s32.totalorder %s490, %s504
      %p506 = scmp.eq.s32.totalorder %s45, 0
      %p507 = por %p505, %p506
      %s509 = sadd.s32 %s508, 1
      %p512 = scmp.eq.s32.totalorder %s39, 1
      %p513 = scmp.ne.s32.totalorder %s508, %s510
      %p514 = scmp.eq.s32.totalorder %s39, 0
      %p515 = por %p513, %p514
      %p516 = scmp.ne.s32.totalorder %s508, %s510
      %p517 = scmp.eq.s32.totalorder %s44, 1
      %p518 = por %p516, %p517
      %p519 = scmp.ne.s32.totalorder %s510, %s511
      %p520 = scmp.eq.s32.totalorder %s44, 0
      %p521 = por %p519, %p520
      %p522 = scmp.ne.s32.totalorder %s510, %s511
      %p523 = scmp.eq.s32.totalorder %s45, 1
      %p524 = por %p522, %p523
      %p526 = scmp.ne.s32.totalorder %s511, %s525
      %p527 = scmp.eq.s32.totalorder %s45, 0
      %p528 = por %p526, %p527
      %s529 = ssub.s32 %s39, %s46
      %p530 = scmp.eq.s32.totalorder %s529, 0
      %s532 = sadd.s32 %s531, 1
      %s533 = scalar_select %p530, %s531, %s532
      %p536 = pneg %p530
      %p537 = scmp.eq.s32.totalorder %s39, 1
      %p538 = por %p536, %p537
      %p539 = scmp.ne.s32.totalorder %s531, %s534
      %p540 = scmp.eq.s32.totalorder %s39, 0
      %p541 = por %p539, %p540
      %p542 = scmp.ne.s32.totalorder %s531, %s534
      %p543 = scmp.eq.s32.totalorder %s44, 1
      %p544 = por %p542, %p543
      %p545 = scmp.ne.s32.totalorder %s534, %s535
      %p546 = scmp.eq.s32.totalorder %s44, 0
      %p547 = por %p545, %p546
      %p548 = scmp.ne.s32.totalorder %s534, %s535
      %p549 = scmp.eq.s32.totalorder %s45, 1
      %p550 = por %p548, %p549
      %p552 = scmp.ne.s32.totalorder %s535, %s551
      %p553 = scmp.eq.s32.totalorder %s45, 0
      %p554 = por %p552, %p553
      %p555 = scmp.le.s32.totalorder 1, %s39
      %p556 = scmp.lt.s32.totalorder %s39, 3
      %p557 = pnand %p555, %p556
      %p558 = pneg %p557
      // Predicated region
      $region9: #{tpu_custom_call.1} parent=5 // pred_check
        _
      $region10: #{tpu_custom_call.1} parent=5 // pred_check_branch
        %560 = sbr.rel (%p557) target = $region12
      $region11: #{tpu_custom_call.1} parent=5 // pred_region
        %s561 = ssub.s32 %s39, 1
        // Predicated region
        $region13: #{tpu_custom_call.1} parent=11 // pred_check
          %p562 = pneg %p164
        $region14: #{tpu_custom_call.1} parent=11 // pred_check_branch
          %564 = sbr.rel (%p562) target = $region16
        $region15: #{tpu_custom_call.1} parent=11 // pred_region
          _
        $region16: #{tpu_custom_call.1} parent=11 // pred_fallthru
          _
        // Predicated region
        $region17: #{tpu_custom_call.1} parent=11 // pred_check
          %p565 = pneg %p185
        $region18: #{tpu_custom_call.1} parent=11 // pred_check_branch
          %567 = sbr.rel (%p565) target = $region20
        $region19: #{tpu_custom_call.1} parent=11 // pred_region
          _
        $region20: #{tpu_custom_call.1} parent=11 // pred_fallthru
          _
        // Predicated region
        $region21: #{tpu_custom_call.1} parent=11 // pred_check
          %p568 = pneg %p206
        $region22: #{tpu_custom_call.1} parent=11 // pred_check_branch
          %570 = sbr.rel (%p568) target = $region24
        $region23: #{tpu_custom_call.1} parent=11 // pred_region
          _
        $region24: #{tpu_custom_call.1} parent=11 // pred_fallthru
          _
        // Predicated region
        $region25: #{tpu_custom_call.1} parent=11 // pred_check
          %p571 = pneg %p227
        $region26: #{tpu_custom_call.1} parent=11 // pred_check_branch
          %573 = sbr.rel (%p571) target = $region28
        $region27: #{tpu_custom_call.1} parent=11 // pred_region
          _
        $region28: #{tpu_custom_call.1} parent=11 // pred_fallthru
          _
        // Predicated region
        $region29: #{tpu_custom_call.1} parent=11 // pred_check
          %p574 = pneg %p248
        $region30: #{tpu_custom_call.1} parent=11 // pred_check_branch
          %576 = sbr.rel (%p574) target = $region32
        $region31: #{tpu_custom_call.1} parent=11 // pred_region
          _
        $region32: #{tpu_custom_call.1} parent=11 // pred_fallthru
          _
        // Predicated region
        $region33: #{tpu_custom_call.1} parent=11 // pred_check
          %p577 = pneg %p269
        $region34: #{tpu_custom_call.1} parent=11 // pred_check_branch
          %579 = sbr.rel (%p577) target = $region36
        $region35: #{tpu_custom_call.1} parent=11 // pred_region
          _
        $region36: #{tpu_custom_call.1} parent=11 // pred_fallthru
          _
        // Predicated region
        $region37: #{tpu_custom_call.1} parent=11 // pred_check
          %p580 = pneg %p290
        $region38: #{tpu_custom_call.1} parent=11 // pred_check_branch
          %582 = sbr.rel (%p580) target = $region40
        $region39: #{tpu_custom_call.1} parent=11 // pred_region
          %s584 = ssub.s32 1024, 1024
          %585 = vsyncadd [#allocation9], %s584
          %s586 = sshll.u32 [#allocation8], 4
          %s587 = int_to_ptr.vmem [resolvable:$true] %s586
          %592 = dma.hbm_to_vmem [thread:$0]  %s10, 1024, %s587, [#allocation9], 128, 128, 8
        $region40: #{tpu_custom_call.1} parent=11 // pred_fallthru
          _
        // Predicated region
        $region41: #{tpu_custom_call.1} parent=11 // pred_check
          %p593 = pneg %p311
        $region42: #{tpu_custom_call.1} parent=11 // pred_check_branch
          %595 = sbr.rel (%p593) target = $region44
        $region43: #{tpu_custom_call.1} parent=11 // pred_region
          _
        $region44: #{tpu_custom_call.1} parent=11 // pred_fallthru
          _
        // Predicated region
        $region45: #{tpu_custom_call.1} parent=11 // pred_check
          %p596 = pneg %p332
        $region46: #{tpu_custom_call.1} parent=11 // pred_check_branch
          %598 = sbr.rel (%p596) target = $region48
        $region47: #{tpu_custom_call.1} parent=11 // pred_region
          %s600 = ssub.s32 1024, 1024
          %601 = vsyncadd [#allocation9], %s600
          %s602 = sshll.u32 [#allocation10], 4
          %s603 = int_to_ptr.vmem [resolvable:$true] %s602
          %608 = dma.hbm_to_vmem [thread:$0]  %s12, 1024, %s603, [#allocation9], 128, 128, 8
        $region48: #{tpu_custom_call.1} parent=11 // pred_fallthru
          _
        // Predicated region
        $region49: #{tpu_custom_call.1} parent=11 // pred_check
          %p609 = pneg %p353
        $region50: #{tpu_custom_call.1} parent=11 // pred_check_branch
          %611 = sbr.rel (%p609) target = $region52
        $region51: #{tpu_custom_call.1} parent=11 // pred_region
          _
        $region52: #{tpu_custom_call.1} parent=11 // pred_fallthru
          _
        // Predicated region
        $region53: #{tpu_custom_call.1} parent=11 // pred_check
          %p612 = pneg %p374
        $region54: #{tpu_custom_call.1} parent=11 // pred_check_branch
          %614 = sbr.rel (%p612) target = $region56
        $region55: #{tpu_custom_call.1} parent=11 // pred_region
          %s616 = ssub.s32 1024, 1024
          %617 = vsyncadd [#allocation12], %s616
          %s618 = sshll.u32 [#allocation11], 4
          %s619 = int_to_ptr.vmem [resolvable:$true] %s618
          %624 = dma.hbm_to_vmem [thread:$0]  %s14, 1024, %s619, [#allocation12], 128, 128, 8
        $region56: #{tpu_custom_call.1} parent=11 // pred_fallthru
          _
        // Predicated region
        $region57: #{tpu_custom_call.1} parent=11 // pred_check
          %p625 = pneg %p395
        $region58: #{tpu_custom_call.1} parent=11 // pred_check_branch
          %627 = sbr.rel (%p625) target = $region60
        $region59: #{tpu_custom_call.1} parent=11 // pred_region
          _
        $region60: #{tpu_custom_call.1} parent=11 // pred_fallthru
          _
        // Predicated region
        $region61: #{tpu_custom_call.1} parent=11 // pred_check
          %p628 = pneg %p416
        $region62: #{tpu_custom_call.1} parent=11 // pred_check_branch
          %630 = sbr.rel (%p628) target = $region64
        $region63: #{tpu_custom_call.1} parent=11 // pred_region
          _
        $region64: #{tpu_custom_call.1} parent=11 // pred_fallthru
          _
        // Predicated region
        $region65: #{tpu_custom_call.1} parent=11 // pred_check
          %p631 = pneg %p437
        $region66: #{tpu_custom_call.1} parent=11 // pred_check_branch
          %633 = sbr.rel (%p631) target = $region68
        $region67: #{tpu_custom_call.1} parent=11 // pred_region
          _
        $region68: #{tpu_custom_call.1} parent=11 // pred_fallthru
          _
        // Predicated region
        $region69: #{tpu_custom_call.1} parent=11 // pred_check
          %p634 = pneg %p458
        $region70: #{tpu_custom_call.1} parent=11 // pred_check_branch
          %636 = sbr.rel (%p634) target = $region72
        $region71: #{tpu_custom_call.1} parent=11 // pred_region
          _
        $region72: #{tpu_custom_call.1} parent=11 // pred_fallthru
          _
        // Predicated region
        $region73: #{tpu_custom_call.1} parent=11 // pred_check
          %p637 = pneg %p479
        $region74: #{tpu_custom_call.1} parent=11 // pred_check_branch
          %639 = sbr.rel (%p637) target = $region76
        $region75: #{tpu_custom_call.1} parent=11 // pred_region
          _
        $region76: #{tpu_custom_call.1} parent=11 // pred_fallthru
          _
        // Predicated region
        $region77: #{tpu_custom_call.1} parent=11 // pred_check
          %p640 = pneg %p500
        $region78: #{tpu_custom_call.1} parent=11 // pred_check_branch
          %642 = sbr.rel (%p640) target = $region80
        $region79: #{tpu_custom_call.1} parent=11 // pred_region
          _
        $region80: #{tpu_custom_call.1} parent=11 // pred_fallthru
          _
        // Predicated region
        $region81: #{tpu_custom_call.1} parent=11 // pred_check
          %p643 = pneg %p521
        $region82: #{tpu_custom_call.1} parent=11 // pred_check_branch
          %645 = sbr.rel (%p643) target = $region84
        $region83: #{tpu_custom_call.1} parent=11 // pred_region
          _
        $region84: #{tpu_custom_call.1} parent=11 // pred_fallthru
          _
      $region12: #{tpu_custom_call.1} parent=5 // pred_fallthru
        _
      %p646 = scmp.lt.s32.totalorder %s39, 2
      // Predicated region
      $region85: #{tpu_custom_call.1} parent=5 // pred_check
        %p647 = pneg %p646
      $region86: #{tpu_custom_call.1} parent=5 // pred_check_branch
        %649 = sbr.rel (%p647) target = $region88
      $region87: #{tpu_custom_call.1} parent=5 // pred_region
        // Predicated region
        $region89: #{tpu_custom_call.1} parent=87 // pred_check
          %p650 = pneg %p59
        $region90: #{tpu_custom_call.1} parent=87 // pred_check_branch
          %652 = sbr.rel (%p650) target = $region92
        $region91: #{tpu_custom_call.1} parent=87 // pred_region
          %p653 = scmp.lt.s32.totalorder %s39, 1
          %s654 = scalar_select %p653, %s39, 1
          %s655 = smul.addr %s654, 8
          %s656 = scalar_lea.vmem %s0, %s655
        $region92: #{tpu_custom_call.1} parent=87 // pred_fallthru
          _
        // Predicated region
        $region93: #{tpu_custom_call.1} parent=87 // pred_check
          %p657 = pneg %p85
        $region94: #{tpu_custom_call.1} parent=87 // pred_check_branch
          %659 = sbr.rel (%p657) target = $region96
        $region95: #{tpu_custom_call.1} parent=87 // pred_region
          %s660 = sand.u32 %s75, 1
          %s661 = scalar_lea.sflag [#allocation3], %s660
          %s662 = sand.u32 %s75, 1
          %s663 = smul.addr %s662, 16
          %s664 = scalar_lea.vmem [#allocation2], %s663
          %s666 = ssub.s32 256, 256
          %667 = vsyncadd %s661, %s666
          %s668 = smul.addr %s39, 2
          %s669 = smul.addr %s668, 128
          %s670 = scalar_lea.hbm %s1, %s669
          %s671 = sshll.u32 %s664, 4
          %s672 = int_to_ptr.vmem [resolvable:$true] %s671
          %677 = dma.hbm_to_vmem [thread:$0]  %s670, 256, %s672, %s661, 128, 128, 8
        $region96: #{tpu_custom_call.1} parent=87 // pred_fallthru
          _
        // Predicated region
        $region97: #{tpu_custom_call.1} parent=87 // pred_check
          %p678 = pneg %p111
        $region98: #{tpu_custom_call.1} parent=87 // pred_check_branch
          %680 = sbr.rel (%p678) target = $region100
        $region99: #{tpu_custom_call.1} parent=87 // pred_region
          %s681 = sand.u32 %s39, 1
          %s682 = scalar_lea.sflag [#allocation6], %s681
          %s683 = sand.u32 %s101, 1
          %s684 = smul.addr %s683, 8
          %s685 = scalar_lea.vmem [#allocation5], %s684
          %s687 = ssub.s32 128, 128
          %688 = vsyncadd %s682, %s687
          %s689 = smul.addr %s39, 128
          %s690 = scalar_lea.hbm %s2, %s689
          %s692 = sshll.u32 %s685, 4
          %s693 = int_to_ptr.vmem [resolvable:$true] %s692
          %695 = dma.hbm_to_vmem [thread:$0]  %s690, 128, %s693, %s682
        $region100: #{tpu_custom_call.1} parent=87 // pred_fallthru
          _
        // Predicated region
        $region101: #{tpu_custom_call.1} parent=87 // pred_check
          %p696 = pneg %p137
        $region102: #{tpu_custom_call.1} parent=87 // pred_check_branch
          %698 = sbr.rel (%p696) target = $region104
        $region103: #{tpu_custom_call.1} parent=87 // pred_region
          %s699 = sand.u32 %s39, 1
          %s700 = scalar_lea.sflag [#allocation6], %s699
          %s701 = sand.u32 %s127, 1
          %s702 = smul.addr %s701, 8
          %s703 = scalar_lea.vmem [#allocation7], %s702
          %s705 = ssub.s32 128, 128
          %706 = vsyncadd %s700, %s705
          %s707 = smul.addr %s39, 128
          %s708 = scalar_lea.hbm %s3, %s707
          %s710 = sshll.u32 %s703, 4
          %s711 = int_to_ptr.vmem [resolvable:$true] %s710
          %713 = dma.hbm_to_vmem [thread:$0]  %s708, 128, %s711, %s700
        $region104: #{tpu_custom_call.1} parent=87 // pred_fallthru
          _
      $region88: #{tpu_custom_call.1} parent=5 // pred_fallthru
        _
      %p714 = scmp.le.s32.totalorder 1, %s39
      %p715 = scmp.lt.s32.totalorder %s39, 3
      %p716 = pnand %p714, %p715
      %p717 = pneg %p716
      // Predicated region
      $region105: #{tpu_custom_call.1} parent=5 // pred_check
        _
      $region106: #{tpu_custom_call.1} parent=5 // pred_check_branch
        %719 = sbr.rel (%p716) target = $region108
      $region107: #{tpu_custom_call.1} parent=5 // pred_region
        %s720 = ssub.s32 %s39, 1
        %s721 = sand.u32 %s78, 1
        %s722 = scalar_lea.sflag [#allocation3], %s721
        %s723 = sand.u32 %s78, 1
        %s724 = smul.addr %s723, 16
        %s725 = scalar_lea.vmem [#allocation2], %s724
        // Predicated region
        $region109: #{tpu_custom_call.1} parent=107 // pred_check
          %p726 = pneg %p91
        $region110: #{tpu_custom_call.1} parent=107 // pred_check_branch
          %728 = sbr.rel (%p726) target = $region112
        $region111: #{tpu_custom_call.1} parent=107 // pred_region
          %729 = dma.done %s722, 256
        $region112: #{tpu_custom_call.1} parent=107 // pred_fallthru
          _
        %s730 = sand.u32 %s44, 1
        %s731 = scalar_lea.sflag [#allocation6], %s730
        %s732 = sand.u32 %s104, 1
        %s733 = smul.addr %s732, 8
        %s734 = scalar_lea.vmem [#allocation5], %s733
        // Predicated region
        $region113: #{tpu_custom_call.1} parent=107 // pred_check
          %p735 = pneg %p117
        $region114: #{tpu_custom_call.1} parent=107 // pred_check_branch
          %737 = sbr.rel (%p735) target = $region116
        $region115: #{tpu_custom_call.1} parent=107 // pred_region
          %738 = dma.done %s731, 128
        $region116: #{tpu_custom_call.1} parent=107 // pred_fallthru
          _
        %s739 = sand.u32 %s44, 1
        %s740 = scalar_lea.sflag [#allocation6], %s739
        %s741 = sand.u32 %s130, 1
        %s742 = smul.addr %s741, 8
        %s743 = scalar_lea.vmem [#allocation7], %s742
        // Predicated region
        $region117: #{tpu_custom_call.1} parent=107 // pred_check
          %p744 = pneg %p143
        $region118: #{tpu_custom_call.1} parent=107 // pred_check_branch
          %746 = sbr.rel (%p744) target = $region120
        $region119: #{tpu_custom_call.1} parent=107 // pred_region
          %747 = dma.done %s740, 128
        $region120: #{tpu_custom_call.1} parent=107 // pred_fallthru
          _
        // Predicated region
        $region121: #{tpu_custom_call.1} parent=107 // pred_check
          %p748 = pneg %p290
        $region122: #{tpu_custom_call.1} parent=107 // pred_check_branch
          %750 = sbr.rel (%p748) target = $region124
        $region123: #{tpu_custom_call.1} parent=107 // pred_region
          %751 = dma.done [#allocation9], 1024
        $region124: #{tpu_custom_call.1} parent=107 // pred_fallthru
          _
        // Predicated region
        $region125: #{tpu_custom_call.1} parent=107 // pred_check
          %p752 = pneg %p332
        $region126: #{tpu_custom_call.1} parent=107 // pred_check_branch
          %754 = sbr.rel (%p752) target = $region128
        $region127: #{tpu_custom_call.1} parent=107 // pred_region
          %755 = dma.done [#allocation9], 1024
        $region128: #{tpu_custom_call.1} parent=107 // pred_fallthru
          _
        // Predicated region
        $region129: #{tpu_custom_call.1} parent=107 // pred_check
          %p756 = pneg %p374
        $region130: #{tpu_custom_call.1} parent=107 // pred_check_branch
          %758 = sbr.rel (%p756) target = $region132
        $region131: #{tpu_custom_call.1} parent=107 // pred_region
          %759 = dma.done [#allocation12], 1024
        $region132: #{tpu_custom_call.1} parent=107 // pred_fallthru
          _
        %p760 = scmp.lt.s32.totalorder %s44, 1
        %s761 = scalar_select %p760, %s44, 1
        %s762 = smul.addr %s761, 8
        %s763 = scalar_lea.vmem %s0, %s762
        %p764 = pneg %p65
        %p765 = pneg %p62
        %s766 = sand.u32 %s78, 1
        %s767 = scalar_lea.sflag [#allocation3], %s766
        %s768 = sand.u32 %s78, 1
        %s769 = smul.addr %s768, 16
        %s770 = scalar_lea.vmem [#allocation2], %s769
        %p771 = pneg %p91
        %p772 = pneg %p88
        %s773 = sand.u32 %s44, 1
        %s774 = scalar_lea.sflag [#allocation6], %s773
        %s775 = sand.u32 %s104, 1
        %s776 = smul.addr %s775, 8
        %s777 = scalar_lea.vmem [#allocation5], %s776
        %p778 = pneg %p117
        %p779 = pneg %p114
        %s780 = sand.u32 %s44, 1
        %s781 = scalar_lea.sflag [#allocation6], %s780
        %s782 = sand.u32 %s130, 1
        %s783 = smul.addr %s782, 8
        %s784 = scalar_lea.vmem [#allocation7], %s783
        %p785 = pneg %p143
        %p786 = pneg %p140
        %p787 = pneg %p164
        %p788 = pneg %p161
        %p789 = pneg %p185
        %p790 = pneg %p182
        %p791 = pneg %p206
        %p792 = pneg %p203
        %p793 = pneg %p227
        %p794 = pneg %p224
        %p795 = pneg %p248
        %p796 = pneg %p245
        %p797 = pneg %p269
        %p798 = pneg %p266
        %p799 = pneg %p290
        %p800 = pneg %p287
        %p801 = pneg %p311
        %p802 = pneg %p308
        %p803 = pneg %p332
        %p804 = pneg %p329
        %p805 = pneg %p353
        %p806 = pneg %p350
        %p807 = pneg %p374
        %p808 = pneg %p371
        %p809 = pneg %p395
        %p810 = pneg %p392
        %p811 = pneg %p416
        %p812 = pneg %p413
        %p813 = pneg %p437
        %p814 = pneg %p434
        %p815 = pneg %p458
        %p816 = pneg %p455
        %p817 = pneg %p479
        %p818 = pneg %p476
        %p819 = pneg %p500
        %p820 = pneg %p497
        %p821 = pneg %p521
        %p822 = pneg %p518
        %p823 = pneg %p547
        %p824 = pneg %p544
        %s825 = sand.u32 %s534, 1
        %s826 = scalar_lea.sflag [#allocation4], %s825
        %s827 = sand.u32 %s534, 1
        %s828 = smul.addr %s827, 8
        %s829 = scalar_lea.vmem [#allocation13], %s828
        %p830 = scmp.lt.s32.totalorder %s44, 1
        %s831 = scalar_select %p830, %s44, 1
        %s832 = smul.addr %s831, 8
        %s833 = scalar_lea.vmem %s0, %s832
        %v834 = vld [vmem:[%s833] sm:$0xff]
        %v835 = vld [vmem:[%s725] sm:$0xff]
        %v836 = vld [vmem:[%s725 + $0x8] sm:$0xff]
        %v837 = vld [vmem:[%s734] sm:$0xff]
        %v838 = vld [vmem:[%s743] sm:$0xff]
        %v839 = vld [vmem:[%s18] sm:$0x7]
        %v840 = vld [vmem:[%s19] sm:$0x7]
        %vm841 = vcmask 261120
        %v842 = vsel %vm841, %v834, 0.0
        %843 = vadd.xlane.f32.xlu0 %v842
        %v844 = vpop.xlane.xlu0 %843
        %v845 = vrcp.pop 32.0
        %v846 = vmul.f32 %v844, %v845
        %v847 = vsub.f32 %v834, %v846
        %v848 = vmul.f32 %v847, %v847
        %v849 = vsel %vm841, %v848, 0.0
        %850 = vadd.xlane.f32.xlu0 %v849
        %v851 = vpop.xlane.xlu0 %850
        %v852 = vrcp.pop 31.0
        %v853 = vmul.f32 %v851, %v852
        %v854 = vrsqrt.pop %v853
        %v855 = vmul.f32 %v853, %v854
        %vm856 = vcmp.eq.f32.partialorder %v853, inf
        %v857 = vsel %vm856, %v853, %v855
        %vm858 = vcmp.eq.f32.partialorder %v853, 0.0
        %v859 = vand.u32 %v853, 2147483648
        %v860 = vsel %vm858, %v859, %v857
        %v861 = vlaneseq
        %v862 = vshrl.u32 %v861, 7
        %v863 = vsub.s32 0, %v862
        %v864 = vrot.slane %v839, %v863
        %v865 = vmul.f32 %v864, %v847
        %v866 = vadd.f32 %v860, 1e-06
        %v867 = vrcp.pop %v866
        %v868 = vmul.f32 %v865, %v867
        %v869 = vlaneseq
        %v870 = vshrl.u32 %v869, 7
        %v871 = vsub.s32 0, %v870
        %v872 = vrot.slane %v840, %v871
        %v873 = vadd.f32 %v868, %v872
        %v874 = vld [vmem:[%s4] sm:$0xff]
        %v875 = vld [vmem:[%s4 + $0x8] sm:$0xff]
        %v876 = vld [vmem:[%s4 + $0x10] sm:$0xff]
        %v877 = vld [vmem:[%s4 + $0x18] sm:$0xff]
        %v878 = vld [vmem:[%s5] sm:$0x1]
        %v880 = vlaneseq
        %v881 = vshrl.u32 %v880, 7
        %v882 = vsub.s32 0, %v881
        %v883 = vrot.slane %v878, %v882
        %v886 = vsel %vm841, %v873, 0
        %888 = vmatprep.subr.mxu0 0.0
        %889 = vmatpush1.msra.mxu0 0.0
        %890 = vmatprep.subr.mxu0 0.0
        %891 = vmatpush1.msra.mxu0 0.0
        %892 = vmatprep.subr.mxu0 0.0
        %893 = vmatpush1.msra.mxu0 0.0
        %894 = vmatprep.subr.mxu0 0.0
        %895 = vmatpush1.msra.mxu0 0.0
        %896 = vmatprep.subr.mxu0 0.0
        %897 = vmatpush1.msra.mxu0 0.0
        %898 = vmatprep.subr.mxu0 0.0
        %899 = vmatpush1.msra.mxu0 0.0
        %900 = vmatprep.subr.mxu0 0.0
        %901 = vmatpush1.msra.mxu0 0.0
        %902 = vmatprep.subr.mxu0 0.0
        %903 = vmatpush1.msra.mxu0 0.0
        %904 = vmatprep.subr.mxu0 0.0
        %905 = vmatpush1.msra.mxu0 0.0
        %906 = vmatprep.subr.mxu0 0.0
        %907 = vmatpush1.msra.mxu0 0.0
        %908 = vmatprep.subr.mxu0 0.0
        %909 = vmatpush1.msra.mxu0 0.0
        %910 = vmatprep.subr.mxu0 0.0
        %911 = vmatpush1.msra.mxu0 0.0
        %912 = vmatprep.subr.mxu0 0.0
        %913 = vmatpush1.msra.mxu0 %v877
        %914 = vmatprep.subr.mxu0 0.0
        %915 = vmatpush1.msra.mxu0 %v876
        %916 = vmatprep.subr.mxu0 0.0
        %917 = vmatpush1.msra.mxu0 %v875
        %918 = vmatprep.subr.mxu0 0.0
        %919 = vmatpush1.msra.mxu0 %v874
        %920 = vmatprep.subr.mxu0 0.0
        %921 = vmatpush2.msra.mxu0 0.0
        %922 = vmatprep.subr.mxu0 0.0
        %923 = vmatpush2.msra.mxu0 0.0
        %924 = vmatprep.subr.mxu0 0.0
        %925 = vmatpush2.msra.mxu0 0.0
        %926 = vmatprep.subr.mxu0 0.0
        %927 = vmatpush2.msra.mxu0 0.0
        %928 = vmatprep.subr.mxu0 0.0
        %929 = vmatpush2.msra.mxu0 0.0
        %930 = vmatprep.subr.mxu0 0.0
        %931 = vmatpush2.msra.mxu0 0.0
        %932 = vmatprep.subr.mxu0 0.0
        %933 = vmatpush2.msra.mxu0 0.0
        %934 = vmatprep.subr.mxu0 0.0
        %935 = vmatpush2.msra.mxu0 0.0
        %936 = vmatprep.subr.mxu0 0.0
        %937 = vmatpush2.msra.mxu0 0.0
        %938 = vmatprep.subr.mxu0 0.0
        %939 = vmatpush2.msra.mxu0 0.0
        %940 = vmatprep.subr.mxu0 0.0
        %941 = vmatpush2.msra.mxu0 0.0
        %942 = vmatprep.subr.mxu0 0.0
        %943 = vmatpush2.msra.mxu0 0.0
        %944 = vmatprep.subr.mxu0 0.0
        %945 = vmatpush2.msra.mxu0 0.0
        %946 = vmatprep.subr.mxu0 0.0
        %947 = vmatpush2.msra.mxu0 0.0
        %948 = vmatprep.subr.mxu0 0.0
        %949 = vmatpush2.msra.mxu0 0.0
        %950 = vmatprep.subr.mxu0 0.0
        %951 = vmatpush2.msra.mxu0 0.0
        %952 = vmatprep.mubr.f32.mxu0 0.0
        %953 = vmatmul.mubr.f32.gmra.mxu0 %v886
        %v954 = vpop.f32.mrf.mxu0
        %v955 = vadd.f32 %v883, %v954
        %v956 = vpop.f32.mrf.mxu0
        %957 = vdwg.mxu0
        %959 = vrot.lane.b32.xlu0 %v955, 96
        %v960 = vpop.permute.xlu0 %959
        %vm961 = vcmask 64512
        %v962 = vsel %vm961, %v955, 0
        %v964 = vsel %vm961, %v960, 0
        %966 = vmatprep.subr.mxu0 0.0
        %967 = vmatpush1.xpose.msra.mxu0 0.0
        %968 = vmatprep.subr.mxu0 0.0
        %969 = vmatpush1.xpose.msra.mxu0 0.0
        %970 = vmatprep.subr.mxu0 0.0
        %971 = vmatpush1.xpose.msra.mxu0 0.0
        %972 = vmatprep.subr.mxu0 0.0
        %973 = vmatpush1.xpose.msra.mxu0 0.0
        %974 = vmatprep.subr.mxu0 0.0
        %975 = vmatpush1.xpose.msra.mxu0 0.0
        %976 = vmatprep.subr.mxu0 0.0
        %977 = vmatpush1.xpose.msra.mxu0 0.0
        %978 = vmatprep.subr.mxu0 0.0
        %979 = vmatpush1.xpose.msra.mxu0 0.0
        %980 = vmatprep.subr.mxu0 0.0
        %981 = vmatpush1.xpose.msra.mxu0 0.0
        %982 = vmatprep.subr.mxu0 0.0
        %983 = vmatpush1.xpose.msra.mxu0 0.0
        %984 = vmatprep.subr.mxu0 0.0
        %985 = vmatpush1.xpose.msra.mxu0 0.0
        %986 = vmatprep.subr.mxu0 0.0
        %987 = vmatpush1.xpose.msra.mxu0 0.0
        %988 = vmatprep.subr.mxu0 0.0
        %989 = vmatpush1.xpose.msra.mxu0 0.0
        %990 = vmatprep.subr.mxu0 0.0
        %991 = vmatpush1.xpose.msra.mxu0 0.0
        %992 = vmatprep.subr.mxu0 0.0
        %993 = vmatpush1.xpose.msra.mxu0 0.0
        %994 = vmatprep.subr.mxu0 0.0
        %995 = vmatpush1.xpose.msra.mxu0 0.0
        %996 = vmatprep.subr.mxu0 0.0
        %997 = vmatpush1.xpose.msra.mxu0 %v964
        %998 = vmatprep.subr.mxu0 0.0
        %999 = vmatpush2.xpose.msra.mxu0 0.0
        %1000 = vmatprep.subr.mxu0 0.0
        %1001 = vmatpush2.xpose.msra.mxu0 0.0
        %1002 = vmatprep.subr.mxu0 0.0
        %1003 = vmatpush2.xpose.msra.mxu0 0.0
        %1004 = vmatprep.subr.mxu0 0.0
        %1005 = vmatpush2.xpose.msra.mxu0 0.0
        %1006 = vmatprep.subr.mxu0 0.0
        %1007 = vmatpush2.xpose.msra.mxu0 0.0
        %1008 = vmatprep.subr.mxu0 0.0
        %1009 = vmatpush2.xpose.msra.mxu0 0.0
        %1010 = vmatprep.subr.mxu0 0.0
        %1011 = vmatpush2.xpose.msra.mxu0 0.0
        %1012 = vmatprep.subr.mxu0 0.0
        %1013 = vmatpush2.xpose.msra.mxu0 0.0
        %1014 = vmatprep.subr.mxu0 0.0
        %1015 = vmatpush2.xpose.msra.mxu0 0.0
        %1016 = vmatprep.subr.mxu0 0.0
        %1017 = vmatpush2.xpose.msra.mxu0 0.0
        %1018 = vmatprep.subr.mxu0 0.0
        %1019 = vmatpush2.xpose.msra.mxu0 0.0
        %1020 = vmatprep.subr.mxu0 0.0
        %1021 = vmatpush2.xpose.msra.mxu0 0.0
        %1022 = vmatprep.subr.mxu0 0.0
        %1023 = vmatpush2.xpose.msra.mxu0 0.0
        %1024 = vmatprep.subr.mxu0 0.0
        %1025 = vmatpush2.xpose.msra.mxu0 0.0
        %1026 = vmatprep.subr.mxu0 0.0
        %1027 = vmatpush2.xpose.msra.mxu0 0.0
        %1028 = vmatprep.subr.mxu0 0.0
        %1029 = vmatpush2.xpose.msra.mxu0 0.0
        %1030 = vmatprep.mubr.f32.mxu0 0.0
        %1031 = vmatmul.mubr.f32.gmra.mxu0 %v962
        %v1032 = vpop.f32.mrf.mxu0
        %v1033 = vadd.f32 0.0, %v1032
        %v1034 = vpop.f32.mrf.mxu0
        %1035 = vdwg.mxu0
        %v1036 = vmul.f32 %v1033, 0.35355338
        %vm1037 = vcmp.eq.f32.partialorder %v837, 0.0
        %v1038 = vsel %vm1037, -1e+09, %v1036
        %v1039 = vsel %vm961, %v1038, -inf
        %1040 = vmax.xlane.f32.xlu0 %v1039
        %v1041 = vpop.xlane.xlu0 %1040
        %v1042 = vsub.f32 %v1038, %v1041
        %v1043 = vmul.f32 %v1042, 1.442695
        %v1044 = vpow.pop %v1043
        %v1045 = vsel %vm961, %v1044, 0.0
        %1046 = vadd.xlane.f32.xlu0 %v1045
        %v1047 = vpop.xlane.xlu0 %1046
        %v1048 = vrcp.pop %v1047
        %v1049 = vmul.f32 %v1044, %v1048
        %1050 = vrot.lane.b32.xlu0 %v955, 64
        %v1051 = vpop.permute.xlu0 %1050
        %v1054 = vsel %vm961, %v1049, 0
        %1056 = vmatprep.subr.mxu0 0.0
        %1057 = vmatpush1.msra.mxu0 0.0
        %1058 = vmatprep.subr.mxu0 0.0
        %1059 = vmatpush1.msra.mxu0 0.0
        %1060 = vmatprep.subr.mxu0 0.0
        %1061 = vmatpush1.msra.mxu0 0.0
        %1062 = vmatprep.subr.mxu0 0.0
        %1063 = vmatpush1.msra.mxu0 0.0
        %1064 = vmatprep.subr.mxu0 0.0
        %1065 = vmatpush1.msra.mxu0 0.0
        %1066 = vmatprep.subr.mxu0 0.0
        %1067 = vmatpush1.msra.mxu0 0.0
        %1068 = vmatprep.subr.mxu0 0.0
        %1069 = vmatpush1.msra.mxu0 0.0
        %1070 = vmatprep.subr.mxu0 0.0
        %1071 = vmatpush1.msra.mxu0 0.0
        %1072 = vmatprep.subr.mxu0 0.0
        %1073 = vmatpush1.msra.mxu0 0.0
        %1074 = vmatprep.subr.mxu0 0.0
        %1075 = vmatpush1.msra.mxu0 0.0
        %1076 = vmatprep.subr.mxu0 0.0
        %1077 = vmatpush1.msra.mxu0 0.0
        %1078 = vmatprep.subr.mxu0 0.0
        %1079 = vmatpush1.msra.mxu0 0.0
        %1080 = vmatprep.subr.mxu0 0.0
        %1081 = vmatpush1.msra.mxu0 0.0
        %1082 = vmatprep.subr.mxu0 0.0
        %1083 = vmatpush1.msra.mxu0 0.0
        %1084 = vmatprep.subr.mxu0 0.0
        %1085 = vmatpush1.msra.mxu0 0.0
        %1086 = vmatprep.subr.mxu0 0.0
        %1087 = vmatpush1.msra.mxu0 %v1051
        %1088 = vmatprep.subr.mxu0 0.0
        %1089 = vmatpush2.msra.mxu0 0.0
        %1090 = vmatprep.subr.mxu0 0.0
        %1091 = vmatpush2.msra.mxu0 0.0
        %1092 = vmatprep.subr.mxu0 0.0
        %1093 = vmatpush2.msra.mxu0 0.0
        %1094 = vmatprep.subr.mxu0 0.0
        %1095 = vmatpush2.msra.mxu0 0.0
        %1096 = vmatprep.subr.mxu0 0.0
        %1097 = vmatpush2.msra.mxu0 0.0
        %1098 = vmatprep.subr.mxu0 0.0
        %1099 = vmatpush2.msra.mxu0 0.0
        %1100 = vmatprep.subr.mxu0 0.0
        %1101 = vmatpush2.msra.mxu0 0.0
        %1102 = vmatprep.subr.mxu0 0.0
        %1103 = vmatpush2.msra.mxu0 0.0
        %1104 = vmatprep.subr.mxu0 0.0
        %1105 = vmatpush2.msra.mxu0 0.0
        %1106 = vmatprep.subr.mxu0 0.0
        %1107 = vmatpush2.msra.mxu0 0.0
        %1108 = vmatprep.subr.mxu0 0.0
        %1109 = vmatpush2.msra.mxu0 0.0
        %1110 = vmatprep.subr.mxu0 0.0
        %1111 = vmatpush2.msra.mxu0 0.0
        %1112 = vmatprep.subr.mxu0 0.0
        %1113 = vmatpush2.msra.mxu0 0.0
        %1114 = vmatprep.subr.mxu0 0.0
        %1115 = vmatpush2.msra.mxu0 0.0
        %1116 = vmatprep.subr.mxu0 0.0
        %1117 = vmatpush2.msra.mxu0 0.0
        %1118 = vmatprep.subr.mxu0 0.0
        %1119 = vmatpush2.msra.mxu0 0.0
        %1120 = vmatprep.mubr.f32.mxu0 0.0
        %1121 = vmatmul.mubr.f32.gmra.mxu0 %v1054
        %v1122 = vpop.f32.mrf.mxu0
        %v1123 = vadd.f32 0.0, %v1122
        %v1124 = vpop.f32.mrf.mxu0
        %1125 = vdwg.mxu0
        %1126 = vrot.lane.b32.xlu0 %v955, 120
        %v1127 = vpop.permute.xlu0 %1126
        %1128 = vrot.lane.b32.xlu0 %v955, 88
        %v1129 = vpop.permute.xlu0 %1128
        %v1130 = vsel %vm961, %v1127, 0
        %v1132 = vsel %vm961, %v1129, 0
        %1134 = vmatprep.subr.mxu0 0.0
        %1135 = vmatpush1.xpose.msra.mxu0 0.0
        %1136 = vmatprep.subr.mxu0 0.0
        %1137 = vmatpush1.xpose.msra.mxu0 0.0
        %1138 = vmatprep.subr.mxu0 0.0
        %1139 = vmatpush1.xpose.msra.mxu0 0.0
        %1140 = vmatprep.subr.mxu0 0.0
        %1141 = vmatpush1.xpose.msra.mxu0 0.0
        %1142 = vmatprep.subr.mxu0 0.0
        %1143 = vmatpush1.xpose.msra.mxu0 0.0
        %1144 = vmatprep.subr.mxu0 0.0
        %1145 = vmatpush1.xpose.msra.mxu0 0.0
        %1146 = vmatprep.subr.mxu0 0.0
        %1147 = vmatpush1.xpose.msra.mxu0 0.0
        %1148 = vmatprep.subr.mxu0 0.0
        %1149 = vmatpush1.xpose.msra.mxu0 0.0
        %1150 = vmatprep.subr.mxu0 0.0
        %1151 = vmatpush1.xpose.msra.mxu0 0.0
        %1152 = vmatprep.subr.mxu0 0.0
        %1153 = vmatpush1.xpose.msra.mxu0 0.0
        %1154 = vmatprep.subr.mxu0 0.0
        %1155 = vmatpush1.xpose.msra.mxu0 0.0
        %1156 = vmatprep.subr.mxu0 0.0
        %1157 = vmatpush1.xpose.msra.mxu0 0.0
        %1158 = vmatprep.subr.mxu0 0.0
        %1159 = vmatpush1.xpose.msra.mxu0 0.0
        %1160 = vmatprep.subr.mxu0 0.0
        %1161 = vmatpush1.xpose.msra.mxu0 0.0
        %1162 = vmatprep.subr.mxu0 0.0
        %1163 = vmatpush1.xpose.msra.mxu0 0.0
        %1164 = vmatprep.subr.mxu0 0.0
        %1165 = vmatpush1.xpose.msra.mxu0 %v1132
        %1166 = vmatprep.subr.mxu0 0.0
        %1167 = vmatpush2.xpose.msra.mxu0 0.0
        %1168 = vmatprep.subr.mxu0 0.0
        %1169 = vmatpush2.xpose.msra.mxu0 0.0
        %1170 = vmatprep.subr.mxu0 0.0
        %1171 = vmatpush2.xpose.msra.mxu0 0.0
        %1172 = vmatprep.subr.mxu0 0.0
        %1173 = vmatpush2.xpose.msra.mxu0 0.0
        %1174 = vmatprep.subr.mxu0 0.0
        %1175 = vmatpush2.xpose.msra.mxu0 0.0
        %1176 = vmatprep.subr.mxu0 0.0
        %1177 = vmatpush2.xpose.msra.mxu0 0.0
        %1178 = vmatprep.subr.mxu0 0.0
        %1179 = vmatpush2.xpose.msra.mxu0 0.0
        %1180 = vmatprep.subr.mxu0 0.0
        %1181 = vmatpush2.xpose.msra.mxu0 0.0
        %1182 = vmatprep.subr.mxu0 0.0
        %1183 = vmatpush2.xpose.msra.mxu0 0.0
        %1184 = vmatprep.subr.mxu0 0.0
        %1185 = vmatpush2.xpose.msra.mxu0 0.0
        %1186 = vmatprep.subr.mxu0 0.0
        %1187 = vmatpush2.xpose.msra.mxu0 0.0
        %1188 = vmatprep.subr.mxu0 0.0
        %1189 = vmatpush2.xpose.msra.mxu0 0.0
        %1190 = vmatprep.subr.mxu0 0.0
        %1191 = vmatpush2.xpose.msra.mxu0 0.0
        %1192 = vmatprep.subr.mxu0 0.0
        %1193 = vmatpush2.xpose.msra.mxu0 0.0
        %1194 = vmatprep.subr.mxu0 0.0
        %1195 = vmatpush2.xpose.msra.mxu0 0.0
        %1196 = vmatprep.subr.mxu0 0.0
        %1197 = vmatpush2.xpose.msra.mxu0 0.0
        %1198 = vmatprep.mubr.f32.mxu0 0.0
        %1199 = vmatmul.mubr.f32.gmra.mxu0 %v1130
        %v1200 = vpop.f32.mrf.mxu0
        %v1201 = vadd.f32 0.0, %v1200
        %v1202 = vpop.f32.mrf.mxu0
        %1203 = vdwg.mxu0
        %v1204 = vmul.f32 %v1201, 0.35355338
        %v1205 = vsel %vm1037, -1e+09, %v1204
        %v1206 = vsel %vm961, %v1205, -inf
        %1207 = vmax.xlane.f32.xlu0 %v1206
        %v1208 = vpop.xlane.xlu0 %1207
        %v1209 = vsub.f32 %v1205, %v1208
        %v1210 = vmul.f32 %v1209, 1.442695
        %v1211 = vpow.pop %v1210
        %v1212 = vsel %vm961, %v1211, 0.0
        %1213 = vadd.xlane.f32.xlu0 %v1212
        %v1214 = vpop.xlane.xlu0 %1213
        %v1215 = vrcp.pop %v1214
        %v1216 = vmul.f32 %v1211, %v1215
        %1217 = vrot.lane.b32.xlu0 %v955, 56
        %v1218 = vpop.permute.xlu0 %1217
        %v1221 = vsel %vm961, %v1216, 0
        %1223 = vmatprep.subr.mxu0 0.0
        %1224 = vmatpush1.msra.mxu0 0.0
        %1225 = vmatprep.subr.mxu0 0.0
        %1226 = vmatpush1.msra.mxu0 0.0
        %1227 = vmatprep.subr.mxu0 0.0
        %1228 = vmatpush1.msra.mxu0 0.0
        %1229 = vmatprep.subr.mxu0 0.0
        %1230 = vmatpush1.msra.mxu0 0.0
        %1231 = vmatprep.subr.mxu0 0.0
        %1232 = vmatpush1.msra.mxu0 0.0
        %1233 = vmatprep.subr.mxu0 0.0
        %1234 = vmatpush1.msra.mxu0 0.0
        %1235 = vmatprep.subr.mxu0 0.0
        %1236 = vmatpush1.msra.mxu0 0.0
        %1237 = vmatprep.subr.mxu0 0.0
        %1238 = vmatpush1.msra.mxu0 0.0
        %1239 = vmatprep.subr.mxu0 0.0
        %1240 = vmatpush1.msra.mxu0 0.0
        %1241 = vmatprep.subr.mxu0 0.0
        %1242 = vmatpush1.msra.mxu0 0.0
        %1243 = vmatprep.subr.mxu0 0.0
        %1244 = vmatpush1.msra.mxu0 0.0
        %1245 = vmatprep.subr.mxu0 0.0
        %1246 = vmatpush1.msra.mxu0 0.0
        %1247 = vmatprep.subr.mxu0 0.0
        %1248 = vmatpush1.msra.mxu0 0.0
        %1249 = vmatprep.subr.mxu0 0.0
        %1250 = vmatpush1.msra.mxu0 0.0
        %1251 = vmatprep.subr.mxu0 0.0
        %1252 = vmatpush1.msra.mxu0 0.0
        %1253 = vmatprep.subr.mxu0 0.0
        %1254 = vmatpush1.msra.mxu0 %v1218
        %1255 = vmatprep.subr.mxu0 0.0
        %1256 = vmatpush2.msra.mxu0 0.0
        %1257 = vmatprep.subr.mxu0 0.0
        %1258 = vmatpush2.msra.mxu0 0.0
        %1259 = vmatprep.subr.mxu0 0.0
        %1260 = vmatpush2.msra.mxu0 0.0
        %1261 = vmatprep.subr.mxu0 0.0
        %1262 = vmatpush2.msra.mxu0 0.0
        %1263 = vmatprep.subr.mxu0 0.0
        %1264 = vmatpush2.msra.mxu0 0.0
        %1265 = vmatprep.subr.mxu0 0.0
        %1266 = vmatpush2.msra.mxu0 0.0
        %1267 = vmatprep.subr.mxu0 0.0
        %1268 = vmatpush2.msra.mxu0 0.0
        %1269 = vmatprep.subr.mxu0 0.0
        %1270 = vmatpush2.msra.mxu0 0.0
        %1271 = vmatprep.subr.mxu0 0.0
        %1272 = vmatpush2.msra.mxu0 0.0
        %1273 = vmatprep.subr.mxu0 0.0
        %1274 = vmatpush2.msra.mxu0 0.0
        %1275 = vmatprep.subr.mxu0 0.0
        %1276 = vmatpush2.msra.mxu0 0.0
        %1277 = vmatprep.subr.mxu0 0.0
        %1278 = vmatpush2.msra.mxu0 0.0
        %1279 = vmatprep.subr.mxu0 0.0
        %1280 = vmatpush2.msra.mxu0 0.0
        %1281 = vmatprep.subr.mxu0 0.0
        %1282 = vmatpush2.msra.mxu0 0.0
        %1283 = vmatprep.subr.mxu0 0.0
        %1284 = vmatpush2.msra.mxu0 0.0
        %1285 = vmatprep.subr.mxu0 0.0
        %1286 = vmatpush2.msra.mxu0 0.0
        %1287 = vmatprep.mubr.f32.mxu0 0.0
        %1288 = vmatmul.mubr.f32.gmra.mxu0 %v1221
        %v1289 = vpop.f32.mrf.mxu0
        %v1290 = vadd.f32 0.0, %v1289
        %v1291 = vpop.f32.mrf.mxu0
        %1292 = vdwg.mxu0
        %1293 = vrot.lane.b32.xlu0 %v955, 112
        %v1294 = vpop.permute.xlu0 %1293
        %1295 = vrot.lane.b32.xlu0 %v955, 80
        %v1296 = vpop.permute.xlu0 %1295
        %v1297 = vsel %vm961, %v1294, 0
        %v1299 = vsel %vm961, %v1296, 0
        %1301 = vmatprep.subr.mxu0 0.0
        %1302 = vmatpush1.xpose.msra.mxu0 0.0
        %1303 = vmatprep.subr.mxu0 0.0
        %1304 = vmatpush1.xpose.msra.mxu0 0.0
        %1305 = vmatprep.subr.mxu0 0.0
        %1306 = vmatpush1.xpose.msra.mxu0 0.0
        %1307 = vmatprep.subr.mxu0 0.0
        %1308 = vmatpush1.xpose.msra.mxu0 0.0
        %1309 = vmatprep.subr.mxu0 0.0
        %1310 = vmatpush1.xpose.msra.mxu0 0.0
        %1311 = vmatprep.subr.mxu0 0.0
        %1312 = vmatpush1.xpose.msra.mxu0 0.0
        %1313 = vmatprep.subr.mxu0 0.0
        %1314 = vmatpush1.xpose.msra.mxu0 0.0
        %1315 = vmatprep.subr.mxu0 0.0
        %1316 = vmatpush1.xpose.msra.mxu0 0.0
        %1317 = vmatprep.subr.mxu0 0.0
        %1318 = vmatpush1.xpose.msra.mxu0 0.0
        %1319 = vmatprep.subr.mxu0 0.0
        %1320 = vmatpush1.xpose.msra.mxu0 0.0
        %1321 = vmatprep.subr.mxu0 0.0
        %1322 = vmatpush1.xpose.msra.mxu0 0.0
        %1323 = vmatprep.subr.mxu0 0.0
        %1324 = vmatpush1.xpose.msra.mxu0 0.0
        %1325 = vmatprep.subr.mxu0 0.0
        %1326 = vmatpush1.xpose.msra.mxu0 0.0
        %1327 = vmatprep.subr.mxu0 0.0
        %1328 = vmatpush1.xpose.msra.mxu0 0.0
        %1329 = vmatprep.subr.mxu0 0.0
        %1330 = vmatpush1.xpose.msra.mxu0 0.0
        %1331 = vmatprep.subr.mxu0 0.0
        %1332 = vmatpush1.xpose.msra.mxu0 %v1299
        %1333 = vmatprep.subr.mxu0 0.0
        %1334 = vmatpush2.xpose.msra.mxu0 0.0
        %1335 = vmatprep.subr.mxu0 0.0
        %1336 = vmatpush2.xpose.msra.mxu0 0.0
        %1337 = vmatprep.subr.mxu0 0.0
        %1338 = vmatpush2.xpose.msra.mxu0 0.0
        %1339 = vmatprep.subr.mxu0 0.0
        %1340 = vmatpush2.xpose.msra.mxu0 0.0
        %1341 = vmatprep.subr.mxu0 0.0
        %1342 = vmatpush2.xpose.msra.mxu0 0.0
        %1343 = vmatprep.subr.mxu0 0.0
        %1344 = vmatpush2.xpose.msra.mxu0 0.0
        %1345 = vmatprep.subr.mxu0 0.0
        %1346 = vmatpush2.xpose.msra.mxu0 0.0
        %1347 = vmatprep.subr.mxu0 0.0
        %1348 = vmatpush2.xpose.msra.mxu0 0.0
        %1349 = vmatprep.subr.mxu0 0.0
        %1350 = vmatpush2.xpose.msra.mxu0 0.0
        %1351 = vmatprep.subr.mxu0 0.0
        %1352 = vmatpush2.xpose.msra.mxu0 0.0
        %1353 = vmatprep.subr.mxu0 0.0
        %1354 = vmatpush2.xpose.msra.mxu0 0.0
        %1355 = vmatprep.subr.mxu0 0.0
        %1356 = vmatpush2.xpose.msra.mxu0 0.0
        %1357 = vmatprep.subr.mxu0 0.0
        %1358 = vmatpush2.xpose.msra.mxu0 0.0
        %1359 = vmatprep.subr.mxu0 0.0
        %1360 = vmatpush2.xpose.msra.mxu0 0.0
        %1361 = vmatprep.subr.mxu0 0.0
        %1362 = vmatpush2.xpose.msra.mxu0 0.0
        %1363 = vmatprep.subr.mxu0 0.0
        %1364 = vmatpush2.xpose.msra.mxu0 0.0
        %1365 = vmatprep.mubr.f32.mxu0 0.0
        %1366 = vmatmul.mubr.f32.gmra.mxu0 %v1297
        %v1367 = vpop.f32.mrf.mxu0
        %v1368 = vadd.f32 0.0, %v1367
        %v1369 = vpop.f32.mrf.mxu0
        %1370 = vdwg.mxu0
        %v1371 = vmul.f32 %v1368, 0.35355338
        %v1372 = vsel %vm1037, -1e+09, %v1371
        %v1373 = vsel %vm961, %v1372, -inf
        %1374 = vmax.xlane.f32.xlu0 %v1373
        %v1375 = vpop.xlane.xlu0 %1374
        %v1376 = vsub.f32 %v1372, %v1375
        %v1377 = vmul.f32 %v1376, 1.442695
        %v1378 = vpow.pop %v1377
        %v1379 = vsel %vm961, %v1378, 0.0
        %1380 = vadd.xlane.f32.xlu0 %v1379
        %v1381 = vpop.xlane.xlu0 %1380
        %v1382 = vrcp.pop %v1381
        %v1383 = vmul.f32 %v1378, %v1382
        %1384 = vrot.lane.b32.xlu0 %v955, 48
        %v1385 = vpop.permute.xlu0 %1384
        %v1388 = vsel %vm961, %v1383, 0
        %1390 = vmatprep.subr.mxu0 0.0
        %1391 = vmatpush1.msra.mxu0 0.0
        %1392 = vmatprep.subr.mxu0 0.0
        %1393 = vmatpush1.msra.mxu0 0.0
        %1394 = vmatprep.subr.mxu0 0.0
        %1395 = vmatpush1.msra.mxu0 0.0
        %1396 = vmatprep.subr.mxu0 0.0
        %1397 = vmatpush1.msra.mxu0 0.0
        %1398 = vmatprep.subr.mxu0 0.0
        %1399 = vmatpush1.msra.mxu0 0.0
        %1400 = vmatprep.subr.mxu0 0.0
        %1401 = vmatpush1.msra.mxu0 0.0
        %1402 = vmatprep.subr.mxu0 0.0
        %1403 = vmatpush1.msra.mxu0 0.0
        %1404 = vmatprep.subr.mxu0 0.0
        %1405 = vmatpush1.msra.mxu0 0.0
        %1406 = vmatprep.subr.mxu0 0.0
        %1407 = vmatpush1.msra.mxu0 0.0
        %1408 = vmatprep.subr.mxu0 0.0
        %1409 = vmatpush1.msra.mxu0 0.0
        %1410 = vmatprep.subr.mxu0 0.0
        %1411 = vmatpush1.msra.mxu0 0.0
        %1412 = vmatprep.subr.mxu0 0.0
        %1413 = vmatpush1.msra.mxu0 0.0
        %1414 = vmatprep.subr.mxu0 0.0
        %1415 = vmatpush1.msra.mxu0 0.0
        %1416 = vmatprep.subr.mxu0 0.0
        %1417 = vmatpush1.msra.mxu0 0.0
        %1418 = vmatprep.subr.mxu0 0.0
        %1419 = vmatpush1.msra.mxu0 0.0
        %1420 = vmatprep.subr.mxu0 0.0
        %1421 = vmatpush1.msra.mxu0 %v1385
        %1422 = vmatprep.subr.mxu0 0.0
        %1423 = vmatpush2.msra.mxu0 0.0
        %1424 = vmatprep.subr.mxu0 0.0
        %1425 = vmatpush2.msra.mxu0 0.0
        %1426 = vmatprep.subr.mxu0 0.0
        %1427 = vmatpush2.msra.mxu0 0.0
        %1428 = vmatprep.subr.mxu0 0.0
        %1429 = vmatpush2.msra.mxu0 0.0
        %1430 = vmatprep.subr.mxu0 0.0
        %1431 = vmatpush2.msra.mxu0 0.0
        %1432 = vmatprep.subr.mxu0 0.0
        %1433 = vmatpush2.msra.mxu0 0.0
        %1434 = vmatprep.subr.mxu0 0.0
        %1435 = vmatpush2.msra.mxu0 0.0
        %1436 = vmatprep.subr.mxu0 0.0
        %1437 = vmatpush2.msra.mxu0 0.0
        %1438 = vmatprep.subr.mxu0 0.0
        %1439 = vmatpush2.msra.mxu0 0.0
        %1440 = vmatprep.subr.mxu0 0.0
        %1441 = vmatpush2.msra.mxu0 0.0
        %1442 = vmatprep.subr.mxu0 0.0
        %1443 = vmatpush2.msra.mxu0 0.0
        %1444 = vmatprep.subr.mxu0 0.0
        %1445 = vmatpush2.msra.mxu0 0.0
        %1446 = vmatprep.subr.mxu0 0.0
        %1447 = vmatpush2.msra.mxu0 0.0
        %1448 = vmatprep.subr.mxu0 0.0
        %1449 = vmatpush2.msra.mxu0 0.0
        %1450 = vmatprep.subr.mxu0 0.0
        %1451 = vmatpush2.msra.mxu0 0.0
        %1452 = vmatprep.subr.mxu0 0.0
        %1453 = vmatpush2.msra.mxu0 0.0
        %1454 = vmatprep.mubr.f32.mxu0 0.0
        %1455 = vmatmul.mubr.f32.gmra.mxu0 %v1388
        %v1456 = vpop.f32.mrf.mxu0
        %v1457 = vadd.f32 0.0, %v1456
        %v1458 = vpop.f32.mrf.mxu0
        %1459 = vdwg.mxu0
        %1460 = vrot.lane.b32.xlu0 %v955, 104
        %v1461 = vpop.permute.xlu0 %1460
        %1462 = vrot.lane.b32.xlu0 %v955, 72
        %v1463 = vpop.permute.xlu0 %1462
        %v1464 = vsel %vm961, %v1461, 0
        %v1466 = vsel %vm961, %v1463, 0
        %1468 = vmatprep.subr.mxu0 0.0
        %1469 = vmatpush1.xpose.msra.mxu0 0.0
        %1470 = vmatprep.subr.mxu0 0.0
        %1471 = vmatpush1.xpose.msra.mxu0 0.0
        %1472 = vmatprep.subr.mxu0 0.0
        %1473 = vmatpush1.xpose.msra.mxu0 0.0
        %1474 = vmatprep.subr.mxu0 0.0
        %1475 = vmatpush1.xpose.msra.mxu0 0.0
        %1476 = vmatprep.subr.mxu0 0.0
        %1477 = vmatpush1.xpose.msra.mxu0 0.0
        %1478 = vmatprep.subr.mxu0 0.0
        %1479 = vmatpush1.xpose.msra.mxu0 0.0
        %1480 = vmatprep.subr.mxu0 0.0
        %1481 = vmatpush1.xpose.msra.mxu0 0.0
        %1482 = vmatprep.subr.mxu0 0.0
        %1483 = vmatpush1.xpose.msra.mxu0 0.0
        %1484 = vmatprep.subr.mxu0 0.0
        %1485 = vmatpush1.xpose.msra.mxu0 0.0
        %1486 = vmatprep.subr.mxu0 0.0
        %1487 = vmatpush1.xpose.msra.mxu0 0.0
        %1488 = vmatprep.subr.mxu0 0.0
        %1489 = vmatpush1.xpose.msra.mxu0 0.0
        %1490 = vmatprep.subr.mxu0 0.0
        %1491 = vmatpush1.xpose.msra.mxu0 0.0
        %1492 = vmatprep.subr.mxu0 0.0
        %1493 = vmatpush1.xpose.msra.mxu0 0.0
        %1494 = vmatprep.subr.mxu0 0.0
        %1495 = vmatpush1.xpose.msra.mxu0 0.0
        %1496 = vmatprep.subr.mxu0 0.0
        %1497 = vmatpush1.xpose.msra.mxu0 0.0
        %1498 = vmatprep.subr.mxu0 0.0
        %1499 = vmatpush1.xpose.msra.mxu0 %v1466
        %1500 = vmatprep.subr.mxu0 0.0
        %1501 = vmatpush2.xpose.msra.mxu0 0.0
        %1502 = vmatprep.subr.mxu0 0.0
        %1503 = vmatpush2.xpose.msra.mxu0 0.0
        %1504 = vmatprep.subr.mxu0 0.0
        %1505 = vmatpush2.xpose.msra.mxu0 0.0
        %1506 = vmatprep.subr.mxu0 0.0
        %1507 = vmatpush2.xpose.msra.mxu0 0.0
        %1508 = vmatprep.subr.mxu0 0.0
        %1509 = vmatpush2.xpose.msra.mxu0 0.0
        %1510 = vmatprep.subr.mxu0 0.0
        %1511 = vmatpush2.xpose.msra.mxu0 0.0
        %1512 = vmatprep.subr.mxu0 0.0
        %1513 = vmatpush2.xpose.msra.mxu0 0.0
        %1514 = vmatprep.subr.mxu0 0.0
        %1515 = vmatpush2.xpose.msra.mxu0 0.0
        %1516 = vmatprep.subr.mxu0 0.0
        %1517 = vmatpush2.xpose.msra.mxu0 0.0
        %1518 = vmatprep.subr.mxu0 0.0
        %1519 = vmatpush2.xpose.msra.mxu0 0.0
        %1520 = vmatprep.subr.mxu0 0.0
        %1521 = vmatpush2.xpose.msra.mxu0 0.0
        %1522 = vmatprep.subr.mxu0 0.0
        %1523 = vmatpush2.xpose.msra.mxu0 0.0
        %1524 = vmatprep.subr.mxu0 0.0
        %1525 = vmatpush2.xpose.msra.mxu0 0.0
        %1526 = vmatprep.subr.mxu0 0.0
        %1527 = vmatpush2.xpose.msra.mxu0 0.0
        %1528 = vmatprep.subr.mxu0 0.0
        %1529 = vmatpush2.xpose.msra.mxu0 0.0
        %1530 = vmatprep.subr.mxu0 0.0
        %1531 = vmatpush2.xpose.msra.mxu0 0.0
        %1532 = vmatprep.mubr.f32.mxu0 0.0
        %1533 = vmatmul.mubr.f32.gmra.mxu0 %v1464
        %v1534 = vpop.f32.mrf.mxu0
        %v1535 = vadd.f32 0.0, %v1534
        %v1536 = vpop.f32.mrf.mxu0
        %1537 = vdwg.mxu0
        %v1538 = vmul.f32 %v1535, 0.35355338
        %v1539 = vsel %vm1037, -1e+09, %v1538
        %v1540 = vsel %vm961, %v1539, -inf
        %1541 = vmax.xlane.f32.xlu0 %v1540
        %v1542 = vpop.xlane.xlu0 %1541
        %v1543 = vsub.f32 %v1539, %v1542
        %v1544 = vmul.f32 %v1543, 1.442695
        %v1545 = vpow.pop %v1544
        %v1546 = vsel %vm961, %v1545, 0.0
        %1547 = vadd.xlane.f32.xlu0 %v1546
        %v1548 = vpop.xlane.xlu0 %1547
        %v1549 = vrcp.pop %v1548
        %v1550 = vmul.f32 %v1545, %v1549
        %1551 = vrot.lane.b32.xlu0 %v955, 40
        %v1552 = vpop.permute.xlu0 %1551
        %v1555 = vsel %vm961, %v1550, 0
        %1557 = vmatprep.subr.mxu0 0.0
        %1558 = vmatpush1.msra.mxu0 0.0
        %1559 = vmatprep.subr.mxu0 0.0
        %1560 = vmatpush1.msra.mxu0 0.0
        %1561 = vmatprep.subr.mxu0 0.0
        %1562 = vmatpush1.msra.mxu0 0.0
        %1563 = vmatprep.subr.mxu0 0.0
        %1564 = vmatpush1.msra.mxu0 0.0
        %1565 = vmatprep.subr.mxu0 0.0
        %1566 = vmatpush1.msra.mxu0 0.0
        %1567 = vmatprep.subr.mxu0 0.0
        %1568 = vmatpush1.msra.mxu0 0.0
        %1569 = vmatprep.subr.mxu0 0.0
        %1570 = vmatpush1.msra.mxu0 0.0
        %1571 = vmatprep.subr.mxu0 0.0
        %1572 = vmatpush1.msra.mxu0 0.0
        %1573 = vmatprep.subr.mxu0 0.0
        %1574 = vmatpush1.msra.mxu0 0.0
        %1575 = vmatprep.subr.mxu0 0.0
        %1576 = vmatpush1.msra.mxu0 0.0
        %1577 = vmatprep.subr.mxu0 0.0
        %1578 = vmatpush1.msra.mxu0 0.0
        %1579 = vmatprep.subr.mxu0 0.0
        %1580 = vmatpush1.msra.mxu0 0.0
        %1581 = vmatprep.subr.mxu0 0.0
        %1582 = vmatpush1.msra.mxu0 0.0
        %1583 = vmatprep.subr.mxu0 0.0
        %1584 = vmatpush1.msra.mxu0 0.0
        %1585 = vmatprep.subr.mxu0 0.0
        %1586 = vmatpush1.msra.mxu0 0.0
        %1587 = vmatprep.subr.mxu0 0.0
        %1588 = vmatpush1.msra.mxu0 %v1552
        %1589 = vmatprep.subr.mxu0 0.0
        %1590 = vmatpush2.msra.mxu0 0.0
        %1591 = vmatprep.subr.mxu0 0.0
        %1592 = vmatpush2.msra.mxu0 0.0
        %1593 = vmatprep.subr.mxu0 0.0
        %1594 = vmatpush2.msra.mxu0 0.0
        %1595 = vmatprep.subr.mxu0 0.0
        %1596 = vmatpush2.msra.mxu0 0.0
        %1597 = vmatprep.subr.mxu0 0.0
        %1598 = vmatpush2.msra.mxu0 0.0
        %1599 = vmatprep.subr.mxu0 0.0
        %1600 = vmatpush2.msra.mxu0 0.0
        %1601 = vmatprep.subr.mxu0 0.0
        %1602 = vmatpush2.msra.mxu0 0.0
        %1603 = vmatprep.subr.mxu0 0.0
        %1604 = vmatpush2.msra.mxu0 0.0
        %1605 = vmatprep.subr.mxu0 0.0
        %1606 = vmatpush2.msra.mxu0 0.0
        %1607 = vmatprep.subr.mxu0 0.0
        %1608 = vmatpush2.msra.mxu0 0.0
        %1609 = vmatprep.subr.mxu0 0.0
        %1610 = vmatpush2.msra.mxu0 0.0
        %1611 = vmatprep.subr.mxu0 0.0
        %1612 = vmatpush2.msra.mxu0 0.0
        %1613 = vmatprep.subr.mxu0 0.0
        %1614 = vmatpush2.msra.mxu0 0.0
        %1615 = vmatprep.subr.mxu0 0.0
        %1616 = vmatpush2.msra.mxu0 0.0
        %1617 = vmatprep.subr.mxu0 0.0
        %1618 = vmatpush2.msra.mxu0 0.0
        %1619 = vmatprep.subr.mxu0 0.0
        %1620 = vmatpush2.msra.mxu0 0.0
        %1621 = vmatprep.mubr.f32.mxu0 0.0
        %1622 = vmatmul.mubr.f32.gmra.mxu0 %v1555
        %v1623 = vpop.f32.mrf.mxu0
        %v1624 = vadd.f32 0.0, %v1623
        %v1625 = vpop.f32.mrf.mxu0
        %1626 = vdwg.mxu0
        %1628 = vrot.lane.b32.xlu0 %v1290, 8
        %v1629 = vpop.permute.xlu0 %1628
        %1632 = vrot.lane.b32.xlu0 %v1457, 16
        %v1633 = vpop.permute.xlu0 %1632
        %1636 = vrot.lane.b32.xlu0 %v1624, 24
        %v1637 = vpop.permute.xlu0 %1636
        %v1639 = vsel %vm961, %v1123, %v1629
        %vm1640 = vcmask 130048
        %v1641 = vsel %vm1640, %v1639, %v1633
        %vm1642 = vcmask 195584
        %v1643 = vsel %vm1642, %v1641, %v1637
        %v1644 = vld [vmem:[%s6] sm:$0xff]
        %v1645 = vld [vmem:[%s6 + $0x8] sm:$0xff]
        %v1646 = vld [vmem:[%s6 + $0x10] sm:$0xff]
        %v1647 = vld [vmem:[%s6 + $0x18] sm:$0xff]
        %v1649 = vsel %vm841, %v1643, 0
        %1651 = vmatprep.subr.mxu0 0.0
        %1652 = vmatpush1.msra.mxu0 0.0
        %1653 = vmatprep.subr.mxu0 0.0
        %1654 = vmatpush1.msra.mxu0 0.0
        %1655 = vmatprep.subr.mxu0 0.0
        %1656 = vmatpush1.msra.mxu0 0.0
        %1657 = vmatprep.subr.mxu0 0.0
        %1658 = vmatpush1.msra.mxu0 0.0
        %1659 = vmatprep.subr.mxu0 0.0
        %1660 = vmatpush1.msra.mxu0 0.0
        %1661 = vmatprep.subr.mxu0 0.0
        %1662 = vmatpush1.msra.mxu0 0.0
        %1663 = vmatprep.subr.mxu0 0.0
        %1664 = vmatpush1.msra.mxu0 0.0
        %1665 = vmatprep.subr.mxu0 0.0
        %1666 = vmatpush1.msra.mxu0 0.0
        %1667 = vmatprep.subr.mxu0 0.0
        %1668 = vmatpush1.msra.mxu0 0.0
        %1669 = vmatprep.subr.mxu0 0.0
        %1670 = vmatpush1.msra.mxu0 0.0
        %1671 = vmatprep.subr.mxu0 0.0
        %1672 = vmatpush1.msra.mxu0 0.0
        %1673 = vmatprep.subr.mxu0 0.0
        %1674 = vmatpush1.msra.mxu0 0.0
        %1675 = vmatprep.subr.mxu0 0.0
        %1676 = vmatpush1.msra.mxu0 %v1647
        %1677 = vmatprep.subr.mxu0 0.0
        %1678 = vmatpush1.msra.mxu0 %v1646
        %1679 = vmatprep.subr.mxu0 0.0
        %1680 = vmatpush1.msra.mxu0 %v1645
        %1681 = vmatprep.subr.mxu0 0.0
        %1682 = vmatpush1.msra.mxu0 %v1644
        %1683 = vmatprep.subr.mxu0 0.0
        %1684 = vmatpush2.msra.mxu0 0.0
        %1685 = vmatprep.subr.mxu0 0.0
        %1686 = vmatpush2.msra.mxu0 0.0
        %1687 = vmatprep.subr.mxu0 0.0
        %1688 = vmatpush2.msra.mxu0 0.0
        %1689 = vmatprep.subr.mxu0 0.0
        %1690 = vmatpush2.msra.mxu0 0.0
        %1691 = vmatprep.subr.mxu0 0.0
        %1692 = vmatpush2.msra.mxu0 0.0
        %1693 = vmatprep.subr.mxu0 0.0
        %1694 = vmatpush2.msra.mxu0 0.0
        %1695 = vmatprep.subr.mxu0 0.0
        %1696 = vmatpush2.msra.mxu0 0.0
        %1697 = vmatprep.subr.mxu0 0.0
        %1698 = vmatpush2.msra.mxu0 0.0
        %1699 = vmatprep.subr.mxu0 0.0
        %1700 = vmatpush2.msra.mxu0 0.0
        %1701 = vmatprep.subr.mxu0 0.0
        %1702 = vmatpush2.msra.mxu0 0.0
        %1703 = vmatprep.subr.mxu0 0.0
        %1704 = vmatpush2.msra.mxu0 0.0
        %1705 = vmatprep.subr.mxu0 0.0
        %1706 = vmatpush2.msra.mxu0 0.0
        %1707 = vmatprep.subr.mxu0 0.0
        %1708 = vmatpush2.msra.mxu0 0.0
        %1709 = vmatprep.subr.mxu0 0.0
        %1710 = vmatpush2.msra.mxu0 0.0
        %1711 = vmatprep.subr.mxu0 0.0
        %1712 = vmatpush2.msra.mxu0 0.0
        %1713 = vmatprep.subr.mxu0 0.0
        %1714 = vmatpush2.msra.mxu0 0.0
        %1715 = vmatprep.mubr.f32.mxu0 0.0
        %1716 = vmatmul.mubr.f32.gmra.mxu0 %v1649
        %v1717 = vpop.f32.mrf.mxu0
        %v1718 = vadd.f32 0.0, %v1717
        %v1719 = vpop.f32.mrf.mxu0
        %1720 = vdwg.mxu0
        %v1721 = vadd.f32 %v834, %v1718
        %v1722 = vld [vmem:[%s7] sm:$0x1]
        %v1724 = vlaneseq
        %v1725 = vshrl.u32 %v1724, 7
        %v1726 = vsub.s32 0, %v1725
        %v1727 = vrot.slane %v1722, %v1726
        %v1729 = vadd.f32 %v1721, %v1727
        %v1730 = vsel %vm841, %v1729, 0.0
        %1731 = vadd.xlane.f32.xlu0 %v1730
        %v1732 = vpop.xlane.xlu0 %1731
        %v1733 = vmul.f32 %v1732, %v845
        %v1734 = vsub.f32 %v1729, %v1733
        %v1735 = vmul.f32 %v1734, %v1734
        %v1736 = vsel %vm841, %v1735, 0.0
        %1737 = vadd.xlane.f32.xlu0 %v1736
        %v1738 = vpop.xlane.xlu0 %1737
        %v1739 = vmul.f32 %v1738, %v852
        %v1740 = vrsqrt.pop %v1739
        %v1741 = vmul.f32 %v1739, %v1740
        %vm1742 = vcmp.eq.f32.partialorder %v1739, inf
        %v1743 = vsel %vm1742, %v1739, %v1741
        %vm1744 = vcmp.eq.f32.partialorder %v1739, 0.0
        %v1745 = vand.u32 %v1739, 2147483648
        %v1746 = vsel %vm1744, %v1745, %v1743
        %v1747 = vlaneseq
        %v1748 = vshrl.u32 %v1747, 7
        %v1749 = vsub.s32 1, %v1748
        %v1750 = vrot.slane %v839, %v1749
        %v1751 = vmul.f32 %v1750, %v1734
        %v1752 = vadd.f32 %v1746, 1e-06
        %v1753 = vrcp.pop %v1752
        %v1754 = vmul.f32 %v1751, %v1753
        %v1755 = vlaneseq
        %v1756 = vshrl.u32 %v1755, 7
        %v1757 = vsub.s32 1, %v1756
        %v1758 = vrot.slane %v840, %v1757
        %v1759 = vadd.f32 %v1754, %v1758
        %v1760 = vld [vmem:[%s8] sm:$0xff]
        %v1761 = vld [vmem:[%s8 + $0x8] sm:$0xff]
        %v1762 = vld [vmem:[%s8 + $0x10] sm:$0xff]
        %v1763 = vld [vmem:[%s8 + $0x18] sm:$0xff]
        %v1764 = vld [vmem:[%s9] sm:$0x1]
        %v1766 = vlaneseq
        %v1767 = vshrl.u32 %v1766, 7
        %v1768 = vsub.s32 0, %v1767
        %v1769 = vrot.slane %v1764, %v1768
        %v1772 = vsel %vm841, %v1759, 0
        %1774 = vmatprep.subr.mxu0 0.0
        %1775 = vmatpush1.msra.mxu0 0.0
        %1776 = vmatprep.subr.mxu0 0.0
        %1777 = vmatpush1.msra.mxu0 0.0
        %1778 = vmatprep.subr.mxu0 0.0
        %1779 = vmatpush1.msra.mxu0 0.0
        %1780 = vmatprep.subr.mxu0 0.0
        %1781 = vmatpush1.msra.mxu0 0.0
        %1782 = vmatprep.subr.mxu0 0.0
        %1783 = vmatpush1.msra.mxu0 0.0
        %1784 = vmatprep.subr.mxu0 0.0
        %1785 = vmatpush1.msra.mxu0 0.0
        %1786 = vmatprep.subr.mxu0 0.0
        %1787 = vmatpush1.msra.mxu0 0.0
        %1788 = vmatprep.subr.mxu0 0.0
        %1789 = vmatpush1.msra.mxu0 0.0
        %1790 = vmatprep.subr.mxu0 0.0
        %1791 = vmatpush1.msra.mxu0 0.0
        %1792 = vmatprep.subr.mxu0 0.0
        %1793 = vmatpush1.msra.mxu0 0.0
        %1794 = vmatprep.subr.mxu0 0.0
        %1795 = vmatpush1.msra.mxu0 0.0
        %1796 = vmatprep.subr.mxu0 0.0
        %1797 = vmatpush1.msra.mxu0 0.0
        %1798 = vmatprep.subr.mxu0 0.0
        %1799 = vmatpush1.msra.mxu0 %v1763
        %1800 = vmatprep.subr.mxu0 0.0
        %1801 = vmatpush1.msra.mxu0 %v1762
        %1802 = vmatprep.subr.mxu0 0.0
        %1803 = vmatpush1.msra.mxu0 %v1761
        %1804 = vmatprep.subr.mxu0 0.0
        %1805 = vmatpush1.msra.mxu0 %v1760
        %1806 = vmatprep.subr.mxu0 0.0
        %1807 = vmatpush2.msra.mxu0 0.0
        %1808 = vmatprep.subr.mxu0 0.0
        %1809 = vmatpush2.msra.mxu0 0.0
        %1810 = vmatprep.subr.mxu0 0.0
        %1811 = vmatpush2.msra.mxu0 0.0
        %1812 = vmatprep.subr.mxu0 0.0
        %1813 = vmatpush2.msra.mxu0 0.0
        %1814 = vmatprep.subr.mxu0 0.0
        %1815 = vmatpush2.msra.mxu0 0.0
        %1816 = vmatprep.subr.mxu0 0.0
        %1817 = vmatpush2.msra.mxu0 0.0
        %1818 = vmatprep.subr.mxu0 0.0
        %1819 = vmatpush2.msra.mxu0 0.0
        %1820 = vmatprep.subr.mxu0 0.0
        %1821 = vmatpush2.msra.mxu0 0.0
        %1822 = vmatprep.subr.mxu0 0.0
        %1823 = vmatpush2.msra.mxu0 0.0
        %1824 = vmatprep.subr.mxu0 0.0
        %1825 = vmatpush2.msra.mxu0 0.0
        %1826 = vmatprep.subr.mxu0 0.0
        %1827 = vmatpush2.msra.mxu0 0.0
        %1828 = vmatprep.subr.mxu0 0.0
        %1829 = vmatpush2.msra.mxu0 0.0
        %1830 = vmatprep.subr.mxu0 0.0
        %1831 = vmatpush2.msra.mxu0 0.0
        %1832 = vmatprep.subr.mxu0 0.0
        %1833 = vmatpush2.msra.mxu0 0.0
        %1834 = vmatprep.subr.mxu0 0.0
        %1835 = vmatpush2.msra.mxu0 0.0
        %1836 = vmatprep.subr.mxu0 0.0
        %1837 = vmatpush2.msra.mxu0 0.0
        %1838 = vmatprep.mubr.f32.mxu0 0.0
        %1839 = vmatmul.mubr.f32.gmra.mxu0 %v1772
        %v1840 = vpop.f32.mrf.mxu0
        %v1841 = vadd.f32 %v1769, %v1840
        %v1842 = vpop.f32.mrf.mxu0
        %1843 = vdwg.mxu0
        %v1844 = vld [vmem:[#allocation8] sm:$0xff]
        %v1845 = vld [vmem:[#allocation8 + $0x8] sm:$0xff]
        %v1846 = vld [vmem:[#allocation8 + $0x10] sm:$0xff]
        %v1847 = vld [vmem:[#allocation8 + $0x18] sm:$0xff]
        %v1848 = vld [vmem:[%s11] sm:$0x1]
        %v1850 = vlaneseq
        %v1851 = vshrl.u32 %v1850, 7
        %v1852 = vsub.s32 0, %v1851
        %v1853 = vrot.slane %v1848, %v1852
        %v1856 = vsel %vm841, %v835, 0
        %v1859 = vsel %vm841, %v836, 0
        %1861 = vmatprep.subr.mxu0 0.0
        %1862 = vmatpush1.msra.mxu0 0.0
        %1863 = vmatprep.subr.mxu0 0.0
        %1864 = vmatpush1.msra.mxu0 0.0
        %1865 = vmatprep.subr.mxu0 0.0
        %1866 = vmatpush1.msra.mxu0 0.0
        %1867 = vmatprep.subr.mxu0 0.0
        %1868 = vmatpush1.msra.mxu0 0.0
        %1869 = vmatprep.subr.mxu0 0.0
        %1870 = vmatpush1.msra.mxu0 0.0
        %1871 = vmatprep.subr.mxu0 0.0
        %1872 = vmatpush1.msra.mxu0 0.0
        %1873 = vmatprep.subr.mxu0 0.0
        %1874 = vmatpush1.msra.mxu0 0.0
        %1875 = vmatprep.subr.mxu0 0.0
        %1876 = vmatpush1.msra.mxu0 0.0
        %1877 = vmatprep.subr.mxu0 0.0
        %1878 = vmatpush1.msra.mxu0 0.0
        %1879 = vmatprep.subr.mxu0 0.0
        %1880 = vmatpush1.msra.mxu0 0.0
        %1881 = vmatprep.subr.mxu0 0.0
        %1882 = vmatpush1.msra.mxu0 0.0
        %1883 = vmatprep.subr.mxu0 0.0
        %1884 = vmatpush1.msra.mxu0 0.0
        %1885 = vmatprep.subr.mxu0 0.0
        %1886 = vmatpush1.msra.mxu0 %v1847
        %1887 = vmatprep.subr.mxu0 0.0
        %1888 = vmatpush1.msra.mxu0 %v1846
        %1889 = vmatprep.subr.mxu0 0.0
        %1890 = vmatpush1.msra.mxu0 %v1845
        %1891 = vmatprep.subr.mxu0 0.0
        %1892 = vmatpush1.msra.mxu0 %v1844
        %1893 = vmatprep.subr.mxu0 0.0
        %1894 = vmatpush2.msra.mxu0 0.0
        %1895 = vmatprep.subr.mxu0 0.0
        %1896 = vmatpush2.msra.mxu0 0.0
        %1897 = vmatprep.subr.mxu0 0.0
        %1898 = vmatpush2.msra.mxu0 0.0
        %1899 = vmatprep.subr.mxu0 0.0
        %1900 = vmatpush2.msra.mxu0 0.0
        %1901 = vmatprep.subr.mxu0 0.0
        %1902 = vmatpush2.msra.mxu0 0.0
        %1903 = vmatprep.subr.mxu0 0.0
        %1904 = vmatpush2.msra.mxu0 0.0
        %1905 = vmatprep.subr.mxu0 0.0
        %1906 = vmatpush2.msra.mxu0 0.0
        %1907 = vmatprep.subr.mxu0 0.0
        %1908 = vmatpush2.msra.mxu0 0.0
        %1909 = vmatprep.subr.mxu0 0.0
        %1910 = vmatpush2.msra.mxu0 0.0
        %1911 = vmatprep.subr.mxu0 0.0
        %1912 = vmatpush2.msra.mxu0 0.0
        %1913 = vmatprep.subr.mxu0 0.0
        %1914 = vmatpush2.msra.mxu0 0.0
        %1915 = vmatprep.subr.mxu0 0.0
        %1916 = vmatpush2.msra.mxu0 0.0
        %1917 = vmatprep.subr.mxu0 0.0
        %1918 = vmatpush2.msra.mxu0 0.0
        %1919 = vmatprep.subr.mxu0 0.0
        %1920 = vmatpush2.msra.mxu0 0.0
        %1921 = vmatprep.subr.mxu0 0.0
        %1922 = vmatpush2.msra.mxu0 0.0
        %1923 = vmatprep.subr.mxu0 0.0
        %1924 = vmatpush2.msra.mxu0 0.0
        %1925 = vmatprep.mubr.f32.mxu0 0.0
        %1926 = vmatmul.mubr.f32.gmra.mxu0 %v1856
        %v1927 = vpop.f32.mrf.mxu0
        %v1928 = vadd.f32 %v1853, %v1927
        %v1929 = vpop.f32.mrf.mxu0
        %1930 = vmatprep.mubr.f32.mxu0 0.0
        %1931 = vmatmul.mubr.f32.gmra.mxu0 %v1859
        %v1932 = vpop.f32.mrf.mxu0
        %v1933 = vadd.f32 %v1853, %v1932
        %v1934 = vpop.f32.mrf.mxu0
        %1935 = vdwg.mxu0
        %v1937 = vsel %vm961, %v1841, 0
        %v1940 = vsel %vm961, %v1928, 0
        %v1943 = vsel %vm961, %v1933, 0
        %1945 = vmatprep.subr.mxu0 0.0
        %1946 = vmatpush1.xpose.msra.mxu0 0.0
        %1947 = vmatprep.subr.mxu0 0.0
        %1948 = vmatpush1.xpose.msra.mxu0 0.0
        %1949 = vmatprep.subr.mxu0 0.0
        %1950 = vmatpush1.xpose.msra.mxu0 0.0
        %1951 = vmatprep.subr.mxu0 0.0
        %1952 = vmatpush1.xpose.msra.mxu0 0.0
        %1953 = vmatprep.subr.mxu0 0.0
        %1954 = vmatpush1.xpose.msra.mxu0 0.0
        %1955 = vmatprep.subr.mxu0 0.0
        %1956 = vmatpush1.xpose.msra.mxu0 0.0
        %1957 = vmatprep.subr.mxu0 0.0
        %1958 = vmatpush1.xpose.msra.mxu0 0.0
        %1959 = vmatprep.subr.mxu0 0.0
        %1960 = vmatpush1.xpose.msra.mxu0 0.0
        %1961 = vmatprep.subr.mxu0 0.0
        %1962 = vmatpush1.xpose.msra.mxu0 0.0
        %1963 = vmatprep.subr.mxu0 0.0
        %1964 = vmatpush1.xpose.msra.mxu0 0.0
        %1965 = vmatprep.subr.mxu0 0.0
        %1966 = vmatpush1.xpose.msra.mxu0 0.0
        %1967 = vmatprep.subr.mxu0 0.0
        %1968 = vmatpush1.xpose.msra.mxu0 0.0
        %1969 = vmatprep.subr.mxu0 0.0
        %1970 = vmatpush1.xpose.msra.mxu0 0.0
        %1971 = vmatprep.subr.mxu0 0.0
        %1972 = vmatpush1.xpose.msra.mxu0 0.0
        %1973 = vmatprep.subr.mxu0 0.0
        %1974 = vmatpush1.xpose.msra.mxu0 %v1943
        %1975 = vmatprep.subr.mxu0 0.0
        %1976 = vmatpush1.xpose.msra.mxu0 %v1940
        %1977 = vmatprep.subr.mxu0 0.0
        %1978 = vmatpush2.xpose.msra.mxu0 0.0
        %1979 = vmatprep.subr.mxu0 0.0
        %1980 = vmatpush2.xpose.msra.mxu0 0.0
        %1981 = vmatprep.subr.mxu0 0.0
        %1982 = vmatpush2.xpose.msra.mxu0 0.0
        %1983 = vmatprep.subr.mxu0 0.0
        %1984 = vmatpush2.xpose.msra.mxu0 0.0
        %1985 = vmatprep.subr.mxu0 0.0
        %1986 = vmatpush2.xpose.msra.mxu0 0.0
        %1987 = vmatprep.subr.mxu0 0.0
        %1988 = vmatpush2.xpose.msra.mxu0 0.0
        %1989 = vmatprep.subr.mxu0 0.0
        %1990 = vmatpush2.xpose.msra.mxu0 0.0
        %1991 = vmatprep.subr.mxu0 0.0
        %1992 = vmatpush2.xpose.msra.mxu0 0.0
        %1993 = vmatprep.subr.mxu0 0.0
        %1994 = vmatpush2.xpose.msra.mxu0 0.0
        %1995 = vmatprep.subr.mxu0 0.0
        %1996 = vmatpush2.xpose.msra.mxu0 0.0
        %1997 = vmatprep.subr.mxu0 0.0
        %1998 = vmatpush2.xpose.msra.mxu0 0.0
        %1999 = vmatprep.subr.mxu0 0.0
        %2000 = vmatpush2.xpose.msra.mxu0 0.0
        %2001 = vmatprep.subr.mxu0 0.0
        %2002 = vmatpush2.xpose.msra.mxu0 0.0
        %2003 = vmatprep.subr.mxu0 0.0
        %2004 = vmatpush2.xpose.msra.mxu0 0.0
        %2005 = vmatprep.subr.mxu0 0.0
        %2006 = vmatpush2.xpose.msra.mxu0 0.0
        %2007 = vmatprep.subr.mxu0 0.0
        %2008 = vmatpush2.xpose.msra.mxu0 0.0
        %2009 = vmatprep.mubr.f32.mxu0 0.0
        %2010 = vmatmul.mubr.f32.gmra.mxu0 %v1937
        %v2011 = vpop.f32.mrf.mxu0
        %v2012 = vadd.f32 0.0, %v2011
        %v2013 = vpop.f32.mrf.mxu0
        %2014 = vdwg.mxu0
        %v2015 = vmul.f32 %v2012, 0.35355338
        %vm2016 = vcmp.eq.f32.partialorder %v838, 0.0
        %v2017 = vsel %vm2016, -1e+09, %v2015
        %v2018 = vsel %vm1640, %v2017, -inf
        %2019 = vmax.xlane.f32.xlu0 %v2018
        %v2020 = vpop.xlane.xlu0 %2019
        %v2021 = vsub.f32 %v2017, %v2020
        %v2022 = vmul.f32 %v2021, 1.442695
        %v2023 = vpow.pop %v2022
        %v2024 = vsel %vm1640, %v2023, 0.0
        %2025 = vadd.xlane.f32.xlu0 %v2024
        %v2026 = vpop.xlane.xlu0 %2025
        %v2027 = vrcp.pop %v2026
        %v2028 = vmul.f32 %v2023, %v2027
        %2029 = vrot.lane.b32.xlu0 %v1928, 96
        %v2030 = vpop.permute.xlu0 %2029
        %2031 = vrot.lane.b32.xlu0 %v1933, 96
        %v2032 = vpop.permute.xlu0 %2031
        %v2036 = vsel %vm1640, %v2028, 0
        %2038 = vmatprep.subr.mxu0 0.0
        %2039 = vmatpush1.msra.mxu0 0.0
        %2040 = vmatprep.subr.mxu0 0.0
        %2041 = vmatpush1.msra.mxu0 0.0
        %2042 = vmatprep.subr.mxu0 0.0
        %2043 = vmatpush1.msra.mxu0 0.0
        %2044 = vmatprep.subr.mxu0 0.0
        %2045 = vmatpush1.msra.mxu0 0.0
        %2046 = vmatprep.subr.mxu0 0.0
        %2047 = vmatpush1.msra.mxu0 0.0
        %2048 = vmatprep.subr.mxu0 0.0
        %2049 = vmatpush1.msra.mxu0 0.0
        %2050 = vmatprep.subr.mxu0 0.0
        %2051 = vmatpush1.msra.mxu0 0.0
        %2052 = vmatprep.subr.mxu0 0.0
        %2053 = vmatpush1.msra.mxu0 0.0
        %2054 = vmatprep.subr.mxu0 0.0
        %2055 = vmatpush1.msra.mxu0 0.0
        %2056 = vmatprep.subr.mxu0 0.0
        %2057 = vmatpush1.msra.mxu0 0.0
        %2058 = vmatprep.subr.mxu0 0.0
        %2059 = vmatpush1.msra.mxu0 0.0
        %2060 = vmatprep.subr.mxu0 0.0
        %2061 = vmatpush1.msra.mxu0 0.0
        %2062 = vmatprep.subr.mxu0 0.0
        %2063 = vmatpush1.msra.mxu0 0.0
        %2064 = vmatprep.subr.mxu0 0.0
        %2065 = vmatpush1.msra.mxu0 0.0
        %2066 = vmatprep.subr.mxu0 0.0
        %2067 = vmatpush1.msra.mxu0 %v2032
        %2068 = vmatprep.subr.mxu0 0.0
        %2069 = vmatpush1.msra.mxu0 %v2030
        %2070 = vmatprep.subr.mxu0 0.0
        %2071 = vmatpush2.msra.mxu0 0.0
        %2072 = vmatprep.subr.mxu0 0.0
        %2073 = vmatpush2.msra.mxu0 0.0
        %2074 = vmatprep.subr.mxu0 0.0
        %2075 = vmatpush2.msra.mxu0 0.0
        %2076 = vmatprep.subr.mxu0 0.0
        %2077 = vmatpush2.msra.mxu0 0.0
        %2078 = vmatprep.subr.mxu0 0.0
        %2079 = vmatpush2.msra.mxu0 0.0
        %2080 = vmatprep.subr.mxu0 0.0
        %2081 = vmatpush2.msra.mxu0 0.0
        %2082 = vmatprep.subr.mxu0 0.0
        %2083 = vmatpush2.msra.mxu0 0.0
        %2084 = vmatprep.subr.mxu0 0.0
        %2085 = vmatpush2.msra.mxu0 0.0
        %2086 = vmatprep.subr.mxu0 0.0
        %2087 = vmatpush2.msra.mxu0 0.0
        %2088 = vmatprep.subr.mxu0 0.0
        %2089 = vmatpush2.msra.mxu0 0.0
        %2090 = vmatprep.subr.mxu0 0.0
        %2091 = vmatpush2.msra.mxu0 0.0
        %2092 = vmatprep.subr.mxu0 0.0
        %2093 = vmatpush2.msra.mxu0 0.0
        %2094 = vmatprep.subr.mxu0 0.0
        %2095 = vmatpush2.msra.mxu0 0.0
        %2096 = vmatprep.subr.mxu0 0.0
        %2097 = vmatpush2.msra.mxu0 0.0
        %2098 = vmatprep.subr.mxu0 0.0
        %2099 = vmatpush2.msra.mxu0 0.0
        %2100 = vmatprep.subr.mxu0 0.0
        %2101 = vmatpush2.msra.mxu0 0.0
        %2102 = vmatprep.mubr.f32.mxu0 0.0
        %2103 = vmatmul.mubr.f32.gmra.mxu0 %v2036
        %v2104 = vpop.f32.mrf.mxu0
        %v2105 = vadd.f32 0.0, %v2104
        %v2106 = vpop.f32.mrf.mxu0
        %2107 = vdwg.mxu0
        %2108 = vrot.lane.b32.xlu0 %v1841, 120
        %v2109 = vpop.permute.xlu0 %2108
        %2110 = vrot.lane.b32.xlu0 %v1928, 120
        %v2111 = vpop.permute.xlu0 %2110
        %2112 = vrot.lane.b32.xlu0 %v1933, 120
        %v2113 = vpop.permute.xlu0 %2112
        %v2114 = vsel %vm961, %v2109, 0
        %v2116 = vsel %vm961, %v2111, 0
        %v2118 = vsel %vm961, %v2113, 0
        %2120 = vmatprep.subr.mxu0 0.0
        %2121 = vmatpush1.xpose.msra.mxu0 0.0
        %2122 = vmatprep.subr.mxu0 0.0
        %2123 = vmatpush1.xpose.msra.mxu0 0.0
        %2124 = vmatprep.subr.mxu0 0.0
        %2125 = vmatpush1.xpose.msra.mxu0 0.0
        %2126 = vmatprep.subr.mxu0 0.0
        %2127 = vmatpush1.xpose.msra.mxu0 0.0
        %2128 = vmatprep.subr.mxu0 0.0
        %2129 = vmatpush1.xpose.msra.mxu0 0.0
        %2130 = vmatprep.subr.mxu0 0.0
        %2131 = vmatpush1.xpose.msra.mxu0 0.0
        %2132 = vmatprep.subr.mxu0 0.0
        %2133 = vmatpush1.xpose.msra.mxu0 0.0
        %2134 = vmatprep.subr.mxu0 0.0
        %2135 = vmatpush1.xpose.msra.mxu0 0.0
        %2136 = vmatprep.subr.mxu0 0.0
        %2137 = vmatpush1.xpose.msra.mxu0 0.0
        %2138 = vmatprep.subr.mxu0 0.0
        %2139 = vmatpush1.xpose.msra.mxu0 0.0
        %2140 = vmatprep.subr.mxu0 0.0
        %2141 = vmatpush1.xpose.msra.mxu0 0.0
        %2142 = vmatprep.subr.mxu0 0.0
        %2143 = vmatpush1.xpose.msra.mxu0 0.0
        %2144 = vmatprep.subr.mxu0 0.0
        %2145 = vmatpush1.xpose.msra.mxu0 0.0
        %2146 = vmatprep.subr.mxu0 0.0
        %2147 = vmatpush1.xpose.msra.mxu0 0.0
        %2148 = vmatprep.subr.mxu0 0.0
        %2149 = vmatpush1.xpose.msra.mxu0 %v2118
        %2150 = vmatprep.subr.mxu0 0.0
        %2151 = vmatpush1.xpose.msra.mxu0 %v2116
        %2152 = vmatprep.subr.mxu0 0.0
        %2153 = vmatpush2.xpose.msra.mxu0 0.0
        %2154 = vmatprep.subr.mxu0 0.0
        %2155 = vmatpush2.xpose.msra.mxu0 0.0
        %2156 = vmatprep.subr.mxu0 0.0
        %2157 = vmatpush2.xpose.msra.mxu0 0.0
        %2158 = vmatprep.subr.mxu0 0.0
        %2159 = vmatpush2.xpose.msra.mxu0 0.0
        %2160 = vmatprep.subr.mxu0 0.0
        %2161 = vmatpush2.xpose.msra.mxu0 0.0
        %2162 = vmatprep.subr.mxu0 0.0
        %2163 = vmatpush2.xpose.msra.mxu0 0.0
        %2164 = vmatprep.subr.mxu0 0.0
        %2165 = vmatpush2.xpose.msra.mxu0 0.0
        %2166 = vmatprep.subr.mxu0 0.0
        %2167 = vmatpush2.xpose.msra.mxu0 0.0
        %2168 = vmatprep.subr.mxu0 0.0
        %2169 = vmatpush2.xpose.msra.mxu0 0.0
        %2170 = vmatprep.subr.mxu0 0.0
        %2171 = vmatpush2.xpose.msra.mxu0 0.0
        %2172 = vmatprep.subr.mxu0 0.0
        %2173 = vmatpush2.xpose.msra.mxu0 0.0
        %2174 = vmatprep.subr.mxu0 0.0
        %2175 = vmatpush2.xpose.msra.mxu0 0.0
        %2176 = vmatprep.subr.mxu0 0.0
        %2177 = vmatpush2.xpose.msra.mxu0 0.0
        %2178 = vmatprep.subr.mxu0 0.0
        %2179 = vmatpush2.xpose.msra.mxu0 0.0
        %2180 = vmatprep.subr.mxu0 0.0
        %2181 = vmatpush2.xpose.msra.mxu0 0.0
        %2182 = vmatprep.subr.mxu0 0.0
        %2183 = vmatpush2.xpose.msra.mxu0 0.0
        %2184 = vmatprep.mubr.f32.mxu0 0.0
        %2185 = vmatmul.mubr.f32.gmra.mxu0 %v2114
        %v2186 = vpop.f32.mrf.mxu0
        %v2187 = vadd.f32 0.0, %v2186
        %v2188 = vpop.f32.mrf.mxu0
        %2189 = vdwg.mxu0
        %v2190 = vmul.f32 %v2187, 0.35355338
        %v2191 = vsel %vm2016, -1e+09, %v2190
        %v2192 = vsel %vm1640, %v2191, -inf
        %2193 = vmax.xlane.f32.xlu0 %v2192
        %v2194 = vpop.xlane.xlu0 %2193
        %v2195 = vsub.f32 %v2191, %v2194
        %v2196 = vmul.f32 %v2195, 1.442695
        %v2197 = vpow.pop %v2196
        %v2198 = vsel %vm1640, %v2197, 0.0
        %2199 = vadd.xlane.f32.xlu0 %v2198
        %v2200 = vpop.xlane.xlu0 %2199
        %v2201 = vrcp.pop %v2200
        %v2202 = vmul.f32 %v2197, %v2201
        %2203 = vrot.lane.b32.xlu0 %v1928, 88
        %v2204 = vpop.permute.xlu0 %2203
        %2205 = vrot.lane.b32.xlu0 %v1933, 88
        %v2206 = vpop.permute.xlu0 %2205
        %v2210 = vsel %vm1640, %v2202, 0
        %2212 = vmatprep.subr.mxu0 0.0
        %2213 = vmatpush1.msra.mxu0 0.0
        %2214 = vmatprep.subr.mxu0 0.0
        %2215 = vmatpush1.msra.mxu0 0.0
        %2216 = vmatprep.subr.mxu0 0.0
        %2217 = vmatpush1.msra.mxu0 0.0
        %2218 = vmatprep.subr.mxu0 0.0
        %2219 = vmatpush1.msra.mxu0 0.0
        %2220 = vmatprep.subr.mxu0 0.0
        %2221 = vmatpush1.msra.mxu0 0.0
        %2222 = vmatprep.subr.mxu0 0.0
        %2223 = vmatpush1.msra.mxu0 0.0
        %2224 = vmatprep.subr.mxu0 0.0
        %2225 = vmatpush1.msra.mxu0 0.0
        %2226 = vmatprep.subr.mxu0 0.0
        %2227 = vmatpush1.msra.mxu0 0.0
        %2228 = vmatprep.subr.mxu0 0.0
        %2229 = vmatpush1.msra.mxu0 0.0
        %2230 = vmatprep.subr.mxu0 0.0
        %2231 = vmatpush1.msra.mxu0 0.0
        %2232 = vmatprep.subr.mxu0 0.0
        %2233 = vmatpush1.msra.mxu0 0.0
        %2234 = vmatprep.subr.mxu0 0.0
        %2235 = vmatpush1.msra.mxu0 0.0
        %2236 = vmatprep.subr.mxu0 0.0
        %2237 = vmatpush1.msra.mxu0 0.0
        %2238 = vmatprep.subr.mxu0 0.0
        %2239 = vmatpush1.msra.mxu0 0.0
        %2240 = vmatprep.subr.mxu0 0.0
        %2241 = vmatpush1.msra.mxu0 %v2206
        %2242 = vmatprep.subr.mxu0 0.0
        %2243 = vmatpush1.msra.mxu0 %v2204
        %2244 = vmatprep.subr.mxu0 0.0
        %2245 = vmatpush2.msra.mxu0 0.0
        %2246 = vmatprep.subr.mxu0 0.0
        %2247 = vmatpush2.msra.mxu0 0.0
        %2248 = vmatprep.subr.mxu0 0.0
        %2249 = vmatpush2.msra.mxu0 0.0
        %2250 = vmatprep.subr.mxu0 0.0
        %2251 = vmatpush2.msra.mxu0 0.0
        %2252 = vmatprep.subr.mxu0 0.0
        %2253 = vmatpush2.msra.mxu0 0.0
        %2254 = vmatprep.subr.mxu0 0.0
        %2255 = vmatpush2.msra.mxu0 0.0
        %2256 = vmatprep.subr.mxu0 0.0
        %2257 = vmatpush2.msra.mxu0 0.0
        %2258 = vmatprep.subr.mxu0 0.0
        %2259 = vmatpush2.msra.mxu0 0.0
        %2260 = vmatprep.subr.mxu0 0.0
        %2261 = vmatpush2.msra.mxu0 0.0
        %2262 = vmatprep.subr.mxu0 0.0
        %2263 = vmatpush2.msra.mxu0 0.0
        %2264 = vmatprep.subr.mxu0 0.0
        %2265 = vmatpush2.msra.mxu0 0.0
        %2266 = vmatprep.subr.mxu0 0.0
        %2267 = vmatpush2.msra.mxu0 0.0
        %2268 = vmatprep.subr.mxu0 0.0
        %2269 = vmatpush2.msra.mxu0 0.0
        %2270 = vmatprep.subr.mxu0 0.0
        %2271 = vmatpush2.msra.mxu0 0.0
        %2272 = vmatprep.subr.mxu0 0.0
        %2273 = vmatpush2.msra.mxu0 0.0
        %2274 = vmatprep.subr.mxu0 0.0
        %2275 = vmatpush2.msra.mxu0 0.0
        %2276 = vmatprep.mubr.f32.mxu0 0.0
        %2277 = vmatmul.mubr.f32.gmra.mxu0 %v2210
        %v2278 = vpop.f32.mrf.mxu0
        %v2279 = vadd.f32 0.0, %v2278
        %v2280 = vpop.f32.mrf.mxu0
        %2281 = vdwg.mxu0
        %2282 = vrot.lane.b32.xlu0 %v1841, 112
        %v2283 = vpop.permute.xlu0 %2282
        %2284 = vrot.lane.b32.xlu0 %v1928, 112
        %v2285 = vpop.permute.xlu0 %2284
        %2286 = vrot.lane.b32.xlu0 %v1933, 112
        %v2287 = vpop.permute.xlu0 %2286
        %v2288 = vsel %vm961, %v2283, 0
        %v2290 = vsel %vm961, %v2285, 0
        %v2292 = vsel %vm961, %v2287, 0
        %2294 = vmatprep.subr.mxu0 0.0
        %2295 = vmatpush1.xpose.msra.mxu0 0.0
        %2296 = vmatprep.subr.mxu0 0.0
        %2297 = vmatpush1.xpose.msra.mxu0 0.0
        %2298 = vmatprep.subr.mxu0 0.0
        %2299 = vmatpush1.xpose.msra.mxu0 0.0
        %2300 = vmatprep.subr.mxu0 0.0
        %2301 = vmatpush1.xpose.msra.mxu0 0.0
        %2302 = vmatprep.subr.mxu0 0.0
        %2303 = vmatpush1.xpose.msra.mxu0 0.0
        %2304 = vmatprep.subr.mxu0 0.0
        %2305 = vmatpush1.xpose.msra.mxu0 0.0
        %2306 = vmatprep.subr.mxu0 0.0
        %2307 = vmatpush1.xpose.msra.mxu0 0.0
        %2308 = vmatprep.subr.mxu0 0.0
        %2309 = vmatpush1.xpose.msra.mxu0 0.0
        %2310 = vmatprep.subr.mxu0 0.0
        %2311 = vmatpush1.xpose.msra.mxu0 0.0
        %2312 = vmatprep.subr.mxu0 0.0
        %2313 = vmatpush1.xpose.msra.mxu0 0.0
        %2314 = vmatprep.subr.mxu0 0.0
        %2315 = vmatpush1.xpose.msra.mxu0 0.0
        %2316 = vmatprep.subr.mxu0 0.0
        %2317 = vmatpush1.xpose.msra.mxu0 0.0
        %2318 = vmatprep.subr.mxu0 0.0
        %2319 = vmatpush1.xpose.msra.mxu0 0.0
        %2320 = vmatprep.subr.mxu0 0.0
        %2321 = vmatpush1.xpose.msra.mxu0 0.0
        %2322 = vmatprep.subr.mxu0 0.0
        %2323 = vmatpush1.xpose.msra.mxu0 %v2292
        %2324 = vmatprep.subr.mxu0 0.0
        %2325 = vmatpush1.xpose.msra.mxu0 %v2290
        %2326 = vmatprep.subr.mxu0 0.0
        %2327 = vmatpush2.xpose.msra.mxu0 0.0
        %2328 = vmatprep.subr.mxu0 0.0
        %2329 = vmatpush2.xpose.msra.mxu0 0.0
        %2330 = vmatprep.subr.mxu0 0.0
        %2331 = vmatpush2.xpose.msra.mxu0 0.0
        %2332 = vmatprep.subr.mxu0 0.0
        %2333 = vmatpush2.xpose.msra.mxu0 0.0
        %2334 = vmatprep.subr.mxu0 0.0
        %2335 = vmatpush2.xpose.msra.mxu0 0.0
        %2336 = vmatprep.subr.mxu0 0.0
        %2337 = vmatpush2.xpose.msra.mxu0 0.0
        %2338 = vmatprep.subr.mxu0 0.0
        %2339 = vmatpush2.xpose.msra.mxu0 0.0
        %2340 = vmatprep.subr.mxu0 0.0
        %2341 = vmatpush2.xpose.msra.mxu0 0.0
        %2342 = vmatprep.subr.mxu0 0.0
        %2343 = vmatpush2.xpose.msra.mxu0 0.0
        %2344 = vmatprep.subr.mxu0 0.0
        %2345 = vmatpush2.xpose.msra.mxu0 0.0
        %2346 = vmatprep.subr.mxu0 0.0
        %2347 = vmatpush2.xpose.msra.mxu0 0.0
        %2348 = vmatprep.subr.mxu0 0.0
        %2349 = vmatpush2.xpose.msra.mxu0 0.0
        %2350 = vmatprep.subr.mxu0 0.0
        %2351 = vmatpush2.xpose.msra.mxu0 0.0
        %2352 = vmatprep.subr.mxu0 0.0
        %2353 = vmatpush2.xpose.msra.mxu0 0.0
        %2354 = vmatprep.subr.mxu0 0.0
        %2355 = vmatpush2.xpose.msra.mxu0 0.0
        %2356 = vmatprep.subr.mxu0 0.0
        %2357 = vmatpush2.xpose.msra.mxu0 0.0
        %2358 = vmatprep.mubr.f32.mxu0 0.0
        %2359 = vmatmul.mubr.f32.gmra.mxu0 %v2288
        %v2360 = vpop.f32.mrf.mxu0
        %v2361 = vadd.f32 0.0, %v2360
        %v2362 = vpop.f32.mrf.mxu0
        %2363 = vdwg.mxu0
        %v2364 = vmul.f32 %v2361, 0.35355338
        %v2365 = vsel %vm2016, -1e+09, %v2364
        %v2366 = vsel %vm1640, %v2365, -inf
        %2367 = vmax.xlane.f32.xlu0 %v2366
        %v2368 = vpop.xlane.xlu0 %2367
        %v2369 = vsub.f32 %v2365, %v2368
        %v2370 = vmul.f32 %v2369, 1.442695
        %v2371 = vpow.pop %v2370
        %v2372 = vsel %vm1640, %v2371, 0.0
        %2373 = vadd.xlane.f32.xlu0 %v2372
        %v2374 = vpop.xlane.xlu0 %2373
        %v2375 = vrcp.pop %v2374
        %v2376 = vmul.f32 %v2371, %v2375
        %2377 = vrot.lane.b32.xlu0 %v1928, 80
        %v2378 = vpop.permute.xlu0 %2377
        %2379 = vrot.lane.b32.xlu0 %v1933, 80
        %v2380 = vpop.permute.xlu0 %2379
        %v2384 = vsel %vm1640, %v2376, 0
        %2386 = vmatprep.subr.mxu0 0.0
        %2387 = vmatpush1.msra.mxu0 0.0
        %2388 = vmatprep.subr.mxu0 0.0
        %2389 = vmatpush1.msra.mxu0 0.0
        %2390 = vmatprep.subr.mxu0 0.0
        %2391 = vmatpush1.msra.mxu0 0.0
        %2392 = vmatprep.subr.mxu0 0.0
        %2393 = vmatpush1.msra.mxu0 0.0
        %2394 = vmatprep.subr.mxu0 0.0
        %2395 = vmatpush1.msra.mxu0 0.0
        %2396 = vmatprep.subr.mxu0 0.0
        %2397 = vmatpush1.msra.mxu0 0.0
        %2398 = vmatprep.subr.mxu0 0.0
        %2399 = vmatpush1.msra.mxu0 0.0
        %2400 = vmatprep.subr.mxu0 0.0
        %2401 = vmatpush1.msra.mxu0 0.0
        %2402 = vmatprep.subr.mxu0 0.0
        %2403 = vmatpush1.msra.mxu0 0.0
        %2404 = vmatprep.subr.mxu0 0.0
        %2405 = vmatpush1.msra.mxu0 0.0
        %2406 = vmatprep.subr.mxu0 0.0
        %2407 = vmatpush1.msra.mxu0 0.0
        %2408 = vmatprep.subr.mxu0 0.0
        %2409 = vmatpush1.msra.mxu0 0.0
        %2410 = vmatprep.subr.mxu0 0.0
        %2411 = vmatpush1.msra.mxu0 0.0
        %2412 = vmatprep.subr.mxu0 0.0
        %2413 = vmatpush1.msra.mxu0 0.0
        %2414 = vmatprep.subr.mxu0 0.0
        %2415 = vmatpush1.msra.mxu0 %v2380
        %2416 = vmatprep.subr.mxu0 0.0
        %2417 = vmatpush1.msra.mxu0 %v2378
        %2418 = vmatprep.subr.mxu0 0.0
        %2419 = vmatpush2.msra.mxu0 0.0
        %2420 = vmatprep.subr.mxu0 0.0
        %2421 = vmatpush2.msra.mxu0 0.0
        %2422 = vmatprep.subr.mxu0 0.0
        %2423 = vmatpush2.msra.mxu0 0.0
        %2424 = vmatprep.subr.mxu0 0.0
        %2425 = vmatpush2.msra.mxu0 0.0
        %2426 = vmatprep.subr.mxu0 0.0
        %2427 = vmatpush2.msra.mxu0 0.0
        %2428 = vmatprep.subr.mxu0 0.0
        %2429 = vmatpush2.msra.mxu0 0.0
        %2430 = vmatprep.subr.mxu0 0.0
        %2431 = vmatpush2.msra.mxu0 0.0
        %2432 = vmatprep.subr.mxu0 0.0
        %2433 = vmatpush2.msra.mxu0 0.0
        %2434 = vmatprep.subr.mxu0 0.0
        %2435 = vmatpush2.msra.mxu0 0.0
        %2436 = vmatprep.subr.mxu0 0.0
        %2437 = vmatpush2.msra.mxu0 0.0
        %2438 = vmatprep.subr.mxu0 0.0
        %2439 = vmatpush2.msra.mxu0 0.0
        %2440 = vmatprep.subr.mxu0 0.0
        %2441 = vmatpush2.msra.mxu0 0.0
        %2442 = vmatprep.subr.mxu0 0.0
        %2443 = vmatpush2.msra.mxu0 0.0
        %2444 = vmatprep.subr.mxu0 0.0
        %2445 = vmatpush2.msra.mxu0 0.0
        %2446 = vmatprep.subr.mxu0 0.0
        %2447 = vmatpush2.msra.mxu0 0.0
        %2448 = vmatprep.subr.mxu0 0.0
        %2449 = vmatpush2.msra.mxu0 0.0
        %2450 = vmatprep.mubr.f32.mxu0 0.0
        %2451 = vmatmul.mubr.f32.gmra.mxu0 %v2384
        %v2452 = vpop.f32.mrf.mxu0
        %v2453 = vadd.f32 0.0, %v2452
        %v2454 = vpop.f32.mrf.mxu0
        %2455 = vdwg.mxu0
        %2456 = vrot.lane.b32.xlu0 %v1841, 104
        %v2457 = vpop.permute.xlu0 %2456
        %2458 = vrot.lane.b32.xlu0 %v1928, 104
        %v2459 = vpop.permute.xlu0 %2458
        %2460 = vrot.lane.b32.xlu0 %v1933, 104
        %v2461 = vpop.permute.xlu0 %2460
        %v2462 = vsel %vm961, %v2457, 0
        %v2464 = vsel %vm961, %v2459, 0
        %v2466 = vsel %vm961, %v2461, 0
        %2468 = vmatprep.subr.mxu0 0.0
        %2469 = vmatpush1.xpose.msra.mxu0 0.0
        %2470 = vmatprep.subr.mxu0 0.0
        %2471 = vmatpush1.xpose.msra.mxu0 0.0
        %2472 = vmatprep.subr.mxu0 0.0
        %2473 = vmatpush1.xpose.msra.mxu0 0.0
        %2474 = vmatprep.subr.mxu0 0.0
        %2475 = vmatpush1.xpose.msra.mxu0 0.0
        %2476 = vmatprep.subr.mxu0 0.0
        %2477 = vmatpush1.xpose.msra.mxu0 0.0
        %2478 = vmatprep.subr.mxu0 0.0
        %2479 = vmatpush1.xpose.msra.mxu0 0.0
        %2480 = vmatprep.subr.mxu0 0.0
        %2481 = vmatpush1.xpose.msra.mxu0 0.0
        %2482 = vmatprep.subr.mxu0 0.0
        %2483 = vmatpush1.xpose.msra.mxu0 0.0
        %2484 = vmatprep.subr.mxu0 0.0
        %2485 = vmatpush1.xpose.msra.mxu0 0.0
        %2486 = vmatprep.subr.mxu0 0.0
        %2487 = vmatpush1.xpose.msra.mxu0 0.0
        %2488 = vmatprep.subr.mxu0 0.0
        %2489 = vmatpush1.xpose.msra.mxu0 0.0
        %2490 = vmatprep.subr.mxu0 0.0
        %2491 = vmatpush1.xpose.msra.mxu0 0.0
        %2492 = vmatprep.subr.mxu0 0.0
        %2493 = vmatpush1.xpose.msra.mxu0 0.0
        %2494 = vmatprep.subr.mxu0 0.0
        %2495 = vmatpush1.xpose.msra.mxu0 0.0
        %2496 = vmatprep.subr.mxu0 0.0
        %2497 = vmatpush1.xpose.msra.mxu0 %v2466
        %2498 = vmatprep.subr.mxu0 0.0
        %2499 = vmatpush1.xpose.msra.mxu0 %v2464
        %2500 = vmatprep.subr.mxu0 0.0
        %2501 = vmatpush2.xpose.msra.mxu0 0.0
        %2502 = vmatprep.subr.mxu0 0.0
        %2503 = vmatpush2.xpose.msra.mxu0 0.0
        %2504 = vmatprep.subr.mxu0 0.0
        %2505 = vmatpush2.xpose.msra.mxu0 0.0
        %2506 = vmatprep.subr.mxu0 0.0
        %2507 = vmatpush2.xpose.msra.mxu0 0.0
        %2508 = vmatprep.subr.mxu0 0.0
        %2509 = vmatpush2.xpose.msra.mxu0 0.0
        %2510 = vmatprep.subr.mxu0 0.0
        %2511 = vmatpush2.xpose.msra.mxu0 0.0
        %2512 = vmatprep.subr.mxu0 0.0
        %2513 = vmatpush2.xpose.msra.mxu0 0.0
        %2514 = vmatprep.subr.mxu0 0.0
        %2515 = vmatpush2.xpose.msra.mxu0 0.0
        %2516 = vmatprep.subr.mxu0 0.0
        %2517 = vmatpush2.xpose.msra.mxu0 0.0
        %2518 = vmatprep.subr.mxu0 0.0
        %2519 = vmatpush2.xpose.msra.mxu0 0.0
        %2520 = vmatprep.subr.mxu0 0.0
        %2521 = vmatpush2.xpose.msra.mxu0 0.0
        %2522 = vmatprep.subr.mxu0 0.0
        %2523 = vmatpush2.xpose.msra.mxu0 0.0
        %2524 = vmatprep.subr.mxu0 0.0
        %2525 = vmatpush2.xpose.msra.mxu0 0.0
        %2526 = vmatprep.subr.mxu0 0.0
        %2527 = vmatpush2.xpose.msra.mxu0 0.0
        %2528 = vmatprep.subr.mxu0 0.0
        %2529 = vmatpush2.xpose.msra.mxu0 0.0
        %2530 = vmatprep.subr.mxu0 0.0
        %2531 = vmatpush2.xpose.msra.mxu0 0.0
        %2532 = vmatprep.mubr.f32.mxu0 0.0
        %2533 = vmatmul.mubr.f32.gmra.mxu0 %v2462
        %v2534 = vpop.f32.mrf.mxu0
        %v2535 = vadd.f32 0.0, %v2534
        %v2536 = vpop.f32.mrf.mxu0
        %2537 = vdwg.mxu0
        %v2538 = vmul.f32 %v2535, 0.35355338
        %v2539 = vsel %vm2016, -1e+09, %v2538
        %v2540 = vsel %vm1640, %v2539, -inf
        %2541 = vmax.xlane.f32.xlu0 %v2540
        %v2542 = vpop.xlane.xlu0 %2541
        %v2543 = vsub.f32 %v2539, %v2542
        %v2544 = vmul.f32 %v2543, 1.442695
        %v2545 = vpow.pop %v2544
        %v2546 = vsel %vm1640, %v2545, 0.0
        %2547 = vadd.xlane.f32.xlu0 %v2546
        %v2548 = vpop.xlane.xlu0 %2547
        %v2549 = vrcp.pop %v2548
        %v2550 = vmul.f32 %v2545, %v2549
        %2551 = vrot.lane.b32.xlu0 %v1928, 72
        %v2552 = vpop.permute.xlu0 %2551
        %2553 = vrot.lane.b32.xlu0 %v1933, 72
        %v2554 = vpop.permute.xlu0 %2553
        %v2558 = vsel %vm1640, %v2550, 0
        %2560 = vmatprep.subr.mxu0 0.0
        %2561 = vmatpush1.msra.mxu0 0.0
        %2562 = vmatprep.subr.mxu0 0.0
        %2563 = vmatpush1.msra.mxu0 0.0
        %2564 = vmatprep.subr.mxu0 0.0
        %2565 = vmatpush1.msra.mxu0 0.0
        %2566 = vmatprep.subr.mxu0 0.0
        %2567 = vmatpush1.msra.mxu0 0.0
        %2568 = vmatprep.subr.mxu0 0.0
        %2569 = vmatpush1.msra.mxu0 0.0
        %2570 = vmatprep.subr.mxu0 0.0
        %2571 = vmatpush1.msra.mxu0 0.0
        %2572 = vmatprep.subr.mxu0 0.0
        %2573 = vmatpush1.msra.mxu0 0.0
        %2574 = vmatprep.subr.mxu0 0.0
        %2575 = vmatpush1.msra.mxu0 0.0
        %2576 = vmatprep.subr.mxu0 0.0
        %2577 = vmatpush1.msra.mxu0 0.0
        %2578 = vmatprep.subr.mxu0 0.0
        %2579 = vmatpush1.msra.mxu0 0.0
        %2580 = vmatprep.subr.mxu0 0.0
        %2581 = vmatpush1.msra.mxu0 0.0
        %2582 = vmatprep.subr.mxu0 0.0
        %2583 = vmatpush1.msra.mxu0 0.0
        %2584 = vmatprep.subr.mxu0 0.0
        %2585 = vmatpush1.msra.mxu0 0.0
        %2586 = vmatprep.subr.mxu0 0.0
        %2587 = vmatpush1.msra.mxu0 0.0
        %2588 = vmatprep.subr.mxu0 0.0
        %2589 = vmatpush1.msra.mxu0 %v2554
        %2590 = vmatprep.subr.mxu0 0.0
        %2591 = vmatpush1.msra.mxu0 %v2552
        %2592 = vmatprep.subr.mxu0 0.0
        %2593 = vmatpush2.msra.mxu0 0.0
        %2594 = vmatprep.subr.mxu0 0.0
        %2595 = vmatpush2.msra.mxu0 0.0
        %2596 = vmatprep.subr.mxu0 0.0
        %2597 = vmatpush2.msra.mxu0 0.0
        %2598 = vmatprep.subr.mxu0 0.0
        %2599 = vmatpush2.msra.mxu0 0.0
        %2600 = vmatprep.subr.mxu0 0.0
        %2601 = vmatpush2.msra.mxu0 0.0
        %2602 = vmatprep.subr.mxu0 0.0
        %2603 = vmatpush2.msra.mxu0 0.0
        %2604 = vmatprep.subr.mxu0 0.0
        %2605 = vmatpush2.msra.mxu0 0.0
        %2606 = vmatprep.subr.mxu0 0.0
        %2607 = vmatpush2.msra.mxu0 0.0
        %2608 = vmatprep.subr.mxu0 0.0
        %2609 = vmatpush2.msra.mxu0 0.0
        %2610 = vmatprep.subr.mxu0 0.0
        %2611 = vmatpush2.msra.mxu0 0.0
        %2612 = vmatprep.subr.mxu0 0.0
        %2613 = vmatpush2.msra.mxu0 0.0
        %2614 = vmatprep.subr.mxu0 0.0
        %2615 = vmatpush2.msra.mxu0 0.0
        %2616 = vmatprep.subr.mxu0 0.0
        %2617 = vmatpush2.msra.mxu0 0.0
        %2618 = vmatprep.subr.mxu0 0.0
        %2619 = vmatpush2.msra.mxu0 0.0
        %2620 = vmatprep.subr.mxu0 0.0
        %2621 = vmatpush2.msra.mxu0 0.0
        %2622 = vmatprep.subr.mxu0 0.0
        %2623 = vmatpush2.msra.mxu0 0.0
        %2624 = vmatprep.mubr.f32.mxu0 0.0
        %2625 = vmatmul.mubr.f32.gmra.mxu0 %v2558
        %v2626 = vpop.f32.mrf.mxu0
        %v2627 = vadd.f32 0.0, %v2626
        %v2628 = vpop.f32.mrf.mxu0
        %2629 = vdwg.mxu0
        %2631 = vrot.lane.b32.xlu0 %v2279, 8
        %v2632 = vpop.permute.xlu0 %2631
        %2635 = vrot.lane.b32.xlu0 %v2453, 16
        %v2636 = vpop.permute.xlu0 %2635
        %2639 = vrot.lane.b32.xlu0 %v2627, 24
        %v2640 = vpop.permute.xlu0 %2639
        %v2642 = vsel %vm961, %v2105, %v2632
        %v2643 = vsel %vm1640, %v2642, %v2636
        %v2644 = vsel %vm1642, %v2643, %v2640
        %v2645 = vld [vmem:[#allocation10] sm:$0xff]
        %v2646 = vld [vmem:[#allocation10 + $0x8] sm:$0xff]
        %v2647 = vld [vmem:[#allocation10 + $0x10] sm:$0xff]
        %v2648 = vld [vmem:[#allocation10 + $0x18] sm:$0xff]
        %v2650 = vsel %vm841, %v2644, 0
        %2652 = vmatprep.subr.mxu0 0.0
        %2653 = vmatpush1.msra.mxu0 0.0
        %2654 = vmatprep.subr.mxu0 0.0
        %2655 = vmatpush1.msra.mxu0 0.0
        %2656 = vmatprep.subr.mxu0 0.0
        %2657 = vmatpush1.msra.mxu0 0.0
        %2658 = vmatprep.subr.mxu0 0.0
        %2659 = vmatpush1.msra.mxu0 0.0
        %2660 = vmatprep.subr.mxu0 0.0
        %2661 = vmatpush1.msra.mxu0 0.0
        %2662 = vmatprep.subr.mxu0 0.0
        %2663 = vmatpush1.msra.mxu0 0.0
        %2664 = vmatprep.subr.mxu0 0.0
        %2665 = vmatpush1.msra.mxu0 0.0
        %2666 = vmatprep.subr.mxu0 0.0
        %2667 = vmatpush1.msra.mxu0 0.0
        %2668 = vmatprep.subr.mxu0 0.0
        %2669 = vmatpush1.msra.mxu0 0.0
        %2670 = vmatprep.subr.mxu0 0.0
        %2671 = vmatpush1.msra.mxu0 0.0
        %2672 = vmatprep.subr.mxu0 0.0
        %2673 = vmatpush1.msra.mxu0 0.0
        %2674 = vmatprep.subr.mxu0 0.0
        %2675 = vmatpush1.msra.mxu0 0.0
        %2676 = vmatprep.subr.mxu0 0.0
        %2677 = vmatpush1.msra.mxu0 %v2648
        %2678 = vmatprep.subr.mxu0 0.0
        %2679 = vmatpush1.msra.mxu0 %v2647
        %2680 = vmatprep.subr.mxu0 0.0
        %2681 = vmatpush1.msra.mxu0 %v2646
        %2682 = vmatprep.subr.mxu0 0.0
        %2683 = vmatpush1.msra.mxu0 %v2645
        %2684 = vmatprep.subr.mxu0 0.0
        %2685 = vmatpush2.msra.mxu0 0.0
        %2686 = vmatprep.subr.mxu0 0.0
        %2687 = vmatpush2.msra.mxu0 0.0
        %2688 = vmatprep.subr.mxu0 0.0
        %2689 = vmatpush2.msra.mxu0 0.0
        %2690 = vmatprep.subr.mxu0 0.0
        %2691 = vmatpush2.msra.mxu0 0.0
        %2692 = vmatprep.subr.mxu0 0.0
        %2693 = vmatpush2.msra.mxu0 0.0
        %2694 = vmatprep.subr.mxu0 0.0
        %2695 = vmatpush2.msra.mxu0 0.0
        %2696 = vmatprep.subr.mxu0 0.0
        %2697 = vmatpush2.msra.mxu0 0.0
        %2698 = vmatprep.subr.mxu0 0.0
        %2699 = vmatpush2.msra.mxu0 0.0
        %2700 = vmatprep.subr.mxu0 0.0
        %2701 = vmatpush2.msra.mxu0 0.0
        %2702 = vmatprep.subr.mxu0 0.0
        %2703 = vmatpush2.msra.mxu0 0.0
        %2704 = vmatprep.subr.mxu0 0.0
        %2705 = vmatpush2.msra.mxu0 0.0
        %2706 = vmatprep.subr.mxu0 0.0
        %2707 = vmatpush2.msra.mxu0 0.0
        %2708 = vmatprep.subr.mxu0 0.0
        %2709 = vmatpush2.msra.mxu0 0.0
        %2710 = vmatprep.subr.mxu0 0.0
        %2711 = vmatpush2.msra.mxu0 0.0
        %2712 = vmatprep.subr.mxu0 0.0
        %2713 = vmatpush2.msra.mxu0 0.0
        %2714 = vmatprep.subr.mxu0 0.0
        %2715 = vmatpush2.msra.mxu0 0.0
        %2716 = vmatprep.mubr.f32.mxu0 0.0
        %2717 = vmatmul.mubr.f32.gmra.mxu0 %v2650
        %v2718 = vpop.f32.mrf.mxu0
        %v2719 = vadd.f32 0.0, %v2718
        %v2720 = vpop.f32.mrf.mxu0
        %2721 = vdwg.mxu0
        %v2722 = vadd.f32 %v1729, %v2719
        %v2723 = vld [vmem:[%s13] sm:$0x1]
        %v2725 = vlaneseq
        %v2726 = vshrl.u32 %v2725, 7
        %v2727 = vsub.s32 0, %v2726
        %v2728 = vrot.slane %v2723, %v2727
        %v2730 = vadd.f32 %v2722, %v2728
        %v2731 = vsel %vm841, %v2730, 0.0
        %2732 = vadd.xlane.f32.xlu0 %v2731
        %v2733 = vpop.xlane.xlu0 %2732
        %v2734 = vmul.f32 %v2733, %v845
        %v2735 = vsub.f32 %v2730, %v2734
        %v2736 = vmul.f32 %v2735, %v2735
        %v2737 = vsel %vm841, %v2736, 0.0
        %2738 = vadd.xlane.f32.xlu0 %v2737
        %v2739 = vpop.xlane.xlu0 %2738
        %v2740 = vmul.f32 %v2739, %v852
        %v2741 = vrsqrt.pop %v2740
        %v2742 = vmul.f32 %v2740, %v2741
        %vm2743 = vcmp.eq.f32.partialorder %v2740, inf
        %v2744 = vsel %vm2743, %v2740, %v2742
        %vm2745 = vcmp.eq.f32.partialorder %v2740, 0.0
        %v2746 = vand.u32 %v2740, 2147483648
        %v2747 = vsel %vm2745, %v2746, %v2744
        %v2748 = vlaneseq
        %v2749 = vshrl.u32 %v2748, 7
        %v2750 = vsub.s32 2, %v2749
        %v2751 = vrot.slane %v839, %v2750
        %v2752 = vmul.f32 %v2751, %v2735
        %v2753 = vadd.f32 %v2747, 1e-06
        %v2754 = vrcp.pop %v2753
        %v2755 = vmul.f32 %v2752, %v2754
        %v2756 = vlaneseq
        %v2757 = vshrl.u32 %v2756, 7
        %v2758 = vsub.s32 2, %v2757
        %v2759 = vrot.slane %v840, %v2758
        %v2760 = vadd.f32 %v2755, %v2759
        %v2761 = vld [vmem:[#allocation11] sm:$0xff]
        %v2762 = vld [vmem:[#allocation11 + $0x8] sm:$0xff]
        %v2763 = vld [vmem:[#allocation11 + $0x10] sm:$0xff]
        %v2764 = vld [vmem:[#allocation11 + $0x18] sm:$0xff]
        %v2765 = vld [vmem:[%s15] sm:$0x1]
        %v2767 = vlaneseq
        %v2768 = vshrl.u32 %v2767, 7
        %v2769 = vsub.s32 0, %v2768
        %v2770 = vrot.slane %v2765, %v2769
        %v2773 = vsel %vm841, %v2760, 0
        %2775 = vmatprep.subr.mxu0 0.0
        %2776 = vmatpush1.msra.mxu0 0.0
        %2777 = vmatprep.subr.mxu0 0.0
        %2778 = vmatpush1.msra.mxu0 0.0
        %2779 = vmatprep.subr.mxu0 0.0
        %2780 = vmatpush1.msra.mxu0 0.0
        %2781 = vmatprep.subr.mxu0 0.0
        %2782 = vmatpush1.msra.mxu0 0.0
        %2783 = vmatprep.subr.mxu0 0.0
        %2784 = vmatpush1.msra.mxu0 0.0
        %2785 = vmatprep.subr.mxu0 0.0
        %2786 = vmatpush1.msra.mxu0 0.0
        %2787 = vmatprep.subr.mxu0 0.0
        %2788 = vmatpush1.msra.mxu0 0.0
        %2789 = vmatprep.subr.mxu0 0.0
        %2790 = vmatpush1.msra.mxu0 0.0
        %2791 = vmatprep.subr.mxu0 0.0
        %2792 = vmatpush1.msra.mxu0 0.0
        %2793 = vmatprep.subr.mxu0 0.0
        %2794 = vmatpush1.msra.mxu0 0.0
        %2795 = vmatprep.subr.mxu0 0.0
        %2796 = vmatpush1.msra.mxu0 0.0
        %2797 = vmatprep.subr.mxu0 0.0
        %2798 = vmatpush1.msra.mxu0 0.0
        %2799 = vmatprep.subr.mxu0 0.0
        %2800 = vmatpush1.msra.mxu0 %v2764
        %2801 = vmatprep.subr.mxu0 0.0
        %2802 = vmatpush1.msra.mxu0 %v2763
        %2803 = vmatprep.subr.mxu0 0.0
        %2804 = vmatpush1.msra.mxu0 %v2762
        %2805 = vmatprep.subr.mxu0 0.0
        %2806 = vmatpush1.msra.mxu0 %v2761
        %2807 = vmatprep.subr.mxu0 0.0
        %2808 = vmatpush2.msra.mxu0 0.0
        %2809 = vmatprep.subr.mxu0 0.0
        %2810 = vmatpush2.msra.mxu0 0.0
        %2811 = vmatprep.subr.mxu0 0.0
        %2812 = vmatpush2.msra.mxu0 0.0
        %2813 = vmatprep.subr.mxu0 0.0
        %2814 = vmatpush2.msra.mxu0 0.0
        %2815 = vmatprep.subr.mxu0 0.0
        %2816 = vmatpush2.msra.mxu0 0.0
        %2817 = vmatprep.subr.mxu0 0.0
        %2818 = vmatpush2.msra.mxu0 0.0
        %2819 = vmatprep.subr.mxu0 0.0
        %2820 = vmatpush2.msra.mxu0 0.0
        %2821 = vmatprep.subr.mxu0 0.0
        %2822 = vmatpush2.msra.mxu0 0.0
        %2823 = vmatprep.subr.mxu0 0.0
        %2824 = vmatpush2.msra.mxu0 0.0
        %2825 = vmatprep.subr.mxu0 0.0
        %2826 = vmatpush2.msra.mxu0 0.0
        %2827 = vmatprep.subr.mxu0 0.0
        %2828 = vmatpush2.msra.mxu0 0.0
        %2829 = vmatprep.subr.mxu0 0.0
        %2830 = vmatpush2.msra.mxu0 0.0
        %2831 = vmatprep.subr.mxu0 0.0
        %2832 = vmatpush2.msra.mxu0 0.0
        %2833 = vmatprep.subr.mxu0 0.0
        %2834 = vmatpush2.msra.mxu0 0.0
        %2835 = vmatprep.subr.mxu0 0.0
        %2836 = vmatpush2.msra.mxu0 0.0
        %2837 = vmatprep.subr.mxu0 0.0
        %2838 = vmatpush2.msra.mxu0 0.0
        %2839 = vmatprep.mubr.f32.mxu0 0.0
        %2840 = vmatmul.mubr.f32.gmra.mxu0 %v2773
        %v2841 = vpop.f32.mrf.mxu0
        %v2842 = vadd.f32 %v2770, %v2841
        %v2843 = vpop.f32.mrf.mxu0
        %2844 = vdwg.mxu0
        %v2845 = vmax.f32 %v2842, 0.0
        %v2846 = vld [vmem:[%s16] sm:$0xff]
        %v2847 = vld [vmem:[%s16 + $0x8] sm:$0xff]
        %v2848 = vld [vmem:[%s16 + $0x10] sm:$0xff]
        %v2849 = vld [vmem:[%s16 + $0x18] sm:$0xff]
        %v2850 = vld [vmem:[%s16 + $0x20] sm:$0xff]
        %v2851 = vld [vmem:[%s16 + $0x28] sm:$0xff]
        %v2852 = vld [vmem:[%s16 + $0x30] sm:$0xff]
        %v2853 = vld [vmem:[%s16 + $0x38] sm:$0xff]
        %vm2854 = vcmask 523264
        %v2856 = vsel %vm2854, %v2845, 0
        %2858 = vmatprep.subr.mxu0 0.0
        %2859 = vmatpush1.msra.mxu0 0.0
        %2860 = vmatprep.subr.mxu0 0.0
        %2861 = vmatpush1.msra.mxu0 0.0
        %2862 = vmatprep.subr.mxu0 0.0
        %2863 = vmatpush1.msra.mxu0 0.0
        %2864 = vmatprep.subr.mxu0 0.0
        %2865 = vmatpush1.msra.mxu0 0.0
        %2866 = vmatprep.subr.mxu0 0.0
        %2867 = vmatpush1.msra.mxu0 0.0
        %2868 = vmatprep.subr.mxu0 0.0
        %2869 = vmatpush1.msra.mxu0 0.0
        %2870 = vmatprep.subr.mxu0 0.0
        %2871 = vmatpush1.msra.mxu0 0.0
        %2872 = vmatprep.subr.mxu0 0.0
        %2873 = vmatpush1.msra.mxu0 0.0
        %2874 = vmatprep.subr.mxu0 0.0
        %2875 = vmatpush1.msra.mxu0 %v2853
        %2876 = vmatprep.subr.mxu0 0.0
        %2877 = vmatpush1.msra.mxu0 %v2852
        %2878 = vmatprep.subr.mxu0 0.0
        %2879 = vmatpush1.msra.mxu0 %v2851
        %2880 = vmatprep.subr.mxu0 0.0
        %2881 = vmatpush1.msra.mxu0 %v2850
        %2882 = vmatprep.subr.mxu0 0.0
        %2883 = vmatpush1.msra.mxu0 %v2849
        %2884 = vmatprep.subr.mxu0 0.0
        %2885 = vmatpush1.msra.mxu0 %v2848
        %2886 = vmatprep.subr.mxu0 0.0
        %2887 = vmatpush1.msra.mxu0 %v2847
        %2888 = vmatprep.subr.mxu0 0.0
        %2889 = vmatpush1.msra.mxu0 %v2846
        %2890 = vmatprep.subr.mxu0 0.0
        %2891 = vmatpush2.msra.mxu0 0.0
        %2892 = vmatprep.subr.mxu0 0.0
        %2893 = vmatpush2.msra.mxu0 0.0
        %2894 = vmatprep.subr.mxu0 0.0
        %2895 = vmatpush2.msra.mxu0 0.0
        %2896 = vmatprep.subr.mxu0 0.0
        %2897 = vmatpush2.msra.mxu0 0.0
        %2898 = vmatprep.subr.mxu0 0.0
        %2899 = vmatpush2.msra.mxu0 0.0
        %2900 = vmatprep.subr.mxu0 0.0
        %2901 = vmatpush2.msra.mxu0 0.0
        %2902 = vmatprep.subr.mxu0 0.0
        %2903 = vmatpush2.msra.mxu0 0.0
        %2904 = vmatprep.subr.mxu0 0.0
        %2905 = vmatpush2.msra.mxu0 0.0
        %2906 = vmatprep.subr.mxu0 0.0
        %2907 = vmatpush2.msra.mxu0 0.0
        %2908 = vmatprep.subr.mxu0 0.0
        %2909 = vmatpush2.msra.mxu0 0.0
        %2910 = vmatprep.subr.mxu0 0.0
        %2911 = vmatpush2.msra.mxu0 0.0
        %2912 = vmatprep.subr.mxu0 0.0
        %2913 = vmatpush2.msra.mxu0 0.0
        %2914 = vmatprep.subr.mxu0 0.0
        %2915 = vmatpush2.msra.mxu0 0.0
        %2916 = vmatprep.subr.mxu0 0.0
        %2917 = vmatpush2.msra.mxu0 0.0
        %2918 = vmatprep.subr.mxu0 0.0
        %2919 = vmatpush2.msra.mxu0 0.0
        %2920 = vmatprep.subr.mxu0 0.0
        %2921 = vmatpush2.msra.mxu0 0.0
        %2922 = vmatprep.mubr.f32.mxu0 0.0
        %2923 = vmatmul.mubr.f32.gmra.mxu0 %v2856
        %v2924 = vpop.f32.mrf.mxu0
        %v2925 = vadd.f32 0.0, %v2924
        %v2926 = vpop.f32.mrf.mxu0
        %2927 = vdwg.mxu0
        %v2928 = vadd.f32 %v2730, %v2925
        %v2929 = vld [vmem:[%s17] sm:$0x1]
        %v2931 = vlaneseq
        %v2932 = vshrl.u32 %v2931, 7
        %v2933 = vsub.s32 0, %v2932
        %v2934 = vrot.slane %v2929, %v2933
        %v2936 = vadd.f32 %v2928, %v2934
        %s2937 = scalar_lea.vmem %s18, 4
        %v2938 = vld [vmem:[%s2937] sm:$0x7]
        %s2939 = scalar_lea.vmem %s19, 4
        %v2940 = vld [vmem:[%s2939] sm:$0x7]
        %v2941 = vsel %vm841, %v2936, 0.0
        %2942 = vadd.xlane.f32.xlu0 %v2941
        %v2943 = vpop.xlane.xlu0 %2942
        %v2944 = vmul.f32 %v2943, %v845
        %v2945 = vsub.f32 %v2936, %v2944
        %v2946 = vmul.f32 %v2945, %v2945
        %v2947 = vsel %vm841, %v2946, 0.0
        %2948 = vadd.xlane.f32.xlu0 %v2947
        %v2949 = vpop.xlane.xlu0 %2948
        %v2950 = vmul.f32 %v2949, %v852
        %v2951 = vrsqrt.pop %v2950
        %v2952 = vmul.f32 %v2950, %v2951
        %vm2953 = vcmp.eq.f32.partialorder %v2950, inf
        %v2954 = vsel %vm2953, %v2950, %v2952
        %vm2955 = vcmp.eq.f32.partialorder %v2950, 0.0
        %v2956 = vand.u32 %v2950, 2147483648
        %v2957 = vsel %vm2955, %v2956, %v2954
        %v2958 = vlaneseq
        %v2959 = vshrl.u32 %v2958, 7
        %v2960 = vsub.s32 0, %v2959
        %v2961 = vrot.slane %v2938, %v2960
        %v2962 = vmul.f32 %v2961, %v2945
        %v2963 = vadd.f32 %v2957, 1e-06
        %v2964 = vrcp.pop %v2963
        %v2965 = vmul.f32 %v2962, %v2964
        %v2966 = vlaneseq
        %v2967 = vshrl.u32 %v2966, 7
        %v2968 = vsub.s32 0, %v2967
        %v2969 = vrot.slane %v2940, %v2968
        %v2970 = vadd.f32 %v2965, %v2969
        %s2971 = scalar_lea.vmem %s4, 32
        %v2972 = vld [vmem:[%s2971] sm:$0xff]
        %v2973 = vld [vmem:[%s2971 + $0x8] sm:$0xff]
        %v2974 = vld [vmem:[%s2971 + $0x10] sm:$0xff]
        %v2975 = vld [vmem:[%s2971 + $0x18] sm:$0xff]
        %s2976 = scalar_lea.vmem %s5, 1
        %v2977 = vld [vmem:[%s2976] sm:$0x1]
        %v2979 = vlaneseq
        %v2980 = vshrl.u32 %v2979, 7
        %v2981 = vsub.s32 0, %v2980
        %v2982 = vrot.slane %v2977, %v2981
        %v2985 = vsel %vm841, %v2970, 0
        %2987 = vmatprep.subr.mxu0 0.0
        %2988 = vmatpush1.msra.mxu0 0.0
        %2989 = vmatprep.subr.mxu0 0.0
        %2990 = vmatpush1.msra.mxu0 0.0
        %2991 = vmatprep.subr.mxu0 0.0
        %2992 = vmatpush1.msra.mxu0 0.0
        %2993 = vmatprep.subr.mxu0 0.0
        %2994 = vmatpush1.msra.mxu0 0.0
        %2995 = vmatprep.subr.mxu0 0.0
        %2996 = vmatpush1.msra.mxu0 0.0
        %2997 = vmatprep.subr.mxu0 0.0
        %2998 = vmatpush1.msra.mxu0 0.0
        %2999 = vmatprep.subr.mxu0 0.0
        %3000 = vmatpush1.msra.mxu0 0.0
        %3001 = vmatprep.subr.mxu0 0.0
        %3002 = vmatpush1.msra.mxu0 0.0
        %3003 = vmatprep.subr.mxu0 0.0
        %3004 = vmatpush1.msra.mxu0 0.0
        %3005 = vmatprep.subr.mxu0 0.0
        %3006 = vmatpush1.msra.mxu0 0.0
        %3007 = vmatprep.subr.mxu0 0.0
        %3008 = vmatpush1.msra.mxu0 0.0
        %3009 = vmatprep.subr.mxu0 0.0
        %3010 = vmatpush1.msra.mxu0 0.0
        %3011 = vmatprep.subr.mxu0 0.0
        %3012 = vmatpush1.msra.mxu0 %v2975
        %3013 = vmatprep.subr.mxu0 0.0
        %3014 = vmatpush1.msra.mxu0 %v2974
        %3015 = vmatprep.subr.mxu0 0.0
        %3016 = vmatpush1.msra.mxu0 %v2973
        %3017 = vmatprep.subr.mxu0 0.0
        %3018 = vmatpush1.msra.mxu0 %v2972
        %3019 = vmatprep.subr.mxu0 0.0
        %3020 = vmatpush2.msra.mxu0 0.0
        %3021 = vmatprep.subr.mxu0 0.0
        %3022 = vmatpush2.msra.mxu0 0.0
        %3023 = vmatprep.subr.mxu0 0.0
        %3024 = vmatpush2.msra.mxu0 0.0
        %3025 = vmatprep.subr.mxu0 0.0
        %3026 = vmatpush2.msra.mxu0 0.0
        %3027 = vmatprep.subr.mxu0 0.0
        %3028 = vmatpush2.msra.mxu0 0.0
        %3029 = vmatprep.subr.mxu0 0.0
        %3030 = vmatpush2.msra.mxu0 0.0
        %3031 = vmatprep.subr.mxu0 0.0
        %3032 = vmatpush2.msra.mxu0 0.0
        %3033 = vmatprep.subr.mxu0 0.0
        %3034 = vmatpush2.msra.mxu0 0.0
        %3035 = vmatprep.subr.mxu0 0.0
        %3036 = vmatpush2.msra.mxu0 0.0
        %3037 = vmatprep.subr.mxu0 0.0
        %3038 = vmatpush2.msra.mxu0 0.0
        %3039 = vmatprep.subr.mxu0 0.0
        %3040 = vmatpush2.msra.mxu0 0.0
        %3041 = vmatprep.subr.mxu0 0.0
        %3042 = vmatpush2.msra.mxu0 0.0
        %3043 = vmatprep.subr.mxu0 0.0
        %3044 = vmatpush2.msra.mxu0 0.0
        %3045 = vmatprep.subr.mxu0 0.0
        %3046 = vmatpush2.msra.mxu0 0.0
        %3047 = vmatprep.subr.mxu0 0.0
        %3048 = vmatpush2.msra.mxu0 0.0
        %3049 = vmatprep.subr.mxu0 0.0
        %3050 = vmatpush2.msra.mxu0 0.0
        %3051 = vmatprep.mubr.f32.mxu0 0.0
        %3052 = vmatmul.mubr.f32.gmra.mxu0 %v2985
        %v3053 = vpop.f32.mrf.mxu0
        %v3054 = vadd.f32 %v2982, %v3053
        %v3055 = vpop.f32.mrf.mxu0
        %3056 = vdwg.mxu0
        %3058 = vrot.lane.b32.xlu0 %v3054, 96
        %v3059 = vpop.permute.xlu0 %3058
        %v3060 = vsel %vm961, %v3054, 0
        %v3062 = vsel %vm961, %v3059, 0
        %3064 = vmatprep.subr.mxu0 0.0
        %3065 = vmatpush1.xpose.msra.mxu0 0.0
        %3066 = vmatprep.subr.mxu0 0.0
        %3067 = vmatpush1.xpose.msra.mxu0 0.0
        %3068 = vmatprep.subr.mxu0 0.0
        %3069 = vmatpush1.xpose.msra.mxu0 0.0
        %3070 = vmatprep.subr.mxu0 0.0
        %3071 = vmatpush1.xpose.msra.mxu0 0.0
        %3072 = vmatprep.subr.mxu0 0.0
        %3073 = vmatpush1.xpose.msra.mxu0 0.0
        %3074 = vmatprep.subr.mxu0 0.0
        %3075 = vmatpush1.xpose.msra.mxu0 0.0
        %3076 = vmatprep.subr.mxu0 0.0
        %3077 = vmatpush1.xpose.msra.mxu0 0.0
        %3078 = vmatprep.subr.mxu0 0.0
        %3079 = vmatpush1.xpose.msra.mxu0 0.0
        %3080 = vmatprep.subr.mxu0 0.0
        %3081 = vmatpush1.xpose.msra.mxu0 0.0
        %3082 = vmatprep.subr.mxu0 0.0
        %3083 = vmatpush1.xpose.msra.mxu0 0.0
        %3084 = vmatprep.subr.mxu0 0.0
        %3085 = vmatpush1.xpose.msra.mxu0 0.0
        %3086 = vmatprep.subr.mxu0 0.0
        %3087 = vmatpush1.xpose.msra.mxu0 0.0
        %3088 = vmatprep.subr.mxu0 0.0
        %3089 = vmatpush1.xpose.msra.mxu0 0.0
        %3090 = vmatprep.subr.mxu0 0.0
        %3091 = vmatpush1.xpose.msra.mxu0 0.0
        %3092 = vmatprep.subr.mxu0 0.0
        %3093 = vmatpush1.xpose.msra.mxu0 0.0
        %3094 = vmatprep.subr.mxu0 0.0
        %3095 = vmatpush1.xpose.msra.mxu0 %v3062
        %3096 = vmatprep.subr.mxu0 0.0
        %3097 = vmatpush2.xpose.msra.mxu0 0.0
        %3098 = vmatprep.subr.mxu0 0.0
        %3099 = vmatpush2.xpose.msra.mxu0 0.0
        %3100 = vmatprep.subr.mxu0 0.0
        %3101 = vmatpush2.xpose.msra.mxu0 0.0
        %3102 = vmatprep.subr.mxu0 0.0
        %3103 = vmatpush2.xpose.msra.mxu0 0.0
        %3104 = vmatprep.subr.mxu0 0.0
        %3105 = vmatpush2.xpose.msra.mxu0 0.0
        %3106 = vmatprep.subr.mxu0 0.0
        %3107 = vmatpush2.xpose.msra.mxu0 0.0
        %3108 = vmatprep.subr.mxu0 0.0
        %3109 = vmatpush2.xpose.msra.mxu0 0.0
        %3110 = vmatprep.subr.mxu0 0.0
        %3111 = vmatpush2.xpose.msra.mxu0 0.0
        %3112 = vmatprep.subr.mxu0 0.0
        %3113 = vmatpush2.xpose.msra.mxu0 0.0
        %3114 = vmatprep.subr.mxu0 0.0
        %3115 = vmatpush2.xpose.msra.mxu0 0.0
        %3116 = vmatprep.subr.mxu0 0.0
        %3117 = vmatpush2.xpose.msra.mxu0 0.0
        %3118 = vmatprep.subr.mxu0 0.0
        %3119 = vmatpush2.xpose.msra.mxu0 0.0
        %3120 = vmatprep.subr.mxu0 0.0
        %3121 = vmatpush2.xpose.msra.mxu0 0.0
        %3122 = vmatprep.subr.mxu0 0.0
        %3123 = vmatpush2.xpose.msra.mxu0 0.0
        %3124 = vmatprep.subr.mxu0 0.0
        %3125 = vmatpush2.xpose.msra.mxu0 0.0
        %3126 = vmatprep.subr.mxu0 0.0
        %3127 = vmatpush2.xpose.msra.mxu0 0.0
        %3128 = vmatprep.mubr.f32.mxu0 0.0
        %3129 = vmatmul.mubr.f32.gmra.mxu0 %v3060
        %v3130 = vpop.f32.mrf.mxu0
        %v3131 = vadd.f32 0.0, %v3130
        %v3132 = vpop.f32.mrf.mxu0
        %3133 = vdwg.mxu0
        %v3134 = vmul.f32 %v3131, 0.35355338
        %v3135 = vsel %vm1037, -1e+09, %v3134
        %v3136 = vsel %vm961, %v3135, -inf
        %3137 = vmax.xlane.f32.xlu0 %v3136
        %v3138 = vpop.xlane.xlu0 %3137
        %v3139 = vsub.f32 %v3135, %v3138
        %v3140 = vmul.f32 %v3139, 1.442695
        %v3141 = vpow.pop %v3140
        %v3142 = vsel %vm961, %v3141, 0.0
        %3143 = vadd.xlane.f32.xlu0 %v3142
        %v3144 = vpop.xlane.xlu0 %3143
        %v3145 = vrcp.pop %v3144
        %v3146 = vmul.f32 %v3141, %v3145
        %3147 = vrot.lane.b32.xlu0 %v3054, 64
        %v3148 = vpop.permute.xlu0 %3147
        %v3151 = vsel %vm961, %v3146, 0
        %3153 = vmatprep.subr.mxu0 0.0
        %3154 = vmatpush1.msra.mxu0 0.0
        %3155 = vmatprep.subr.mxu0 0.0
        %3156 = vmatpush1.msra.mxu0 0.0
        %3157 = vmatprep.subr.mxu0 0.0
        %3158 = vmatpush1.msra.mxu0 0.0
        %3159 = vmatprep.subr.mxu0 0.0
        %3160 = vmatpush1.msra.mxu0 0.0
        %3161 = vmatprep.subr.mxu0 0.0
        %3162 = vmatpush1.msra.mxu0 0.0
        %3163 = vmatprep.subr.mxu0 0.0
        %3164 = vmatpush1.msra.mxu0 0.0
        %3165 = vmatprep.subr.mxu0 0.0
        %3166 = vmatpush1.msra.mxu0 0.0
        %3167 = vmatprep.subr.mxu0 0.0
        %3168 = vmatpush1.msra.mxu0 0.0
        %3169 = vmatprep.subr.mxu0 0.0
        %3170 = vmatpush1.msra.mxu0 0.0
        %3171 = vmatprep.subr.mxu0 0.0
        %3172 = vmatpush1.msra.mxu0 0.0
        %3173 = vmatprep.subr.mxu0 0.0
        %3174 = vmatpush1.msra.mxu0 0.0
        %3175 = vmatprep.subr.mxu0 0.0
        %3176 = vmatpush1.msra.mxu0 0.0
        %3177 = vmatprep.subr.mxu0 0.0
        %3178 = vmatpush1.msra.mxu0 0.0
        %3179 = vmatprep.subr.mxu0 0.0
        %3180 = vmatpush1.msra.mxu0 0.0
        %3181 = vmatprep.subr.mxu0 0.0
        %3182 = vmatpush1.msra.mxu0 0.0
        %3183 = vmatprep.subr.mxu0 0.0
        %3184 = vmatpush1.msra.mxu0 %v3148
        %3185 = vmatprep.subr.mxu0 0.0
        %3186 = vmatpush2.msra.mxu0 0.0
        %3187 = vmatprep.subr.mxu0 0.0
        %3188 = vmatpush2.msra.mxu0 0.0
        %3189 = vmatprep.subr.mxu0 0.0
        %3190 = vmatpush2.msra.mxu0 0.0
        %3191 = vmatprep.subr.mxu0 0.0
        %3192 = vmatpush2.msra.mxu0 0.0
        %3193 = vmatprep.subr.mxu0 0.0
        %3194 = vmatpush2.msra.mxu0 0.0
        %3195 = vmatprep.subr.mxu0 0.0
        %3196 = vmatpush2.msra.mxu0 0.0
        %3197 = vmatprep.subr.mxu0 0.0
        %3198 = vmatpush2.msra.mxu0 0.0
        %3199 = vmatprep.subr.mxu0 0.0
        %3200 = vmatpush2.msra.mxu0 0.0
        %3201 = vmatprep.subr.mxu0 0.0
        %3202 = vmatpush2.msra.mxu0 0.0
        %3203 = vmatprep.subr.mxu0 0.0
        %3204 = vmatpush2.msra.mxu0 0.0
        %3205 = vmatprep.subr.mxu0 0.0
        %3206 = vmatpush2.msra.mxu0 0.0
        %3207 = vmatprep.subr.mxu0 0.0
        %3208 = vmatpush2.msra.mxu0 0.0
        %3209 = vmatprep.subr.mxu0 0.0
        %3210 = vmatpush2.msra.mxu0 0.0
        %3211 = vmatprep.subr.mxu0 0.0
        %3212 = vmatpush2.msra.mxu0 0.0
        %3213 = vmatprep.subr.mxu0 0.0
        %3214 = vmatpush2.msra.mxu0 0.0
        %3215 = vmatprep.subr.mxu0 0.0
        %3216 = vmatpush2.msra.mxu0 0.0
        %3217 = vmatprep.mubr.f32.mxu0 0.0
        %3218 = vmatmul.mubr.f32.gmra.mxu0 %v3151
        %v3219 = vpop.f32.mrf.mxu0
        %v3220 = vadd.f32 0.0, %v3219
        %v3221 = vpop.f32.mrf.mxu0
        %3222 = vdwg.mxu0
        %3223 = vrot.lane.b32.xlu0 %v3054, 120
        %v3224 = vpop.permute.xlu0 %3223
        %3225 = vrot.lane.b32.xlu0 %v3054, 88
        %v3226 = vpop.permute.xlu0 %3225
        %v3227 = vsel %vm961, %v3224, 0
        %v3229 = vsel %vm961, %v3226, 0
        %3231 = vmatprep.subr.mxu0 0.0
        %3232 = vmatpush1.xpose.msra.mxu0 0.0
        %3233 = vmatprep.subr.mxu0 0.0
        %3234 = vmatpush1.xpose.msra.mxu0 0.0
        %3235 = vmatprep.subr.mxu0 0.0
        %3236 = vmatpush1.xpose.msra.mxu0 0.0
        %3237 = vmatprep.subr.mxu0 0.0
        %3238 = vmatpush1.xpose.msra.mxu0 0.0
        %3239 = vmatprep.subr.mxu0 0.0
        %3240 = vmatpush1.xpose.msra.mxu0 0.0
        %3241 = vmatprep.subr.mxu0 0.0
        %3242 = vmatpush1.xpose.msra.mxu0 0.0
        %3243 = vmatprep.subr.mxu0 0.0
        %3244 = vmatpush1.xpose.msra.mxu0 0.0
        %3245 = vmatprep.subr.mxu0 0.0
        %3246 = vmatpush1.xpose.msra.mxu0 0.0
        %3247 = vmatprep.subr.mxu0 0.0
        %3248 = vmatpush1.xpose.msra.mxu0 0.0
        %3249 = vmatprep.subr.mxu0 0.0
        %3250 = vmatpush1.xpose.msra.mxu0 0.0
        %3251 = vmatprep.subr.mxu0 0.0
        %3252 = vmatpush1.xpose.msra.mxu0 0.0
        %3253 = vmatprep.subr.mxu0 0.0
        %3254 = vmatpush1.xpose.msra.mxu0 0.0
        %3255 = vmatprep.subr.mxu0 0.0
        %3256 = vmatpush1.xpose.msra.mxu0 0.0
        %3257 = vmatprep.subr.mxu0 0.0
        %3258 = vmatpush1.xpose.msra.mxu0 0.0
        %3259 = vmatprep.subr.mxu0 0.0
        %3260 = vmatpush1.xpose.msra.mxu0 0.0
        %3261 = vmatprep.subr.mxu0 0.0
        %3262 = vmatpush1.xpose.msra.mxu0 %v3229
        %3263 = vmatprep.subr.mxu0 0.0
        %3264 = vmatpush2.xpose.msra.mxu0 0.0
        %3265 = vmatprep.subr.mxu0 0.0
        %3266 = vmatpush2.xpose.msra.mxu0 0.0
        %3267 = vmatprep.subr.mxu0 0.0
        %3268 = vmatpush2.xpose.msra.mxu0 0.0
        %3269 = vmatprep.subr.mxu0 0.0
        %3270 = vmatpush2.xpose.msra.mxu0 0.0
        %3271 = vmatprep.subr.mxu0 0.0
        %3272 = vmatpush2.xpose.msra.mxu0 0.0
        %3273 = vmatprep.subr.mxu0 0.0
        %3274 = vmatpush2.xpose.msra.mxu0 0.0
        %3275 = vmatprep.subr.mxu0 0.0
        %3276 = vmatpush2.xpose.msra.mxu0 0.0
        %3277 = vmatprep.subr.mxu0 0.0
        %3278 = vmatpush2.xpose.msra.mxu0 0.0
        %3279 = vmatprep.subr.mxu0 0.0
        %3280 = vmatpush2.xpose.msra.mxu0 0.0
        %3281 = vmatprep.subr.mxu0 0.0
        %3282 = vmatpush2.xpose.msra.mxu0 0.0
        %3283 = vmatprep.subr.mxu0 0.0
        %3284 = vmatpush2.xpose.msra.mxu0 0.0
        %3285 = vmatprep.subr.mxu0 0.0
        %3286 = vmatpush2.xpose.msra.mxu0 0.0
        %3287 = vmatprep.subr.mxu0 0.0
        %3288 = vmatpush2.xpose.msra.mxu0 0.0
        %3289 = vmatprep.subr.mxu0 0.0
        %3290 = vmatpush2.xpose.msra.mxu0 0.0
        %3291 = vmatprep.subr.mxu0 0.0
        %3292 = vmatpush2.xpose.msra.mxu0 0.0
        %3293 = vmatprep.subr.mxu0 0.0
        %3294 = vmatpush2.xpose.msra.mxu0 0.0
        %3295 = vmatprep.mubr.f32.mxu0 0.0
        %3296 = vmatmul.mubr.f32.gmra.mxu0 %v3227
        %v3297 = vpop.f32.mrf.mxu0
        %v3298 = vadd.f32 0.0, %v3297
        %v3299 = vpop.f32.mrf.mxu0
        %3300 = vdwg.mxu0
        %v3301 = vmul.f32 %v3298, 0.35355338
        %v3302 = vsel %vm1037, -1e+09, %v3301
        %v3303 = vsel %vm961, %v3302, -inf
        %3304 = vmax.xlane.f32.xlu0 %v3303
        %v3305 = vpop.xlane.xlu0 %3304
        %v3306 = vsub.f32 %v3302, %v3305
        %v3307 = vmul.f32 %v3306, 1.442695
        %v3308 = vpow.pop %v3307
        %v3309 = vsel %vm961, %v3308, 0.0
        %3310 = vadd.xlane.f32.xlu0 %v3309
        %v3311 = vpop.xlane.xlu0 %3310
        %v3312 = vrcp.pop %v3311
        %v3313 = vmul.f32 %v3308, %v3312
        %3314 = vrot.lane.b32.xlu0 %v3054, 56
        %v3315 = vpop.permute.xlu0 %3314
        %v3318 = vsel %vm961, %v3313, 0
        %3320 = vmatprep.subr.mxu0 0.0
        %3321 = vmatpush1.msra.mxu0 0.0
        %3322 = vmatprep.subr.mxu0 0.0
        %3323 = vmatpush1.msra.mxu0 0.0
        %3324 = vmatprep.subr.mxu0 0.0
        %3325 = vmatpush1.msra.mxu0 0.0
        %3326 = vmatprep.subr.mxu0 0.0
        %3327 = vmatpush1.msra.mxu0 0.0
        %3328 = vmatprep.subr.mxu0 0.0
        %3329 = vmatpush1.msra.mxu0 0.0
        %3330 = vmatprep.subr.mxu0 0.0
        %3331 = vmatpush1.msra.mxu0 0.0
        %3332 = vmatprep.subr.mxu0 0.0
        %3333 = vmatpush1.msra.mxu0 0.0
        %3334 = vmatprep.subr.mxu0 0.0
        %3335 = vmatpush1.msra.mxu0 0.0
        %3336 = vmatprep.subr.mxu0 0.0
        %3337 = vmatpush1.msra.mxu0 0.0
        %3338 = vmatprep.subr.mxu0 0.0
        %3339 = vmatpush1.msra.mxu0 0.0
        %3340 = vmatprep.subr.mxu0 0.0
        %3341 = vmatpush1.msra.mxu0 0.0
        %3342 = vmatprep.subr.mxu0 0.0
        %3343 = vmatpush1.msra.mxu0 0.0
        %3344 = vmatprep.subr.mxu0 0.0
        %3345 = vmatpush1.msra.mxu0 0.0
        %3346 = vmatprep.subr.mxu0 0.0
        %3347 = vmatpush1.msra.mxu0 0.0
        %3348 = vmatprep.subr.mxu0 0.0
        %3349 = vmatpush1.msra.mxu0 0.0
        %3350 = vmatprep.subr.mxu0 0.0
        %3351 = vmatpush1.msra.mxu0 %v3315
        %3352 = vmatprep.subr.mxu0 0.0
        %3353 = vmatpush2.msra.mxu0 0.0
        %3354 = vmatprep.subr.mxu0 0.0
        %3355 = vmatpush2.msra.mxu0 0.0
        %3356 = vmatprep.subr.mxu0 0.0
        %3357 = vmatpush2.msra.mxu0 0.0
        %3358 = vmatprep.subr.mxu0 0.0
        %3359 = vmatpush2.msra.mxu0 0.0
        %3360 = vmatprep.subr.mxu0 0.0
        %3361 = vmatpush2.msra.mxu0 0.0
        %3362 = vmatprep.subr.mxu0 0.0
        %3363 = vmatpush2.msra.mxu0 0.0
        %3364 = vmatprep.subr.mxu0 0.0
        %3365 = vmatpush2.msra.mxu0 0.0
        %3366 = vmatprep.subr.mxu0 0.0
        %3367 = vmatpush2.msra.mxu0 0.0
        %3368 = vmatprep.subr.mxu0 0.0
        %3369 = vmatpush2.msra.mxu0 0.0
        %3370 = vmatprep.subr.mxu0 0.0
        %3371 = vmatpush2.msra.mxu0 0.0
        %3372 = vmatprep.subr.mxu0 0.0
        %3373 = vmatpush2.msra.mxu0 0.0
        %3374 = vmatprep.subr.mxu0 0.0
        %3375 = vmatpush2.msra.mxu0 0.0
        %3376 = vmatprep.subr.mxu0 0.0
        %3377 = vmatpush2.msra.mxu0 0.0
        %3378 = vmatprep.subr.mxu0 0.0
        %3379 = vmatpush2.msra.mxu0 0.0
        %3380 = vmatprep.subr.mxu0 0.0
        %3381 = vmatpush2.msra.mxu0 0.0
        %3382 = vmatprep.subr.mxu0 0.0
        %3383 = vmatpush2.msra.mxu0 0.0
        %3384 = vmatprep.mubr.f32.mxu0 0.0
        %3385 = vmatmul.mubr.f32.gmra.mxu0 %v3318
        %v3386 = vpop.f32.mrf.mxu0
        %v3387 = vadd.f32 0.0, %v3386
        %v3388 = vpop.f32.mrf.mxu0
        %3389 = vdwg.mxu0
        %3390 = vrot.lane.b32.xlu0 %v3054, 112
        %v3391 = vpop.permute.xlu0 %3390
        %3392 = vrot.lane.b32.xlu0 %v3054, 80
        %v3393 = vpop.permute.xlu0 %3392
        %v3394 = vsel %vm961, %v3391, 0
        %v3396 = vsel %vm961, %v3393, 0
        %3398 = vmatprep.subr.mxu0 0.0
        %3399 = vmatpush1.xpose.msra.mxu0 0.0
        %3400 = vmatprep.subr.mxu0 0.0
        %3401 = vmatpush1.xpose.msra.mxu0 0.0
        %3402 = vmatprep.subr.mxu0 0.0
        %3403 = vmatpush1.xpose.msra.mxu0 0.0
        %3404 = vmatprep.subr.mxu0 0.0
        %3405 = vmatpush1.xpose.msra.mxu0 0.0
        %3406 = vmatprep.subr.mxu0 0.0
        %3407 = vmatpush1.xpose.msra.mxu0 0.0
        %3408 = vmatprep.subr.mxu0 0.0
        %3409 = vmatpush1.xpose.msra.mxu0 0.0
        %3410 = vmatprep.subr.mxu0 0.0
        %3411 = vmatpush1.xpose.msra.mxu0 0.0
        %3412 = vmatprep.subr.mxu0 0.0
        %3413 = vmatpush1.xpose.msra.mxu0 0.0
        %3414 = vmatprep.subr.mxu0 0.0
        %3415 = vmatpush1.xpose.msra.mxu0 0.0
        %3416 = vmatprep.subr.mxu0 0.0
        %3417 = vmatpush1.xpose.msra.mxu0 0.0
        %3418 = vmatprep.subr.mxu0 0.0
        %3419 = vmatpush1.xpose.msra.mxu0 0.0
        %3420 = vmatprep.subr.mxu0 0.0
        %3421 = vmatpush1.xpose.msra.mxu0 0.0
        %3422 = vmatprep.subr.mxu0 0.0
        %3423 = vmatpush1.xpose.msra.mxu0 0.0
        %3424 = vmatprep.subr.mxu0 0.0
        %3425 = vmatpush1.xpose.msra.mxu0 0.0
        %3426 = vmatprep.subr.mxu0 0.0
        %3427 = vmatpush1.xpose.msra.mxu0 0.0
        %3428 = vmatprep.subr.mxu0 0.0
        %3429 = vmatpush1.xpose.msra.mxu0 %v3396
        %3430 = vmatprep.subr.mxu0 0.0
        %3431 = vmatpush2.xpose.msra.mxu0 0.0
        %3432 = vmatprep.subr.mxu0 0.0
        %3433 = vmatpush2.xpose.msra.mxu0 0.0
        %3434 = vmatprep.subr.mxu0 0.0
        %3435 = vmatpush2.xpose.msra.mxu0 0.0
        %3436 = vmatprep.subr.mxu0 0.0
        %3437 = vmatpush2.xpose.msra.mxu0 0.0
        %3438 = vmatprep.subr.mxu0 0.0
        %3439 = vmatpush2.xpose.msra.mxu0 0.0
        %3440 = vmatprep.subr.mxu0 0.0
        %3441 = vmatpush2.xpose.msra.mxu0 0.0
        %3442 = vmatprep.subr.mxu0 0.0
        %3443 = vmatpush2.xpose.msra.mxu0 0.0
        %3444 = vmatprep.subr.mxu0 0.0
        %3445 = vmatpush2.xpose.msra.mxu0 0.0
        %3446 = vmatprep.subr.mxu0 0.0
        %3447 = vmatpush2.xpose.msra.mxu0 0.0
        %3448 = vmatprep.subr.mxu0 0.0
        %3449 = vmatpush2.xpose.msra.mxu0 0.0
        %3450 = vmatprep.subr.mxu0 0.0
        %3451 = vmatpush2.xpose.msra.mxu0 0.0
        %3452 = vmatprep.subr.mxu0 0.0
        %3453 = vmatpush2.xpose.msra.mxu0 0.0
        %3454 = vmatprep.subr.mxu0 0.0
        %3455 = vmatpush2.xpose.msra.mxu0 0.0
        %3456 = vmatprep.subr.mxu0 0.0
        %3457 = vmatpush2.xpose.msra.mxu0 0.0
        %3458 = vmatprep.subr.mxu0 0.0
        %3459 = vmatpush2.xpose.msra.mxu0 0.0
        %3460 = vmatprep.subr.mxu0 0.0
        %3461 = vmatpush2.xpose.msra.mxu0 0.0
        %3462 = vmatprep.mubr.f32.mxu0 0.0
        %3463 = vmatmul.mubr.f32.gmra.mxu0 %v3394
        %v3464 = vpop.f32.mrf.mxu0
        %v3465 = vadd.f32 0.0, %v3464
        %v3466 = vpop.f32.mrf.mxu0
        %3467 = vdwg.mxu0
        %v3468 = vmul.f32 %v3465, 0.35355338
        %v3469 = vsel %vm1037, -1e+09, %v3468
        %v3470 = vsel %vm961, %v3469, -inf
        %3471 = vmax.xlane.f32.xlu0 %v3470
        %v3472 = vpop.xlane.xlu0 %3471
        %v3473 = vsub.f32 %v3469, %v3472
        %v3474 = vmul.f32 %v3473, 1.442695
        %v3475 = vpow.pop %v3474
        %v3476 = vsel %vm961, %v3475, 0.0
        %3477 = vadd.xlane.f32.xlu0 %v3476
        %v3478 = vpop.xlane.xlu0 %3477
        %v3479 = vrcp.pop %v3478
        %v3480 = vmul.f32 %v3475, %v3479
        %3481 = vrot.lane.b32.xlu0 %v3054, 48
        %v3482 = vpop.permute.xlu0 %3481
        %v3485 = vsel %vm961, %v3480, 0
        %3487 = vmatprep.subr.mxu0 0.0
        %3488 = vmatpush1.msra.mxu0 0.0
        %3489 = vmatprep.subr.mxu0 0.0
        %3490 = vmatpush1.msra.mxu0 0.0
        %3491 = vmatprep.subr.mxu0 0.0
        %3492 = vmatpush1.msra.mxu0 0.0
        %3493 = vmatprep.subr.mxu0 0.0
        %3494 = vmatpush1.msra.mxu0 0.0
        %3495 = vmatprep.subr.mxu0 0.0
        %3496 = vmatpush1.msra.mxu0 0.0
        %3497 = vmatprep.subr.mxu0 0.0
        %3498 = vmatpush1.msra.mxu0 0.0
        %3499 = vmatprep.subr.mxu0 0.0
        %3500 = vmatpush1.msra.mxu0 0.0
        %3501 = vmatprep.subr.mxu0 0.0
        %3502 = vmatpush1.msra.mxu0 0.0
        %3503 = vmatprep.subr.mxu0 0.0
        %3504 = vmatpush1.msra.mxu0 0.0
        %3505 = vmatprep.subr.mxu0 0.0
        %3506 = vmatpush1.msra.mxu0 0.0
        %3507 = vmatprep.subr.mxu0 0.0
        %3508 = vmatpush1.msra.mxu0 0.0
        %3509 = vmatprep.subr.mxu0 0.0
        %3510 = vmatpush1.msra.mxu0 0.0
        %3511 = vmatprep.subr.mxu0 0.0
        %3512 = vmatpush1.msra.mxu0 0.0
        %3513 = vmatprep.subr.mxu0 0.0
        %3514 = vmatpush1.msra.mxu0 0.0
        %3515 = vmatprep.subr.mxu0 0.0
        %3516 = vmatpush1.msra.mxu0 0.0
        %3517 = vmatprep.subr.mxu0 0.0
        %3518 = vmatpush1.msra.mxu0 %v3482
        %3519 = vmatprep.subr.mxu0 0.0
        %3520 = vmatpush2.msra.mxu0 0.0
        %3521 = vmatprep.subr.mxu0 0.0
        %3522 = vmatpush2.msra.mxu0 0.0
        %3523 = vmatprep.subr.mxu0 0.0
        %3524 = vmatpush2.msra.mxu0 0.0
        %3525 = vmatprep.subr.mxu0 0.0
        %3526 = vmatpush2.msra.mxu0 0.0
        %3527 = vmatprep.subr.mxu0 0.0
        %3528 = vmatpush2.msra.mxu0 0.0
        %3529 = vmatprep.subr.mxu0 0.0
        %3530 = vmatpush2.msra.mxu0 0.0
        %3531 = vmatprep.subr.mxu0 0.0
        %3532 = vmatpush2.msra.mxu0 0.0
        %3533 = vmatprep.subr.mxu0 0.0
        %3534 = vmatpush2.msra.mxu0 0.0
        %3535 = vmatprep.subr.mxu0 0.0
        %3536 = vmatpush2.msra.mxu0 0.0
        %3537 = vmatprep.subr.mxu0 0.0
        %3538 = vmatpush2.msra.mxu0 0.0
        %3539 = vmatprep.subr.mxu0 0.0
        %3540 = vmatpush2.msra.mxu0 0.0
        %3541 = vmatprep.subr.mxu0 0.0
        %3542 = vmatpush2.msra.mxu0 0.0
        %3543 = vmatprep.subr.mxu0 0.0
        %3544 = vmatpush2.msra.mxu0 0.0
        %3545 = vmatprep.subr.mxu0 0.0
        %3546 = vmatpush2.msra.mxu0 0.0
        %3547 = vmatprep.subr.mxu0 0.0
        %3548 = vmatpush2.msra.mxu0 0.0
        %3549 = vmatprep.subr.mxu0 0.0
        %3550 = vmatpush2.msra.mxu0 0.0
        %3551 = vmatprep.mubr.f32.mxu0 0.0
        %3552 = vmatmul.mubr.f32.gmra.mxu0 %v3485
        %v3553 = vpop.f32.mrf.mxu0
        %v3554 = vadd.f32 0.0, %v3553
        %v3555 = vpop.f32.mrf.mxu0
        %3556 = vdwg.mxu0
        %3557 = vrot.lane.b32.xlu0 %v3054, 104
        %v3558 = vpop.permute.xlu0 %3557
        %3559 = vrot.lane.b32.xlu0 %v3054, 72
        %v3560 = vpop.permute.xlu0 %3559
        %v3561 = vsel %vm961, %v3558, 0
        %v3563 = vsel %vm961, %v3560, 0
        %3565 = vmatprep.subr.mxu0 0.0
        %3566 = vmatpush1.xpose.msra.mxu0 0.0
        %3567 = vmatprep.subr.mxu0 0.0
        %3568 = vmatpush1.xpose.msra.mxu0 0.0
        %3569 = vmatprep.subr.mxu0 0.0
        %3570 = vmatpush1.xpose.msra.mxu0 0.0
        %3571 = vmatprep.subr.mxu0 0.0
        %3572 = vmatpush1.xpose.msra.mxu0 0.0
        %3573 = vmatprep.subr.mxu0 0.0
        %3574 = vmatpush1.xpose.msra.mxu0 0.0
        %3575 = vmatprep.subr.mxu0 0.0
        %3576 = vmatpush1.xpose.msra.mxu0 0.0
        %3577 = vmatprep.subr.mxu0 0.0
        %3578 = vmatpush1.xpose.msra.mxu0 0.0
        %3579 = vmatprep.subr.mxu0 0.0
        %3580 = vmatpush1.xpose.msra.mxu0 0.0
        %3581 = vmatprep.subr.mxu0 0.0
        %3582 = vmatpush1.xpose.msra.mxu0 0.0
        %3583 = vmatprep.subr.mxu0 0.0
        %3584 = vmatpush1.xpose.msra.mxu0 0.0
        %3585 = vmatprep.subr.mxu0 0.0
        %3586 = vmatpush1.xpose.msra.mxu0 0.0
        %3587 = vmatprep.subr.mxu0 0.0
        %3588 = vmatpush1.xpose.msra.mxu0 0.0
        %3589 = vmatprep.subr.mxu0 0.0
        %3590 = vmatpush1.xpose.msra.mxu0 0.0
        %3591 = vmatprep.subr.mxu0 0.0
        %3592 = vmatpush1.xpose.msra.mxu0 0.0
        %3593 = vmatprep.subr.mxu0 0.0
        %3594 = vmatpush1.xpose.msra.mxu0 0.0
        %3595 = vmatprep.subr.mxu0 0.0
        %3596 = vmatpush1.xpose.msra.mxu0 %v3563
        %3597 = vmatprep.subr.mxu0 0.0
        %3598 = vmatpush2.xpose.msra.mxu0 0.0
        %3599 = vmatprep.subr.mxu0 0.0
        %3600 = vmatpush2.xpose.msra.mxu0 0.0
        %3601 = vmatprep.subr.mxu0 0.0
        %3602 = vmatpush2.xpose.msra.mxu0 0.0
        %3603 = vmatprep.subr.mxu0 0.0
        %3604 = vmatpush2.xpose.msra.mxu0 0.0
        %3605 = vmatprep.subr.mxu0 0.0
        %3606 = vmatpush2.xpose.msra.mxu0 0.0
        %3607 = vmatprep.subr.mxu0 0.0
        %3608 = vmatpush2.xpose.msra.mxu0 0.0
        %3609 = vmatprep.subr.mxu0 0.0
        %3610 = vmatpush2.xpose.msra.mxu0 0.0
        %3611 = vmatprep.subr.mxu0 0.0
        %3612 = vmatpush2.xpose.msra.mxu0 0.0
        %3613 = vmatprep.subr.mxu0 0.0
        %3614 = vmatpush2.xpose.msra.mxu0 0.0
        %3615 = vmatprep.subr.mxu0 0.0
        %3616 = vmatpush2.xpose.msra.mxu0 0.0
        %3617 = vmatprep.subr.mxu0 0.0
        %3618 = vmatpush2.xpose.msra.mxu0 0.0
        %3619 = vmatprep.subr.mxu0 0.0
        %3620 = vmatpush2.xpose.msra.mxu0 0.0
        %3621 = vmatprep.subr.mxu0 0.0
        %3622 = vmatpush2.xpose.msra.mxu0 0.0
        %3623 = vmatprep.subr.mxu0 0.0
        %3624 = vmatpush2.xpose.msra.mxu0 0.0
        %3625 = vmatprep.subr.mxu0 0.0
        %3626 = vmatpush2.xpose.msra.mxu0 0.0
        %3627 = vmatprep.subr.mxu0 0.0
        %3628 = vmatpush2.xpose.msra.mxu0 0.0
        %3629 = vmatprep.mubr.f32.mxu0 0.0
        %3630 = vmatmul.mubr.f32.gmra.mxu0 %v3561
        %v3631 = vpop.f32.mrf.mxu0
        %v3632 = vadd.f32 0.0, %v3631
        %v3633 = vpop.f32.mrf.mxu0
        %3634 = vdwg.mxu0
        %v3635 = vmul.f32 %v3632, 0.35355338
        %v3636 = vsel %vm1037, -1e+09, %v3635
        %v3637 = vsel %vm961, %v3636, -inf
        %3638 = vmax.xlane.f32.xlu0 %v3637
        %v3639 = vpop.xlane.xlu0 %3638
        %v3640 = vsub.f32 %v3636, %v3639
        %v3641 = vmul.f32 %v3640, 1.442695
        %v3642 = vpow.pop %v3641
        %v3643 = vsel %vm961, %v3642, 0.0
        %3644 = vadd.xlane.f32.xlu0 %v3643
        %v3645 = vpop.xlane.xlu0 %3644
        %v3646 = vrcp.pop %v3645
        %v3647 = vmul.f32 %v3642, %v3646
        %3648 = vrot.lane.b32.xlu0 %v3054, 40
        %v3649 = vpop.permute.xlu0 %3648
        %v3652 = vsel %vm961, %v3647, 0
        %3654 = vmatprep.subr.mxu0 0.0
        %3655 = vmatpush1.msra.mxu0 0.0
        %3656 = vmatprep.subr.mxu0 0.0
        %3657 = vmatpush1.msra.mxu0 0.0
        %3658 = vmatprep.subr.mxu0 0.0
        %3659 = vmatpush1.msra.mxu0 0.0
        %3660 = vmatprep.subr.mxu0 0.0
        %3661 = vmatpush1.msra.mxu0 0.0
        %3662 = vmatprep.subr.mxu0 0.0
        %3663 = vmatpush1.msra.mxu0 0.0
        %3664 = vmatprep.subr.mxu0 0.0
        %3665 = vmatpush1.msra.mxu0 0.0
        %3666 = vmatprep.subr.mxu0 0.0
        %3667 = vmatpush1.msra.mxu0 0.0
        %3668 = vmatprep.subr.mxu0 0.0
        %3669 = vmatpush1.msra.mxu0 0.0
        %3670 = vmatprep.subr.mxu0 0.0
        %3671 = vmatpush1.msra.mxu0 0.0
        %3672 = vmatprep.subr.mxu0 0.0
        %3673 = vmatpush1.msra.mxu0 0.0
        %3674 = vmatprep.subr.mxu0 0.0
        %3675 = vmatpush1.msra.mxu0 0.0
        %3676 = vmatprep.subr.mxu0 0.0
        %3677 = vmatpush1.msra.mxu0 0.0
        %3678 = vmatprep.subr.mxu0 0.0
        %3679 = vmatpush1.msra.mxu0 0.0
        %3680 = vmatprep.subr.mxu0 0.0
        %3681 = vmatpush1.msra.mxu0 0.0
        %3682 = vmatprep.subr.mxu0 0.0
        %3683 = vmatpush1.msra.mxu0 0.0
        %3684 = vmatprep.subr.mxu0 0.0
        %3685 = vmatpush1.msra.mxu0 %v3649
        %3686 = vmatprep.subr.mxu0 0.0
        %3687 = vmatpush2.msra.mxu0 0.0
        %3688 = vmatprep.subr.mxu0 0.0
        %3689 = vmatpush2.msra.mxu0 0.0
        %3690 = vmatprep.subr.mxu0 0.0
        %3691 = vmatpush2.msra.mxu0 0.0
        %3692 = vmatprep.subr.mxu0 0.0
        %3693 = vmatpush2.msra.mxu0 0.0
        %3694 = vmatprep.subr.mxu0 0.0
        %3695 = vmatpush2.msra.mxu0 0.0
        %3696 = vmatprep.subr.mxu0 0.0
        %3697 = vmatpush2.msra.mxu0 0.0
        %3698 = vmatprep.subr.mxu0 0.0
        %3699 = vmatpush2.msra.mxu0 0.0
        %3700 = vmatprep.subr.mxu0 0.0
        %3701 = vmatpush2.msra.mxu0 0.0
        %3702 = vmatprep.subr.mxu0 0.0
        %3703 = vmatpush2.msra.mxu0 0.0
        %3704 = vmatprep.subr.mxu0 0.0
        %3705 = vmatpush2.msra.mxu0 0.0
        %3706 = vmatprep.subr.mxu0 0.0
        %3707 = vmatpush2.msra.mxu0 0.0
        %3708 = vmatprep.subr.mxu0 0.0
        %3709 = vmatpush2.msra.mxu0 0.0
        %3710 = vmatprep.subr.mxu0 0.0
        %3711 = vmatpush2.msra.mxu0 0.0
        %3712 = vmatprep.subr.mxu0 0.0
        %3713 = vmatpush2.msra.mxu0 0.0
        %3714 = vmatprep.subr.mxu0 0.0
        %3715 = vmatpush2.msra.mxu0 0.0
        %3716 = vmatprep.subr.mxu0 0.0
        %3717 = vmatpush2.msra.mxu0 0.0
        %3718 = vmatprep.mubr.f32.mxu0 0.0
        %3719 = vmatmul.mubr.f32.gmra.mxu0 %v3652
        %v3720 = vpop.f32.mrf.mxu0
        %v3721 = vadd.f32 0.0, %v3720
        %v3722 = vpop.f32.mrf.mxu0
        %3723 = vdwg.mxu0
        %3725 = vrot.lane.b32.xlu0 %v3387, 8
        %v3726 = vpop.permute.xlu0 %3725
        %3729 = vrot.lane.b32.xlu0 %v3554, 16
        %v3730 = vpop.permute.xlu0 %3729
        %3733 = vrot.lane.b32.xlu0 %v3721, 24
        %v3734 = vpop.permute.xlu0 %3733
        %v3736 = vsel %vm961, %v3220, %v3726
        %v3737 = vsel %vm1640, %v3736, %v3730
        %v3738 = vsel %vm1642, %v3737, %v3734
        %s3739 = scalar_lea.vmem %s6, 32
        %v3740 = vld [vmem:[%s3739] sm:$0xff]
        %v3741 = vld [vmem:[%s3739 + $0x8] sm:$0xff]
        %v3742 = vld [vmem:[%s3739 + $0x10] sm:$0xff]
        %v3743 = vld [vmem:[%s3739 + $0x18] sm:$0xff]
        %v3745 = vsel %vm841, %v3738, 0
        %3747 = vmatprep.subr.mxu0 0.0
        %3748 = vmatpush1.msra.mxu0 0.0
        %3749 = vmatprep.subr.mxu0 0.0
        %3750 = vmatpush1.msra.mxu0 0.0
        %3751 = vmatprep.subr.mxu0 0.0
        %3752 = vmatpush1.msra.mxu0 0.0
        %3753 = vmatprep.subr.mxu0 0.0
        %3754 = vmatpush1.msra.mxu0 0.0
        %3755 = vmatprep.subr.mxu0 0.0
        %3756 = vmatpush1.msra.mxu0 0.0
        %3757 = vmatprep.subr.mxu0 0.0
        %3758 = vmatpush1.msra.mxu0 0.0
        %3759 = vmatprep.subr.mxu0 0.0
        %3760 = vmatpush1.msra.mxu0 0.0
        %3761 = vmatprep.subr.mxu0 0.0
        %3762 = vmatpush1.msra.mxu0 0.0
        %3763 = vmatprep.subr.mxu0 0.0
        %3764 = vmatpush1.msra.mxu0 0.0
        %3765 = vmatprep.subr.mxu0 0.0
        %3766 = vmatpush1.msra.mxu0 0.0
        %3767 = vmatprep.subr.mxu0 0.0
        %3768 = vmatpush1.msra.mxu0 0.0
        %3769 = vmatprep.subr.mxu0 0.0
        %3770 = vmatpush1.msra.mxu0 0.0
        %3771 = vmatprep.subr.mxu0 0.0
        %3772 = vmatpush1.msra.mxu0 %v3743
        %3773 = vmatprep.subr.mxu0 0.0
        %3774 = vmatpush1.msra.mxu0 %v3742
        %3775 = vmatprep.subr.mxu0 0.0
        %3776 = vmatpush1.msra.mxu0 %v3741
        %3777 = vmatprep.subr.mxu0 0.0
        %3778 = vmatpush1.msra.mxu0 %v3740
        %3779 = vmatprep.subr.mxu0 0.0
        %3780 = vmatpush2.msra.mxu0 0.0
        %3781 = vmatprep.subr.mxu0 0.0
        %3782 = vmatpush2.msra.mxu0 0.0
        %3783 = vmatprep.subr.mxu0 0.0
        %3784 = vmatpush2.msra.mxu0 0.0
        %3785 = vmatprep.subr.mxu0 0.0
        %3786 = vmatpush2.msra.mxu0 0.0
        %3787 = vmatprep.subr.mxu0 0.0
        %3788 = vmatpush2.msra.mxu0 0.0
        %3789 = vmatprep.subr.mxu0 0.0
        %3790 = vmatpush2.msra.mxu0 0.0
        %3791 = vmatprep.subr.mxu0 0.0
        %3792 = vmatpush2.msra.mxu0 0.0
        %3793 = vmatprep.subr.mxu0 0.0
        %3794 = vmatpush2.msra.mxu0 0.0
        %3795 = vmatprep.subr.mxu0 0.0
        %3796 = vmatpush2.msra.mxu0 0.0
        %3797 = vmatprep.subr.mxu0 0.0
        %3798 = vmatpush2.msra.mxu0 0.0
        %3799 = vmatprep.subr.mxu0 0.0
        %3800 = vmatpush2.msra.mxu0 0.0
        %3801 = vmatprep.subr.mxu0 0.0
        %3802 = vmatpush2.msra.mxu0 0.0
        %3803 = vmatprep.subr.mxu0 0.0
        %3804 = vmatpush2.msra.mxu0 0.0
        %3805 = vmatprep.subr.mxu0 0.0
        %3806 = vmatpush2.msra.mxu0 0.0
        %3807 = vmatprep.subr.mxu0 0.0
        %3808 = vmatpush2.msra.mxu0 0.0
        %3809 = vmatprep.subr.mxu0 0.0
        %3810 = vmatpush2.msra.mxu0 0.0
        %3811 = vmatprep.mubr.f32.mxu0 0.0
        %3812 = vmatmul.mubr.f32.gmra.mxu0 %v3745
        %v3813 = vpop.f32.mrf.mxu0
        %v3814 = vadd.f32 0.0, %v3813
        %v3815 = vpop.f32.mrf.mxu0
        %3816 = vdwg.mxu0
        %v3817 = vadd.f32 %v2936, %v3814
        %s3818 = scalar_lea.vmem %s7, 1
        %v3819 = vld [vmem:[%s3818] sm:$0x1]
        %v3821 = vlaneseq
        %v3822 = vshrl.u32 %v3821, 7
        %v3823 = vsub.s32 0, %v3822
        %v3824 = vrot.slane %v3819, %v3823
        %v3826 = vadd.f32 %v3817, %v3824
        %v3827 = vsel %vm841, %v3826, 0.0
        %3828 = vadd.xlane.f32.xlu0 %v3827
        %v3829 = vpop.xlane.xlu0 %3828
        %v3830 = vmul.f32 %v3829, %v845
        %v3831 = vsub.f32 %v3826, %v3830
        %v3832 = vmul.f32 %v3831, %v3831
        %v3833 = vsel %vm841, %v3832, 0.0
        %3834 = vadd.xlane.f32.xlu0 %v3833
        %v3835 = vpop.xlane.xlu0 %3834
        %v3836 = vmul.f32 %v3835, %v852
        %v3837 = vrsqrt.pop %v3836
        %v3838 = vmul.f32 %v3836, %v3837
        %vm3839 = vcmp.eq.f32.partialorder %v3836, inf
        %v3840 = vsel %vm3839, %v3836, %v3838
        %vm3841 = vcmp.eq.f32.partialorder %v3836, 0.0
        %v3842 = vand.u32 %v3836, 2147483648
        %v3843 = vsel %vm3841, %v3842, %v3840
        %v3844 = vlaneseq
        %v3845 = vshrl.u32 %v3844, 7
        %v3846 = vsub.s32 1, %v3845
        %v3847 = vrot.slane %v2938, %v3846
        %v3848 = vmul.f32 %v3847, %v3831
        %v3849 = vadd.f32 %v3843, 1e-06
        %v3850 = vrcp.pop %v3849
        %v3851 = vmul.f32 %v3848, %v3850
        %v3852 = vlaneseq
        %v3853 = vshrl.u32 %v3852, 7
        %v3854 = vsub.s32 1, %v3853
        %v3855 = vrot.slane %v2940, %v3854
        %v3856 = vadd.f32 %v3851, %v3855
        %s3857 = scalar_lea.vmem %s8, 32
        %v3858 = vld [vmem:[%s3857] sm:$0xff]
        %v3859 = vld [vmem:[%s3857 + $0x8] sm:$0xff]
        %v3860 = vld [vmem:[%s3857 + $0x10] sm:$0xff]
        %v3861 = vld [vmem:[%s3857 + $0x18] sm:$0xff]
        %s3862 = scalar_lea.vmem %s9, 1
        %v3863 = vld [vmem:[%s3862] sm:$0x1]
        %v3865 = vlaneseq
        %v3866 = vshrl.u32 %v3865, 7
        %v3867 = vsub.s32 0, %v3866
        %v3868 = vrot.slane %v3863, %v3867
        %v3871 = vsel %vm841, %v3856, 0
        %3873 = vmatprep.subr.mxu0 0.0
        %3874 = vmatpush1.msra.mxu0 0.0
        %3875 = vmatprep.subr.mxu0 0.0
        %3876 = vmatpush1.msra.mxu0 0.0
        %3877 = vmatprep.subr.mxu0 0.0
        %3878 = vmatpush1.msra.mxu0 0.0
        %3879 = vmatprep.subr.mxu0 0.0
        %3880 = vmatpush1.msra.mxu0 0.0
        %3881 = vmatprep.subr.mxu0 0.0
        %3882 = vmatpush1.msra.mxu0 0.0
        %3883 = vmatprep.subr.mxu0 0.0
        %3884 = vmatpush1.msra.mxu0 0.0
        %3885 = vmatprep.subr.mxu0 0.0
        %3886 = vmatpush1.msra.mxu0 0.0
        %3887 = vmatprep.subr.mxu0 0.0
        %3888 = vmatpush1.msra.mxu0 0.0
        %3889 = vmatprep.subr.mxu0 0.0
        %3890 = vmatpush1.msra.mxu0 0.0
        %3891 = vmatprep.subr.mxu0 0.0
        %3892 = vmatpush1.msra.mxu0 0.0
        %3893 = vmatprep.subr.mxu0 0.0
        %3894 = vmatpush1.msra.mxu0 0.0
        %3895 = vmatprep.subr.mxu0 0.0
        %3896 = vmatpush1.msra.mxu0 0.0
        %3897 = vmatprep.subr.mxu0 0.0
        %3898 = vmatpush1.msra.mxu0 %v3861
        %3899 = vmatprep.subr.mxu0 0.0
        %3900 = vmatpush1.msra.mxu0 %v3860
        %3901 = vmatprep.subr.mxu0 0.0
        %3902 = vmatpush1.msra.mxu0 %v3859
        %3903 = vmatprep.subr.mxu0 0.0
        %3904 = vmatpush1.msra.mxu0 %v3858
        %3905 = vmatprep.subr.mxu0 0.0
        %3906 = vmatpush2.msra.mxu0 0.0
        %3907 = vmatprep.subr.mxu0 0.0
        %3908 = vmatpush2.msra.mxu0 0.0
        %3909 = vmatprep.subr.mxu0 0.0
        %3910 = vmatpush2.msra.mxu0 0.0
        %3911 = vmatprep.subr.mxu0 0.0
        %3912 = vmatpush2.msra.mxu0 0.0
        %3913 = vmatprep.subr.mxu0 0.0
        %3914 = vmatpush2.msra.mxu0 0.0
        %3915 = vmatprep.subr.mxu0 0.0
        %3916 = vmatpush2.msra.mxu0 0.0
        %3917 = vmatprep.subr.mxu0 0.0
        %3918 = vmatpush2.msra.mxu0 0.0
        %3919 = vmatprep.subr.mxu0 0.0
        %3920 = vmatpush2.msra.mxu0 0.0
        %3921 = vmatprep.subr.mxu0 0.0
        %3922 = vmatpush2.msra.mxu0 0.0
        %3923 = vmatprep.subr.mxu0 0.0
        %3924 = vmatpush2.msra.mxu0 0.0
        %3925 = vmatprep.subr.mxu0 0.0
        %3926 = vmatpush2.msra.mxu0 0.0
        %3927 = vmatprep.subr.mxu0 0.0
        %3928 = vmatpush2.msra.mxu0 0.0
        %3929 = vmatprep.subr.mxu0 0.0
        %3930 = vmatpush2.msra.mxu0 0.0
        %3931 = vmatprep.subr.mxu0 0.0
        %3932 = vmatpush2.msra.mxu0 0.0
        %3933 = vmatprep.subr.mxu0 0.0
        %3934 = vmatpush2.msra.mxu0 0.0
        %3935 = vmatprep.subr.mxu0 0.0
        %3936 = vmatpush2.msra.mxu0 0.0
        %3937 = vmatprep.mubr.f32.mxu0 0.0
        %3938 = vmatmul.mubr.f32.gmra.mxu0 %v3871
        %v3939 = vpop.f32.mrf.mxu0
        %v3940 = vadd.f32 %v3868, %v3939
        %v3941 = vpop.f32.mrf.mxu0
        %3942 = vdwg.mxu0
        %s3943 = scalar_lea.vmem [#allocation8], 32
        %v3944 = vld [vmem:[%s3943] sm:$0xff]
        %v3945 = vld [vmem:[%s3943 + $0x8] sm:$0xff]
        %v3946 = vld [vmem:[%s3943 + $0x10] sm:$0xff]
        %v3947 = vld [vmem:[%s3943 + $0x18] sm:$0xff]
        %s3948 = scalar_lea.vmem %s11, 1
        %v3949 = vld [vmem:[%s3948] sm:$0x1]
        %v3951 = vlaneseq
        %v3952 = vshrl.u32 %v3951, 7
        %v3953 = vsub.s32 0, %v3952
        %v3954 = vrot.slane %v3949, %v3953
        %3956 = vmatprep.subr.mxu0 0.0
        %3957 = vmatpush1.msra.mxu0 0.0
        %3958 = vmatprep.subr.mxu0 0.0
        %3959 = vmatpush1.msra.mxu0 0.0
        %3960 = vmatprep.subr.mxu0 0.0
        %3961 = vmatpush1.msra.mxu0 0.0
        %3962 = vmatprep.subr.mxu0 0.0
        %3963 = vmatpush1.msra.mxu0 0.0
        %3964 = vmatprep.subr.mxu0 0.0
        %3965 = vmatpush1.msra.mxu0 0.0
        %3966 = vmatprep.subr.mxu0 0.0
        %3967 = vmatpush1.msra.mxu0 0.0
        %3968 = vmatprep.subr.mxu0 0.0
        %3969 = vmatpush1.msra.mxu0 0.0
        %3970 = vmatprep.subr.mxu0 0.0
        %3971 = vmatpush1.msra.mxu0 0.0
        %3972 = vmatprep.subr.mxu0 0.0
        %3973 = vmatpush1.msra.mxu0 0.0
        %3974 = vmatprep.subr.mxu0 0.0
        %3975 = vmatpush1.msra.mxu0 0.0
        %3976 = vmatprep.subr.mxu0 0.0
        %3977 = vmatpush1.msra.mxu0 0.0
        %3978 = vmatprep.subr.mxu0 0.0
        %3979 = vmatpush1.msra.mxu0 0.0
        %3980 = vmatprep.subr.mxu0 0.0
        %3981 = vmatpush1.msra.mxu0 %v3947
        %3982 = vmatprep.subr.mxu0 0.0
        %3983 = vmatpush1.msra.mxu0 %v3946
        %3984 = vmatprep.subr.mxu0 0.0
        %3985 = vmatpush1.msra.mxu0 %v3945
        %3986 = vmatprep.subr.mxu0 0.0
        %3987 = vmatpush1.msra.mxu0 %v3944
        %3988 = vmatprep.subr.mxu0 0.0
        %3989 = vmatpush2.msra.mxu0 0.0
        %3990 = vmatprep.subr.mxu0 0.0
        %3991 = vmatpush2.msra.mxu0 0.0
        %3992 = vmatprep.subr.mxu0 0.0
        %3993 = vmatpush2.msra.mxu0 0.0
        %3994 = vmatprep.subr.mxu0 0.0
        %3995 = vmatpush2.msra.mxu0 0.0
        %3996 = vmatprep.subr.mxu0 0.0
        %3997 = vmatpush2.msra.mxu0 0.0
        %3998 = vmatprep.subr.mxu0 0.0
        %3999 = vmatpush2.msra.mxu0 0.0
        %4000 = vmatprep.subr.mxu0 0.0
        %4001 = vmatpush2.msra.mxu0 0.0
        %4002 = vmatprep.subr.mxu0 0.0
        %4003 = vmatpush2.msra.mxu0 0.0
        %4004 = vmatprep.subr.mxu0 0.0
        %4005 = vmatpush2.msra.mxu0 0.0
        %4006 = vmatprep.subr.mxu0 0.0
        %4007 = vmatpush2.msra.mxu0 0.0
        %4008 = vmatprep.subr.mxu0 0.0
        %4009 = vmatpush2.msra.mxu0 0.0
        %4010 = vmatprep.subr.mxu0 0.0
        %4011 = vmatpush2.msra.mxu0 0.0
        %4012 = vmatprep.subr.mxu0 0.0
        %4013 = vmatpush2.msra.mxu0 0.0
        %4014 = vmatprep.subr.mxu0 0.0
        %4015 = vmatpush2.msra.mxu0 0.0
        %4016 = vmatprep.subr.mxu0 0.0
        %4017 = vmatpush2.msra.mxu0 0.0
        %4018 = vmatprep.subr.mxu0 0.0
        %4019 = vmatpush2.msra.mxu0 0.0
        %4020 = vmatprep.mubr.f32.mxu0 0.0
        %4021 = vmatmul.mubr.f32.gmra.mxu0 %v1856
        %v4022 = vpop.f32.mrf.mxu0
        %v4023 = vadd.f32 %v3954, %v4022
        %v4024 = vpop.f32.mrf.mxu0
        %4025 = vmatprep.mubr.f32.mxu0 0.0
        %4026 = vmatmul.mubr.f32.gmra.mxu0 %v1859
        %v4027 = vpop.f32.mrf.mxu0
        %v4028 = vadd.f32 %v3954, %v4027
        %v4029 = vpop.f32.mrf.mxu0
        %4030 = vdwg.mxu0
        %v4032 = vsel %vm961, %v3940, 0
        %v4035 = vsel %vm961, %v4023, 0
        %v4038 = vsel %vm961, %v4028, 0
        %4040 = vmatprep.subr.mxu0 0.0
        %4041 = vmatpush1.xpose.msra.mxu0 0.0
        %4042 = vmatprep.subr.mxu0 0.0
        %4043 = vmatpush1.xpose.msra.mxu0 0.0
        %4044 = vmatprep.subr.mxu0 0.0
        %4045 = vmatpush1.xpose.msra.mxu0 0.0
        %4046 = vmatprep.subr.mxu0 0.0
        %4047 = vmatpush1.xpose.msra.mxu0 0.0
        %4048 = vmatprep.subr.mxu0 0.0
        %4049 = vmatpush1.xpose.msra.mxu0 0.0
        %4050 = vmatprep.subr.mxu0 0.0
        %4051 = vmatpush1.xpose.msra.mxu0 0.0
        %4052 = vmatprep.subr.mxu0 0.0
        %4053 = vmatpush1.xpose.msra.mxu0 0.0
        %4054 = vmatprep.subr.mxu0 0.0
        %4055 = vmatpush1.xpose.msra.mxu0 0.0
        %4056 = vmatprep.subr.mxu0 0.0
        %4057 = vmatpush1.xpose.msra.mxu0 0.0
        %4058 = vmatprep.subr.mxu0 0.0
        %4059 = vmatpush1.xpose.msra.mxu0 0.0
        %4060 = vmatprep.subr.mxu0 0.0
        %4061 = vmatpush1.xpose.msra.mxu0 0.0
        %4062 = vmatprep.subr.mxu0 0.0
        %4063 = vmatpush1.xpose.msra.mxu0 0.0
        %4064 = vmatprep.subr.mxu0 0.0
        %4065 = vmatpush1.xpose.msra.mxu0 0.0
        %4066 = vmatprep.subr.mxu0 0.0
        %4067 = vmatpush1.xpose.msra.mxu0 0.0
        %4068 = vmatprep.subr.mxu0 0.0
        %4069 = vmatpush1.xpose.msra.mxu0 %v4038
        %4070 = vmatprep.subr.mxu0 0.0
        %4071 = vmatpush1.xpose.msra.mxu0 %v4035
        %4072 = vmatprep.subr.mxu0 0.0
        %4073 = vmatpush2.xpose.msra.mxu0 0.0
        %4074 = vmatprep.subr.mxu0 0.0
        %4075 = vmatpush2.xpose.msra.mxu0 0.0
        %4076 = vmatprep.subr.mxu0 0.0
        %4077 = vmatpush2.xpose.msra.mxu0 0.0
        %4078 = vmatprep.subr.mxu0 0.0
        %4079 = vmatpush2.xpose.msra.mxu0 0.0
        %4080 = vmatprep.subr.mxu0 0.0
        %4081 = vmatpush2.xpose.msra.mxu0 0.0
        %4082 = vmatprep.subr.mxu0 0.0
        %4083 = vmatpush2.xpose.msra.mxu0 0.0
        %4084 = vmatprep.subr.mxu0 0.0
        %4085 = vmatpush2.xpose.msra.mxu0 0.0
        %4086 = vmatprep.subr.mxu0 0.0
        %4087 = vmatpush2.xpose.msra.mxu0 0.0
        %4088 = vmatprep.subr.mxu0 0.0
        %4089 = vmatpush2.xpose.msra.mxu0 0.0
        %4090 = vmatprep.subr.mxu0 0.0
        %4091 = vmatpush2.xpose.msra.mxu0 0.0
        %4092 = vmatprep.subr.mxu0 0.0
        %4093 = vmatpush2.xpose.msra.mxu0 0.0
        %4094 = vmatprep.subr.mxu0 0.0
        %4095 = vmatpush2.xpose.msra.mxu0 0.0
        %4096 = vmatprep.subr.mxu0 0.0
        %4097 = vmatpush2.xpose.msra.mxu0 0.0
        %4098 = vmatprep.subr.mxu0 0.0
        %4099 = vmatpush2.xpose.msra.mxu0 0.0
        %4100 = vmatprep.subr.mxu0 0.0
        %4101 = vmatpush2.xpose.msra.mxu0 0.0
        %4102 = vmatprep.subr.mxu0 0.0
        %4103 = vmatpush2.xpose.msra.mxu0 0.0
        %4104 = vmatprep.mubr.f32.mxu0 0.0
        %4105 = vmatmul.mubr.f32.gmra.mxu0 %v4032
        %v4106 = vpop.f32.mrf.mxu0
        %v4107 = vadd.f32 0.0, %v4106
        %v4108 = vpop.f32.mrf.mxu0
        %4109 = vdwg.mxu0
        %v4110 = vmul.f32 %v4107, 0.35355338
        %v4111 = vsel %vm2016, -1e+09, %v4110
        %v4112 = vsel %vm1640, %v4111, -inf
        %4113 = vmax.xlane.f32.xlu0 %v4112
        %v4114 = vpop.xlane.xlu0 %4113
        %v4115 = vsub.f32 %v4111, %v4114
        %v4116 = vmul.f32 %v4115, 1.442695
        %v4117 = vpow.pop %v4116
        %v4118 = vsel %vm1640, %v4117, 0.0
        %4119 = vadd.xlane.f32.xlu0 %v4118
        %v4120 = vpop.xlane.xlu0 %4119
        %v4121 = vrcp.pop %v4120
        %v4122 = vmul.f32 %v4117, %v4121
        %4123 = vrot.lane.b32.xlu0 %v4023, 96
        %v4124 = vpop.permute.xlu0 %4123
        %4125 = vrot.lane.b32.xlu0 %v4028, 96
        %v4126 = vpop.permute.xlu0 %4125
        %v4130 = vsel %vm1640, %v4122, 0
        %4132 = vmatprep.subr.mxu0 0.0
        %4133 = vmatpush1.msra.mxu0 0.0
        %4134 = vmatprep.subr.mxu0 0.0
        %4135 = vmatpush1.msra.mxu0 0.0
        %4136 = vmatprep.subr.mxu0 0.0
        %4137 = vmatpush1.msra.mxu0 0.0
        %4138 = vmatprep.subr.mxu0 0.0
        %4139 = vmatpush1.msra.mxu0 0.0
        %4140 = vmatprep.subr.mxu0 0.0
        %4141 = vmatpush1.msra.mxu0 0.0
        %4142 = vmatprep.subr.mxu0 0.0
        %4143 = vmatpush1.msra.mxu0 0.0
        %4144 = vmatprep.subr.mxu0 0.0
        %4145 = vmatpush1.msra.mxu0 0.0
        %4146 = vmatprep.subr.mxu0 0.0
        %4147 = vmatpush1.msra.mxu0 0.0
        %4148 = vmatprep.subr.mxu0 0.0
        %4149 = vmatpush1.msra.mxu0 0.0
        %4150 = vmatprep.subr.mxu0 0.0
        %4151 = vmatpush1.msra.mxu0 0.0
        %4152 = vmatprep.subr.mxu0 0.0
        %4153 = vmatpush1.msra.mxu0 0.0
        %4154 = vmatprep.subr.mxu0 0.0
        %4155 = vmatpush1.msra.mxu0 0.0
        %4156 = vmatprep.subr.mxu0 0.0
        %4157 = vmatpush1.msra.mxu0 0.0
        %4158 = vmatprep.subr.mxu0 0.0
        %4159 = vmatpush1.msra.mxu0 0.0
        %4160 = vmatprep.subr.mxu0 0.0
        %4161 = vmatpush1.msra.mxu0 %v4126
        %4162 = vmatprep.subr.mxu0 0.0
        %4163 = vmatpush1.msra.mxu0 %v4124
        %4164 = vmatprep.subr.mxu0 0.0
        %4165 = vmatpush2.msra.mxu0 0.0
        %4166 = vmatprep.subr.mxu0 0.0
        %4167 = vmatpush2.msra.mxu0 0.0
        %4168 = vmatprep.subr.mxu0 0.0
        %4169 = vmatpush2.msra.mxu0 0.0
        %4170 = vmatprep.subr.mxu0 0.0
        %4171 = vmatpush2.msra.mxu0 0.0
        %4172 = vmatprep.subr.mxu0 0.0
        %4173 = vmatpush2.msra.mxu0 0.0
        %4174 = vmatprep.subr.mxu0 0.0
        %4175 = vmatpush2.msra.mxu0 0.0
        %4176 = vmatprep.subr.mxu0 0.0
        %4177 = vmatpush2.msra.mxu0 0.0
        %4178 = vmatprep.subr.mxu0 0.0
        %4179 = vmatpush2.msra.mxu0 0.0
        %4180 = vmatprep.subr.mxu0 0.0
        %4181 = vmatpush2.msra.mxu0 0.0
        %4182 = vmatprep.subr.mxu0 0.0
        %4183 = vmatpush2.msra.mxu0 0.0
        %4184 = vmatprep.subr.mxu0 0.0
        %4185 = vmatpush2.msra.mxu0 0.0
        %4186 = vmatprep.subr.mxu0 0.0
        %4187 = vmatpush2.msra.mxu0 0.0
        %4188 = vmatprep.subr.mxu0 0.0
        %4189 = vmatpush2.msra.mxu0 0.0
        %4190 = vmatprep.subr.mxu0 0.0
        %4191 = vmatpush2.msra.mxu0 0.0
        %4192 = vmatprep.subr.mxu0 0.0
        %4193 = vmatpush2.msra.mxu0 0.0
        %4194 = vmatprep.subr.mxu0 0.0
        %4195 = vmatpush2.msra.mxu0 0.0
        %4196 = vmatprep.mubr.f32.mxu0 0.0
        %4197 = vmatmul.mubr.f32.gmra.mxu0 %v4130
        %v4198 = vpop.f32.mrf.mxu0
        %v4199 = vadd.f32 0.0, %v4198
        %v4200 = vpop.f32.mrf.mxu0
        %4201 = vdwg.mxu0
        %4202 = vrot.lane.b32.xlu0 %v3940, 120
        %v4203 = vpop.permute.xlu0 %4202
        %4204 = vrot.lane.b32.xlu0 %v4023, 120
        %v4205 = vpop.permute.xlu0 %4204
        %4206 = vrot.lane.b32.xlu0 %v4028, 120
        %v4207 = vpop.permute.xlu0 %4206
        %v4208 = vsel %vm961, %v4203, 0
        %v4210 = vsel %vm961, %v4205, 0
        %v4212 = vsel %vm961, %v4207, 0
        %4214 = vmatprep.subr.mxu0 0.0
        %4215 = vmatpush1.xpose.msra.mxu0 0.0
        %4216 = vmatprep.subr.mxu0 0.0
        %4217 = vmatpush1.xpose.msra.mxu0 0.0
        %4218 = vmatprep.subr.mxu0 0.0
        %4219 = vmatpush1.xpose.msra.mxu0 0.0
        %4220 = vmatprep.subr.mxu0 0.0
        %4221 = vmatpush1.xpose.msra.mxu0 0.0
        %4222 = vmatprep.subr.mxu0 0.0
        %4223 = vmatpush1.xpose.msra.mxu0 0.0
        %4224 = vmatprep.subr.mxu0 0.0
        %4225 = vmatpush1.xpose.msra.mxu0 0.0
        %4226 = vmatprep.subr.mxu0 0.0
        %4227 = vmatpush1.xpose.msra.mxu0 0.0
        %4228 = vmatprep.subr.mxu0 0.0
        %4229 = vmatpush1.xpose.msra.mxu0 0.0
        %4230 = vmatprep.subr.mxu0 0.0
        %4231 = vmatpush1.xpose.msra.mxu0 0.0
        %4232 = vmatprep.subr.mxu0 0.0
        %4233 = vmatpush1.xpose.msra.mxu0 0.0
        %4234 = vmatprep.subr.mxu0 0.0
        %4235 = vmatpush1.xpose.msra.mxu0 0.0
        %4236 = vmatprep.subr.mxu0 0.0
        %4237 = vmatpush1.xpose.msra.mxu0 0.0
        %4238 = vmatprep.subr.mxu0 0.0
        %4239 = vmatpush1.xpose.msra.mxu0 0.0
        %4240 = vmatprep.subr.mxu0 0.0
        %4241 = vmatpush1.xpose.msra.mxu0 0.0
        %4242 = vmatprep.subr.mxu0 0.0
        %4243 = vmatpush1.xpose.msra.mxu0 %v4212
        %4244 = vmatprep.subr.mxu0 0.0
        %4245 = vmatpush1.xpose.msra.mxu0 %v4210
        %4246 = vmatprep.subr.mxu0 0.0
        %4247 = vmatpush2.xpose.msra.mxu0 0.0
        %4248 = vmatprep.subr.mxu0 0.0
        %4249 = vmatpush2.xpose.msra.mxu0 0.0
        %4250 = vmatprep.subr.mxu0 0.0
        %4251 = vmatpush2.xpose.msra.mxu0 0.0
        %4252 = vmatprep.subr.mxu0 0.0
        %4253 = vmatpush2.xpose.msra.mxu0 0.0
        %4254 = vmatprep.subr.mxu0 0.0
        %4255 = vmatpush2.xpose.msra.mxu0 0.0
        %4256 = vmatprep.subr.mxu0 0.0
        %4257 = vmatpush2.xpose.msra.mxu0 0.0
        %4258 = vmatprep.subr.mxu0 0.0
        %4259 = vmatpush2.xpose.msra.mxu0 0.0
        %4260 = vmatprep.subr.mxu0 0.0
        %4261 = vmatpush2.xpose.msra.mxu0 0.0
        %4262 = vmatprep.subr.mxu0 0.0
        %4263 = vmatpush2.xpose.msra.mxu0 0.0
        %4264 = vmatprep.subr.mxu0 0.0
        %4265 = vmatpush2.xpose.msra.mxu0 0.0
        %4266 = vmatprep.subr.mxu0 0.0
        %4267 = vmatpush2.xpose.msra.mxu0 0.0
        %4268 = vmatprep.subr.mxu0 0.0
        %4269 = vmatpush2.xpose.msra.mxu0 0.0
        %4270 = vmatprep.subr.mxu0 0.0
        %4271 = vmatpush2.xpose.msra.mxu0 0.0
        %4272 = vmatprep.subr.mxu0 0.0
        %4273 = vmatpush2.xpose.msra.mxu0 0.0
        %4274 = vmatprep.subr.mxu0 0.0
        %4275 = vmatpush2.xpose.msra.mxu0 0.0
        %4276 = vmatprep.subr.mxu0 0.0
        %4277 = vmatpush2.xpose.msra.mxu0 0.0
        %4278 = vmatprep.mubr.f32.mxu0 0.0
        %4279 = vmatmul.mubr.f32.gmra.mxu0 %v4208
        %v4280 = vpop.f32.mrf.mxu0
        %v4281 = vadd.f32 0.0, %v4280
        %v4282 = vpop.f32.mrf.mxu0
        %4283 = vdwg.mxu0
        %v4284 = vmul.f32 %v4281, 0.35355338
        %v4285 = vsel %vm2016, -1e+09, %v4284
        %v4286 = vsel %vm1640, %v4285, -inf
        %4287 = vmax.xlane.f32.xlu0 %v4286
        %v4288 = vpop.xlane.xlu0 %4287
        %v4289 = vsub.f32 %v4285, %v4288
        %v4290 = vmul.f32 %v4289, 1.442695
        %v4291 = vpow.pop %v4290
        %v4292 = vsel %vm1640, %v4291, 0.0
        %4293 = vadd.xlane.f32.xlu0 %v4292
        %v4294 = vpop.xlane.xlu0 %4293
        %v4295 = vrcp.pop %v4294
        %v4296 = vmul.f32 %v4291, %v4295
        %4297 = vrot.lane.b32.xlu0 %v4023, 88
        %v4298 = vpop.permute.xlu0 %4297
        %4299 = vrot.lane.b32.xlu0 %v4028, 88
        %v4300 = vpop.permute.xlu0 %4299
        %v4304 = vsel %vm1640, %v4296, 0
        %4306 = vmatprep.subr.mxu0 0.0
        %4307 = vmatpush1.msra.mxu0 0.0
        %4308 = vmatprep.subr.mxu0 0.0
        %4309 = vmatpush1.msra.mxu0 0.0
        %4310 = vmatprep.subr.mxu0 0.0
        %4311 = vmatpush1.msra.mxu0 0.0
        %4312 = vmatprep.subr.mxu0 0.0
        %4313 = vmatpush1.msra.mxu0 0.0
        %4314 = vmatprep.subr.mxu0 0.0
        %4315 = vmatpush1.msra.mxu0 0.0
        %4316 = vmatprep.subr.mxu0 0.0
        %4317 = vmatpush1.msra.mxu0 0.0
        %4318 = vmatprep.subr.mxu0 0.0
        %4319 = vmatpush1.msra.mxu0 0.0
        %4320 = vmatprep.subr.mxu0 0.0
        %4321 = vmatpush1.msra.mxu0 0.0
        %4322 = vmatprep.subr.mxu0 0.0
        %4323 = vmatpush1.msra.mxu0 0.0
        %4324 = vmatprep.subr.mxu0 0.0
        %4325 = vmatpush1.msra.mxu0 0.0
        %4326 = vmatprep.subr.mxu0 0.0
        %4327 = vmatpush1.msra.mxu0 0.0
        %4328 = vmatprep.subr.mxu0 0.0
        %4329 = vmatpush1.msra.mxu0 0.0
        %4330 = vmatprep.subr.mxu0 0.0
        %4331 = vmatpush1.msra.mxu0 0.0
        %4332 = vmatprep.subr.mxu0 0.0
        %4333 = vmatpush1.msra.mxu0 0.0
        %4334 = vmatprep.subr.mxu0 0.0
        %4335 = vmatpush1.msra.mxu0 %v4300
        %4336 = vmatprep.subr.mxu0 0.0
        %4337 = vmatpush1.msra.mxu0 %v4298
        %4338 = vmatprep.subr.mxu0 0.0
        %4339 = vmatpush2.msra.mxu0 0.0
        %4340 = vmatprep.subr.mxu0 0.0
        %4341 = vmatpush2.msra.mxu0 0.0
        %4342 = vmatprep.subr.mxu0 0.0
        %4343 = vmatpush2.msra.mxu0 0.0
        %4344 = vmatprep.subr.mxu0 0.0
        %4345 = vmatpush2.msra.mxu0 0.0
        %4346 = vmatprep.subr.mxu0 0.0
        %4347 = vmatpush2.msra.mxu0 0.0
        %4348 = vmatprep.subr.mxu0 0.0
        %4349 = vmatpush2.msra.mxu0 0.0
        %4350 = vmatprep.subr.mxu0 0.0
        %4351 = vmatpush2.msra.mxu0 0.0
        %4352 = vmatprep.subr.mxu0 0.0
        %4353 = vmatpush2.msra.mxu0 0.0
        %4354 = vmatprep.subr.mxu0 0.0
        %4355 = vmatpush2.msra.mxu0 0.0
        %4356 = vmatprep.subr.mxu0 0.0
        %4357 = vmatpush2.msra.mxu0 0.0
        %4358 = vmatprep.subr.mxu0 0.0
        %4359 = vmatpush2.msra.mxu0 0.0
        %4360 = vmatprep.subr.mxu0 0.0
        %4361 = vmatpush2.msra.mxu0 0.0
        %4362 = vmatprep.subr.mxu0 0.0
        %4363 = vmatpush2.msra.mxu0 0.0
        %4364 = vmatprep.subr.mxu0 0.0
        %4365 = vmatpush2.msra.mxu0 0.0
        %4366 = vmatprep.subr.mxu0 0.0
        %4367 = vmatpush2.msra.mxu0 0.0
        %4368 = vmatprep.subr.mxu0 0.0
        %4369 = vmatpush2.msra.mxu0 0.0
        %4370 = vmatprep.mubr.f32.mxu0 0.0
        %4371 = vmatmul.mubr.f32.gmra.mxu0 %v4304
        %v4372 = vpop.f32.mrf.mxu0
        %v4373 = vadd.f32 0.0, %v4372
        %v4374 = vpop.f32.mrf.mxu0
        %4375 = vdwg.mxu0
        %4376 = vrot.lane.b32.xlu0 %v3940, 112
        %v4377 = vpop.permute.xlu0 %4376
        %4378 = vrot.lane.b32.xlu0 %v4023, 112
        %v4379 = vpop.permute.xlu0 %4378
        %4380 = vrot.lane.b32.xlu0 %v4028, 112
        %v4381 = vpop.permute.xlu0 %4380
        %v4382 = vsel %vm961, %v4377, 0
        %v4384 = vsel %vm961, %v4379, 0
        %v4386 = vsel %vm961, %v4381, 0
        %4388 = vmatprep.subr.mxu0 0.0
        %4389 = vmatpush1.xpose.msra.mxu0 0.0
        %4390 = vmatprep.subr.mxu0 0.0
        %4391 = vmatpush1.xpose.msra.mxu0 0.0
        %4392 = vmatprep.subr.mxu0 0.0
        %4393 = vmatpush1.xpose.msra.mxu0 0.0
        %4394 = vmatprep.subr.mxu0 0.0
        %4395 = vmatpush1.xpose.msra.mxu0 0.0
        %4396 = vmatprep.subr.mxu0 0.0
        %4397 = vmatpush1.xpose.msra.mxu0 0.0
        %4398 = vmatprep.subr.mxu0 0.0
        %4399 = vmatpush1.xpose.msra.mxu0 0.0
        %4400 = vmatprep.subr.mxu0 0.0
        %4401 = vmatpush1.xpose.msra.mxu0 0.0
        %4402 = vmatprep.subr.mxu0 0.0
        %4403 = vmatpush1.xpose.msra.mxu0 0.0
        %4404 = vmatprep.subr.mxu0 0.0
        %4405 = vmatpush1.xpose.msra.mxu0 0.0
        %4406 = vmatprep.subr.mxu0 0.0
        %4407 = vmatpush1.xpose.msra.mxu0 0.0
        %4408 = vmatprep.subr.mxu0 0.0
        %4409 = vmatpush1.xpose.msra.mxu0 0.0
        %4410 = vmatprep.subr.mxu0 0.0
        %4411 = vmatpush1.xpose.msra.mxu0 0.0
        %4412 = vmatprep.subr.mxu0 0.0
        %4413 = vmatpush1.xpose.msra.mxu0 0.0
        %4414 = vmatprep.subr.mxu0 0.0
        %4415 = vmatpush1.xpose.msra.mxu0 0.0
        %4416 = vmatprep.subr.mxu0 0.0
        %4417 = vmatpush1.xpose.msra.mxu0 %v4386
        %4418 = vmatprep.subr.mxu0 0.0
        %4419 = vmatpush1.xpose.msra.mxu0 %v4384
        %4420 = vmatprep.subr.mxu0 0.0
        %4421 = vmatpush2.xpose.msra.mxu0 0.0
        %4422 = vmatprep.subr.mxu0 0.0
        %4423 = vmatpush2.xpose.msra.mxu0 0.0
        %4424 = vmatprep.subr.mxu0 0.0
        %4425 = vmatpush2.xpose.msra.mxu0 0.0
        %4426 = vmatprep.subr.mxu0 0.0
        %4427 = vmatpush2.xpose.msra.mxu0 0.0
        %4428 = vmatprep.subr.mxu0 0.0
        %4429 = vmatpush2.xpose.msra.mxu0 0.0
        %4430 = vmatprep.subr.mxu0 0.0
        %4431 = vmatpush2.xpose.msra.mxu0 0.0
        %4432 = vmatprep.subr.mxu0 0.0
        %4433 = vmatpush2.xpose.msra.mxu0 0.0
        %4434 = vmatprep.subr.mxu0 0.0
        %4435 = vmatpush2.xpose.msra.mxu0 0.0
        %4436 = vmatprep.subr.mxu0 0.0
        %4437 = vmatpush2.xpose.msra.mxu0 0.0
        %4438 = vmatprep.subr.mxu0 0.0
        %4439 = vmatpush2.xpose.msra.mxu0 0.0
        %4440 = vmatprep.subr.mxu0 0.0
        %4441 = vmatpush2.xpose.msra.mxu0 0.0
        %4442 = vmatprep.subr.mxu0 0.0
        %4443 = vmatpush2.xpose.msra.mxu0 0.0
        %4444 = vmatprep.subr.mxu0 0.0
        %4445 = vmatpush2.xpose.msra.mxu0 0.0
        %4446 = vmatprep.subr.mxu0 0.0
        %4447 = vmatpush2.xpose.msra.mxu0 0.0
        %4448 = vmatprep.subr.mxu0 0.0
        %4449 = vmatpush2.xpose.msra.mxu0 0.0
        %4450 = vmatprep.subr.mxu0 0.0
        %4451 = vmatpush2.xpose.msra.mxu0 0.0
        %4452 = vmatprep.mubr.f32.mxu0 0.0
        %4453 = vmatmul.mubr.f32.gmra.mxu0 %v4382
        %v4454 = vpop.f32.mrf.mxu0
        %v4455 = vadd.f32 0.0, %v4454
        %v4456 = vpop.f32.mrf.mxu0
        %4457 = vdwg.mxu0
        %v4458 = vmul.f32 %v4455, 0.35355338
        %v4459 = vsel %vm2016, -1e+09, %v4458
        %v4460 = vsel %vm1640, %v4459, -inf
        %4461 = vmax.xlane.f32.xlu0 %v4460
        %v4462 = vpop.xlane.xlu0 %4461
        %v4463 = vsub.f32 %v4459, %v4462
        %v4464 = vmul.f32 %v4463, 1.442695
        %v4465 = vpow.pop %v4464
        %v4466 = vsel %vm1640, %v4465, 0.0
        %4467 = vadd.xlane.f32.xlu0 %v4466
        %v4468 = vpop.xlane.xlu0 %4467
        %v4469 = vrcp.pop %v4468
        %v4470 = vmul.f32 %v4465, %v4469
        %4471 = vrot.lane.b32.xlu0 %v4023, 80
        %v4472 = vpop.permute.xlu0 %4471
        %4473 = vrot.lane.b32.xlu0 %v4028, 80
        %v4474 = vpop.permute.xlu0 %4473
        %v4478 = vsel %vm1640, %v4470, 0
        %4480 = vmatprep.subr.mxu0 0.0
        %4481 = vmatpush1.msra.mxu0 0.0
        %4482 = vmatprep.subr.mxu0 0.0
        %4483 = vmatpush1.msra.mxu0 0.0
        %4484 = vmatprep.subr.mxu0 0.0
        %4485 = vmatpush1.msra.mxu0 0.0
        %4486 = vmatprep.subr.mxu0 0.0
        %4487 = vmatpush1.msra.mxu0 0.0
        %4488 = vmatprep.subr.mxu0 0.0
        %4489 = vmatpush1.msra.mxu0 0.0
        %4490 = vmatprep.subr.mxu0 0.0
        %4491 = vmatpush1.msra.mxu0 0.0
        %4492 = vmatprep.subr.mxu0 0.0
        %4493 = vmatpush1.msra.mxu0 0.0
        %4494 = vmatprep.subr.mxu0 0.0
        %4495 = vmatpush1.msra.mxu0 0.0
        %4496 = vmatprep.subr.mxu0 0.0
        %4497 = vmatpush1.msra.mxu0 0.0
        %4498 = vmatprep.subr.mxu0 0.0
        %4499 = vmatpush1.msra.mxu0 0.0
        %4500 = vmatprep.subr.mxu0 0.0
        %4501 = vmatpush1.msra.mxu0 0.0
        %4502 = vmatprep.subr.mxu0 0.0
        %4503 = vmatpush1.msra.mxu0 0.0
        %4504 = vmatprep.subr.mxu0 0.0
        %4505 = vmatpush1.msra.mxu0 0.0
        %4506 = vmatprep.subr.mxu0 0.0
        %4507 = vmatpush1.msra.mxu0 0.0
        %4508 = vmatprep.subr.mxu0 0.0
        %4509 = vmatpush1.msra.mxu0 %v4474
        %4510 = vmatprep.subr.mxu0 0.0
        %4511 = vmatpush1.msra.mxu0 %v4472
        %4512 = vmatprep.subr.mxu0 0.0
        %4513 = vmatpush2.msra.mxu0 0.0
        %4514 = vmatprep.subr.mxu0 0.0
        %4515 = vmatpush2.msra.mxu0 0.0
        %4516 = vmatprep.subr.mxu0 0.0
        %4517 = vmatpush2.msra.mxu0 0.0
        %4518 = vmatprep.subr.mxu0 0.0
        %4519 = vmatpush2.msra.mxu0 0.0
        %4520 = vmatprep.subr.mxu0 0.0
        %4521 = vmatpush2.msra.mxu0 0.0
        %4522 = vmatprep.subr.mxu0 0.0
        %4523 = vmatpush2.msra.mxu0 0.0
        %4524 = vmatprep.subr.mxu0 0.0
        %4525 = vmatpush2.msra.mxu0 0.0
        %4526 = vmatprep.subr.mxu0 0.0
        %4527 = vmatpush2.msra.mxu0 0.0
        %4528 = vmatprep.subr.mxu0 0.0
        %4529 = vmatpush2.msra.mxu0 0.0
        %4530 = vmatprep.subr.mxu0 0.0
        %4531 = vmatpush2.msra.mxu0 0.0
        %4532 = vmatprep.subr.mxu0 0.0
        %4533 = vmatpush2.msra.mxu0 0.0
        %4534 = vmatprep.subr.mxu0 0.0
        %4535 = vmatpush2.msra.mxu0 0.0
        %4536 = vmatprep.subr.mxu0 0.0
        %4537 = vmatpush2.msra.mxu0 0.0
        %4538 = vmatprep.subr.mxu0 0.0
        %4539 = vmatpush2.msra.mxu0 0.0
        %4540 = vmatprep.subr.mxu0 0.0
        %4541 = vmatpush2.msra.mxu0 0.0
        %4542 = vmatprep.subr.mxu0 0.0
        %4543 = vmatpush2.msra.mxu0 0.0
        %4544 = vmatprep.mubr.f32.mxu0 0.0
        %4545 = vmatmul.mubr.f32.gmra.mxu0 %v4478
        %v4546 = vpop.f32.mrf.mxu0
        %v4547 = vadd.f32 0.0, %v4546
        %v4548 = vpop.f32.mrf.mxu0
        %4549 = vdwg.mxu0
        %4550 = vrot.lane.b32.xlu0 %v3940, 104
        %v4551 = vpop.permute.xlu0 %4550
        %4552 = vrot.lane.b32.xlu0 %v4023, 104
        %v4553 = vpop.permute.xlu0 %4552
        %4554 = vrot.lane.b32.xlu0 %v4028, 104
        %v4555 = vpop.permute.xlu0 %4554
        %v4556 = vsel %vm961, %v4551, 0
        %v4558 = vsel %vm961, %v4553, 0
        %v4560 = vsel %vm961, %v4555, 0
        %4562 = vmatprep.subr.mxu0 0.0
        %4563 = vmatpush1.xpose.msra.mxu0 0.0
        %4564 = vmatprep.subr.mxu0 0.0
        %4565 = vmatpush1.xpose.msra.mxu0 0.0
        %4566 = vmatprep.subr.mxu0 0.0
        %4567 = vmatpush1.xpose.msra.mxu0 0.0
        %4568 = vmatprep.subr.mxu0 0.0
        %4569 = vmatpush1.xpose.msra.mxu0 0.0
        %4570 = vmatprep.subr.mxu0 0.0
        %4571 = vmatpush1.xpose.msra.mxu0 0.0
        %4572 = vmatprep.subr.mxu0 0.0
        %4573 = vmatpush1.xpose.msra.mxu0 0.0
        %4574 = vmatprep.subr.mxu0 0.0
        %4575 = vmatpush1.xpose.msra.mxu0 0.0
        %4576 = vmatprep.subr.mxu0 0.0
        %4577 = vmatpush1.xpose.msra.mxu0 0.0
        %4578 = vmatprep.subr.mxu0 0.0
        %4579 = vmatpush1.xpose.msra.mxu0 0.0
        %4580 = vmatprep.subr.mxu0 0.0
        %4581 = vmatpush1.xpose.msra.mxu0 0.0
        %4582 = vmatprep.subr.mxu0 0.0
        %4583 = vmatpush1.xpose.msra.mxu0 0.0
        %4584 = vmatprep.subr.mxu0 0.0
        %4585 = vmatpush1.xpose.msra.mxu0 0.0
        %4586 = vmatprep.subr.mxu0 0.0
        %4587 = vmatpush1.xpose.msra.mxu0 0.0
        %4588 = vmatprep.subr.mxu0 0.0
        %4589 = vmatpush1.xpose.msra.mxu0 0.0
        %4590 = vmatprep.subr.mxu0 0.0
        %4591 = vmatpush1.xpose.msra.mxu0 %v4560
        %4592 = vmatprep.subr.mxu0 0.0
        %4593 = vmatpush1.xpose.msra.mxu0 %v4558
        %4594 = vmatprep.subr.mxu0 0.0
        %4595 = vmatpush2.xpose.msra.mxu0 0.0
        %4596 = vmatprep.subr.mxu0 0.0
        %4597 = vmatpush2.xpose.msra.mxu0 0.0
        %4598 = vmatprep.subr.mxu0 0.0
        %4599 = vmatpush2.xpose.msra.mxu0 0.0
        %4600 = vmatprep.subr.mxu0 0.0
        %4601 = vmatpush2.xpose.msra.mxu0 0.0
        %4602 = vmatprep.subr.mxu0 0.0
        %4603 = vmatpush2.xpose.msra.mxu0 0.0
        %4604 = vmatprep.subr.mxu0 0.0
        %4605 = vmatpush2.xpose.msra.mxu0 0.0
        %4606 = vmatprep.subr.mxu0 0.0
        %4607 = vmatpush2.xpose.msra.mxu0 0.0
        %4608 = vmatprep.subr.mxu0 0.0
        %4609 = vmatpush2.xpose.msra.mxu0 0.0
        %4610 = vmatprep.subr.mxu0 0.0
        %4611 = vmatpush2.xpose.msra.mxu0 0.0
        %4612 = vmatprep.subr.mxu0 0.0
        %4613 = vmatpush2.xpose.msra.mxu0 0.0
        %4614 = vmatprep.subr.mxu0 0.0
        %4615 = vmatpush2.xpose.msra.mxu0 0.0
        %4616 = vmatprep.subr.mxu0 0.0
        %4617 = vmatpush2.xpose.msra.mxu0 0.0
        %4618 = vmatprep.subr.mxu0 0.0
        %4619 = vmatpush2.xpose.msra.mxu0 0.0
        %4620 = vmatprep.subr.mxu0 0.0
        %4621 = vmatpush2.xpose.msra.mxu0 0.0
        %4622 = vmatprep.subr.mxu0 0.0
        %4623 = vmatpush2.xpose.msra.mxu0 0.0
        %4624 = vmatprep.subr.mxu0 0.0
        %4625 = vmatpush2.xpose.msra.mxu0 0.0
        %4626 = vmatprep.mubr.f32.mxu0 0.0
        %4627 = vmatmul.mubr.f32.gmra.mxu0 %v4556
        %v4628 = vpop.f32.mrf.mxu0
        %v4629 = vadd.f32 0.0, %v4628
        %v4630 = vpop.f32.mrf.mxu0
        %4631 = vdwg.mxu0
        %v4632 = vmul.f32 %v4629, 0.35355338
        %v4633 = vsel %vm2016, -1e+09, %v4632
        %v4634 = vsel %vm1640, %v4633, -inf
        %4635 = vmax.xlane.f32.xlu0 %v4634
        %v4636 = vpop.xlane.xlu0 %4635
        %v4637 = vsub.f32 %v4633, %v4636
        %v4638 = vmul.f32 %v4637, 1.442695
        %v4639 = vpow.pop %v4638
        %v4640 = vsel %vm1640, %v4639, 0.0
        %4641 = vadd.xlane.f32.xlu0 %v4640
        %v4642 = vpop.xlane.xlu0 %4641
        %v4643 = vrcp.pop %v4642
        %v4644 = vmul.f32 %v4639, %v4643
        %4645 = vrot.lane.b32.xlu0 %v4023, 72
        %v4646 = vpop.permute.xlu0 %4645
        %4647 = vrot.lane.b32.xlu0 %v4028, 72
        %v4648 = vpop.permute.xlu0 %4647
        %v4652 = vsel %vm1640, %v4644, 0
        %4654 = vmatprep.subr.mxu0 0.0
        %4655 = vmatpush1.msra.mxu0 0.0
        %4656 = vmatprep.subr.mxu0 0.0
        %4657 = vmatpush1.msra.mxu0 0.0
        %4658 = vmatprep.subr.mxu0 0.0
        %4659 = vmatpush1.msra.mxu0 0.0
        %4660 = vmatprep.subr.mxu0 0.0
        %4661 = vmatpush1.msra.mxu0 0.0
        %4662 = vmatprep.subr.mxu0 0.0
        %4663 = vmatpush1.msra.mxu0 0.0
        %4664 = vmatprep.subr.mxu0 0.0
        %4665 = vmatpush1.msra.mxu0 0.0
        %4666 = vmatprep.subr.mxu0 0.0
        %4667 = vmatpush1.msra.mxu0 0.0
        %4668 = vmatprep.subr.mxu0 0.0
        %4669 = vmatpush1.msra.mxu0 0.0
        %4670 = vmatprep.subr.mxu0 0.0
        %4671 = vmatpush1.msra.mxu0 0.0
        %4672 = vmatprep.subr.mxu0 0.0
        %4673 = vmatpush1.msra.mxu0 0.0
        %4674 = vmatprep.subr.mxu0 0.0
        %4675 = vmatpush1.msra.mxu0 0.0
        %4676 = vmatprep.subr.mxu0 0.0
        %4677 = vmatpush1.msra.mxu0 0.0
        %4678 = vmatprep.subr.mxu0 0.0
        %4679 = vmatpush1.msra.mxu0 0.0
        %4680 = vmatprep.subr.mxu0 0.0
        %4681 = vmatpush1.msra.mxu0 0.0
        %4682 = vmatprep.subr.mxu0 0.0
        %4683 = vmatpush1.msra.mxu0 %v4648
        %4684 = vmatprep.subr.mxu0 0.0
        %4685 = vmatpush1.msra.mxu0 %v4646
        %4686 = vmatprep.subr.mxu0 0.0
        %4687 = vmatpush2.msra.mxu0 0.0
        %4688 = vmatprep.subr.mxu0 0.0
        %4689 = vmatpush2.msra.mxu0 0.0
        %4690 = vmatprep.subr.mxu0 0.0
        %4691 = vmatpush2.msra.mxu0 0.0
        %4692 = vmatprep.subr.mxu0 0.0
        %4693 = vmatpush2.msra.mxu0 0.0
        %4694 = vmatprep.subr.mxu0 0.0
        %4695 = vmatpush2.msra.mxu0 0.0
        %4696 = vmatprep.subr.mxu0 0.0
        %4697 = vmatpush2.msra.mxu0 0.0
        %4698 = vmatprep.subr.mxu0 0.0
        %4699 = vmatpush2.msra.mxu0 0.0
        %4700 = vmatprep.subr.mxu0 0.0
        %4701 = vmatpush2.msra.mxu0 0.0
        %4702 = vmatprep.subr.mxu0 0.0
        %4703 = vmatpush2.msra.mxu0 0.0
        %4704 = vmatprep.subr.mxu0 0.0
        %4705 = vmatpush2.msra.mxu0 0.0
        %4706 = vmatprep.subr.mxu0 0.0
        %4707 = vmatpush2.msra.mxu0 0.0
        %4708 = vmatprep.subr.mxu0 0.0
        %4709 = vmatpush2.msra.mxu0 0.0
        %4710 = vmatprep.subr.mxu0 0.0
        %4711 = vmatpush2.msra.mxu0 0.0
        %4712 = vmatprep.subr.mxu0 0.0
        %4713 = vmatpush2.msra.mxu0 0.0
        %4714 = vmatprep.subr.mxu0 0.0
        %4715 = vmatpush2.msra.mxu0 0.0
        %4716 = vmatprep.subr.mxu0 0.0
        %4717 = vmatpush2.msra.mxu0 0.0
        %4718 = vmatprep.mubr.f32.mxu0 0.0
        %4719 = vmatmul.mubr.f32.gmra.mxu0 %v4652
        %v4720 = vpop.f32.mrf.mxu0
        %v4721 = vadd.f32 0.0, %v4720
        %v4722 = vpop.f32.mrf.mxu0
        %4723 = vdwg.mxu0
        %4725 = vrot.lane.b32.xlu0 %v4373, 8
        %v4726 = vpop.permute.xlu0 %4725
        %4729 = vrot.lane.b32.xlu0 %v4547, 16
        %v4730 = vpop.permute.xlu0 %4729
        %4733 = vrot.lane.b32.xlu0 %v4721, 24
        %v4734 = vpop.permute.xlu0 %4733
        %v4736 = vsel %vm961, %v4199, %v4726
        %v4737 = vsel %vm1640, %v4736, %v4730
        %v4738 = vsel %vm1642, %v4737, %v4734
        %s4739 = scalar_lea.vmem [#allocation10], 32
        %v4740 = vld [vmem:[%s4739] sm:$0xff]
        %v4741 = vld [vmem:[%s4739 + $0x8] sm:$0xff]
        %v4742 = vld [vmem:[%s4739 + $0x10] sm:$0xff]
        %v4743 = vld [vmem:[%s4739 + $0x18] sm:$0xff]
        %v4745 = vsel %vm841, %v4738, 0
        %4747 = vmatprep.subr.mxu0 0.0
        %4748 = vmatpush1.msra.mxu0 0.0
        %4749 = vmatprep.subr.mxu0 0.0
        %4750 = vmatpush1.msra.mxu0 0.0
        %4751 = vmatprep.subr.mxu0 0.0
        %4752 = vmatpush1.msra.mxu0 0.0
        %4753 = vmatprep.subr.mxu0 0.0
        %4754 = vmatpush1.msra.mxu0 0.0
        %4755 = vmatprep.subr.mxu0 0.0
        %4756 = vmatpush1.msra.mxu0 0.0
        %4757 = vmatprep.subr.mxu0 0.0
        %4758 = vmatpush1.msra.mxu0 0.0
        %4759 = vmatprep.subr.mxu0 0.0
        %4760 = vmatpush1.msra.mxu0 0.0
        %4761 = vmatprep.subr.mxu0 0.0
        %4762 = vmatpush1.msra.mxu0 0.0
        %4763 = vmatprep.subr.mxu0 0.0
        %4764 = vmatpush1.msra.mxu0 0.0
        %4765 = vmatprep.subr.mxu0 0.0
        %4766 = vmatpush1.msra.mxu0 0.0
        %4767 = vmatprep.subr.mxu0 0.0
        %4768 = vmatpush1.msra.mxu0 0.0
        %4769 = vmatprep.subr.mxu0 0.0
        %4770 = vmatpush1.msra.mxu0 0.0
        %4771 = vmatprep.subr.mxu0 0.0
        %4772 = vmatpush1.msra.mxu0 %v4743
        %4773 = vmatprep.subr.mxu0 0.0
        %4774 = vmatpush1.msra.mxu0 %v4742
        %4775 = vmatprep.subr.mxu0 0.0
        %4776 = vmatpush1.msra.mxu0 %v4741
        %4777 = vmatprep.subr.mxu0 0.0
        %4778 = vmatpush1.msra.mxu0 %v4740
        %4779 = vmatprep.subr.mxu0 0.0
        %4780 = vmatpush2.msra.mxu0 0.0
        %4781 = vmatprep.subr.mxu0 0.0
        %4782 = vmatpush2.msra.mxu0 0.0
        %4783 = vmatprep.subr.mxu0 0.0
        %4784 = vmatpush2.msra.mxu0 0.0
        %4785 = vmatprep.subr.mxu0 0.0
        %4786 = vmatpush2.msra.mxu0 0.0
        %4787 = vmatprep.subr.mxu0 0.0
        %4788 = vmatpush2.msra.mxu0 0.0
        %4789 = vmatprep.subr.mxu0 0.0
        %4790 = vmatpush2.msra.mxu0 0.0
        %4791 = vmatprep.subr.mxu0 0.0
        %4792 = vmatpush2.msra.mxu0 0.0
        %4793 = vmatprep.subr.mxu0 0.0
        %4794 = vmatpush2.msra.mxu0 0.0
        %4795 = vmatprep.subr.mxu0 0.0
        %4796 = vmatpush2.msra.mxu0 0.0
        %4797 = vmatprep.subr.mxu0 0.0
        %4798 = vmatpush2.msra.mxu0 0.0
        %4799 = vmatprep.subr.mxu0 0.0
        %4800 = vmatpush2.msra.mxu0 0.0
        %4801 = vmatprep.subr.mxu0 0.0
        %4802 = vmatpush2.msra.mxu0 0.0
        %4803 = vmatprep.subr.mxu0 0.0
        %4804 = vmatpush2.msra.mxu0 0.0
        %4805 = vmatprep.subr.mxu0 0.0
        %4806 = vmatpush2.msra.mxu0 0.0
        %4807 = vmatprep.subr.mxu0 0.0
        %4808 = vmatpush2.msra.mxu0 0.0
        %4809 = vmatprep.subr.mxu0 0.0
        %4810 = vmatpush2.msra.mxu0 0.0
        %4811 = vmatprep.mubr.f32.mxu0 0.0
        %4812 = vmatmul.mubr.f32.gmra.mxu0 %v4745
        %v4813 = vpop.f32.mrf.mxu0
        %v4814 = vadd.f32 0.0, %v4813
        %v4815 = vpop.f32.mrf.mxu0
        %4816 = vdwg.mxu0
        %v4817 = vadd.f32 %v3826, %v4814
        %s4818 = scalar_lea.vmem %s13, 1
        %v4819 = vld [vmem:[%s4818] sm:$0x1]
        %v4821 = vlaneseq
        %v4822 = vshrl.u32 %v4821, 7
        %v4823 = vsub.s32 0, %v4822
        %v4824 = vrot.slane %v4819, %v4823
        %v4826 = vadd.f32 %v4817, %v4824
        %v4827 = vsel %vm841, %v4826, 0.0
        %4828 = vadd.xlane.f32.xlu0 %v4827
        %v4829 = vpop.xlane.xlu0 %4828
        %v4830 = vmul.f32 %v4829, %v845
        %v4831 = vsub.f32 %v4826, %v4830
        %v4832 = vmul.f32 %v4831, %v4831
        %v4833 = vsel %vm841, %v4832, 0.0
        %4834 = vadd.xlane.f32.xlu0 %v4833
        %v4835 = vpop.xlane.xlu0 %4834
        %v4836 = vmul.f32 %v4835, %v852
        %v4837 = vrsqrt.pop %v4836
        %v4838 = vmul.f32 %v4836, %v4837
        %vm4839 = vcmp.eq.f32.partialorder %v4836, inf
        %v4840 = vsel %vm4839, %v4836, %v4838
        %vm4841 = vcmp.eq.f32.partialorder %v4836, 0.0
        %v4842 = vand.u32 %v4836, 2147483648
        %v4843 = vsel %vm4841, %v4842, %v4840
        %v4844 = vlaneseq
        %v4845 = vshrl.u32 %v4844, 7
        %v4846 = vsub.s32 2, %v4845
        %v4847 = vrot.slane %v2938, %v4846
        %v4848 = vmul.f32 %v4847, %v4831
        %v4849 = vadd.f32 %v4843, 1e-06
        %v4850 = vrcp.pop %v4849
        %v4851 = vmul.f32 %v4848, %v4850
        %v4852 = vlaneseq
        %v4853 = vshrl.u32 %v4852, 7
        %v4854 = vsub.s32 2, %v4853
        %v4855 = vrot.slane %v2940, %v4854
        %v4856 = vadd.f32 %v4851, %v4855
        %s4857 = scalar_lea.vmem [#allocation11], 32
        %v4858 = vld [vmem:[%s4857] sm:$0xff]
        %v4859 = vld [vmem:[%s4857 + $0x8] sm:$0xff]
        %v4860 = vld [vmem:[%s4857 + $0x10] sm:$0xff]
        %v4861 = vld [vmem:[%s4857 + $0x18] sm:$0xff]
        %s4862 = scalar_lea.vmem %s15, 1
        %v4863 = vld [vmem:[%s4862] sm:$0x1]
        %v4865 = vlaneseq
        %v4866 = vshrl.u32 %v4865, 7
        %v4867 = vsub.s32 0, %v4866
        %v4868 = vrot.slane %v4863, %v4867
        %v4871 = vsel %vm841, %v4856, 0
        %4873 = vmatprep.subr.mxu0 0.0
        %4874 = vmatpush1.msra.mxu0 0.0
        %4875 = vmatprep.subr.mxu0 0.0
        %4876 = vmatpush1.msra.mxu0 0.0
        %4877 = vmatprep.subr.mxu0 0.0
        %4878 = vmatpush1.msra.mxu0 0.0
        %4879 = vmatprep.subr.mxu0 0.0
        %4880 = vmatpush1.msra.mxu0 0.0
        %4881 = vmatprep.subr.mxu0 0.0
        %4882 = vmatpush1.msra.mxu0 0.0
        %4883 = vmatprep.subr.mxu0 0.0
        %4884 = vmatpush1.msra.mxu0 0.0
        %4885 = vmatprep.subr.mxu0 0.0
        %4886 = vmatpush1.msra.mxu0 0.0
        %4887 = vmatprep.subr.mxu0 0.0
        %4888 = vmatpush1.msra.mxu0 0.0
        %4889 = vmatprep.subr.mxu0 0.0
        %4890 = vmatpush1.msra.mxu0 0.0
        %4891 = vmatprep.subr.mxu0 0.0
        %4892 = vmatpush1.msra.mxu0 0.0
        %4893 = vmatprep.subr.mxu0 0.0
        %4894 = vmatpush1.msra.mxu0 0.0
        %4895 = vmatprep.subr.mxu0 0.0
        %4896 = vmatpush1.msra.mxu0 0.0
        %4897 = vmatprep.subr.mxu0 0.0
        %4898 = vmatpush1.msra.mxu0 %v4861
        %4899 = vmatprep.subr.mxu0 0.0
        %4900 = vmatpush1.msra.mxu0 %v4860
        %4901 = vmatprep.subr.mxu0 0.0
        %4902 = vmatpush1.msra.mxu0 %v4859
        %4903 = vmatprep.subr.mxu0 0.0
        %4904 = vmatpush1.msra.mxu0 %v4858
        %4905 = vmatprep.subr.mxu0 0.0
        %4906 = vmatpush2.msra.mxu0 0.0
        %4907 = vmatprep.subr.mxu0 0.0
        %4908 = vmatpush2.msra.mxu0 0.0
        %4909 = vmatprep.subr.mxu0 0.0
        %4910 = vmatpush2.msra.mxu0 0.0
        %4911 = vmatprep.subr.mxu0 0.0
        %4912 = vmatpush2.msra.mxu0 0.0
        %4913 = vmatprep.subr.mxu0 0.0
        %4914 = vmatpush2.msra.mxu0 0.0
        %4915 = vmatprep.subr.mxu0 0.0
        %4916 = vmatpush2.msra.mxu0 0.0
        %4917 = vmatprep.subr.mxu0 0.0
        %4918 = vmatpush2.msra.mxu0 0.0
        %4919 = vmatprep.subr.mxu0 0.0
        %4920 = vmatpush2.msra.mxu0 0.0
        %4921 = vmatprep.subr.mxu0 0.0
        %4922 = vmatpush2.msra.mxu0 0.0
        %4923 = vmatprep.subr.mxu0 0.0
        %4924 = vmatpush2.msra.mxu0 0.0
        %4925 = vmatprep.subr.mxu0 0.0
        %4926 = vmatpush2.msra.mxu0 0.0
        %4927 = vmatprep.subr.mxu0 0.0
        %4928 = vmatpush2.msra.mxu0 0.0
        %4929 = vmatprep.subr.mxu0 0.0
        %4930 = vmatpush2.msra.mxu0 0.0
        %4931 = vmatprep.subr.mxu0 0.0
        %4932 = vmatpush2.msra.mxu0 0.0
        %4933 = vmatprep.subr.mxu0 0.0
        %4934 = vmatpush2.msra.mxu0 0.0
        %4935 = vmatprep.subr.mxu0 0.0
        %4936 = vmatpush2.msra.mxu0 0.0
        %4937 = vmatprep.mubr.f32.mxu0 0.0
        %4938 = vmatmul.mubr.f32.gmra.mxu0 %v4871
        %v4939 = vpop.f32.mrf.mxu0
        %v4940 = vadd.f32 %v4868, %v4939
        %v4941 = vpop.f32.mrf.mxu0
        %4942 = vdwg.mxu0
        %v4943 = vmax.f32 %v4940, 0.0
        %s4944 = scalar_lea.vmem %s16, 64
        %v4945 = vld [vmem:[%s4944] sm:$0xff]
        %v4946 = vld [vmem:[%s4944 + $0x8] sm:$0xff]
        %v4947 = vld [vmem:[%s4944 + $0x10] sm:$0xff]
        %v4948 = vld [vmem:[%s4944 + $0x18] sm:$0xff]
        %v4949 = vld [vmem:[%s4944 + $0x20] sm:$0xff]
        %v4950 = vld [vmem:[%s4944 + $0x28] sm:$0xff]
        %v4951 = vld [vmem:[%s4944 + $0x30] sm:$0xff]
        %v4952 = vld [vmem:[%s4944 + $0x38] sm:$0xff]
        %v4954 = vsel %vm2854, %v4943, 0
        %4956 = vmatprep.subr.mxu0 0.0
        %4957 = vmatpush1.msra.mxu0 0.0
        %4958 = vmatprep.subr.mxu0 0.0
        %4959 = vmatpush1.msra.mxu0 0.0
        %4960 = vmatprep.subr.mxu0 0.0
        %4961 = vmatpush1.msra.mxu0 0.0
        %4962 = vmatprep.subr.mxu0 0.0
        %4963 = vmatpush1.msra.mxu0 0.0
        %4964 = vmatprep.subr.mxu0 0.0
        %4965 = vmatpush1.msra.mxu0 0.0
        %4966 = vmatprep.subr.mxu0 0.0
        %4967 = vmatpush1.msra.mxu0 0.0
        %4968 = vmatprep.subr.mxu0 0.0
        %4969 = vmatpush1.msra.mxu0 0.0
        %4970 = vmatprep.subr.mxu0 0.0
        %4971 = vmatpush1.msra.mxu0 0.0
        %4972 = vmatprep.subr.mxu0 0.0
        %4973 = vmatpush1.msra.mxu0 %v4952
        %4974 = vmatprep.subr.mxu0 0.0
        %4975 = vmatpush1.msra.mxu0 %v4951
        %4976 = vmatprep.subr.mxu0 0.0
        %4977 = vmatpush1.msra.mxu0 %v4950
        %4978 = vmatprep.subr.mxu0 0.0
        %4979 = vmatpush1.msra.mxu0 %v4949
        %4980 = vmatprep.subr.mxu0 0.0
        %4981 = vmatpush1.msra.mxu0 %v4948
        %4982 = vmatprep.subr.mxu0 0.0
        %4983 = vmatpush1.msra.mxu0 %v4947
        %4984 = vmatprep.subr.mxu0 0.0
        %4985 = vmatpush1.msra.mxu0 %v4946
        %4986 = vmatprep.subr.mxu0 0.0
        %4987 = vmatpush1.msra.mxu0 %v4945
        %4988 = vmatprep.subr.mxu0 0.0
        %4989 = vmatpush2.msra.mxu0 0.0
        %4990 = vmatprep.subr.mxu0 0.0
        %4991 = vmatpush2.msra.mxu0 0.0
        %4992 = vmatprep.subr.mxu0 0.0
        %4993 = vmatpush2.msra.mxu0 0.0
        %4994 = vmatprep.subr.mxu0 0.0
        %4995 = vmatpush2.msra.mxu0 0.0
        %4996 = vmatprep.subr.mxu0 0.0
        %4997 = vmatpush2.msra.mxu0 0.0
        %4998 = vmatprep.subr.mxu0 0.0
        %4999 = vmatpush2.msra.mxu0 0.0
        %5000 = vmatprep.subr.mxu0 0.0
        %5001 = vmatpush2.msra.mxu0 0.0
        %5002 = vmatprep.subr.mxu0 0.0
        %5003 = vmatpush2.msra.mxu0 0.0
        %5004 = vmatprep.subr.mxu0 0.0
        %5005 = vmatpush2.msra.mxu0 0.0
        %5006 = vmatprep.subr.mxu0 0.0
        %5007 = vmatpush2.msra.mxu0 0.0
        %5008 = vmatprep.subr.mxu0 0.0
        %5009 = vmatpush2.msra.mxu0 0.0
        %5010 = vmatprep.subr.mxu0 0.0
        %5011 = vmatpush2.msra.mxu0 0.0
        %5012 = vmatprep.subr.mxu0 0.0
        %5013 = vmatpush2.msra.mxu0 0.0
        %5014 = vmatprep.subr.mxu0 0.0
        %5015 = vmatpush2.msra.mxu0 0.0
        %5016 = vmatprep.subr.mxu0 0.0
        %5017 = vmatpush2.msra.mxu0 0.0
        %5018 = vmatprep.subr.mxu0 0.0
        %5019 = vmatpush2.msra.mxu0 0.0
        %5020 = vmatprep.mubr.f32.mxu0 0.0
        %5021 = vmatmul.mubr.f32.gmra.mxu0 %v4954
        %v5022 = vpop.f32.mrf.mxu0
        %v5023 = vadd.f32 0.0, %v5022
        %v5024 = vpop.f32.mrf.mxu0
        %5025 = vdwg.mxu0
        %v5026 = vadd.f32 %v4826, %v5023
        %s5027 = scalar_lea.vmem %s17, 1
        %v5028 = vld [vmem:[%s5027] sm:$0x1]
        %v5030 = vlaneseq
        %v5031 = vshrl.u32 %v5030, 7
        %v5032 = vsub.s32 0, %v5031
        %v5033 = vrot.slane %v5028, %v5032
        %v5035 = vadd.f32 %v5026, %v5033
        %v5036 = vld [vmem:[%s20] sm:$0x1]
        %v5037 = vld [vmem:[%s21] sm:$0x1]
        %v5038 = vsel %vm841, %v5035, 0.0
        %5039 = vadd.xlane.f32.xlu0 %v5038
        %v5040 = vpop.xlane.xlu0 %5039
        %v5041 = vmul.f32 %v5040, %v845
        %v5042 = vsub.f32 %v5035, %v5041
        %v5043 = vmul.f32 %v5042, %v5042
        %v5044 = vsel %vm841, %v5043, 0.0
        %5045 = vadd.xlane.f32.xlu0 %v5044
        %v5046 = vpop.xlane.xlu0 %5045
        %v5047 = vmul.f32 %v5046, %v852
        %v5048 = vrsqrt.pop %v5047
        %v5049 = vmul.f32 %v5047, %v5048
        %vm5050 = vcmp.eq.f32.partialorder %v5047, inf
        %v5051 = vsel %vm5050, %v5047, %v5049
        %vm5052 = vcmp.eq.f32.partialorder %v5047, 0.0
        %v5053 = vand.u32 %v5047, 2147483648
        %v5054 = vsel %vm5052, %v5053, %v5051
        %v5056 = vlaneseq
        %v5057 = vshrl.u32 %v5056, 7
        %v5058 = vsub.s32 0, %v5057
        %v5059 = vrot.slane %v5036, %v5058
        %v5061 = vmul.f32 %v5059, %v5042
        %v5062 = vadd.f32 %v5054, 1e-06
        %v5063 = vrcp.pop %v5062
        %v5064 = vmul.f32 %v5061, %v5063
        %v5066 = vlaneseq
        %v5067 = vshrl.u32 %v5066, 7
        %v5068 = vsub.s32 0, %v5067
        %v5069 = vrot.slane %v5037, %v5068
        %v5071 = vadd.f32 %v5064, %v5069
        %5072 = vst.msk [vmem:[%s829] sm:$0xff] %vm841, %v5071
        %s5073 = sand.u32 %s534, 1
        %s5074 = scalar_lea.sflag [#allocation4], %s5073
        %s5075 = sand.u32 %s534, 1
        %s5076 = smul.addr %s5075, 8
        %s5077 = scalar_lea.vmem [#allocation13], %s5076
        // Predicated region
        $region133: #{tpu_custom_call.1} parent=107 // pred_check
          %p5078 = pneg %p544
        $region134: #{tpu_custom_call.1} parent=107 // pred_check_branch
          %5080 = sbr.rel (%p5078) target = $region136
        $region135: #{tpu_custom_call.1} parent=107 // pred_region
          %s5082 = ssub.s32 128, 128
          %5083 = vsyncadd %s5074, %s5082
          %s5084 = smul.addr %s44, 128
          %s5085 = scalar_lea.hbm %s22, %s5084
          %s5087 = sshll.u32 %s5077, 4
          %s5088 = int_to_ptr.vmem [resolvable:$true] %s5087
          %5090 = dma.vmem_to_hbm [thread:$0]  %s5088, 128, %s5085, %s5074
        $region136: #{tpu_custom_call.1} parent=107 // pred_fallthru
          _
      $region108: #{tpu_custom_call.1} parent=5 // pred_fallthru
        _
      %p5091 = scmp.le.s32.totalorder 2, %s39
      // Predicated region
      $region137: #{tpu_custom_call.1} parent=5 // pred_check
        %p5092 = pneg %p5091
      $region138: #{tpu_custom_call.1} parent=5 // pred_check_branch
        %5094 = sbr.rel (%p5092) target = $region140
      $region139: #{tpu_custom_call.1} parent=5 // pred_region
        %s5095 = ssub.s32 %s39, 2
        // Predicated region
        $region141: #{tpu_custom_call.1} parent=139 // pred_check
          %p5096 = pneg %p550
        $region142: #{tpu_custom_call.1} parent=139 // pred_check_branch
          %5098 = sbr.rel (%p5096) target = $region144
        $region143: #{tpu_custom_call.1} parent=139 // pred_region
          %s5099 = sand.u32 %s535, 1
          %s5100 = scalar_lea.sflag [#allocation4], %s5099
          %s5101 = sand.u32 %s535, 1
          %s5102 = smul.addr %s5101, 8
          %s5103 = scalar_lea.vmem [#allocation13], %s5102
          %5104 = dma.done %s5100, 128
        $region144: #{tpu_custom_call.1} parent=139 // pred_fallthru
          _
      $region140: #{tpu_custom_call.1} parent=5 // pred_fallthru
        _
    $region6: #{tpu_custom_call.1} parent=1 // loop_footer
      %s43 = sadd.s32 1, %s39
    $region7: #{tpu_custom_call.1} parent=1 // loop_footer_branch
      %38 = sbr.rel target = $region3
    $region8: #{tpu_custom_call.1} parent=1 // loop_exit
      _
    %5105 = vsyncpa [#allocation3], 1
    %s5106 = scalar_lea.sflag [#allocation3], 1
    %5107 = vsyncpa %s5106, 1
    %5108 = vsyncpa [#allocation6], 1
    %s5109 = scalar_lea.sflag [#allocation6], 1
    %5110 = vsyncpa %s5109, 1
    %5111 = vsyncpa [#allocation9], 1
    %5112 = vsyncpa [#allocation12], 1
    %5113 = vsyncpa [#allocation4], 1
    %s5114 = scalar_lea.sflag [#allocation4], 1
    %5115 = vsyncpa %s5114, 1

</llo_original>
